<compile_context>
chip_gen: v5e
topology: v5e:2x2
jax: 0.10.0
libtpu: 0.0.40
codegen_flags: <defaults>
</compile_context>

<pallas_src>
import functools

import jax
import jax.numpy as jnp
from jax.experimental import pallas as pl
from jax.experimental.pallas import tpu as pltpu

BN_EPS = 1e-5


# ---------------------------------------------------------------------------
# Pallas kernels: fused matmul(s) + epilogue.  Whole output resident in VMEM,
# so batch statistics are computed in the epilogue (training-mode BatchNorm,
# biased variance, eps=1e-5, matching nn.BatchNorm2d defaults).
# ---------------------------------------------------------------------------
def _mm_grouped_bn_relu_kernel(a_ref, b_ref, gamma_ref, beta_ref, o_ref, *,
                               groups, ch):
    """out = relu(batchnorm(a @ b)).

    Columns of (a @ b) are `groups` blocks of `ch` channels (position-major /
    channel-minor); BN statistics aggregate over all rows and all groups.
    """
    y = jnp.dot(a_ref[...], b_ref[...], preferred_element_type=jnp.float32)
    m = y.shape[0]
    inv_n = 1.0 / float(groups * m)
    col_s = jnp.sum(y, axis=0, keepdims=True)          # (1, groups*ch)
    col_q = jnp.sum(y * y, axis=0, keepdims=True)      # (1, groups*ch)
    s = col_s[:, 0:ch]
    q = col_q[:, 0:ch]
    for g in range(1, groups):                         # static unroll (tiny)
        s = s + col_s[:, g * ch:(g + 1) * ch]
        q = q + col_q[:, g * ch:(g + 1) * ch]
    mean = s * inv_n
    var = jnp.maximum(q * inv_n - mean * mean, 0.0)    # guard vs cancellation
    scale = jax.lax.rsqrt(var + BN_EPS) * gamma_ref[...]    # (1, ch)
    shift = beta_ref[...] - mean * scale                     # (1, ch)
    scale_f = jnp.concatenate([scale] * groups, axis=1)      # (1, groups*ch)
    shift_f = jnp.concatenate([shift] * groups, axis=1)
    o_ref[...] = jnp.maximum(y * scale_f + shift_f, 0.0).astype(o_ref.dtype)


def _mm4_bn_relu_kernel(a0_ref, a1_ref, a2_ref, a3_ref,
                        w0_ref, w1_ref, w2_ref, w3_ref,
                        gamma_ref, beta_ref, o_ref, *, co):
    """Four per-phase matmuls (structural zeros of the stride-2 ConvTranspose
    already stripped) sharing one BatchNorm(+ReLU) epilogue; phase p lands in
    output lane block [p*co, (p+1)*co)."""
    a_refs = (a0_ref, a1_ref, a2_ref, a3_ref)
    w_refs = (w0_ref, w1_ref, w2_ref, w3_ref)
    ys = [jnp.dot(a_refs[p][...], w_refs[p][...],
                  preferred_element_type=jnp.float32) for p in range(4)]
    m = ys[0].shape[0]
    inv_n = 1.0 / float(4 * m)                          # BN count = B*(2H)*(2W)
    s = jnp.zeros((1, co), jnp.float32)
    q = jnp.zeros((1, co), jnp.float32)
    for y in ys:                                        # static unroll (4)
        s = s + jnp.sum(y, axis=0, keepdims=True)
        q = q + jnp.sum(y * y, axis=0, keepdims=True)
    mean = s * inv_n
    var = jnp.maximum(q * inv_n - mean * mean, 0.0)
    scale = jax.lax.rsqrt(var + BN_EPS) * gamma_ref[...]     # (1, co)
    shift = beta_ref[...] - mean * scale
    outs = [jnp.maximum(ys[p] * scale + shift, 0.0) for p in range(4)]
    o_ref[...] = jnp.concatenate(outs, axis=1).astype(o_ref.dtype)


def _mm_tanh_kernel(a_ref, b_ref, o_ref):
    y = jnp.dot(a_ref[...], b_ref[...], preferred_element_type=jnp.float32)
    o_ref[...] = jnp.tanh(y)


# ---------------------------------------------------------------------------
# Pallas wrappers (no grid: the whole layer fits VMEM on every generation and
# serial grid steps would be pure overhead at this problem size).
# ---------------------------------------------------------------------------
def fused_matmul_grouped_bn_relu(a, b, gamma, beta, groups, ch):
    m, k = a.shape
    n = b.shape[1]
    kern = functools.partial(_mm_grouped_bn_relu_kernel, groups=groups, ch=ch)
    return pl.pallas_call(
        kern,
        out_shape=jax.ShapeDtypeStruct((m, n), jnp.bfloat16),
        cost_estimate=pl.CostEstimate(
            flops=2 * m * k * n + 8 * m * n,
            transcendentals=ch,
            bytes_accessed=2 * (m * k + k * n + 2 * m * n)),
    )(a, b, gamma.reshape(1, -1), beta.reshape(1, -1))


def fused_phase_matmul_bn_relu(a_phases, w_phases, gamma, beta):
    """Four (M, 4*Ci) @ (4*Ci, Co) per-phase matmuls + one fused BN(+ReLU)."""
    m, k = a_phases[0].shape
    co = w_phases[0].shape[1]
    kern = functools.partial(_mm4_bn_relu_kernel, co=co)
    return pl.pallas_call(
        kern,
        out_shape=jax.ShapeDtypeStruct((m, 4 * co), jnp.bfloat16),
        # Explicit VMEM budget: ~1.5 MB of bf16 operands today, but keep
        # headroom (v5e default scoped limit is 16 MiB) if batch grows.
        compiler_params=pltpu.CompilerParams(
            vmem_limit_bytes=32 * 1024 * 1024),
        cost_estimate=pl.CostEstimate(
            flops=2 * 4 * m * k * co + 16 * m * co,
            transcendentals=co,
            bytes_accessed=2 * (4 * m * k + 4 * k * co + 2 * m * co)),
    )(*a_phases, *w_phases, gamma.reshape(1, -1), beta.reshape(1, -1))


def fused_matmul_tanh(a, b):
    """(M,K)@(K,N) + fused tanh; single output block (no grid: one TC on
    v5e/v6e, and at this size grid steps are serial overhead)."""
    m, k = a.shape
    n = b.shape[1]
    return pl.pallas_call(
        _mm_tanh_kernel,
        out_shape=jax.ShapeDtypeStruct((m, n), jnp.float32),
        cost_estimate=pl.CostEstimate(
            flops=2 * m * k * n,
            transcendentals=m * n,
            bytes_accessed=2 * (m * k + k * n) + 4 * m * n),
    )(a, b)


# ---------------------------------------------------------------------------
# Plain-JAX layout glue (tap gather, weight re-layout, phase reassembly)
# ---------------------------------------------------------------------------
def _phase_lhs_list(x_nhwc):
    """Sub-pixel tap gather: (B,H,W,C) -> four (B*H*W, 4*C) matrices, one per
    output phase (dy,dx); row (b,m,n) holds the 2x2 tap window of the padded
    input needed by output pixel (2m+dy, 2n+dx), tap-major / channel-minor."""
    b, h, w, c = x_nhwc.shape
    xp = jnp.pad(x_nhwc, ((0, 0), (1, 1), (1, 1), (0, 0)))
    g = jnp.concatenate([xp[:, u:u + h + 1, v:v + w + 1, :]
                         for u in (0, 1) for v in (0, 1)], axis=-1)
    return [g[:, dy:dy + h, dx:dx + w, :].reshape(b * h * w, 4 * c)
            for dy in (0, 1) for dx in (0, 1)]


def _im2col_3x3(x_nhwc):
    """3x3 neighborhood patches (zero pad 1): (B,H,W,C) -> (B*H*W, 9*C),
    tap-major / channel-minor column order (last, channel-narrow layer only)."""
    b, h, w, c = x_nhwc.shape
    xp = jnp.pad(x_nhwc, ((0, 0), (1, 1), (1, 1), (0, 0)))
    taps = [xp[:, 1 + dh:1 + dh + h, 1 + dw:1 + dw + w, :]
            for dh in (-1, 0, 1) for dw in (-1, 0, 1)]
    p = jnp.stack(taps, axis=3)                        # (B, H, W, 9, C)
    return p.reshape(b * h * w, 9 * c)


def _phase_weights_2x2(w):
    """ConvTranspose2d(k=4, s=2, p=1) weight (Ci,Co,4,4) -> 4 matrices
    (4*Ci, Co), one per output phase p = dy*2+dx; rows ordered (tap u,v major,
    channel minor) to match _phase_lhs_list.  The structurally-zero tap/phase
    combinations of the full 3x3 form are dropped entirely (2.25x fewer weight
    bytes and MXU flops)."""
    mats = []
    for dy in (0, 1):
        for dx in (0, 1):
            blocks = [w[:, :, 3 - dy - 2 * u, 3 - dx - 2 * v]
                      for u in (0, 1) for v in (0, 1)]
            mats.append(jnp.concatenate(blocks, axis=0))   # (4*Ci, Co)
    return mats


def _phase_weight_3x3(w):
    """Full phase-decomposed weight (9*Ci, 4*Co): output column
    (dy*2+dx)*Co + co, y[2m+dy,2n+dx] += x[m+dh,n+dw]*w[kh,kw] with
    kh=dy+1-2*dh, kw=dx+1-2*dw (invalid taps are structural zeros)."""
    ci, co = w.shape[0], w.shape[1]
    zero = jnp.zeros((ci, co), w.dtype)
    rows = []
    for dh in (-1, 0, 1):
        for dw in (-1, 0, 1):
            cols = []
            for dy in (0, 1):
                for dx in (0, 1):
                    kh = dy + 1 - 2 * dh
                    kw = dx + 1 - 2 * dw
                    cols.append(w[:, :, kh, kw]
                                if 0 <= kh < 4 and 0 <= kw < 4 else zero)
            rows.append(jnp.concatenate(cols, axis=1))  # (Ci, 4*Co)
    return jnp.concatenate(rows, axis=0)                # (9*Ci, 4*Co)


def _phases_to_nhwc(flat, b, h, w, c):
    """(B*H*W, 4*C) phase-major output -> (B, 2H, 2W, C)."""
    y = flat.reshape(b, h, w, 2, 2, c)                  # (b, h, w, dy, dx, c)
    y = y.transpose(0, 1, 3, 2, 4, 5)                   # (b, h, dy, w, dx, c)
    return y.reshape(b, 2 * h, 2 * w, c)


# ---------------------------------------------------------------------------
# Parameters (deterministic, matching the module's __init__ shapes)
# ---------------------------------------------------------------------------
def init_params(key):
    ks = jax.random.split(key, 4)
    # nn.ConvTranspose2d weight shape: (in_channels, out_channels, kH, kW)
    w1 = 0.05 * jax.random.normal(ks[0], (100, 256, 4, 4), jnp.float32)
    w2 = 0.05 * jax.random.normal(ks[1], (256, 128, 4, 4), jnp.float32)
    w3 = 0.05 * jax.random.normal(ks[2], (128, 64, 4, 4), jnp.float32)
    w4 = 0.05 * jax.random.normal(ks[3], (64, 3, 4, 4), jnp.float32)
    # nn.BatchNorm2d default init: weight=1, bias=0
    bn = {c: (jnp.ones((c,), jnp.float32), jnp.zeros((c,), jnp.float32))
          for c in (256, 128, 64)}
    # TODO(synk): BatchNorm running-stat buffer updates (training side effect)
    # are not materialized; they do not affect the forward output.
    return (w1, w2, w3, w4, bn)


def prepare_weights(params):
    """One-time weight re-layout into bf16 matmul matrices (plain-JAX glue)."""
    w1, w2, w3, w4, bn = params
    # Layer 1 (1x1 input, s=1, p=0): columns ordered (kh*4+kw)*256 + co so the
    # output reshapes straight to NHWC; K padded 100 -> 128.
    w1m = w1.transpose(0, 2, 3, 1).reshape(100, 16 * 256)
    w1m = jnp.pad(w1m, ((0, 28), (0, 0))).astype(jnp.bfloat16)       # (128, 4096)
    w2p = [m.astype(jnp.bfloat16) for m in _phase_weights_2x2(w2)]   # 4x(1024,128)
    w3p = [m.astype(jnp.bfloat16) for m in _phase_weights_2x2(w3)]   # 4x(512, 64)
    # Layer 4: 4*Co = 12 real output columns padded to a lane-dense 128 so
    # tanh + stores run on an unmasked (M, 128) slab.
    w4m = _phase_weight_3x3(w4)                                      # (576, 12)
    w4m = jnp.pad(w4m, ((0, 0), (0, 128 - w4m.shape[1]))).astype(jnp.bfloat16)
    return (w1m, w2p, w3p, w4m, bn)


@jax.jit
def generator_forward(z, prep):
    w1m, w2p, w3p, w4m, bn = prep
    b = z.shape[0]
    zp = jnp.pad(z, ((0, 0), (0, w1m.shape[0] - z.shape[1]))
                 ).astype(jnp.bfloat16)

    # Layer 1: ConvT(100->256, k4, s1, p0) + BN + ReLU (fused).
    f1 = fused_matmul_grouped_bn_relu(zp, w1m, *bn[256], groups=16, ch=256)
    x = f1.reshape(b, 4, 4, 256)                                     # NHWC bf16

    # Layer 2: ConvT(256->128, k4, s2, p1) + BN + ReLU (zero-stripped 4-phase).
    f2 = fused_phase_matmul_bn_relu(_phase_lhs_list(x), w2p, *bn[128])
    x = _phases_to_nhwc(f2, b, 4, 4, 128)                            # (B,8,8,128)

    # Layer 3: ConvT(128->64, k4, s2, p1) + BN + ReLU.
    f3 = fused_phase_matmul_bn_relu(_phase_lhs_list(x), w3p, *bn[64])
    x = _phases_to_nhwc(f3, b, 8, 8, 64)                             # (B,16,16,64)

    # Layer 4: ConvT(64->3, k4, s2, p1) + Tanh (lane-dense padded output).
    f4 = fused_matmul_tanh(_im2col_3x3(x), w4m)                      # (B*256,128)
    y = _phases_to_nhwc(f4[:, :12], b, 16, 16, 3)                    # (B,32,32,3)
    return y.transpose(0, 3, 1, 2)                                   # NCHW f32


# ---------------------------------------------------------------------------
# Pure-JAX reference (PyTorch ConvTranspose2d / BatchNorm2d training semantics)
# ---------------------------------------------------------------------------
def _ref_generator(z, params):
    w1, w2, w3, w4, bn = params

    def conv_t(x, w, stride, pad):
        bsz, ci, h, wd = x.shape
        _, co, k, _ = w.shape
        oh = (h - 1) * stride - 2 * pad + k
        ow = (wd - 1) * stride - 2 * pad + k
        if stride > 1:
            xd = jnp.zeros((bsz, ci, (h - 1) * stride + 1,
                            (wd - 1) * stride + 1), x.dtype)
            xd = xd.at[:, :, ::stride, ::stride].set(x)
        else:
            xd = x
        p = k - 1 - pad
        xp = jnp.pad(xd, ((0, 0), (0, 0), (p, p), (p, p)))
        wf = w[:, :, ::-1, ::-1]
        out = jnp.zeros((bsz, co, oh, ow), jnp.float32)
        for kh in range(k):
            for kw in range(k):
                out = out + jnp.einsum('bchw,cd->bdhw',
                                       xp[:, :, kh:kh + oh, kw:kw + ow],
                                       wf[:, :, kh, kw])
        return out

    def bn_relu(x, gamma, beta):
        mean = jnp.mean(x, axis=(0, 2, 3), keepdims=True)
        var = jnp.mean(jnp.square(x - mean), axis=(0, 2, 3), keepdims=True)
        y = (x - mean) * jax.lax.rsqrt(var + BN_EPS)
        y = y * gamma[None, :, None, None] + beta[None, :, None, None]
        return jnp.maximum(y, 0.0)

    x = z[:, :, None, None]
    x = bn_relu(conv_t(x, w1, 1, 0), *bn[256])
    x = bn_relu(conv_t(x, w2, 2, 1), *bn[128])
    x = bn_relu(conv_t(x, w3, 2, 1), *bn[64])
    return jnp.tanh(conv_t(x, w4, 2, 1))


if __name__ == "__main__":
    key = jax.random.PRNGKey(0)
    kz, kp = jax.random.split(key)
    z = jax.random.normal(kz, (2, 100), jnp.float32)                 # latent, B=2
    params = init_params(kp)
    prep = prepare_weights(params)

    out = generator_forward(z, prep)
    out = jax.block_until_ready(out)

    assert out.shape == (2, 3, 32, 32), out.shape
    assert bool(jnp.all(jnp.isfinite(out)))
    assert bool(jnp.all(jnp.abs(out) <= 1.0))                        # tanh range

    ref = jax.jit(_ref_generator)(z, params)
    err_max = float(jnp.max(jnp.abs(out - ref)))
    err_mean = float(jnp.mean(jnp.abs(out - ref)))
    # bf16 weights/activations with f32 accumulation vs. the f32 reference.
    assert err_max < 5e-2, f"max abs diff vs reference = {err_max}"
    assert err_mean < 1e-2, f"mean abs diff vs reference = {err_mean}"
    print("KERNEL_OK")
</pallas_src>

<mosaic_0001>
module attributes {stable_mosaic.version = 11 : i64} {
  func.func @_mm_grouped_bn_relu_kernel(%arg0: memref<2x128xbf16, #tpu.memory_space<vmem>>, %arg1: memref<128x4096xbf16, #tpu.memory_space<vmem>>, %arg2: memref<1x256xf32, #tpu.memory_space<vmem>>, %arg3: memref<1x256xf32, #tpu.memory_space<vmem>>, %arg4: memref<2x4096xbf16, #tpu.memory_space<vmem>>) attributes {dimension_semantics = [], scalar_prefetch = 0 : i64, scratch_operands = 0 : i64, tpu.core_type = #tpu.core_type<tc>} {
    %c0 = arith.constant 0 : index
    %c0_0 = arith.constant 0 : index
    %0 = vector.load %arg0[%c0, %c0_0] : memref<2x128xbf16, #tpu.memory_space<vmem>>, vector<2x128xbf16>
    %c0_1 = arith.constant 0 : index
    %c0_2 = arith.constant 0 : index
    %1 = vector.load %arg1[%c0_1, %c0_2] : memref<128x4096xbf16, #tpu.memory_space<vmem>>, vector<128x4096xbf16>
    %cst = arith.constant dense<0.000000e+00> : vector<2x4096xf32>
    %2 = tpu.matmul %0, %1, %cst {dimension_numbers = #tpu.dot_dimension_numbers<[1], [0], [0], [1], [0, 0, 1, 1], [], []>} : vector<2x128xbf16>, vector<128x4096xbf16>, vector<2x4096xf32> -> vector<2x4096xf32>
    %cst_3 = arith.constant dense<0.000000e+00> : vector<4096xf32>
    %3 = vector.multi_reduction <add>, %2, %cst_3 [0] : vector<2x4096xf32> to vector<4096xf32>
    %4 = vector.shape_cast %3 : vector<4096xf32> to vector<1x4096xf32>
    %5 = arith.mulf %2, %2 : vector<2x4096xf32>
    %cst_4 = arith.constant dense<0.000000e+00> : vector<4096xf32>
    %6 = vector.multi_reduction <add>, %5, %cst_4 [0] : vector<2x4096xf32> to vector<4096xf32>
    %7 = vector.shape_cast %6 : vector<4096xf32> to vector<1x4096xf32>
    %8 = vector.extract_strided_slice %4 {offsets = [0, 0], sizes = [1, 256], strides = [1, 1]} : vector<1x4096xf32> to vector<1x256xf32>
    %9 = vector.extract_strided_slice %7 {offsets = [0, 0], sizes = [1, 256], strides = [1, 1]} : vector<1x4096xf32> to vector<1x256xf32>
    %10 = vector.extract_strided_slice %4 {offsets = [0, 256], sizes = [1, 256], strides = [1, 1]} : vector<1x4096xf32> to vector<1x256xf32>
    %11 = arith.addf %8, %10 : vector<1x256xf32>
    %12 = vector.extract_strided_slice %7 {offsets = [0, 256], sizes = [1, 256], strides = [1, 1]} : vector<1x4096xf32> to vector<1x256xf32>
    %13 = arith.addf %9, %12 : vector<1x256xf32>
    %14 = vector.extract_strided_slice %4 {offsets = [0, 512], sizes = [1, 256], strides = [1, 1]} : vector<1x4096xf32> to vector<1x256xf32>
    %15 = arith.addf %11, %14 : vector<1x256xf32>
    %16 = vector.extract_strided_slice %7 {offsets = [0, 512], sizes = [1, 256], strides = [1, 1]} : vector<1x4096xf32> to vector<1x256xf32>
    %17 = arith.addf %13, %16 : vector<1x256xf32>
    %18 = vector.extract_strided_slice %4 {offsets = [0, 768], sizes = [1, 256], strides = [1, 1]} : vector<1x4096xf32> to vector<1x256xf32>
    %19 = arith.addf %15, %18 : vector<1x256xf32>
    %20 = vector.extract_strided_slice %7 {offsets = [0, 768], sizes = [1, 256], strides = [1, 1]} : vector<1x4096xf32> to vector<1x256xf32>
    %21 = arith.addf %17, %20 : vector<1x256xf32>
    %22 = vector.extract_strided_slice %4 {offsets = [0, 1024], sizes = [1, 256], strides = [1, 1]} : vector<1x4096xf32> to vector<1x256xf32>
    %23 = arith.addf %19, %22 : vector<1x256xf32>
    %24 = vector.extract_strided_slice %7 {offsets = [0, 1024], sizes = [1, 256], strides = [1, 1]} : vector<1x4096xf32> to vector<1x256xf32>
    %25 = arith.addf %21, %24 : vector<1x256xf32>
    %26 = vector.extract_strided_slice %4 {offsets = [0, 1280], sizes = [1, 256], strides = [1, 1]} : vector<1x4096xf32> to vector<1x256xf32>
    %27 = arith.addf %23, %26 : vector<1x256xf32>
    %28 = vector.extract_strided_slice %7 {offsets = [0, 1280], sizes = [1, 256], strides = [1, 1]} : vector<1x4096xf32> to vector<1x256xf32>
    %29 = arith.addf %25, %28 : vector<1x256xf32>
    %30 = vector.extract_strided_slice %4 {offsets = [0, 1536], sizes = [1, 256], strides = [1, 1]} : vector<1x4096xf32> to vector<1x256xf32>
    %31 = arith.addf %27, %30 : vector<1x256xf32>
    %32 = vector.extract_strided_slice %7 {offsets = [0, 1536], sizes = [1, 256], strides = [1, 1]} : vector<1x4096xf32> to vector<1x256xf32>
    %33 = arith.addf %29, %32 : vector<1x256xf32>
    %34 = vector.extract_strided_slice %4 {offsets = [0, 1792], sizes = [1, 256], strides = [1, 1]} : vector<1x4096xf32> to vector<1x256xf32>
    %35 = arith.addf %31, %34 : vector<1x256xf32>
    %36 = vector.extract_strided_slice %7 {offsets = [0, 1792], sizes = [1, 256], strides = [1, 1]} : vector<1x4096xf32> to vector<1x256xf32>
    %37 = arith.addf %33, %36 : vector<1x256xf32>
    %38 = vector.extract_strided_slice %4 {offsets = [0, 2048], sizes = [1, 256], strides = [1, 1]} : vector<1x4096xf32> to vector<1x256xf32>
    %39 = arith.addf %35, %38 : vector<1x256xf32>
    %40 = vector.extract_strided_slice %7 {offsets = [0, 2048], sizes = [1, 256], strides = [1, 1]} : vector<1x4096xf32> to vector<1x256xf32>
    %41 = arith.addf %37, %40 : vector<1x256xf32>
    %42 = vector.extract_strided_slice %4 {offsets = [0, 2304], sizes = [1, 256], strides = [1, 1]} : vector<1x4096xf32> to vector<1x256xf32>
    %43 = arith.addf %39, %42 : vector<1x256xf32>
    %44 = vector.extract_strided_slice %7 {offsets = [0, 2304], sizes = [1, 256], strides = [1, 1]} : vector<1x4096xf32> to vector<1x256xf32>
    %45 = arith.addf %41, %44 : vector<1x256xf32>
    %46 = vector.extract_strided_slice %4 {offsets = [0, 2560], sizes = [1, 256], strides = [1, 1]} : vector<1x4096xf32> to vector<1x256xf32>
    %47 = arith.addf %43, %46 : vector<1x256xf32>
    %48 = vector.extract_strided_slice %7 {offsets = [0, 2560], sizes = [1, 256], strides = [1, 1]} : vector<1x4096xf32> to vector<1x256xf32>
    %49 = arith.addf %45, %48 : vector<1x256xf32>
    %50 = vector.extract_strided_slice %4 {offsets = [0, 2816], sizes = [1, 256], strides = [1, 1]} : vector<1x4096xf32> to vector<1x256xf32>
    %51 = arith.addf %47, %50 : vector<1x256xf32>
    %52 = vector.extract_strided_slice %7 {offsets = [0, 2816], sizes = [1, 256], strides = [1, 1]} : vector<1x4096xf32> to vector<1x256xf32>
    %53 = arith.addf %49, %52 : vector<1x256xf32>
    %54 = vector.extract_strided_slice %4 {offsets = [0, 3072], sizes = [1, 256], strides = [1, 1]} : vector<1x4096xf32> to vector<1x256xf32>
    %55 = arith.addf %51, %54 : vector<1x256xf32>
    %56 = vector.extract_strided_slice %7 {offsets = [0, 3072], sizes = [1, 256], strides = [1, 1]} : vector<1x4096xf32> to vector<1x256xf32>
    %57 = arith.addf %53, %56 : vector<1x256xf32>
    %58 = vector.extract_strided_slice %4 {offsets = [0, 3328], sizes = [1, 256], strides = [1, 1]} : vector<1x4096xf32> to vector<1x256xf32>
    %59 = arith.addf %55, %58 : vector<1x256xf32>
    %60 = vector.extract_strided_slice %7 {offsets = [0, 3328], sizes = [1, 256], strides = [1, 1]} : vector<1x4096xf32> to vector<1x256xf32>
    %61 = arith.addf %57, %60 : vector<1x256xf32>
    %62 = vector.extract_strided_slice %4 {offsets = [0, 3584], sizes = [1, 256], strides = [1, 1]} : vector<1x4096xf32> to vector<1x256xf32>
    %63 = arith.addf %59, %62 : vector<1x256xf32>
    %64 = vector.extract_strided_slice %7 {offsets = [0, 3584], sizes = [1, 256], strides = [1, 1]} : vector<1x4096xf32> to vector<1x256xf32>
    %65 = arith.addf %61, %64 : vector<1x256xf32>
    %66 = vector.extract_strided_slice %4 {offsets = [0, 3840], sizes = [1, 256], strides = [1, 1]} : vector<1x4096xf32> to vector<1x256xf32>
    %67 = arith.addf %63, %66 : vector<1x256xf32>
    %68 = vector.extract_strided_slice %7 {offsets = [0, 3840], sizes = [1, 256], strides = [1, 1]} : vector<1x4096xf32> to vector<1x256xf32>
    %69 = arith.addf %65, %68 : vector<1x256xf32>
    %cst_5 = arith.constant 3.125000e-02 : f32
    %70 = vector.broadcast %cst_5 : f32 to vector<1x256xf32>
    %71 = arith.mulf %67, %70 : vector<1x256xf32>
    %cst_6 = arith.constant 3.125000e-02 : f32
    %72 = vector.broadcast %cst_6 : f32 to vector<1x256xf32>
    %73 = arith.mulf %69, %72 : vector<1x256xf32>
    %74 = arith.mulf %71, %71 : vector<1x256xf32>
    %75 = arith.subf %73, %74 : vector<1x256xf32>
    %cst_7 = arith.constant 0.000000e+00 : f32
    %76 = vector.broadcast %cst_7 : f32 to vector<1x256xf32>
    %77 = arith.maximumf %75, %76 : vector<1x256xf32>
    %cst_8 = arith.constant 9.99999974E-6 : f32
    %78 = vector.broadcast %cst_8 : f32 to vector<1x256xf32>
    %79 = arith.addf %77, %78 : vector<1x256xf32>
    %80 = math.rsqrt %79 : vector<1x256xf32>
    %c0_9 = arith.constant 0 : index
    %c0_10 = arith.constant 0 : index
    %81 = vector.load %arg2[%c0_9, %c0_10] : memref<1x256xf32, #tpu.memory_space<vmem>>, vector<1x256xf32>
    %82 = arith.mulf %80, %81 : vector<1x256xf32>
    %c0_11 = arith.constant 0 : index
    %c0_12 = arith.constant 0 : index
    %83 = vector.load %arg3[%c0_11, %c0_12] : memref<1x256xf32, #tpu.memory_space<vmem>>, vector<1x256xf32>
    %84 = arith.mulf %71, %82 : vector<1x256xf32>
    %85 = arith.subf %83, %84 : vector<1x256xf32>
    %86 = tpu.concatenate %82, %82, %82, %82, %82, %82, %82, %82, %82, %82, %82, %82, %82, %82, %82, %82 in 1 : vector<1x256xf32>, vector<1x256xf32>, vector<1x256xf32>, vector<1x256xf32>, vector<1x256xf32>, vector<1x256xf32>, vector<1x256xf32>, vector<1x256xf32>, vector<1x256xf32>, vector<1x256xf32>, vector<1x256xf32>, vector<1x256xf32>, vector<1x256xf32>, vector<1x256xf32>, vector<1x256xf32>, vector<1x256xf32> -> vector<1x4096xf32>
    %87 = tpu.concatenate %85, %85, %85, %85, %85, %85, %85, %85, %85, %85, %85, %85, %85, %85, %85, %85 in 1 : vector<1x256xf32>, vector<1x256xf32>, vector<1x256xf32>, vector<1x256xf32>, vector<1x256xf32>, vector<1x256xf32>, vector<1x256xf32>, vector<1x256xf32>, vector<1x256xf32>, vector<1x256xf32>, vector<1x256xf32>, vector<1x256xf32>, vector<1x256xf32>, vector<1x256xf32>, vector<1x256xf32>, vector<1x256xf32> -> vector<1x4096xf32>
    %88 = vector.broadcast %86 : vector<1x4096xf32> to vector<2x4096xf32>
    %89 = arith.mulf %2, %88 : vector<2x4096xf32>
    %90 = vector.broadcast %87 : vector<1x4096xf32> to vector<2x4096xf32>
    %91 = arith.addf %89, %90 : vector<2x4096xf32>
    %cst_13 = arith.constant 0.000000e+00 : f32
    %92 = vector.broadcast %cst_13 : f32 to vector<2x4096xf32>
    %93 = arith.maximumf %91, %92 : vector<2x4096xf32>
    %94 = arith.truncf %93 : vector<2x4096xf32> to vector<2x4096xbf16>
    %c0_14 = arith.constant 0 : index
    %c0_15 = arith.constant 0 : index
    %95 = vector.load %arg4[%c0_14, %c0_15] : memref<2x4096xbf16, #tpu.memory_space<vmem>>, vector<2x4096xbf16>
    tpu.vector_store %arg4[%c0_14, %c0_15], %94 {strides = array<i32>} : memref<2x4096xbf16, #tpu.memory_space<vmem>>, vector<2x4096xbf16>,
    return
  }
}

module attributes {stable_mosaic.version = 11 : i64} {
  func.func @_mm4_bn_relu_kernel(%arg0: memref<32x1024xbf16, #tpu.memory_space<vmem>>, %arg1: memref<32x1024xbf16, #tpu.memory_space<vmem>>, %arg2: memref<32x1024xbf16, #tpu.memory_space<vmem>>, %arg3: memref<32x1024xbf16, #tpu.memory_space<vmem>>, %arg4: memref<1024x128xbf16, #tpu.memory_space<vmem>>, %arg5: memref<1024x128xbf16, #tpu.memory_space<vmem>>, %arg6: memref<1024x128xbf16, #tpu.memory_space<vmem>>, %arg7: memref<1024x128xbf16, #tpu.memory_space<vmem>>, %arg8: memref<1x128xf32, #tpu.memory_space<vmem>>, %arg9: memref<1x128xf32, #tpu.memory_space<vmem>>, %arg10: memref<32x512xbf16, #tpu.memory_space<vmem>>) attributes {dimension_semantics = [], scalar_prefetch = 0 : i64, scratch_operands = 0 : i64, tpu.core_type = #tpu.core_type<tc>} {
    %c0 = arith.constant 0 : index
    %c0_0 = arith.constant 0 : index
    %0 = vector.load %arg0[%c0, %c0_0] : memref<32x1024xbf16, #tpu.memory_space<vmem>>, vector<32x1024xbf16>
    %c0_1 = arith.constant 0 : index
    %c0_2 = arith.constant 0 : index
    %1 = vector.load %arg4[%c0_1, %c0_2] : memref<1024x128xbf16, #tpu.memory_space<vmem>>, vector<1024x128xbf16>
    %cst = arith.constant dense<0.000000e+00> : vector<32x128xf32>
    %2 = tpu.matmul %0, %1, %cst {dimension_numbers = #tpu.dot_dimension_numbers<[1], [0], [0], [1], [0, 0, 1, 1], [], []>} : vector<32x1024xbf16>, vector<1024x128xbf16>, vector<32x128xf32> -> vector<32x128xf32>
    %c0_3 = arith.constant 0 : index
    %c0_4 = arith.constant 0 : index
    %3 = vector.load %arg1[%c0_3, %c0_4] : memref<32x1024xbf16, #tpu.memory_space<vmem>>, vector<32x1024xbf16>
    %c0_5 = arith.constant 0 : index
    %c0_6 = arith.constant 0 : index
    %4 = vector.load %arg5[%c0_5, %c0_6] : memref<1024x128xbf16, #tpu.memory_space<vmem>>, vector<1024x128xbf16>
    %cst_7 = arith.constant dense<0.000000e+00> : vector<32x128xf32>
    %5 = tpu.matmul %3, %4, %cst_7 {dimension_numbers = #tpu.dot_dimension_numbers<[1], [0], [0], [1], [0, 0, 1, 1], [], []>} : vector<32x1024xbf16>, vector<1024x128xbf16>, vector<32x128xf32> -> vector<32x128xf32>
    %c0_8 = arith.constant 0 : index
    %c0_9 = arith.constant 0 : index
    %6 = vector.load %arg2[%c0_8, %c0_9] : memref<32x1024xbf16, #tpu.memory_space<vmem>>, vector<32x1024xbf16>
    %c0_10 = arith.constant 0 : index
    %c0_11 = arith.constant 0 : index
    %7 = vector.load %arg6[%c0_10, %c0_11] : memref<1024x128xbf16, #tpu.memory_space<vmem>>, vector<1024x128xbf16>
    %cst_12 = arith.constant dense<0.000000e+00> : vector<32x128xf32>
    %8 = tpu.matmul %6, %7, %cst_12 {dimension_numbers = #tpu.dot_dimension_numbers<[1], [0], [0], [1], [0, 0, 1, 1], [], []>} : vector<32x1024xbf16>, vector<1024x128xbf16>, vector<32x128xf32> -> vector<32x128xf32>
    %c0_13 = arith.constant 0 : index
    %c0_14 = arith.constant 0 : index
    %9 = vector.load %arg3[%c0_13, %c0_14] : memref<32x1024xbf16, #tpu.memory_space<vmem>>, vector<32x1024xbf16>
    %c0_15 = arith.constant 0 : index
    %c0_16 = arith.constant 0 : index
    %10 = vector.load %arg7[%c0_15, %c0_16] : memref<1024x128xbf16, #tpu.memory_space<vmem>>, vector<1024x128xbf16>
    %cst_17 = arith.constant dense<0.000000e+00> : vector<32x128xf32>
    %11 = tpu.matmul %9, %10, %cst_17 {dimension_numbers = #tpu.dot_dimension_numbers<[1], [0], [0], [1], [0, 0, 1, 1], [], []>} : vector<32x1024xbf16>, vector<1024x128xbf16>, vector<32x128xf32> -> vector<32x128xf32>
    %cst_18 = arith.constant 0.000000e+00 : f32
    %12 = vector.broadcast %cst_18 : f32 to vector<1x128xf32>
    %cst_19 = arith.constant 0.000000e+00 : f32
    %13 = vector.broadcast %cst_19 : f32 to vector<1x128xf32>
    %cst_20 = arith.constant dense<0.000000e+00> : vector<128xf32>
    %14 = vector.multi_reduction <add>, %2, %cst_20 [0] : vector<32x128xf32> to vector<128xf32>
    %15 = vector.shape_cast %14 : vector<128xf32> to vector<1x128xf32>
    %16 = arith.addf %12, %15 : vector<1x128xf32>
    %17 = arith.mulf %2, %2 : vector<32x128xf32>
    %cst_21 = arith.constant dense<0.000000e+00> : vector<128xf32>
    %18 = vector.multi_reduction <add>, %17, %cst_21 [0] : vector<32x128xf32> to vector<128xf32>
    %19 = vector.shape_cast %18 : vector<128xf32> to vector<1x128xf32>
    %20 = arith.addf %13, %19 : vector<1x128xf32>
    %cst_22 = arith.constant dense<0.000000e+00> : vector<128xf32>
    %21 = vector.multi_reduction <add>, %5, %cst_22 [0] : vector<32x128xf32> to vector<128xf32>
    %22 = vector.shape_cast %21 : vector<128xf32> to vector<1x128xf32>
    %23 = arith.addf %16, %22 : vector<1x128xf32>
    %24 = arith.mulf %5, %5 : vector<32x128xf32>
    %cst_23 = arith.constant dense<0.000000e+00> : vector<128xf32>
    %25 = vector.multi_reduction <add>, %24, %cst_23 [0] : vector<32x128xf32> to vector<128xf32>
    %26 = vector.shape_cast %25 : vector<128xf32> to vector<1x128xf32>
    %27 = arith.addf %20, %26 : vector<1x128xf32>
    %cst_24 = arith.constant dense<0.000000e+00> : vector<128xf32>
    %28 = vector.multi_reduction <add>, %8, %cst_24 [0] : vector<32x128xf32> to vector<128xf32>
    %29 = vector.shape_cast %28 : vector<128xf32> to vector<1x128xf32>
    %30 = arith.addf %23, %29 : vector<1x128xf32>
    %31 = arith.mulf %8, %8 : vector<32x128xf32>
    %cst_25 = arith.constant dense<0.000000e+00> : vector<128xf32>
    %32 = vector.multi_reduction <add>, %31, %cst_25 [0] : vector<32x128xf32> to vector<128xf32>
    %33 = vector.shape_cast %32 : vector<128xf32> to vector<1x128xf32>
    %34 = arith.addf %27, %33 : vector<1x128xf32>
    %cst_26 = arith.constant dense<0.000000e+00> : vector<128xf32>
    %35 = vector.multi_reduction <add>, %11, %cst_26 [0] : vector<32x128xf32> to vector<128xf32>
    %36 = vector.shape_cast %35 : vector<128xf32> to vector<1x128xf32>
    %37 = arith.addf %30, %36 : vector<1x128xf32>
    %38 = arith.mulf %11, %11 : vector<32x128xf32>
    %cst_27 = arith.constant dense<0.000000e+00> : vector<128xf32>
    %39 = vector.multi_reduction <add>, %38, %cst_27 [0] : vector<32x128xf32> to vector<128xf32>
    %40 = vector.shape_cast %39 : vector<128xf32> to vector<1x128xf32>
    %41 = arith.addf %34, %40 : vector<1x128xf32>
    %cst_28 = arith.constant 7.812500e-03 : f32
    %42 = vector.broadcast %cst_28 : f32 to vector<1x128xf32>
    %43 = arith.mulf %37, %42 : vector<1x128xf32>
    %cst_29 = arith.constant 7.812500e-03 : f32
    %44 = vector.broadcast %cst_29 : f32 to vector<1x128xf32>
    %45 = arith.mulf %41, %44 : vector<1x128xf32>
    %46 = arith.mulf %43, %43 : vector<1x128xf32>
    %47 = arith.subf %45, %46 : vector<1x128xf32>
    %cst_30 = arith.constant 0.000000e+00 : f32
    %48 = vector.broadcast %cst_30 : f32 to vector<1x128xf32>
    %49 = arith.maximumf %47, %48 : vector<1x128xf32>
    %cst_31 = arith.constant 9.99999974E-6 : f32
    %50 = vector.broadcast %cst_31 : f32 to vector<1x128xf32>
    %51 = arith.addf %49, %50 : vector<1x128xf32>
    %52 = math.rsqrt %51 : vector<1x128xf32>
    %c0_32 = arith.constant 0 : index
    %c0_33 = arith.constant 0 : index
    %53 = vector.load %arg8[%c0_32, %c0_33] : memref<1x128xf32, #tpu.memory_space<vmem>>, vector<1x128xf32>
    %54 = arith.mulf %52, %53 : vector<1x128xf32>
    %c0_34 = arith.constant 0 : index
    %c0_35 = arith.constant 0 : index
    %55 = vector.load %arg9[%c0_34, %c0_35] : memref<1x128xf32, #tpu.memory_space<vmem>>, vector<1x128xf32>
    %56 = arith.mulf %43, %54 : vector<1x128xf32>
    %57 = arith.subf %55, %56 : vector<1x128xf32>
    %58 = vector.broadcast %54 : vector<1x128xf32> to vector<32x128xf32>
    %59 = arith.mulf %2, %58 : vector<32x128xf32>
    %60 = vector.broadcast %57 : vector<1x128xf32> to vector<32x128xf32>
    %61 = arith.addf %59, %60 : vector<32x128xf32>
    %cst_36 = arith.constant 0.000000e+00 : f32
    %62 = vector.broadcast %cst_36 : f32 to vector<32x128xf32>
    %63 = arith.maximumf %61, %62 : vector<32x128xf32>
    %64 = vector.broadcast %54 : vector<1x128xf32> to vector<32x128xf32>
    %65 = arith.mulf %5, %64 : vector<32x128xf32>
    %66 = vector.broadcast %57 : vector<1x128xf32> to vector<32x128xf32>
    %67 = arith.addf %65, %66 : vector<32x128xf32>
    %cst_37 = arith.constant 0.000000e+00 : f32
    %68 = vector.broadcast %cst_37 : f32 to vector<32x128xf32>
    %69 = arith.maximumf %67, %68 : vector<32x128xf32>
    %70 = vector.broadcast %54 : vector<1x128xf32> to vector<32x128xf32>
    %71 = arith.mulf %8, %70 : vector<32x128xf32>
    %72 = vector.broadcast %57 : vector<1x128xf32> to vector<32x128xf32>
    %73 = arith.addf %71, %72 : vector<32x128xf32>
    %cst_38 = arith.constant 0.000000e+00 : f32
    %74 = vector.broadcast %cst_38 : f32 to vector<32x128xf32>
    %75 = arith.maximumf %73, %74 : vector<32x128xf32>
    %76 = vector.broadcast %54 : vector<1x128xf32> to vector<32x128xf32>
    %77 = arith.mulf %11, %76 : vector<32x128xf32>
    %78 = vector.broadcast %57 : vector<1x128xf32> to vector<32x128xf32>
    %79 = arith.addf %77, %78 : vector<32x128xf32>
    %cst_39 = arith.constant 0.000000e+00 : f32
    %80 = vector.broadcast %cst_39 : f32 to vector<32x128xf32>
    %81 = arith.maximumf %79, %80 : vector<32x128xf32>
    %82 = tpu.concatenate %63, %69, %75, %81 in 1 : vector<32x128xf32>, vector<32x128xf32>, vector<32x128xf32>, vector<32x128xf32> -> vector<32x512xf32>
    %83 = arith.truncf %82 : vector<32x512xf32> to vector<32x512xbf16>
    %c0_40 = arith.constant 0 : index
    %c0_41 = arith.constant 0 : index
    %84 = vector.load %arg10[%c0_40, %c0_41] : memref<32x512xbf16, #tpu.memory_space<vmem>>, vector<32x512xbf16>
    tpu.vector_store %arg10[%c0_40, %c0_41], %83 {strides = array<i32>} : memref<32x512xbf16, #tpu.memory_space<vmem>>, vector<32x512xbf16>,
    return
  }
}

module attributes {stable_mosaic.version = 11 : i64} {
  func.func @_mm4_bn_relu_kernel(%arg0: memref<128x512xbf16, #tpu.memory_space<vmem>>, %arg1: memref<128x512xbf16, #tpu.memory_space<vmem>>, %arg2: memref<128x512xbf16, #tpu.memory_space<vmem>>, %arg3: memref<128x512xbf16, #tpu.memory_space<vmem>>, %arg4: memref<512x64xbf16, #tpu.memory_space<vmem>>, %arg5: memref<512x64xbf16, #tpu.memory_space<vmem>>, %arg6: memref<512x64xbf16, #tpu.memory_space<vmem>>, %arg7: memref<512x64xbf16, #tpu.memory_space<vmem>>, %arg8: memref<1x64xf32, #tpu.memory_space<vmem>>, %arg9: memref<1x64xf32, #tpu.memory_space<vmem>>, %arg10: memref<128x256xbf16, #tpu.memory_space<vmem>>) attributes {dimension_semantics = [], scalar_prefetch = 0 : i64, scratch_operands = 0 : i64, tpu.core_type = #tpu.core_type<tc>} {
    %c0 = arith.constant 0 : index
    %c0_0 = arith.constant 0 : index
    %0 = vector.load %arg0[%c0, %c0_0] : memref<128x512xbf16, #tpu.memory_space<vmem>>, vector<128x512xbf16>
    %c0_1 = arith.constant 0 : index
    %c0_2 = arith.constant 0 : index
    %1 = vector.load %arg4[%c0_1, %c0_2] : memref<512x64xbf16, #tpu.memory_space<vmem>>, vector<512x64xbf16>
    %cst = arith.constant dense<0.000000e+00> : vector<128x64xf32>
    %2 = tpu.matmul %0, %1, %cst {dimension_numbers = #tpu.dot_dimension_numbers<[1], [0], [0], [1], [0, 0, 1, 1], [], []>} : vector<128x512xbf16>, vector<512x64xbf16>, vector<128x64xf32> -> vector<128x64xf32>
    %c0_3 = arith.constant 0 : index
    %c0_4 = arith.constant 0 : index
    %3 = vector.load %arg1[%c0_3, %c0_4] : memref<128x512xbf16, #tpu.memory_space<vmem>>, vector<128x512xbf16>
    %c0_5 = arith.constant 0 : index
    %c0_6 = arith.constant 0 : index
    %4 = vector.load %arg5[%c0_5, %c0_6] : memref<512x64xbf16, #tpu.memory_space<vmem>>, vector<512x64xbf16>
    %cst_7 = arith.constant dense<0.000000e+00> : vector<128x64xf32>
    %5 = tpu.matmul %3, %4, %cst_7 {dimension_numbers = #tpu.dot_dimension_numbers<[1], [0], [0], [1], [0, 0, 1, 1], [], []>} : vector<128x512xbf16>, vector<512x64xbf16>, vector<128x64xf32> -> vector<128x64xf32>
    %c0_8 = arith.constant 0 : index
    %c0_9 = arith.constant 0 : index
    %6 = vector.load %arg2[%c0_8, %c0_9] : memref<128x512xbf16, #tpu.memory_space<vmem>>, vector<128x512xbf16>
    %c0_10 = arith.constant 0 : index
    %c0_11 = arith.constant 0 : index
    %7 = vector.load %arg6[%c0_10, %c0_11] : memref<512x64xbf16, #tpu.memory_space<vmem>>, vector<512x64xbf16>
    %cst_12 = arith.constant dense<0.000000e+00> : vector<128x64xf32>
    %8 = tpu.matmul %6, %7, %cst_12 {dimension_numbers = #tpu.dot_dimension_numbers<[1], [0], [0], [1], [0, 0, 1, 1], [], []>} : vector<128x512xbf16>, vector<512x64xbf16>, vector<128x64xf32> -> vector<128x64xf32>
    %c0_13 = arith.constant 0 : index
    %c0_14 = arith.constant 0 : index
    %9 = vector.load %arg3[%c0_13, %c0_14] : memref<128x512xbf16, #tpu.memory_space<vmem>>, vector<128x512xbf16>
    %c0_15 = arith.constant 0 : index
    %c0_16 = arith.constant 0 : index
    %10 = vector.load %arg7[%c0_15, %c0_16] : memref<512x64xbf16, #tpu.memory_space<vmem>>, vector<512x64xbf16>
    %cst_17 = arith.constant dense<0.000000e+00> : vector<128x64xf32>
    %11 = tpu.matmul %9, %10, %cst_17 {dimension_numbers = #tpu.dot_dimension_numbers<[1], [0], [0], [1], [0, 0, 1, 1], [], []>} : vector<128x512xbf16>, vector<512x64xbf16>, vector<128x64xf32> -> vector<128x64xf32>
    %cst_18 = arith.constant 0.000000e+00 : f32
    %12 = vector.broadcast %cst_18 : f32 to vector<1x64xf32>
    %cst_19 = arith.constant 0.000000e+00 : f32
    %13 = vector.broadcast %cst_19 : f32 to vector<1x64xf32>
    %cst_20 = arith.constant dense<0.000000e+00> : vector<64xf32>
    %14 = vector.multi_reduction <add>, %2, %cst_20 [0] : vector<128x64xf32> to vector<64xf32>
    %15 = vector.shape_cast %14 : vector<64xf32> to vector<1x64xf32>
    %16 = arith.addf %12, %15 : vector<1x64xf32>
    %17 = arith.mulf %2, %2 : vector<128x64xf32>
    %cst_21 = arith.constant dense<0.000000e+00> : vector<64xf32>
    %18 = vector.multi_reduction <add>, %17, %cst_21 [0] : vector<128x64xf32> to vector<64xf32>
    %19 = vector.shape_cast %18 : vector<64xf32> to vector<1x64xf32>
    %20 = arith.addf %13, %19 : vector<1x64xf32>
    %cst_22 = arith.constant dense<0.000000e+00> : vector<64xf32>
    %21 = vector.multi_reduction <add>, %5, %cst_22 [0] : vector<128x64xf32> to vector<64xf32>
    %22 = vector.shape_cast %21 : vector<64xf32> to vector<1x64xf32>
    %23 = arith.addf %16, %22 : vector<1x64xf32>
    %24 = arith.mulf %5, %5 : vector<128x64xf32>
    %cst_23 = arith.constant dense<0.000000e+00> : vector<64xf32>
    %25 = vector.multi_reduction <add>, %24, %cst_23 [0] : vector<128x64xf32> to vector<64xf32>
    %26 = vector.shape_cast %25 : vector<64xf32> to vector<1x64xf32>
    %27 = arith.addf %20, %26 : vector<1x64xf32>
    %cst_24 = arith.constant dense<0.000000e+00> : vector<64xf32>
    %28 = vector.multi_reduction <add>, %8, %cst_24 [0] : vector<128x64xf32> to vector<64xf32>
    %29 = vector.shape_cast %28 : vector<64xf32> to vector<1x64xf32>
    %30 = arith.addf %23, %29 : vector<1x64xf32>
    %31 = arith.mulf %8, %8 : vector<128x64xf32>
    %cst_25 = arith.constant dense<0.000000e+00> : vector<64xf32>
    %32 = vector.multi_reduction <add>, %31, %cst_25 [0] : vector<128x64xf32> to vector<64xf32>
    %33 = vector.shape_cast %32 : vector<64xf32> to vector<1x64xf32>
    %34 = arith.addf %27, %33 : vector<1x64xf32>
    %cst_26 = arith.constant dense<0.000000e+00> : vector<64xf32>
    %35 = vector.multi_reduction <add>, %11, %cst_26 [0] : vector<128x64xf32> to vector<64xf32>
    %36 = vector.shape_cast %35 : vector<64xf32> to vector<1x64xf32>
    %37 = arith.addf %30, %36 : vector<1x64xf32>
    %38 = arith.mulf %11, %11 : vector<128x64xf32>
    %cst_27 = arith.constant dense<0.000000e+00> : vector<64xf32>
    %39 = vector.multi_reduction <add>, %38, %cst_27 [0] : vector<128x64xf32> to vector<64xf32>
    %40 = vector.shape_cast %39 : vector<64xf32> to vector<1x64xf32>
    %41 = arith.addf %34, %40 : vector<1x64xf32>
    %cst_28 = arith.constant 0.001953125 : f32
    %42 = vector.broadcast %cst_28 : f32 to vector<1x64xf32>
    %43 = arith.mulf %37, %42 : vector<1x64xf32>
    %cst_29 = arith.constant 0.001953125 : f32
    %44 = vector.broadcast %cst_29 : f32 to vector<1x64xf32>
    %45 = arith.mulf %41, %44 : vector<1x64xf32>
    %46 = arith.mulf %43, %43 : vector<1x64xf32>
    %47 = arith.subf %45, %46 : vector<1x64xf32>
    %cst_30 = arith.constant 0.000000e+00 : f32
    %48 = vector.broadcast %cst_30 : f32 to vector<1x64xf32>
    %49 = arith.maximumf %47, %48 : vector<1x64xf32>
    %cst_31 = arith.constant 9.99999974E-6 : f32
    %50 = vector.broadcast %cst_31 : f32 to vector<1x64xf32>
    %51 = arith.addf %49, %50 : vector<1x64xf32>
    %52 = math.rsqrt %51 : vector<1x64xf32>
    %c0_32 = arith.constant 0 : index
    %c0_33 = arith.constant 0 : index
    %53 = vector.load %arg8[%c0_32, %c0_33] : memref<1x64xf32, #tpu.memory_space<vmem>>, vector<1x64xf32>
    %54 = arith.mulf %52, %53 : vector<1x64xf32>
    %c0_34 = arith.constant 0 : index
    %c0_35 = arith.constant 0 : index
    %55 = vector.load %arg9[%c0_34, %c0_35] : memref<1x64xf32, #tpu.memory_space<vmem>>, vector<1x64xf32>
    %56 = arith.mulf %43, %54 : vector<1x64xf32>
    %57 = arith.subf %55, %56 : vector<1x64xf32>
    %58 = vector.broadcast %54 : vector<1x64xf32> to vector<128x64xf32>
    %59 = arith.mulf %2, %58 : vector<128x64xf32>
    %60 = vector.broadcast %57 : vector<1x64xf32> to vector<128x64xf32>
    %61 = arith.addf %59, %60 : vector<128x64xf32>
    %cst_36 = arith.constant 0.000000e+00 : f32
    %62 = vector.broadcast %cst_36 : f32 to vector<128x64xf32>
    %63 = arith.maximumf %61, %62 : vector<128x64xf32>
    %64 = vector.broadcast %54 : vector<1x64xf32> to vector<128x64xf32>
    %65 = arith.mulf %5, %64 : vector<128x64xf32>
    %66 = vector.broadcast %57 : vector<1x64xf32> to vector<128x64xf32>
    %67 = arith.addf %65, %66 : vector<128x64xf32>
    %cst_37 = arith.constant 0.000000e+00 : f32
    %68 = vector.broadcast %cst_37 : f32 to vector<128x64xf32>
    %69 = arith.maximumf %67, %68 : vector<128x64xf32>
    %70 = vector.broadcast %54 : vector<1x64xf32> to vector<128x64xf32>
    %71 = arith.mulf %8, %70 : vector<128x64xf32>
    %72 = vector.broadcast %57 : vector<1x64xf32> to vector<128x64xf32>
    %73 = arith.addf %71, %72 : vector<128x64xf32>
    %cst_38 = arith.constant 0.000000e+00 : f32
    %74 = vector.broadcast %cst_38 : f32 to vector<128x64xf32>
    %75 = arith.maximumf %73, %74 : vector<128x64xf32>
    %76 = vector.broadcast %54 : vector<1x64xf32> to vector<128x64xf32>
    %77 = arith.mulf %11, %76 : vector<128x64xf32>
    %78 = vector.broadcast %57 : vector<1x64xf32> to vector<128x64xf32>
    %79 = arith.addf %77, %78 : vector<128x64xf32>
    %cst_39 = arith.constant 0.000000e+00 : f32
    %80 = vector.broadcast %cst_39 : f32 to vector<128x64xf32>
    %81 = arith.maximumf %79, %80 : vector<128x64xf32>
    %82 = tpu.concatenate %63, %69, %75, %81 in 1 : vector<128x64xf32>, vector<128x64xf32>, vector<128x64xf32>, vector<128x64xf32> -> vector<128x256xf32>
    %83 = arith.truncf %82 : vector<128x256xf32> to vector<128x256xbf16>
    %c0_40 = arith.constant 0 : index
    %c0_41 = arith.constant 0 : index
    %84 = vector.load %arg10[%c0_40, %c0_41] : memref<128x256xbf16, #tpu.memory_space<vmem>>, vector<128x256xbf16>
    tpu.vector_store %arg10[%c0_40, %c0_41], %83 {strides = array<i32>} : memref<128x256xbf16, #tpu.memory_space<vmem>>, vector<128x256xbf16>,
    return
  }
}

module attributes {stable_mosaic.version = 11 : i64} {
  func.func @_mm_tanh_kernel(%arg0: memref<512x576xbf16, #tpu.memory_space<vmem>>, %arg1: memref<576x128xbf16, #tpu.memory_space<vmem>>, %arg2: memref<512x128xf32, #tpu.memory_space<vmem>>) attributes {dimension_semantics = [], scalar_prefetch = 0 : i64, scratch_operands = 0 : i64, tpu.core_type = #tpu.core_type<tc>} {
    %c0 = arith.constant 0 : index
    %c0_0 = arith.constant 0 : index
    %0 = vector.load %arg0[%c0, %c0_0] : memref<512x576xbf16, #tpu.memory_space<vmem>>, vector<512x576xbf16>
    %c0_1 = arith.constant 0 : index
    %c0_2 = arith.constant 0 : index
    %1 = vector.load %arg1[%c0_1, %c0_2] : memref<576x128xbf16, #tpu.memory_space<vmem>>, vector<576x128xbf16>
    %cst = arith.constant dense<0.000000e+00> : vector<512x128xf32>
    %2 = tpu.matmul %0, %1, %cst {dimension_numbers = #tpu.dot_dimension_numbers<[1], [0], [0], [1], [0, 0, 1, 1], [], []>} : vector<512x576xbf16>, vector<576x128xbf16>, vector<512x128xf32> -> vector<512x128xf32>
    %3 = math.tanh %2 : vector<512x128xf32>
    %c0_3 = arith.constant 0 : index
    %c0_4 = arith.constant 0 : index
    %4 = vector.load %arg2[%c0_3, %c0_4] : memref<512x128xf32, #tpu.memory_space<vmem>>, vector<512x128xf32>
    tpu.vector_store %arg2[%c0_3, %c0_4], %3 {strides = array<i32>} : memref<512x128xf32, #tpu.memory_space<vmem>>, vector<512x128xf32>,
    return
  }
}

</mosaic_0001>

<llo_original>
// kernel: generator_forward.4
$region0: #{generator_forward.4}
  #allocation0 [shape = 'u32[]', space=smem, size = 0x4, offset = 0x4, fixed_abs, tag = 'smem constant byte address 0x4 - core index']
  #allocation1 [shape = 'u32[72,128]{1,0:T(1,128)}', space=vmem, size = 0x9000, scoped, tag = 'internal scratch']
  %s0 = inlined_call_operand.vmem [shape: bf16[2,128], index: 0, kind: input, shape index: {}]
  %s1 = inlined_call_operand.hbm [shape: bf16[128,4096], index: 1, kind: input, shape index: {}]
  %s2 = inlined_call_operand.hbm [shape: f32[1,256], index: 2, kind: input, shape index: {}]
  %s3 = inlined_call_operand.hbm [shape: f32[1,256], index: 3, kind: input, shape index: {}]
  %s4 = inlined_call_operand.vmem [shape: bf16[2,4096], index: 4, kind: output, shape index: {}]
  %s5 = sld [smem:[#allocation0]]
  $region38: #{generator_forward.4} parent=0
    _
  %s7 = ssub.s32 1, %s5
  %s8 = scalar_select 0, %s7, %s5
  $region1: #{generator_forward.4} parent=0
    #allocation2 [shape = 'u8[1048576]{0}', space=vmem, size = 0x100000, scoped, tag = 'input window, operand 1, single buffered']
    #allocation3 [shape = 's32[1]{0}', space=sflag, size = 0x4, scoped, tag = 'scoped memory for generator_forward.4']
    #allocation4 [shape = 'u8[1024]{0}', space=vmem, size = 0x400, scoped, tag = 'input window, operand 2, single buffered']
    #allocation5 [shape = 's32[1]{0}', space=sflag, size = 0x4, scoped, tag = 'scoped memory for generator_forward.4']
    #allocation6 [shape = 'u8[1024]{0}', space=vmem, size = 0x400, scoped, tag = 'input window, operand 3, single buffered']
    %9 = vsyncpa [#allocation3], 0
    %10 = vsyncpa [#allocation5], 0
    // Predicated region
    $region2: #{generator_forward.4} parent=1 // pred_check
      _
    $region3: #{generator_forward.4} parent=1 // pred_check_branch
      %12 = sbr.rel (0) target = $region5
    $region4: #{generator_forward.4} parent=1 // pred_region
      _
    $region5: #{generator_forward.4} parent=1 // pred_fallthru
      _
    // Predicated region
    $region6: #{generator_forward.4} parent=1 // pred_check
      _
    $region7: #{generator_forward.4} parent=1 // pred_check_branch
      %14 = sbr.rel (0) target = $region9
    $region8: #{generator_forward.4} parent=1 // pred_region
      %16 = vsyncadd [#allocation3], 0
      %s17 = sshll.u32 %s1, 4
      %s18 = int_to_ptr.hbm [resolvable:$true] %s17
      %s19 = sshll.u32 [#allocation2], 4
      %s20 = int_to_ptr.vmem [resolvable:$true] %s19
      %25 = dma.hbm_to_vmem [thread:$0]  %s18, 32768, %s20, [#allocation3], 2048, 2048, 128
    $region9: #{generator_forward.4} parent=1 // pred_fallthru
      _
    // Predicated region
    $region10: #{generator_forward.4} parent=1 // pred_check
      _
    $region11: #{generator_forward.4} parent=1 // pred_check_branch
      %27 = sbr.rel (0) target = $region13
    $region12: #{generator_forward.4} parent=1 // pred_region
      %29 = vsyncadd [#allocation5], 0
      %s31 = sshll.u32 %s2, 4
      %s32 = int_to_ptr.hbm [resolvable:$true] %s31
      %s33 = sshll.u32 [#allocation4], 4
      %s34 = int_to_ptr.vmem [resolvable:$true] %s33
      %36 = dma.hbm_to_vmem [thread:$0]  %s32, 32, %s34, [#allocation5]
    $region13: #{generator_forward.4} parent=1 // pred_fallthru
      _
    // Predicated region
    $region14: #{generator_forward.4} parent=1 // pred_check
      _
    $region15: #{generator_forward.4} parent=1 // pred_check_branch
      %38 = sbr.rel (0) target = $region17
    $region16: #{generator_forward.4} parent=1 // pred_region
      %40 = vsyncadd [#allocation5], 0
      %s42 = sshll.u32 %s3, 4
      %s43 = int_to_ptr.hbm [resolvable:$true] %s42
      %s44 = sshll.u32 [#allocation6], 4
      %s45 = int_to_ptr.vmem [resolvable:$true] %s44
      %47 = dma.hbm_to_vmem [thread:$0]  %s43, 32, %s45, [#allocation5]
    $region17: #{generator_forward.4} parent=1 // pred_fallthru
      _
    // Predicated region
    $region18: #{generator_forward.4} parent=1 // pred_check
      _
    $region19: #{generator_forward.4} parent=1 // pred_check_branch
      %49 = sbr.rel (0) target = $region21
    $region20: #{generator_forward.4} parent=1 // pred_region
      %51 = dma.done [#allocation3], 32768
    $region21: #{generator_forward.4} parent=1 // pred_fallthru
      _
    // Predicated region
    $region22: #{generator_forward.4} parent=1 // pred_check
      _
    $region23: #{generator_forward.4} parent=1 // pred_check_branch
      %53 = sbr.rel (0) target = $region25
    $region24: #{generator_forward.4} parent=1 // pred_region
      %55 = dma.done [#allocation5], 32
    $region25: #{generator_forward.4} parent=1 // pred_fallthru
      _
    // Predicated region
    $region26: #{generator_forward.4} parent=1 // pred_check
      _
    $region27: #{generator_forward.4} parent=1 // pred_check_branch
      %57 = sbr.rel (0) target = $region29
    $region28: #{generator_forward.4} parent=1 // pred_region
      %59 = dma.done [#allocation5], 32
    $region29: #{generator_forward.4} parent=1 // pred_fallthru
      _
    %v60 = vld [vmem:[%s0] sm:$0x1]
    %v61 = vld [vmem:[#allocation2] sm:$0xff]
    %v62 = vld [vmem:[#allocation2 + $0x8] sm:$0xff]
    %v63 = vld [vmem:[#allocation2 + $0x10] sm:$0xff]
    %v64 = vld [vmem:[#allocation2 + $0x18] sm:$0xff]
    %v65 = vld [vmem:[#allocation2 + $0x20] sm:$0xff]
    %v66 = vld [vmem:[#allocation2 + $0x28] sm:$0xff]
    %v67 = vld [vmem:[#allocation2 + $0x30] sm:$0xff]
    %v68 = vld [vmem:[#allocation2 + $0x38] sm:$0xff]
    %v69 = vld [vmem:[#allocation2 + $0x40] sm:$0xff]
    %v70 = vld [vmem:[#allocation2 + $0x48] sm:$0xff]
    %v71 = vld [vmem:[#allocation2 + $0x50] sm:$0xff]
    %v72 = vld [vmem:[#allocation2 + $0x58] sm:$0xff]
    %v73 = vld [vmem:[#allocation2 + $0x60] sm:$0xff]
    %v74 = vld [vmem:[#allocation2 + $0x68] sm:$0xff]
    %v75 = vld [vmem:[#allocation2 + $0x70] sm:$0xff]
    %v76 = vld [vmem:[#allocation2 + $0x78] sm:$0xff]
    %v77 = vld [vmem:[#allocation2 + $0x80] sm:$0xff]
    %v78 = vld [vmem:[#allocation2 + $0x88] sm:$0xff]
    %v79 = vld [vmem:[#allocation2 + $0x90] sm:$0xff]
    %v80 = vld [vmem:[#allocation2 + $0x98] sm:$0xff]
    %v81 = vld [vmem:[#allocation2 + $0xa0] sm:$0xff]
    %v82 = vld [vmem:[#allocation2 + $0xa8] sm:$0xff]
    %v83 = vld [vmem:[#allocation2 + $0xb0] sm:$0xff]
    %v84 = vld [vmem:[#allocation2 + $0xb8] sm:$0xff]
    %v85 = vld [vmem:[#allocation2 + $0xc0] sm:$0xff]
    %v86 = vld [vmem:[#allocation2 + $0xc8] sm:$0xff]
    %v87 = vld [vmem:[#allocation2 + $0xd0] sm:$0xff]
    %v88 = vld [vmem:[#allocation2 + $0xd8] sm:$0xff]
    %v89 = vld [vmem:[#allocation2 + $0xe0] sm:$0xff]
    %v90 = vld [vmem:[#allocation2 + $0xe8] sm:$0xff]
    %v91 = vld [vmem:[#allocation2 + $0xf0] sm:$0xff]
    %v92 = vld [vmem:[#allocation2 + $0xf8] sm:$0xff]
    %v93 = vld [vmem:[#allocation2 + $0x100] sm:$0xff]
    %v94 = vld [vmem:[#allocation2 + $0x108] sm:$0xff]
    %v95 = vld [vmem:[#allocation2 + $0x110] sm:$0xff]
    %v96 = vld [vmem:[#allocation2 + $0x118] sm:$0xff]
    %v97 = vld [vmem:[#allocation2 + $0x120] sm:$0xff]
    %v98 = vld [vmem:[#allocation2 + $0x128] sm:$0xff]
    %v99 = vld [vmem:[#allocation2 + $0x130] sm:$0xff]
    %v100 = vld [vmem:[#allocation2 + $0x138] sm:$0xff]
    %v101 = vld [vmem:[#allocation2 + $0x140] sm:$0xff]
    %v102 = vld [vmem:[#allocation2 + $0x148] sm:$0xff]
    %v103 = vld [vmem:[#allocation2 + $0x150] sm:$0xff]
    %v104 = vld [vmem:[#allocation2 + $0x158] sm:$0xff]
    %v105 = vld [vmem:[#allocation2 + $0x160] sm:$0xff]
    %v106 = vld [vmem:[#allocation2 + $0x168] sm:$0xff]
    %v107 = vld [vmem:[#allocation2 + $0x170] sm:$0xff]
    %v108 = vld [vmem:[#allocation2 + $0x178] sm:$0xff]
    %v109 = vld [vmem:[#allocation2 + $0x180] sm:$0xff]
    %v110 = vld [vmem:[#allocation2 + $0x188] sm:$0xff]
    %v111 = vld [vmem:[#allocation2 + $0x190] sm:$0xff]
    %v112 = vld [vmem:[#allocation2 + $0x198] sm:$0xff]
    %v113 = vld [vmem:[#allocation2 + $0x1a0] sm:$0xff]
    %v114 = vld [vmem:[#allocation2 + $0x1a8] sm:$0xff]
    %v115 = vld [vmem:[#allocation2 + $0x1b0] sm:$0xff]
    %v116 = vld [vmem:[#allocation2 + $0x1b8] sm:$0xff]
    %v117 = vld [vmem:[#allocation2 + $0x1c0] sm:$0xff]
    %v118 = vld [vmem:[#allocation2 + $0x1c8] sm:$0xff]
    %v119 = vld [vmem:[#allocation2 + $0x1d0] sm:$0xff]
    %v120 = vld [vmem:[#allocation2 + $0x1d8] sm:$0xff]
    %v121 = vld [vmem:[#allocation2 + $0x1e0] sm:$0xff]
    %v122 = vld [vmem:[#allocation2 + $0x1e8] sm:$0xff]
    %v123 = vld [vmem:[#allocation2 + $0x1f0] sm:$0xff]
    %v124 = vld [vmem:[#allocation2 + $0x1f8] sm:$0xff]
    %v125 = vld [vmem:[#allocation2 + $0x200] sm:$0xff]
    %v126 = vld [vmem:[#allocation2 + $0x208] sm:$0xff]
    %v127 = vld [vmem:[#allocation2 + $0x210] sm:$0xff]
    %v128 = vld [vmem:[#allocation2 + $0x218] sm:$0xff]
    %v129 = vld [vmem:[#allocation2 + $0x220] sm:$0xff]
    %v130 = vld [vmem:[#allocation2 + $0x228] sm:$0xff]
    %v131 = vld [vmem:[#allocation2 + $0x230] sm:$0xff]
    %v132 = vld [vmem:[#allocation2 + $0x238] sm:$0xff]
    %v133 = vld [vmem:[#allocation2 + $0x240] sm:$0xff]
    %v134 = vld [vmem:[#allocation2 + $0x248] sm:$0xff]
    %v135 = vld [vmem:[#allocation2 + $0x250] sm:$0xff]
    %v136 = vld [vmem:[#allocation2 + $0x258] sm:$0xff]
    %v137 = vld [vmem:[#allocation2 + $0x260] sm:$0xff]
    %v138 = vld [vmem:[#allocation2 + $0x268] sm:$0xff]
    %v139 = vld [vmem:[#allocation2 + $0x270] sm:$0xff]
    %v140 = vld [vmem:[#allocation2 + $0x278] sm:$0xff]
    %v141 = vld [vmem:[#allocation2 + $0x280] sm:$0xff]
    %v142 = vld [vmem:[#allocation2 + $0x288] sm:$0xff]
    %v143 = vld [vmem:[#allocation2 + $0x290] sm:$0xff]
    %v144 = vld [vmem:[#allocation2 + $0x298] sm:$0xff]
    %v145 = vld [vmem:[#allocation2 + $0x2a0] sm:$0xff]
    %v146 = vld [vmem:[#allocation2 + $0x2a8] sm:$0xff]
    %v147 = vld [vmem:[#allocation2 + $0x2b0] sm:$0xff]
    %v148 = vld [vmem:[#allocation2 + $0x2b8] sm:$0xff]
    %v149 = vld [vmem:[#allocation2 + $0x2c0] sm:$0xff]
    %v150 = vld [vmem:[#allocation2 + $0x2c8] sm:$0xff]
    %v151 = vld [vmem:[#allocation2 + $0x2d0] sm:$0xff]
    %v152 = vld [vmem:[#allocation2 + $0x2d8] sm:$0xff]
    %v153 = vld [vmem:[#allocation2 + $0x2e0] sm:$0xff]
    %v154 = vld [vmem:[#allocation2 + $0x2e8] sm:$0xff]
    %v155 = vld [vmem:[#allocation2 + $0x2f0] sm:$0xff]
    %v156 = vld [vmem:[#allocation2 + $0x2f8] sm:$0xff]
    %v157 = vld [vmem:[#allocation2 + $0x300] sm:$0xff]
    %v158 = vld [vmem:[#allocation2 + $0x308] sm:$0xff]
    %v159 = vld [vmem:[#allocation2 + $0x310] sm:$0xff]
    %v160 = vld [vmem:[#allocation2 + $0x318] sm:$0xff]
    %v161 = vld [vmem:[#allocation2 + $0x320] sm:$0xff]
    %v162 = vld [vmem:[#allocation2 + $0x328] sm:$0xff]
    %v163 = vld [vmem:[#allocation2 + $0x330] sm:$0xff]
    %v164 = vld [vmem:[#allocation2 + $0x338] sm:$0xff]
    %v165 = vld [vmem:[#allocation2 + $0x340] sm:$0xff]
    %v166 = vld [vmem:[#allocation2 + $0x348] sm:$0xff]
    %v167 = vld [vmem:[#allocation2 + $0x350] sm:$0xff]
    %v168 = vld [vmem:[#allocation2 + $0x358] sm:$0xff]
    %v169 = vld [vmem:[#allocation2 + $0x360] sm:$0xff]
    %v170 = vld [vmem:[#allocation2 + $0x368] sm:$0xff]
    %v171 = vld [vmem:[#allocation2 + $0x370] sm:$0xff]
    %v172 = vld [vmem:[#allocation2 + $0x378] sm:$0xff]
    %v173 = vld [vmem:[#allocation2 + $0x380] sm:$0xff]
    %v174 = vld [vmem:[#allocation2 + $0x388] sm:$0xff]
    %v175 = vld [vmem:[#allocation2 + $0x390] sm:$0xff]
    %v176 = vld [vmem:[#allocation2 + $0x398] sm:$0xff]
    %v177 = vld [vmem:[#allocation2 + $0x3a0] sm:$0xff]
    %v178 = vld [vmem:[#allocation2 + $0x3a8] sm:$0xff]
    %v179 = vld [vmem:[#allocation2 + $0x3b0] sm:$0xff]
    %v180 = vld [vmem:[#allocation2 + $0x3b8] sm:$0xff]
    %v181 = vld [vmem:[#allocation2 + $0x3c0] sm:$0xff]
    %v182 = vld [vmem:[#allocation2 + $0x3c8] sm:$0xff]
    %v183 = vld [vmem:[#allocation2 + $0x3d0] sm:$0xff]
    %v184 = vld [vmem:[#allocation2 + $0x3d8] sm:$0xff]
    %v185 = vld [vmem:[#allocation2 + $0x3e0] sm:$0xff]
    %v186 = vld [vmem:[#allocation2 + $0x3e8] sm:$0xff]
    %v187 = vld [vmem:[#allocation2 + $0x3f0] sm:$0xff]
    %v188 = vld [vmem:[#allocation2 + $0x3f8] sm:$0xff]
    %v189 = vld [vmem:[#allocation2 + $0x400] sm:$0xff]
    %v190 = vld [vmem:[#allocation2 + $0x408] sm:$0xff]
    %v191 = vld [vmem:[#allocation2 + $0x410] sm:$0xff]
    %v192 = vld [vmem:[#allocation2 + $0x418] sm:$0xff]
    %v193 = vld [vmem:[#allocation2 + $0x420] sm:$0xff]
    %v194 = vld [vmem:[#allocation2 + $0x428] sm:$0xff]
    %v195 = vld [vmem:[#allocation2 + $0x430] sm:$0xff]
    %v196 = vld [vmem:[#allocation2 + $0x438] sm:$0xff]
    %v197 = vld [vmem:[#allocation2 + $0x440] sm:$0xff]
    %v198 = vld [vmem:[#allocation2 + $0x448] sm:$0xff]
    %v199 = vld [vmem:[#allocation2 + $0x450] sm:$0xff]
    %v200 = vld [vmem:[#allocation2 + $0x458] sm:$0xff]
    %v201 = vld [vmem:[#allocation2 + $0x460] sm:$0xff]
    %v202 = vld [vmem:[#allocation2 + $0x468] sm:$0xff]
    %v203 = vld [vmem:[#allocation2 + $0x470] sm:$0xff]
    %v204 = vld [vmem:[#allocation2 + $0x478] sm:$0xff]
    %v205 = vld [vmem:[#allocation2 + $0x480] sm:$0xff]
    %v206 = vld [vmem:[#allocation2 + $0x488] sm:$0xff]
    %v207 = vld [vmem:[#allocation2 + $0x490] sm:$0xff]
    %v208 = vld [vmem:[#allocation2 + $0x498] sm:$0xff]
    %v209 = vld [vmem:[#allocation2 + $0x4a0] sm:$0xff]
    %v210 = vld [vmem:[#allocation2 + $0x4a8] sm:$0xff]
    %v211 = vld [vmem:[#allocation2 + $0x4b0] sm:$0xff]
    %v212 = vld [vmem:[#allocation2 + $0x4b8] sm:$0xff]
    %v213 = vld [vmem:[#allocation2 + $0x4c0] sm:$0xff]
    %v214 = vld [vmem:[#allocation2 + $0x4c8] sm:$0xff]
    %v215 = vld [vmem:[#allocation2 + $0x4d0] sm:$0xff]
    %v216 = vld [vmem:[#allocation2 + $0x4d8] sm:$0xff]
    %v217 = vld [vmem:[#allocation2 + $0x4e0] sm:$0xff]
    %v218 = vld [vmem:[#allocation2 + $0x4e8] sm:$0xff]
    %v219 = vld [vmem:[#allocation2 + $0x4f0] sm:$0xff]
    %v220 = vld [vmem:[#allocation2 + $0x4f8] sm:$0xff]
    %v221 = vld [vmem:[#allocation2 + $0x500] sm:$0xff]
    %v222 = vld [vmem:[#allocation2 + $0x508] sm:$0xff]
    %v223 = vld [vmem:[#allocation2 + $0x510] sm:$0xff]
    %v224 = vld [vmem:[#allocation2 + $0x518] sm:$0xff]
    %v225 = vld [vmem:[#allocation2 + $0x520] sm:$0xff]
    %v226 = vld [vmem:[#allocation2 + $0x528] sm:$0xff]
    %v227 = vld [vmem:[#allocation2 + $0x530] sm:$0xff]
    %v228 = vld [vmem:[#allocation2 + $0x538] sm:$0xff]
    %v229 = vld [vmem:[#allocation2 + $0x540] sm:$0xff]
    %v230 = vld [vmem:[#allocation2 + $0x548] sm:$0xff]
    %v231 = vld [vmem:[#allocation2 + $0x550] sm:$0xff]
    %v232 = vld [vmem:[#allocation2 + $0x558] sm:$0xff]
    %v233 = vld [vmem:[#allocation2 + $0x560] sm:$0xff]
    %v234 = vld [vmem:[#allocation2 + $0x568] sm:$0xff]
    %v235 = vld [vmem:[#allocation2 + $0x570] sm:$0xff]
    %v236 = vld [vmem:[#allocation2 + $0x578] sm:$0xff]
    %v237 = vld [vmem:[#allocation2 + $0x580] sm:$0xff]
    %v238 = vld [vmem:[#allocation2 + $0x588] sm:$0xff]
    %v239 = vld [vmem:[#allocation2 + $0x590] sm:$0xff]
    %v240 = vld [vmem:[#allocation2 + $0x598] sm:$0xff]
    %v241 = vld [vmem:[#allocation2 + $0x5a0] sm:$0xff]
    %v242 = vld [vmem:[#allocation2 + $0x5a8] sm:$0xff]
    %v243 = vld [vmem:[#allocation2 + $0x5b0] sm:$0xff]
    %v244 = vld [vmem:[#allocation2 + $0x5b8] sm:$0xff]
    %v245 = vld [vmem:[#allocation2 + $0x5c0] sm:$0xff]
    %v246 = vld [vmem:[#allocation2 + $0x5c8] sm:$0xff]
    %v247 = vld [vmem:[#allocation2 + $0x5d0] sm:$0xff]
    %v248 = vld [vmem:[#allocation2 + $0x5d8] sm:$0xff]
    %v249 = vld [vmem:[#allocation2 + $0x5e0] sm:$0xff]
    %v250 = vld [vmem:[#allocation2 + $0x5e8] sm:$0xff]
    %v251 = vld [vmem:[#allocation2 + $0x5f0] sm:$0xff]
    %v252 = vld [vmem:[#allocation2 + $0x5f8] sm:$0xff]
    %v253 = vld [vmem:[#allocation2 + $0x600] sm:$0xff]
    %v254 = vld [vmem:[#allocation2 + $0x608] sm:$0xff]
    %v255 = vld [vmem:[#allocation2 + $0x610] sm:$0xff]
    %v256 = vld [vmem:[#allocation2 + $0x618] sm:$0xff]
    %v257 = vld [vmem:[#allocation2 + $0x620] sm:$0xff]
    %v258 = vld [vmem:[#allocation2 + $0x628] sm:$0xff]
    %v259 = vld [vmem:[#allocation2 + $0x630] sm:$0xff]
    %v260 = vld [vmem:[#allocation2 + $0x638] sm:$0xff]
    %v261 = vld [vmem:[#allocation2 + $0x640] sm:$0xff]
    %v262 = vld [vmem:[#allocation2 + $0x648] sm:$0xff]
    %v263 = vld [vmem:[#allocation2 + $0x650] sm:$0xff]
    %v264 = vld [vmem:[#allocation2 + $0x658] sm:$0xff]
    %v265 = vld [vmem:[#allocation2 + $0x660] sm:$0xff]
    %v266 = vld [vmem:[#allocation2 + $0x668] sm:$0xff]
    %v267 = vld [vmem:[#allocation2 + $0x670] sm:$0xff]
    %v268 = vld [vmem:[#allocation2 + $0x678] sm:$0xff]
    %v269 = vld [vmem:[#allocation2 + $0x680] sm:$0xff]
    %v270 = vld [vmem:[#allocation2 + $0x688] sm:$0xff]
    %v271 = vld [vmem:[#allocation2 + $0x690] sm:$0xff]
    %v272 = vld [vmem:[#allocation2 + $0x698] sm:$0xff]
    %v273 = vld [vmem:[#allocation2 + $0x6a0] sm:$0xff]
    %v274 = vld [vmem:[#allocation2 + $0x6a8] sm:$0xff]
    %v275 = vld [vmem:[#allocation2 + $0x6b0] sm:$0xff]
    %v276 = vld [vmem:[#allocation2 + $0x6b8] sm:$0xff]
    %v277 = vld [vmem:[#allocation2 + $0x6c0] sm:$0xff]
    %v278 = vld [vmem:[#allocation2 + $0x6c8] sm:$0xff]
    %v279 = vld [vmem:[#allocation2 + $0x6d0] sm:$0xff]
    %v280 = vld [vmem:[#allocation2 + $0x6d8] sm:$0xff]
    %v281 = vld [vmem:[#allocation2 + $0x6e0] sm:$0xff]
    %v282 = vld [vmem:[#allocation2 + $0x6e8] sm:$0xff]
    %v283 = vld [vmem:[#allocation2 + $0x6f0] sm:$0xff]
    %v284 = vld [vmem:[#allocation2 + $0x6f8] sm:$0xff]
    %v285 = vld [vmem:[#allocation2 + $0x700] sm:$0xff]
    %v286 = vld [vmem:[#allocation2 + $0x708] sm:$0xff]
    %v287 = vld [vmem:[#allocation2 + $0x710] sm:$0xff]
    %v288 = vld [vmem:[#allocation2 + $0x718] sm:$0xff]
    %v289 = vld [vmem:[#allocation2 + $0x720] sm:$0xff]
    %v290 = vld [vmem:[#allocation2 + $0x728] sm:$0xff]
    %v291 = vld [vmem:[#allocation2 + $0x730] sm:$0xff]
    %v292 = vld [vmem:[#allocation2 + $0x738] sm:$0xff]
    %v293 = vld [vmem:[#allocation2 + $0x740] sm:$0xff]
    %v294 = vld [vmem:[#allocation2 + $0x748] sm:$0xff]
    %v295 = vld [vmem:[#allocation2 + $0x750] sm:$0xff]
    %v296 = vld [vmem:[#allocation2 + $0x758] sm:$0xff]
    %v297 = vld [vmem:[#allocation2 + $0x760] sm:$0xff]
    %v298 = vld [vmem:[#allocation2 + $0x768] sm:$0xff]
    %v299 = vld [vmem:[#allocation2 + $0x770] sm:$0xff]
    %v300 = vld [vmem:[#allocation2 + $0x778] sm:$0xff]
    %v301 = vld [vmem:[#allocation2 + $0x780] sm:$0xff]
    %v302 = vld [vmem:[#allocation2 + $0x788] sm:$0xff]
    %v303 = vld [vmem:[#allocation2 + $0x790] sm:$0xff]
    %v304 = vld [vmem:[#allocation2 + $0x798] sm:$0xff]
    %v305 = vld [vmem:[#allocation2 + $0x7a0] sm:$0xff]
    %v306 = vld [vmem:[#allocation2 + $0x7a8] sm:$0xff]
    %v307 = vld [vmem:[#allocation2 + $0x7b0] sm:$0xff]
    %v308 = vld [vmem:[#allocation2 + $0x7b8] sm:$0xff]
    %v309 = vld [vmem:[#allocation2 + $0x7c0] sm:$0xff]
    %v310 = vld [vmem:[#allocation2 + $0x7c8] sm:$0xff]
    %v311 = vld [vmem:[#allocation2 + $0x7d0] sm:$0xff]
    %v312 = vld [vmem:[#allocation2 + $0x7d8] sm:$0xff]
    %v313 = vld [vmem:[#allocation2 + $0x7e0] sm:$0xff]
    %v314 = vld [vmem:[#allocation2 + $0x7e8] sm:$0xff]
    %v315 = vld [vmem:[#allocation2 + $0x7f0] sm:$0xff]
    %v316 = vld [vmem:[#allocation2 + $0x7f8] sm:$0xff]
    %v573 = vunpack.c.l.b16 %v61
    %v574 = vunpack.c.h.b16 %v61
    %v575 = vunpack.c.l.b16 %v62
    %v576 = vunpack.c.h.b16 %v62
    %v577 = vunpack.c.l.b16 %v63
    %v578 = vunpack.c.h.b16 %v63
    %v579 = vunpack.c.l.b16 %v64
    %v580 = vunpack.c.h.b16 %v64
    %v581 = vunpack.c.l.b16 %v65
    %v582 = vunpack.c.h.b16 %v65
    %v583 = vunpack.c.l.b16 %v66
    %v584 = vunpack.c.h.b16 %v66
    %v585 = vunpack.c.l.b16 %v67
    %v586 = vunpack.c.h.b16 %v67
    %v587 = vunpack.c.l.b16 %v68
    %v588 = vunpack.c.h.b16 %v68
    %v589 = vunpack.c.l.b16 %v69
    %v590 = vunpack.c.h.b16 %v69
    %v591 = vunpack.c.l.b16 %v70
    %v592 = vunpack.c.h.b16 %v70
    %v593 = vunpack.c.l.b16 %v71
    %v594 = vunpack.c.h.b16 %v71
    %v595 = vunpack.c.l.b16 %v72
    %v596 = vunpack.c.h.b16 %v72
    %v597 = vunpack.c.l.b16 %v73
    %v598 = vunpack.c.h.b16 %v73
    %v599 = vunpack.c.l.b16 %v74
    %v600 = vunpack.c.h.b16 %v74
    %v601 = vunpack.c.l.b16 %v75
    %v602 = vunpack.c.h.b16 %v75
    %v603 = vunpack.c.l.b16 %v76
    %v604 = vunpack.c.h.b16 %v76
    %v605 = vunpack.c.l.b16 %v77
    %v606 = vunpack.c.h.b16 %v77
    %v607 = vunpack.c.l.b16 %v78
    %v608 = vunpack.c.h.b16 %v78
    %v609 = vunpack.c.l.b16 %v79
    %v610 = vunpack.c.h.b16 %v79
    %v611 = vunpack.c.l.b16 %v80
    %v612 = vunpack.c.h.b16 %v80
    %v613 = vunpack.c.l.b16 %v81
    %v614 = vunpack.c.h.b16 %v81
    %v615 = vunpack.c.l.b16 %v82
    %v616 = vunpack.c.h.b16 %v82
    %v617 = vunpack.c.l.b16 %v83
    %v618 = vunpack.c.h.b16 %v83
    %v619 = vunpack.c.l.b16 %v84
    %v620 = vunpack.c.h.b16 %v84
    %v621 = vunpack.c.l.b16 %v85
    %v622 = vunpack.c.h.b16 %v85
    %v623 = vunpack.c.l.b16 %v86
    %v624 = vunpack.c.h.b16 %v86
    %v625 = vunpack.c.l.b16 %v87
    %v626 = vunpack.c.h.b16 %v87
    %v627 = vunpack.c.l.b16 %v88
    %v628 = vunpack.c.h.b16 %v88
    %v629 = vunpack.c.l.b16 %v89
    %v630 = vunpack.c.h.b16 %v89
    %v631 = vunpack.c.l.b16 %v90
    %v632 = vunpack.c.h.b16 %v90
    %v633 = vunpack.c.l.b16 %v91
    %v634 = vunpack.c.h.b16 %v91
    %v635 = vunpack.c.l.b16 %v92
    %v636 = vunpack.c.h.b16 %v92
    %v637 = vunpack.c.l.b16 %v93
    %v638 = vunpack.c.h.b16 %v93
    %v639 = vunpack.c.l.b16 %v94
    %v640 = vunpack.c.h.b16 %v94
    %v641 = vunpack.c.l.b16 %v95
    %v642 = vunpack.c.h.b16 %v95
    %v643 = vunpack.c.l.b16 %v96
    %v644 = vunpack.c.h.b16 %v96
    %v645 = vunpack.c.l.b16 %v97
    %v646 = vunpack.c.h.b16 %v97
    %v647 = vunpack.c.l.b16 %v98
    %v648 = vunpack.c.h.b16 %v98
    %v649 = vunpack.c.l.b16 %v99
    %v650 = vunpack.c.h.b16 %v99
    %v651 = vunpack.c.l.b16 %v100
    %v652 = vunpack.c.h.b16 %v100
    %v653 = vunpack.c.l.b16 %v101
    %v654 = vunpack.c.h.b16 %v101
    %v655 = vunpack.c.l.b16 %v102
    %v656 = vunpack.c.h.b16 %v102
    %v657 = vunpack.c.l.b16 %v103
    %v658 = vunpack.c.h.b16 %v103
    %v659 = vunpack.c.l.b16 %v104
    %v660 = vunpack.c.h.b16 %v104
    %v661 = vunpack.c.l.b16 %v105
    %v662 = vunpack.c.h.b16 %v105
    %v663 = vunpack.c.l.b16 %v106
    %v664 = vunpack.c.h.b16 %v106
    %v665 = vunpack.c.l.b16 %v107
    %v666 = vunpack.c.h.b16 %v107
    %v667 = vunpack.c.l.b16 %v108
    %v668 = vunpack.c.h.b16 %v108
    %v669 = vunpack.c.l.b16 %v109
    %v670 = vunpack.c.h.b16 %v109
    %v671 = vunpack.c.l.b16 %v110
    %v672 = vunpack.c.h.b16 %v110
    %v673 = vunpack.c.l.b16 %v111
    %v674 = vunpack.c.h.b16 %v111
    %v675 = vunpack.c.l.b16 %v112
    %v676 = vunpack.c.h.b16 %v112
    %v677 = vunpack.c.l.b16 %v113
    %v678 = vunpack.c.h.b16 %v113
    %v679 = vunpack.c.l.b16 %v114
    %v680 = vunpack.c.h.b16 %v114
    %v681 = vunpack.c.l.b16 %v115
    %v682 = vunpack.c.h.b16 %v115
    %v683 = vunpack.c.l.b16 %v116
    %v684 = vunpack.c.h.b16 %v116
    %v685 = vunpack.c.l.b16 %v117
    %v686 = vunpack.c.h.b16 %v117
    %v687 = vunpack.c.l.b16 %v118
    %v688 = vunpack.c.h.b16 %v118
    %v689 = vunpack.c.l.b16 %v119
    %v690 = vunpack.c.h.b16 %v119
    %v691 = vunpack.c.l.b16 %v120
    %v692 = vunpack.c.h.b16 %v120
    %v693 = vunpack.c.l.b16 %v121
    %v694 = vunpack.c.h.b16 %v121
    %v695 = vunpack.c.l.b16 %v122
    %v696 = vunpack.c.h.b16 %v122
    %v697 = vunpack.c.l.b16 %v123
    %v698 = vunpack.c.h.b16 %v123
    %v699 = vunpack.c.l.b16 %v124
    %v700 = vunpack.c.h.b16 %v124
    %v701 = vunpack.c.l.b16 %v125
    %v702 = vunpack.c.h.b16 %v125
    %v703 = vunpack.c.l.b16 %v126
    %v704 = vunpack.c.h.b16 %v126
    %v705 = vunpack.c.l.b16 %v127
    %v706 = vunpack.c.h.b16 %v127
    %v707 = vunpack.c.l.b16 %v128
    %v708 = vunpack.c.h.b16 %v128
    %v709 = vunpack.c.l.b16 %v129
    %v710 = vunpack.c.h.b16 %v129
    %v711 = vunpack.c.l.b16 %v130
    %v712 = vunpack.c.h.b16 %v130
    %v713 = vunpack.c.l.b16 %v131
    %v714 = vunpack.c.h.b16 %v131
    %v715 = vunpack.c.l.b16 %v132
    %v716 = vunpack.c.h.b16 %v132
    %v717 = vunpack.c.l.b16 %v133
    %v718 = vunpack.c.h.b16 %v133
    %v719 = vunpack.c.l.b16 %v134
    %v720 = vunpack.c.h.b16 %v134
    %v721 = vunpack.c.l.b16 %v135
    %v722 = vunpack.c.h.b16 %v135
    %v723 = vunpack.c.l.b16 %v136
    %v724 = vunpack.c.h.b16 %v136
    %v725 = vunpack.c.l.b16 %v137
    %v726 = vunpack.c.h.b16 %v137
    %v727 = vunpack.c.l.b16 %v138
    %v728 = vunpack.c.h.b16 %v138
    %v729 = vunpack.c.l.b16 %v139
    %v730 = vunpack.c.h.b16 %v139
    %v731 = vunpack.c.l.b16 %v140
    %v732 = vunpack.c.h.b16 %v140
    %v733 = vunpack.c.l.b16 %v141
    %v734 = vunpack.c.h.b16 %v141
    %v735 = vunpack.c.l.b16 %v142
    %v736 = vunpack.c.h.b16 %v142
    %v737 = vunpack.c.l.b16 %v143
    %v738 = vunpack.c.h.b16 %v143
    %v739 = vunpack.c.l.b16 %v144
    %v740 = vunpack.c.h.b16 %v144
    %v741 = vunpack.c.l.b16 %v145
    %v742 = vunpack.c.h.b16 %v145
    %v743 = vunpack.c.l.b16 %v146
    %v744 = vunpack.c.h.b16 %v146
    %v745 = vunpack.c.l.b16 %v147
    %v746 = vunpack.c.h.b16 %v147
    %v747 = vunpack.c.l.b16 %v148
    %v748 = vunpack.c.h.b16 %v148
    %v749 = vunpack.c.l.b16 %v149
    %v750 = vunpack.c.h.b16 %v149
    %v751 = vunpack.c.l.b16 %v150
    %v752 = vunpack.c.h.b16 %v150
    %v753 = vunpack.c.l.b16 %v151
    %v754 = vunpack.c.h.b16 %v151
    %v755 = vunpack.c.l.b16 %v152
    %v756 = vunpack.c.h.b16 %v152
    %v757 = vunpack.c.l.b16 %v153
    %v758 = vunpack.c.h.b16 %v153
    %v759 = vunpack.c.l.b16 %v154
    %v760 = vunpack.c.h.b16 %v154
    %v761 = vunpack.c.l.b16 %v155
    %v762 = vunpack.c.h.b16 %v155
    %v763 = vunpack.c.l.b16 %v156
    %v764 = vunpack.c.h.b16 %v156
    %v765 = vunpack.c.l.b16 %v157
    %v766 = vunpack.c.h.b16 %v157
    %v767 = vunpack.c.l.b16 %v158
    %v768 = vunpack.c.h.b16 %v158
    %v769 = vunpack.c.l.b16 %v159
    %v770 = vunpack.c.h.b16 %v159
    %v771 = vunpack.c.l.b16 %v160
    %v772 = vunpack.c.h.b16 %v160
    %v773 = vunpack.c.l.b16 %v161
    %v774 = vunpack.c.h.b16 %v161
    %v775 = vunpack.c.l.b16 %v162
    %v776 = vunpack.c.h.b16 %v162
    %v777 = vunpack.c.l.b16 %v163
    %v778 = vunpack.c.h.b16 %v163
    %v779 = vunpack.c.l.b16 %v164
    %v780 = vunpack.c.h.b16 %v164
    %v781 = vunpack.c.l.b16 %v165
    %v782 = vunpack.c.h.b16 %v165
    %v783 = vunpack.c.l.b16 %v166
    %v784 = vunpack.c.h.b16 %v166
    %v785 = vunpack.c.l.b16 %v167
    %v786 = vunpack.c.h.b16 %v167
    %v787 = vunpack.c.l.b16 %v168
    %v788 = vunpack.c.h.b16 %v168
    %v789 = vunpack.c.l.b16 %v169
    %v790 = vunpack.c.h.b16 %v169
    %v791 = vunpack.c.l.b16 %v170
    %v792 = vunpack.c.h.b16 %v170
    %v793 = vunpack.c.l.b16 %v171
    %v794 = vunpack.c.h.b16 %v171
    %v795 = vunpack.c.l.b16 %v172
    %v796 = vunpack.c.h.b16 %v172
    %v797 = vunpack.c.l.b16 %v173
    %v798 = vunpack.c.h.b16 %v173
    %v799 = vunpack.c.l.b16 %v174
    %v800 = vunpack.c.h.b16 %v174
    %v801 = vunpack.c.l.b16 %v175
    %v802 = vunpack.c.h.b16 %v175
    %v803 = vunpack.c.l.b16 %v176
    %v804 = vunpack.c.h.b16 %v176
    %v805 = vunpack.c.l.b16 %v177
    %v806 = vunpack.c.h.b16 %v177
    %v807 = vunpack.c.l.b16 %v178
    %v808 = vunpack.c.h.b16 %v178
    %v809 = vunpack.c.l.b16 %v179
    %v810 = vunpack.c.h.b16 %v179
    %v811 = vunpack.c.l.b16 %v180
    %v812 = vunpack.c.h.b16 %v180
    %v813 = vunpack.c.l.b16 %v181
    %v814 = vunpack.c.h.b16 %v181
    %v815 = vunpack.c.l.b16 %v182
    %v816 = vunpack.c.h.b16 %v182
    %v817 = vunpack.c.l.b16 %v183
    %v818 = vunpack.c.h.b16 %v183
    %v819 = vunpack.c.l.b16 %v184
    %v820 = vunpack.c.h.b16 %v184
    %v821 = vunpack.c.l.b16 %v185
    %v822 = vunpack.c.h.b16 %v185
    %v823 = vunpack.c.l.b16 %v186
    %v824 = vunpack.c.h.b16 %v186
    %v825 = vunpack.c.l.b16 %v187
    %v826 = vunpack.c.h.b16 %v187
    %v827 = vunpack.c.l.b16 %v188
    %v828 = vunpack.c.h.b16 %v188
    %v829 = vunpack.c.l.b16 %v189
    %v830 = vunpack.c.h.b16 %v189
    %v831 = vunpack.c.l.b16 %v190
    %v832 = vunpack.c.h.b16 %v190
    %v833 = vunpack.c.l.b16 %v191
    %v834 = vunpack.c.h.b16 %v191
    %v835 = vunpack.c.l.b16 %v192
    %v836 = vunpack.c.h.b16 %v192
    %v837 = vunpack.c.l.b16 %v193
    %v838 = vunpack.c.h.b16 %v193
    %v839 = vunpack.c.l.b16 %v194
    %v840 = vunpack.c.h.b16 %v194
    %v841 = vunpack.c.l.b16 %v195
    %v842 = vunpack.c.h.b16 %v195
    %v843 = vunpack.c.l.b16 %v196
    %v844 = vunpack.c.h.b16 %v196
    %v845 = vunpack.c.l.b16 %v197
    %v846 = vunpack.c.h.b16 %v197
    %v847 = vunpack.c.l.b16 %v198
    %v848 = vunpack.c.h.b16 %v198
    %v849 = vunpack.c.l.b16 %v199
    %v850 = vunpack.c.h.b16 %v199
    %v851 = vunpack.c.l.b16 %v200
    %v852 = vunpack.c.h.b16 %v200
    %v853 = vunpack.c.l.b16 %v201
    %v854 = vunpack.c.h.b16 %v201
    %v855 = vunpack.c.l.b16 %v202
    %v856 = vunpack.c.h.b16 %v202
    %v857 = vunpack.c.l.b16 %v203
    %v858 = vunpack.c.h.b16 %v203
    %v859 = vunpack.c.l.b16 %v204
    %v860 = vunpack.c.h.b16 %v204
    %v861 = vunpack.c.l.b16 %v205
    %v862 = vunpack.c.h.b16 %v205
    %v863 = vunpack.c.l.b16 %v206
    %v864 = vunpack.c.h.b16 %v206
    %v865 = vunpack.c.l.b16 %v207
    %v866 = vunpack.c.h.b16 %v207
    %v867 = vunpack.c.l.b16 %v208
    %v868 = vunpack.c.h.b16 %v208
    %v869 = vunpack.c.l.b16 %v209
    %v870 = vunpack.c.h.b16 %v209
    %v871 = vunpack.c.l.b16 %v210
    %v872 = vunpack.c.h.b16 %v210
    %v873 = vunpack.c.l.b16 %v211
    %v874 = vunpack.c.h.b16 %v211
    %v875 = vunpack.c.l.b16 %v212
    %v876 = vunpack.c.h.b16 %v212
    %v877 = vunpack.c.l.b16 %v213
    %v878 = vunpack.c.h.b16 %v213
    %v879 = vunpack.c.l.b16 %v214
    %v880 = vunpack.c.h.b16 %v214
    %v881 = vunpack.c.l.b16 %v215
    %v882 = vunpack.c.h.b16 %v215
    %v883 = vunpack.c.l.b16 %v216
    %v884 = vunpack.c.h.b16 %v216
    %v885 = vunpack.c.l.b16 %v217
    %v886 = vunpack.c.h.b16 %v217
    %v887 = vunpack.c.l.b16 %v218
    %v888 = vunpack.c.h.b16 %v218
    %v889 = vunpack.c.l.b16 %v219
    %v890 = vunpack.c.h.b16 %v219
    %v891 = vunpack.c.l.b16 %v220
    %v892 = vunpack.c.h.b16 %v220
    %v893 = vunpack.c.l.b16 %v221
    %v894 = vunpack.c.h.b16 %v221
    %v895 = vunpack.c.l.b16 %v222
    %v896 = vunpack.c.h.b16 %v222
    %v897 = vunpack.c.l.b16 %v223
    %v898 = vunpack.c.h.b16 %v223
    %v899 = vunpack.c.l.b16 %v224
    %v900 = vunpack.c.h.b16 %v224
    %v901 = vunpack.c.l.b16 %v225
    %v902 = vunpack.c.h.b16 %v225
    %v903 = vunpack.c.l.b16 %v226
    %v904 = vunpack.c.h.b16 %v226
    %v905 = vunpack.c.l.b16 %v227
    %v906 = vunpack.c.h.b16 %v227
    %v907 = vunpack.c.l.b16 %v228
    %v908 = vunpack.c.h.b16 %v228
    %v909 = vunpack.c.l.b16 %v229
    %v910 = vunpack.c.h.b16 %v229
    %v911 = vunpack.c.l.b16 %v230
    %v912 = vunpack.c.h.b16 %v230
    %v913 = vunpack.c.l.b16 %v231
    %v914 = vunpack.c.h.b16 %v231
    %v915 = vunpack.c.l.b16 %v232
    %v916 = vunpack.c.h.b16 %v232
    %v917 = vunpack.c.l.b16 %v233
    %v918 = vunpack.c.h.b16 %v233
    %v919 = vunpack.c.l.b16 %v234
    %v920 = vunpack.c.h.b16 %v234
    %v921 = vunpack.c.l.b16 %v235
    %v922 = vunpack.c.h.b16 %v235
    %v923 = vunpack.c.l.b16 %v236
    %v924 = vunpack.c.h.b16 %v236
    %v925 = vunpack.c.l.b16 %v237
    %v926 = vunpack.c.h.b16 %v237
    %v927 = vunpack.c.l.b16 %v238
    %v928 = vunpack.c.h.b16 %v238
    %v929 = vunpack.c.l.b16 %v239
    %v930 = vunpack.c.h.b16 %v239
    %v931 = vunpack.c.l.b16 %v240
    %v932 = vunpack.c.h.b16 %v240
    %v933 = vunpack.c.l.b16 %v241
    %v934 = vunpack.c.h.b16 %v241
    %v935 = vunpack.c.l.b16 %v242
    %v936 = vunpack.c.h.b16 %v242
    %v937 = vunpack.c.l.b16 %v243
    %v938 = vunpack.c.h.b16 %v243
    %v939 = vunpack.c.l.b16 %v244
    %v940 = vunpack.c.h.b16 %v244
    %v941 = vunpack.c.l.b16 %v245
    %v942 = vunpack.c.h.b16 %v245
    %v943 = vunpack.c.l.b16 %v246
    %v944 = vunpack.c.h.b16 %v246
    %v945 = vunpack.c.l.b16 %v247
    %v946 = vunpack.c.h.b16 %v247
    %v947 = vunpack.c.l.b16 %v248
    %v948 = vunpack.c.h.b16 %v248
    %v949 = vunpack.c.l.b16 %v249
    %v950 = vunpack.c.h.b16 %v249
    %v951 = vunpack.c.l.b16 %v250
    %v952 = vunpack.c.h.b16 %v250
    %v953 = vunpack.c.l.b16 %v251
    %v954 = vunpack.c.h.b16 %v251
    %v955 = vunpack.c.l.b16 %v252
    %v956 = vunpack.c.h.b16 %v252
    %v957 = vunpack.c.l.b16 %v253
    %v958 = vunpack.c.h.b16 %v253
    %v959 = vunpack.c.l.b16 %v254
    %v960 = vunpack.c.h.b16 %v254
    %v961 = vunpack.c.l.b16 %v255
    %v962 = vunpack.c.h.b16 %v255
    %v963 = vunpack.c.l.b16 %v256
    %v964 = vunpack.c.h.b16 %v256
    %v965 = vunpack.c.l.b16 %v257
    %v966 = vunpack.c.h.b16 %v257
    %v967 = vunpack.c.l.b16 %v258
    %v968 = vunpack.c.h.b16 %v258
    %v969 = vunpack.c.l.b16 %v259
    %v970 = vunpack.c.h.b16 %v259
    %v971 = vunpack.c.l.b16 %v260
    %v972 = vunpack.c.h.b16 %v260
    %v973 = vunpack.c.l.b16 %v261
    %v974 = vunpack.c.h.b16 %v261
    %v975 = vunpack.c.l.b16 %v262
    %v976 = vunpack.c.h.b16 %v262
    %v977 = vunpack.c.l.b16 %v263
    %v978 = vunpack.c.h.b16 %v263
    %v979 = vunpack.c.l.b16 %v264
    %v980 = vunpack.c.h.b16 %v264
    %v981 = vunpack.c.l.b16 %v265
    %v982 = vunpack.c.h.b16 %v265
    %v983 = vunpack.c.l.b16 %v266
    %v984 = vunpack.c.h.b16 %v266
    %v985 = vunpack.c.l.b16 %v267
    %v986 = vunpack.c.h.b16 %v267
    %v987 = vunpack.c.l.b16 %v268
    %v988 = vunpack.c.h.b16 %v268
    %v989 = vunpack.c.l.b16 %v269
    %v990 = vunpack.c.h.b16 %v269
    %v991 = vunpack.c.l.b16 %v270
    %v992 = vunpack.c.h.b16 %v270
    %v993 = vunpack.c.l.b16 %v271
    %v994 = vunpack.c.h.b16 %v271
    %v995 = vunpack.c.l.b16 %v272
    %v996 = vunpack.c.h.b16 %v272
    %v997 = vunpack.c.l.b16 %v273
    %v998 = vunpack.c.h.b16 %v273
    %v999 = vunpack.c.l.b16 %v274
    %v1000 = vunpack.c.h.b16 %v274
    %v1001 = vunpack.c.l.b16 %v275
    %v1002 = vunpack.c.h.b16 %v275
    %v1003 = vunpack.c.l.b16 %v276
    %v1004 = vunpack.c.h.b16 %v276
    %v1005 = vunpack.c.l.b16 %v277
    %v1006 = vunpack.c.h.b16 %v277
    %v1007 = vunpack.c.l.b16 %v278
    %v1008 = vunpack.c.h.b16 %v278
    %v1009 = vunpack.c.l.b16 %v279
    %v1010 = vunpack.c.h.b16 %v279
    %v1011 = vunpack.c.l.b16 %v280
    %v1012 = vunpack.c.h.b16 %v280
    %v1013 = vunpack.c.l.b16 %v281
    %v1014 = vunpack.c.h.b16 %v281
    %v1015 = vunpack.c.l.b16 %v282
    %v1016 = vunpack.c.h.b16 %v282
    %v1017 = vunpack.c.l.b16 %v283
    %v1018 = vunpack.c.h.b16 %v283
    %v1019 = vunpack.c.l.b16 %v284
    %v1020 = vunpack.c.h.b16 %v284
    %v1021 = vunpack.c.l.b16 %v285
    %v1022 = vunpack.c.h.b16 %v285
    %v1023 = vunpack.c.l.b16 %v286
    %v1024 = vunpack.c.h.b16 %v286
    %v1025 = vunpack.c.l.b16 %v287
    %v1026 = vunpack.c.h.b16 %v287
    %v1027 = vunpack.c.l.b16 %v288
    %v1028 = vunpack.c.h.b16 %v288
    %v1029 = vunpack.c.l.b16 %v289
    %v1030 = vunpack.c.h.b16 %v289
    %v1031 = vunpack.c.l.b16 %v290
    %v1032 = vunpack.c.h.b16 %v290
    %v1033 = vunpack.c.l.b16 %v291
    %v1034 = vunpack.c.h.b16 %v291
    %v1035 = vunpack.c.l.b16 %v292
    %v1036 = vunpack.c.h.b16 %v292
    %v1037 = vunpack.c.l.b16 %v293
    %v1038 = vunpack.c.h.b16 %v293
    %v1039 = vunpack.c.l.b16 %v294
    %v1040 = vunpack.c.h.b16 %v294
    %v1041 = vunpack.c.l.b16 %v295
    %v1042 = vunpack.c.h.b16 %v295
    %v1043 = vunpack.c.l.b16 %v296
    %v1044 = vunpack.c.h.b16 %v296
    %v1045 = vunpack.c.l.b16 %v297
    %v1046 = vunpack.c.h.b16 %v297
    %v1047 = vunpack.c.l.b16 %v298
    %v1048 = vunpack.c.h.b16 %v298
    %v1049 = vunpack.c.l.b16 %v299
    %v1050 = vunpack.c.h.b16 %v299
    %v1051 = vunpack.c.l.b16 %v300
    %v1052 = vunpack.c.h.b16 %v300
    %v1053 = vunpack.c.l.b16 %v301
    %v1054 = vunpack.c.h.b16 %v301
    %v1055 = vunpack.c.l.b16 %v302
    %v1056 = vunpack.c.h.b16 %v302
    %v1057 = vunpack.c.l.b16 %v303
    %v1058 = vunpack.c.h.b16 %v303
    %v1059 = vunpack.c.l.b16 %v304
    %v1060 = vunpack.c.h.b16 %v304
    %v1061 = vunpack.c.l.b16 %v305
    %v1062 = vunpack.c.h.b16 %v305
    %v1063 = vunpack.c.l.b16 %v306
    %v1064 = vunpack.c.h.b16 %v306
    %v1065 = vunpack.c.l.b16 %v307
    %v1066 = vunpack.c.h.b16 %v307
    %v1067 = vunpack.c.l.b16 %v308
    %v1068 = vunpack.c.h.b16 %v308
    %v1069 = vunpack.c.l.b16 %v309
    %v1070 = vunpack.c.h.b16 %v309
    %v1071 = vunpack.c.l.b16 %v310
    %v1072 = vunpack.c.h.b16 %v310
    %v1073 = vunpack.c.l.b16 %v311
    %v1074 = vunpack.c.h.b16 %v311
    %v1075 = vunpack.c.l.b16 %v312
    %v1076 = vunpack.c.h.b16 %v312
    %v1077 = vunpack.c.l.b16 %v313
    %v1078 = vunpack.c.h.b16 %v313
    %v1079 = vunpack.c.l.b16 %v314
    %v1080 = vunpack.c.h.b16 %v314
    %v1081 = vunpack.c.l.b16 %v315
    %v1082 = vunpack.c.h.b16 %v315
    %v1083 = vunpack.c.l.b16 %v316
    %v1084 = vunpack.c.h.b16 %v316
    %v1085 = vpack.c.b16 %v605, %v573
    %v1086 = vpack.c.b16 %v606, %v574
    %v1087 = vpack.c.b16 %v607, %v575
    %v1088 = vpack.c.b16 %v608, %v576
    %v1089 = vpack.c.b16 %v609, %v577
    %v1090 = vpack.c.b16 %v610, %v578
    %v1091 = vpack.c.b16 %v611, %v579
    %v1092 = vpack.c.b16 %v612, %v580
    %v1093 = vpack.c.b16 %v613, %v581
    %v1094 = vpack.c.b16 %v614, %v582
    %v1095 = vpack.c.b16 %v615, %v583
    %v1096 = vpack.c.b16 %v616, %v584
    %v1097 = vpack.c.b16 %v617, %v585
    %v1098 = vpack.c.b16 %v618, %v586
    %v1099 = vpack.c.b16 %v619, %v587
    %v1100 = vpack.c.b16 %v620, %v588
    %v1101 = vpack.c.b16 %v621, %v589
    %v1102 = vpack.c.b16 %v622, %v590
    %v1103 = vpack.c.b16 %v623, %v591
    %v1104 = vpack.c.b16 %v624, %v592
    %v1105 = vpack.c.b16 %v625, %v593
    %v1106 = vpack.c.b16 %v626, %v594
    %v1107 = vpack.c.b16 %v627, %v595
    %v1108 = vpack.c.b16 %v628, %v596
    %v1109 = vpack.c.b16 %v629, %v597
    %v1110 = vpack.c.b16 %v630, %v598
    %v1111 = vpack.c.b16 %v631, %v599
    %v1112 = vpack.c.b16 %v632, %v600
    %v1113 = vpack.c.b16 %v633, %v601
    %v1114 = vpack.c.b16 %v634, %v602
    %v1115 = vpack.c.b16 %v635, %v603
    %v1116 = vpack.c.b16 %v636, %v604
    %v1117 = vpack.c.b16 %v669, %v637
    %v1118 = vpack.c.b16 %v670, %v638
    %v1119 = vpack.c.b16 %v671, %v639
    %v1120 = vpack.c.b16 %v672, %v640
    %v1121 = vpack.c.b16 %v673, %v641
    %v1122 = vpack.c.b16 %v674, %v642
    %v1123 = vpack.c.b16 %v675, %v643
    %v1124 = vpack.c.b16 %v676, %v644
    %v1125 = vpack.c.b16 %v677, %v645
    %v1126 = vpack.c.b16 %v678, %v646
    %v1127 = vpack.c.b16 %v679, %v647
    %v1128 = vpack.c.b16 %v680, %v648
    %v1129 = vpack.c.b16 %v681, %v649
    %v1130 = vpack.c.b16 %v682, %v650
    %v1131 = vpack.c.b16 %v683, %v651
    %v1132 = vpack.c.b16 %v684, %v652
    %v1133 = vpack.c.b16 %v685, %v653
    %v1134 = vpack.c.b16 %v686, %v654
    %v1135 = vpack.c.b16 %v687, %v655
    %v1136 = vpack.c.b16 %v688, %v656
    %v1137 = vpack.c.b16 %v689, %v657
    %v1138 = vpack.c.b16 %v690, %v658
    %v1139 = vpack.c.b16 %v691, %v659
    %v1140 = vpack.c.b16 %v692, %v660
    %v1141 = vpack.c.b16 %v693, %v661
    %v1142 = vpack.c.b16 %v694, %v662
    %v1143 = vpack.c.b16 %v695, %v663
    %v1144 = vpack.c.b16 %v696, %v664
    %v1145 = vpack.c.b16 %v697, %v665
    %v1146 = vpack.c.b16 %v698, %v666
    %v1147 = vpack.c.b16 %v699, %v667
    %v1148 = vpack.c.b16 %v700, %v668
    %v1149 = vpack.c.b16 %v733, %v701
    %v1150 = vpack.c.b16 %v734, %v702
    %v1151 = vpack.c.b16 %v735, %v703
    %v1152 = vpack.c.b16 %v736, %v704
    %v1153 = vpack.c.b16 %v737, %v705
    %v1154 = vpack.c.b16 %v738, %v706
    %v1155 = vpack.c.b16 %v739, %v707
    %v1156 = vpack.c.b16 %v740, %v708
    %v1157 = vpack.c.b16 %v741, %v709
    %v1158 = vpack.c.b16 %v742, %v710
    %v1159 = vpack.c.b16 %v743, %v711
    %v1160 = vpack.c.b16 %v744, %v712
    %v1161 = vpack.c.b16 %v745, %v713
    %v1162 = vpack.c.b16 %v746, %v714
    %v1163 = vpack.c.b16 %v747, %v715
    %v1164 = vpack.c.b16 %v748, %v716
    %v1165 = vpack.c.b16 %v749, %v717
    %v1166 = vpack.c.b16 %v750, %v718
    %v1167 = vpack.c.b16 %v751, %v719
    %v1168 = vpack.c.b16 %v752, %v720
    %v1169 = vpack.c.b16 %v753, %v721
    %v1170 = vpack.c.b16 %v754, %v722
    %v1171 = vpack.c.b16 %v755, %v723
    %v1172 = vpack.c.b16 %v756, %v724
    %v1173 = vpack.c.b16 %v757, %v725
    %v1174 = vpack.c.b16 %v758, %v726
    %v1175 = vpack.c.b16 %v759, %v727
    %v1176 = vpack.c.b16 %v760, %v728
    %v1177 = vpack.c.b16 %v761, %v729
    %v1178 = vpack.c.b16 %v762, %v730
    %v1179 = vpack.c.b16 %v763, %v731
    %v1180 = vpack.c.b16 %v764, %v732
    %v1181 = vpack.c.b16 %v797, %v765
    %v1182 = vpack.c.b16 %v798, %v766
    %v1183 = vpack.c.b16 %v799, %v767
    %v1184 = vpack.c.b16 %v800, %v768
    %v1185 = vpack.c.b16 %v801, %v769
    %v1186 = vpack.c.b16 %v802, %v770
    %v1187 = vpack.c.b16 %v803, %v771
    %v1188 = vpack.c.b16 %v804, %v772
    %v1189 = vpack.c.b16 %v805, %v773
    %v1190 = vpack.c.b16 %v806, %v774
    %v1191 = vpack.c.b16 %v807, %v775
    %v1192 = vpack.c.b16 %v808, %v776
    %v1193 = vpack.c.b16 %v809, %v777
    %v1194 = vpack.c.b16 %v810, %v778
    %v1195 = vpack.c.b16 %v811, %v779
    %v1196 = vpack.c.b16 %v812, %v780
    %v1197 = vpack.c.b16 %v813, %v781
    %v1198 = vpack.c.b16 %v814, %v782
    %v1199 = vpack.c.b16 %v815, %v783
    %v1200 = vpack.c.b16 %v816, %v784
    %v1201 = vpack.c.b16 %v817, %v785
    %v1202 = vpack.c.b16 %v818, %v786
    %v1203 = vpack.c.b16 %v819, %v787
    %v1204 = vpack.c.b16 %v820, %v788
    %v1205 = vpack.c.b16 %v821, %v789
    %v1206 = vpack.c.b16 %v822, %v790
    %v1207 = vpack.c.b16 %v823, %v791
    %v1208 = vpack.c.b16 %v824, %v792
    %v1209 = vpack.c.b16 %v825, %v793
    %v1210 = vpack.c.b16 %v826, %v794
    %v1211 = vpack.c.b16 %v827, %v795
    %v1212 = vpack.c.b16 %v828, %v796
    %v1213 = vpack.c.b16 %v861, %v829
    %v1214 = vpack.c.b16 %v862, %v830
    %v1215 = vpack.c.b16 %v863, %v831
    %v1216 = vpack.c.b16 %v864, %v832
    %v1217 = vpack.c.b16 %v865, %v833
    %v1218 = vpack.c.b16 %v866, %v834
    %v1219 = vpack.c.b16 %v867, %v835
    %v1220 = vpack.c.b16 %v868, %v836
    %v1221 = vpack.c.b16 %v869, %v837
    %v1222 = vpack.c.b16 %v870, %v838
    %v1223 = vpack.c.b16 %v871, %v839
    %v1224 = vpack.c.b16 %v872, %v840
    %v1225 = vpack.c.b16 %v873, %v841
    %v1226 = vpack.c.b16 %v874, %v842
    %v1227 = vpack.c.b16 %v875, %v843
    %v1228 = vpack.c.b16 %v876, %v844
    %v1229 = vpack.c.b16 %v877, %v845
    %v1230 = vpack.c.b16 %v878, %v846
    %v1231 = vpack.c.b16 %v879, %v847
    %v1232 = vpack.c.b16 %v880, %v848
    %v1233 = vpack.c.b16 %v881, %v849
    %v1234 = vpack.c.b16 %v882, %v850
    %v1235 = vpack.c.b16 %v883, %v851
    %v1236 = vpack.c.b16 %v884, %v852
    %v1237 = vpack.c.b16 %v885, %v853
    %v1238 = vpack.c.b16 %v886, %v854
    %v1239 = vpack.c.b16 %v887, %v855
    %v1240 = vpack.c.b16 %v888, %v856
    %v1241 = vpack.c.b16 %v889, %v857
    %v1242 = vpack.c.b16 %v890, %v858
    %v1243 = vpack.c.b16 %v891, %v859
    %v1244 = vpack.c.b16 %v892, %v860
    %v1245 = vpack.c.b16 %v925, %v893
    %v1246 = vpack.c.b16 %v926, %v894
    %v1247 = vpack.c.b16 %v927, %v895
    %v1248 = vpack.c.b16 %v928, %v896
    %v1249 = vpack.c.b16 %v929, %v897
    %v1250 = vpack.c.b16 %v930, %v898
    %v1251 = vpack.c.b16 %v931, %v899
    %v1252 = vpack.c.b16 %v932, %v900
    %v1253 = vpack.c.b16 %v933, %v901
    %v1254 = vpack.c.b16 %v934, %v902
    %v1255 = vpack.c.b16 %v935, %v903
    %v1256 = vpack.c.b16 %v936, %v904
    %v1257 = vpack.c.b16 %v937, %v905
    %v1258 = vpack.c.b16 %v938, %v906
    %v1259 = vpack.c.b16 %v939, %v907
    %v1260 = vpack.c.b16 %v940, %v908
    %v1261 = vpack.c.b16 %v941, %v909
    %v1262 = vpack.c.b16 %v942, %v910
    %v1263 = vpack.c.b16 %v943, %v911
    %v1264 = vpack.c.b16 %v944, %v912
    %v1265 = vpack.c.b16 %v945, %v913
    %v1266 = vpack.c.b16 %v946, %v914
    %v1267 = vpack.c.b16 %v947, %v915
    %v1268 = vpack.c.b16 %v948, %v916
    %v1269 = vpack.c.b16 %v949, %v917
    %v1270 = vpack.c.b16 %v950, %v918
    %v1271 = vpack.c.b16 %v951, %v919
    %v1272 = vpack.c.b16 %v952, %v920
    %v1273 = vpack.c.b16 %v953, %v921
    %v1274 = vpack.c.b16 %v954, %v922
    %v1275 = vpack.c.b16 %v955, %v923
    %v1276 = vpack.c.b16 %v956, %v924
    %v1277 = vpack.c.b16 %v989, %v957
    %v1278 = vpack.c.b16 %v990, %v958
    %v1279 = vpack.c.b16 %v991, %v959
    %v1280 = vpack.c.b16 %v992, %v960
    %v1281 = vpack.c.b16 %v993, %v961
    %v1282 = vpack.c.b16 %v994, %v962
    %v1283 = vpack.c.b16 %v995, %v963
    %v1284 = vpack.c.b16 %v996, %v964
    %v1285 = vpack.c.b16 %v997, %v965
    %v1286 = vpack.c.b16 %v998, %v966
    %v1287 = vpack.c.b16 %v999, %v967
    %v1288 = vpack.c.b16 %v1000, %v968
    %v1289 = vpack.c.b16 %v1001, %v969
    %v1290 = vpack.c.b16 %v1002, %v970
    %v1291 = vpack.c.b16 %v1003, %v971
    %v1292 = vpack.c.b16 %v1004, %v972
    %v1293 = vpack.c.b16 %v1005, %v973
    %v1294 = vpack.c.b16 %v1006, %v974
    %v1295 = vpack.c.b16 %v1007, %v975
    %v1296 = vpack.c.b16 %v1008, %v976
    %v1297 = vpack.c.b16 %v1009, %v977
    %v1298 = vpack.c.b16 %v1010, %v978
    %v1299 = vpack.c.b16 %v1011, %v979
    %v1300 = vpack.c.b16 %v1012, %v980
    %v1301 = vpack.c.b16 %v1013, %v981
    %v1302 = vpack.c.b16 %v1014, %v982
    %v1303 = vpack.c.b16 %v1015, %v983
    %v1304 = vpack.c.b16 %v1016, %v984
    %v1305 = vpack.c.b16 %v1017, %v985
    %v1306 = vpack.c.b16 %v1018, %v986
    %v1307 = vpack.c.b16 %v1019, %v987
    %v1308 = vpack.c.b16 %v1020, %v988
    %v1309 = vpack.c.b16 %v1053, %v1021
    %v1310 = vpack.c.b16 %v1054, %v1022
    %v1311 = vpack.c.b16 %v1055, %v1023
    %v1312 = vpack.c.b16 %v1056, %v1024
    %v1313 = vpack.c.b16 %v1057, %v1025
    %v1314 = vpack.c.b16 %v1058, %v1026
    %v1315 = vpack.c.b16 %v1059, %v1027
    %v1316 = vpack.c.b16 %v1060, %v1028
    %v1317 = vpack.c.b16 %v1061, %v1029
    %v1318 = vpack.c.b16 %v1062, %v1030
    %v1319 = vpack.c.b16 %v1063, %v1031
    %v1320 = vpack.c.b16 %v1064, %v1032
    %v1321 = vpack.c.b16 %v1065, %v1033
    %v1322 = vpack.c.b16 %v1066, %v1034
    %v1323 = vpack.c.b16 %v1067, %v1035
    %v1324 = vpack.c.b16 %v1068, %v1036
    %v1325 = vpack.c.b16 %v1069, %v1037
    %v1326 = vpack.c.b16 %v1070, %v1038
    %v1327 = vpack.c.b16 %v1071, %v1039
    %v1328 = vpack.c.b16 %v1072, %v1040
    %v1329 = vpack.c.b16 %v1073, %v1041
    %v1330 = vpack.c.b16 %v1074, %v1042
    %v1331 = vpack.c.b16 %v1075, %v1043
    %v1332 = vpack.c.b16 %v1076, %v1044
    %v1333 = vpack.c.b16 %v1077, %v1045
    %v1334 = vpack.c.b16 %v1078, %v1046
    %v1335 = vpack.c.b16 %v1079, %v1047
    %v1336 = vpack.c.b16 %v1080, %v1048
    %v1337 = vpack.c.b16 %v1081, %v1049
    %v1338 = vpack.c.b16 %v1082, %v1050
    %v1339 = vpack.c.b16 %v1083, %v1051
    %v1340 = vpack.c.b16 %v1084, %v1052
    %1597 = vmatpush.bf16.msra.mxu0 %v1309
    %1598 = vmatpush.bf16.msra.mxu0 %v1277
    %1599 = vmatpush.bf16.msra.mxu0 %v1245
    %1600 = vmatpush.bf16.msra.mxu0 %v1213
    %1601 = vmatpush.bf16.msra.mxu0 %v1181
    %1602 = vmatpush.bf16.msra.mxu0 %v1149
    %1603 = vmatpush.bf16.msra.mxu0 %v1117
    %1604 = vmatpush.bf16.msra.mxu0 %v1085
    %1605 = vmatmul.bf16.gmra.mxu0 %v60
    %v1606 = vpop.f32.mrf.mxu0
    %v1607 = vadd.f32 0.0, %v1606
    %v1608 = vpop.f32.mrf.mxu0
    %1609 = vdwg.mxu0
    %1610 = vmatpush.bf16.msra.mxu0 %v1310
    %1611 = vmatpush.bf16.msra.mxu0 %v1278
    %1612 = vmatpush.bf16.msra.mxu0 %v1246
    %1613 = vmatpush.bf16.msra.mxu0 %v1214
    %1614 = vmatpush.bf16.msra.mxu0 %v1182
    %1615 = vmatpush.bf16.msra.mxu0 %v1150
    %1616 = vmatpush.bf16.msra.mxu0 %v1118
    %1617 = vmatpush.bf16.msra.mxu0 %v1086
    %1618 = vmatmul.bf16.gmra.mxu0 %v60
    %v1619 = vpop.f32.mrf.mxu0
    %v1620 = vadd.f32 0.0, %v1619
    %v1621 = vpop.f32.mrf.mxu0
    %1622 = vdwg.mxu0
    %1623 = vmatpush.bf16.msra.mxu0 %v1311
    %1624 = vmatpush.bf16.msra.mxu0 %v1279
    %1625 = vmatpush.bf16.msra.mxu0 %v1247
    %1626 = vmatpush.bf16.msra.mxu0 %v1215
    %1627 = vmatpush.bf16.msra.mxu0 %v1183
    %1628 = vmatpush.bf16.msra.mxu0 %v1151
    %1629 = vmatpush.bf16.msra.mxu0 %v1119
    %1630 = vmatpush.bf16.msra.mxu0 %v1087
    %1631 = vmatmul.bf16.gmra.mxu0 %v60
    %v1632 = vpop.f32.mrf.mxu0
    %v1633 = vadd.f32 0.0, %v1632
    %v1634 = vpop.f32.mrf.mxu0
    %1635 = vdwg.mxu0
    %1636 = vmatpush.bf16.msra.mxu0 %v1312
    %1637 = vmatpush.bf16.msra.mxu0 %v1280
    %1638 = vmatpush.bf16.msra.mxu0 %v1248
    %1639 = vmatpush.bf16.msra.mxu0 %v1216
    %1640 = vmatpush.bf16.msra.mxu0 %v1184
    %1641 = vmatpush.bf16.msra.mxu0 %v1152
    %1642 = vmatpush.bf16.msra.mxu0 %v1120
    %1643 = vmatpush.bf16.msra.mxu0 %v1088
    %1644 = vmatmul.bf16.gmra.mxu0 %v60
    %v1645 = vpop.f32.mrf.mxu0
    %v1646 = vadd.f32 0.0, %v1645
    %v1647 = vpop.f32.mrf.mxu0
    %1648 = vdwg.mxu0
    %1649 = vmatpush.bf16.msra.mxu0 %v1313
    %1650 = vmatpush.bf16.msra.mxu0 %v1281
    %1651 = vmatpush.bf16.msra.mxu0 %v1249
    %1652 = vmatpush.bf16.msra.mxu0 %v1217
    %1653 = vmatpush.bf16.msra.mxu0 %v1185
    %1654 = vmatpush.bf16.msra.mxu0 %v1153
    %1655 = vmatpush.bf16.msra.mxu0 %v1121
    %1656 = vmatpush.bf16.msra.mxu0 %v1089
    %1657 = vmatmul.bf16.gmra.mxu0 %v60
    %v1658 = vpop.f32.mrf.mxu0
    %v1659 = vadd.f32 0.0, %v1658
    %v1660 = vpop.f32.mrf.mxu0
    %1661 = vdwg.mxu0
    %1662 = vmatpush.bf16.msra.mxu0 %v1314
    %1663 = vmatpush.bf16.msra.mxu0 %v1282
    %1664 = vmatpush.bf16.msra.mxu0 %v1250
    %1665 = vmatpush.bf16.msra.mxu0 %v1218
    %1666 = vmatpush.bf16.msra.mxu0 %v1186
    %1667 = vmatpush.bf16.msra.mxu0 %v1154
    %1668 = vmatpush.bf16.msra.mxu0 %v1122
    %1669 = vmatpush.bf16.msra.mxu0 %v1090
    %1670 = vmatmul.bf16.gmra.mxu0 %v60
    %v1671 = vpop.f32.mrf.mxu0
    %v1672 = vadd.f32 0.0, %v1671
    %v1673 = vpop.f32.mrf.mxu0
    %1674 = vdwg.mxu0
    %1675 = vmatpush.bf16.msra.mxu0 %v1315
    %1676 = vmatpush.bf16.msra.mxu0 %v1283
    %1677 = vmatpush.bf16.msra.mxu0 %v1251
    %1678 = vmatpush.bf16.msra.mxu0 %v1219
    %1679 = vmatpush.bf16.msra.mxu0 %v1187
    %1680 = vmatpush.bf16.msra.mxu0 %v1155
    %1681 = vmatpush.bf16.msra.mxu0 %v1123
    %1682 = vmatpush.bf16.msra.mxu0 %v1091
    %1683 = vmatmul.bf16.gmra.mxu0 %v60
    %v1684 = vpop.f32.mrf.mxu0
    %v1685 = vadd.f32 0.0, %v1684
    %v1686 = vpop.f32.mrf.mxu0
    %1687 = vdwg.mxu0
    %1688 = vmatpush.bf16.msra.mxu0 %v1316
    %1689 = vmatpush.bf16.msra.mxu0 %v1284
    %1690 = vmatpush.bf16.msra.mxu0 %v1252
    %1691 = vmatpush.bf16.msra.mxu0 %v1220
    %1692 = vmatpush.bf16.msra.mxu0 %v1188
    %1693 = vmatpush.bf16.msra.mxu0 %v1156
    %1694 = vmatpush.bf16.msra.mxu0 %v1124
    %1695 = vmatpush.bf16.msra.mxu0 %v1092
    %1696 = vmatmul.bf16.gmra.mxu0 %v60
    %v1697 = vpop.f32.mrf.mxu0
    %v1698 = vadd.f32 0.0, %v1697
    %v1699 = vpop.f32.mrf.mxu0
    %1700 = vdwg.mxu0
    %1701 = vmatpush.bf16.msra.mxu0 %v1317
    %1702 = vmatpush.bf16.msra.mxu0 %v1285
    %1703 = vmatpush.bf16.msra.mxu0 %v1253
    %1704 = vmatpush.bf16.msra.mxu0 %v1221
    %1705 = vmatpush.bf16.msra.mxu0 %v1189
    %1706 = vmatpush.bf16.msra.mxu0 %v1157
    %1707 = vmatpush.bf16.msra.mxu0 %v1125
    %1708 = vmatpush.bf16.msra.mxu0 %v1093
    %1709 = vmatmul.bf16.gmra.mxu0 %v60
    %v1710 = vpop.f32.mrf.mxu0
    %v1711 = vadd.f32 0.0, %v1710
    %v1712 = vpop.f32.mrf.mxu0
    %1713 = vdwg.mxu0
    %1714 = vmatpush.bf16.msra.mxu0 %v1318
    %1715 = vmatpush.bf16.msra.mxu0 %v1286
    %1716 = vmatpush.bf16.msra.mxu0 %v1254
    %1717 = vmatpush.bf16.msra.mxu0 %v1222
    %1718 = vmatpush.bf16.msra.mxu0 %v1190
    %1719 = vmatpush.bf16.msra.mxu0 %v1158
    %1720 = vmatpush.bf16.msra.mxu0 %v1126
    %1721 = vmatpush.bf16.msra.mxu0 %v1094
    %1722 = vmatmul.bf16.gmra.mxu0 %v60
    %v1723 = vpop.f32.mrf.mxu0
    %v1724 = vadd.f32 0.0, %v1723
    %v1725 = vpop.f32.mrf.mxu0
    %1726 = vdwg.mxu0
    %1727 = vmatpush.bf16.msra.mxu0 %v1319
    %1728 = vmatpush.bf16.msra.mxu0 %v1287
    %1729 = vmatpush.bf16.msra.mxu0 %v1255
    %1730 = vmatpush.bf16.msra.mxu0 %v1223
    %1731 = vmatpush.bf16.msra.mxu0 %v1191
    %1732 = vmatpush.bf16.msra.mxu0 %v1159
    %1733 = vmatpush.bf16.msra.mxu0 %v1127
    %1734 = vmatpush.bf16.msra.mxu0 %v1095
    %1735 = vmatmul.bf16.gmra.mxu0 %v60
    %v1736 = vpop.f32.mrf.mxu0
    %v1737 = vadd.f32 0.0, %v1736
    %v1738 = vpop.f32.mrf.mxu0
    %1739 = vdwg.mxu0
    %1740 = vmatpush.bf16.msra.mxu0 %v1320
    %1741 = vmatpush.bf16.msra.mxu0 %v1288
    %1742 = vmatpush.bf16.msra.mxu0 %v1256
    %1743 = vmatpush.bf16.msra.mxu0 %v1224
    %1744 = vmatpush.bf16.msra.mxu0 %v1192
    %1745 = vmatpush.bf16.msra.mxu0 %v1160
    %1746 = vmatpush.bf16.msra.mxu0 %v1128
    %1747 = vmatpush.bf16.msra.mxu0 %v1096
    %1748 = vmatmul.bf16.gmra.mxu0 %v60
    %v1749 = vpop.f32.mrf.mxu0
    %v1750 = vadd.f32 0.0, %v1749
    %v1751 = vpop.f32.mrf.mxu0
    %1752 = vdwg.mxu0
    %1753 = vmatpush.bf16.msra.mxu0 %v1321
    %1754 = vmatpush.bf16.msra.mxu0 %v1289
    %1755 = vmatpush.bf16.msra.mxu0 %v1257
    %1756 = vmatpush.bf16.msra.mxu0 %v1225
    %1757 = vmatpush.bf16.msra.mxu0 %v1193
    %1758 = vmatpush.bf16.msra.mxu0 %v1161
    %1759 = vmatpush.bf16.msra.mxu0 %v1129
    %1760 = vmatpush.bf16.msra.mxu0 %v1097
    %1761 = vmatmul.bf16.gmra.mxu0 %v60
    %v1762 = vpop.f32.mrf.mxu0
    %v1763 = vadd.f32 0.0, %v1762
    %v1764 = vpop.f32.mrf.mxu0
    %1765 = vdwg.mxu0
    %1766 = vmatpush.bf16.msra.mxu0 %v1322
    %1767 = vmatpush.bf16.msra.mxu0 %v1290
    %1768 = vmatpush.bf16.msra.mxu0 %v1258
    %1769 = vmatpush.bf16.msra.mxu0 %v1226
    %1770 = vmatpush.bf16.msra.mxu0 %v1194
    %1771 = vmatpush.bf16.msra.mxu0 %v1162
    %1772 = vmatpush.bf16.msra.mxu0 %v1130
    %1773 = vmatpush.bf16.msra.mxu0 %v1098
    %1774 = vmatmul.bf16.gmra.mxu0 %v60
    %v1775 = vpop.f32.mrf.mxu0
    %v1776 = vadd.f32 0.0, %v1775
    %v1777 = vpop.f32.mrf.mxu0
    %1778 = vdwg.mxu0
    %1779 = vmatpush.bf16.msra.mxu0 %v1323
    %1780 = vmatpush.bf16.msra.mxu0 %v1291
    %1781 = vmatpush.bf16.msra.mxu0 %v1259
    %1782 = vmatpush.bf16.msra.mxu0 %v1227
    %1783 = vmatpush.bf16.msra.mxu0 %v1195
    %1784 = vmatpush.bf16.msra.mxu0 %v1163
    %1785 = vmatpush.bf16.msra.mxu0 %v1131
    %1786 = vmatpush.bf16.msra.mxu0 %v1099
    %1787 = vmatmul.bf16.gmra.mxu0 %v60
    %v1788 = vpop.f32.mrf.mxu0
    %v1789 = vadd.f32 0.0, %v1788
    %v1790 = vpop.f32.mrf.mxu0
    %1791 = vdwg.mxu0
    %1792 = vmatpush.bf16.msra.mxu0 %v1324
    %1793 = vmatpush.bf16.msra.mxu0 %v1292
    %1794 = vmatpush.bf16.msra.mxu0 %v1260
    %1795 = vmatpush.bf16.msra.mxu0 %v1228
    %1796 = vmatpush.bf16.msra.mxu0 %v1196
    %1797 = vmatpush.bf16.msra.mxu0 %v1164
    %1798 = vmatpush.bf16.msra.mxu0 %v1132
    %1799 = vmatpush.bf16.msra.mxu0 %v1100
    %1800 = vmatmul.bf16.gmra.mxu0 %v60
    %v1801 = vpop.f32.mrf.mxu0
    %v1802 = vadd.f32 0.0, %v1801
    %v1803 = vpop.f32.mrf.mxu0
    %1804 = vdwg.mxu0
    %1805 = vmatpush.bf16.msra.mxu0 %v1325
    %1806 = vmatpush.bf16.msra.mxu0 %v1293
    %1807 = vmatpush.bf16.msra.mxu0 %v1261
    %1808 = vmatpush.bf16.msra.mxu0 %v1229
    %1809 = vmatpush.bf16.msra.mxu0 %v1197
    %1810 = vmatpush.bf16.msra.mxu0 %v1165
    %1811 = vmatpush.bf16.msra.mxu0 %v1133
    %1812 = vmatpush.bf16.msra.mxu0 %v1101
    %1813 = vmatmul.bf16.gmra.mxu0 %v60
    %v1814 = vpop.f32.mrf.mxu0
    %v1815 = vadd.f32 0.0, %v1814
    %v1816 = vpop.f32.mrf.mxu0
    %1817 = vdwg.mxu0
    %1818 = vmatpush.bf16.msra.mxu0 %v1326
    %1819 = vmatpush.bf16.msra.mxu0 %v1294
    %1820 = vmatpush.bf16.msra.mxu0 %v1262
    %1821 = vmatpush.bf16.msra.mxu0 %v1230
    %1822 = vmatpush.bf16.msra.mxu0 %v1198
    %1823 = vmatpush.bf16.msra.mxu0 %v1166
    %1824 = vmatpush.bf16.msra.mxu0 %v1134
    %1825 = vmatpush.bf16.msra.mxu0 %v1102
    %1826 = vmatmul.bf16.gmra.mxu0 %v60
    %v1827 = vpop.f32.mrf.mxu0
    %v1828 = vadd.f32 0.0, %v1827
    %v1829 = vpop.f32.mrf.mxu0
    %1830 = vdwg.mxu0
    %1831 = vmatpush.bf16.msra.mxu0 %v1327
    %1832 = vmatpush.bf16.msra.mxu0 %v1295
    %1833 = vmatpush.bf16.msra.mxu0 %v1263
    %1834 = vmatpush.bf16.msra.mxu0 %v1231
    %1835 = vmatpush.bf16.msra.mxu0 %v1199
    %1836 = vmatpush.bf16.msra.mxu0 %v1167
    %1837 = vmatpush.bf16.msra.mxu0 %v1135
    %1838 = vmatpush.bf16.msra.mxu0 %v1103
    %1839 = vmatmul.bf16.gmra.mxu0 %v60
    %v1840 = vpop.f32.mrf.mxu0
    %v1841 = vadd.f32 0.0, %v1840
    %v1842 = vpop.f32.mrf.mxu0
    %1843 = vdwg.mxu0
    %1844 = vmatpush.bf16.msra.mxu0 %v1328
    %1845 = vmatpush.bf16.msra.mxu0 %v1296
    %1846 = vmatpush.bf16.msra.mxu0 %v1264
    %1847 = vmatpush.bf16.msra.mxu0 %v1232
    %1848 = vmatpush.bf16.msra.mxu0 %v1200
    %1849 = vmatpush.bf16.msra.mxu0 %v1168
    %1850 = vmatpush.bf16.msra.mxu0 %v1136
    %1851 = vmatpush.bf16.msra.mxu0 %v1104
    %1852 = vmatmul.bf16.gmra.mxu0 %v60
    %v1853 = vpop.f32.mrf.mxu0
    %v1854 = vadd.f32 0.0, %v1853
    %v1855 = vpop.f32.mrf.mxu0
    %1856 = vdwg.mxu0
    %1857 = vmatpush.bf16.msra.mxu0 %v1329
    %1858 = vmatpush.bf16.msra.mxu0 %v1297
    %1859 = vmatpush.bf16.msra.mxu0 %v1265
    %1860 = vmatpush.bf16.msra.mxu0 %v1233
    %1861 = vmatpush.bf16.msra.mxu0 %v1201
    %1862 = vmatpush.bf16.msra.mxu0 %v1169
    %1863 = vmatpush.bf16.msra.mxu0 %v1137
    %1864 = vmatpush.bf16.msra.mxu0 %v1105
    %1865 = vmatmul.bf16.gmra.mxu0 %v60
    %v1866 = vpop.f32.mrf.mxu0
    %v1867 = vadd.f32 0.0, %v1866
    %v1868 = vpop.f32.mrf.mxu0
    %1869 = vdwg.mxu0
    %1870 = vmatpush.bf16.msra.mxu0 %v1330
    %1871 = vmatpush.bf16.msra.mxu0 %v1298
    %1872 = vmatpush.bf16.msra.mxu0 %v1266
    %1873 = vmatpush.bf16.msra.mxu0 %v1234
    %1874 = vmatpush.bf16.msra.mxu0 %v1202
    %1875 = vmatpush.bf16.msra.mxu0 %v1170
    %1876 = vmatpush.bf16.msra.mxu0 %v1138
    %1877 = vmatpush.bf16.msra.mxu0 %v1106
    %1878 = vmatmul.bf16.gmra.mxu0 %v60
    %v1879 = vpop.f32.mrf.mxu0
    %v1880 = vadd.f32 0.0, %v1879
    %v1881 = vpop.f32.mrf.mxu0
    %1882 = vdwg.mxu0
    %1883 = vmatpush.bf16.msra.mxu0 %v1331
    %1884 = vmatpush.bf16.msra.mxu0 %v1299
    %1885 = vmatpush.bf16.msra.mxu0 %v1267
    %1886 = vmatpush.bf16.msra.mxu0 %v1235
    %1887 = vmatpush.bf16.msra.mxu0 %v1203
    %1888 = vmatpush.bf16.msra.mxu0 %v1171
    %1889 = vmatpush.bf16.msra.mxu0 %v1139
    %1890 = vmatpush.bf16.msra.mxu0 %v1107
    %1891 = vmatmul.bf16.gmra.mxu0 %v60
    %v1892 = vpop.f32.mrf.mxu0
    %v1893 = vadd.f32 0.0, %v1892
    %v1894 = vpop.f32.mrf.mxu0
    %1895 = vdwg.mxu0
    %1896 = vmatpush.bf16.msra.mxu0 %v1332
    %1897 = vmatpush.bf16.msra.mxu0 %v1300
    %1898 = vmatpush.bf16.msra.mxu0 %v1268
    %1899 = vmatpush.bf16.msra.mxu0 %v1236
    %1900 = vmatpush.bf16.msra.mxu0 %v1204
    %1901 = vmatpush.bf16.msra.mxu0 %v1172
    %1902 = vmatpush.bf16.msra.mxu0 %v1140
    %1903 = vmatpush.bf16.msra.mxu0 %v1108
    %1904 = vmatmul.bf16.gmra.mxu0 %v60
    %v1905 = vpop.f32.mrf.mxu0
    %v1906 = vadd.f32 0.0, %v1905
    %v1907 = vpop.f32.mrf.mxu0
    %1908 = vdwg.mxu0
    %1909 = vmatpush.bf16.msra.mxu0 %v1333
    %1910 = vmatpush.bf16.msra.mxu0 %v1301
    %1911 = vmatpush.bf16.msra.mxu0 %v1269
    %1912 = vmatpush.bf16.msra.mxu0 %v1237
    %1913 = vmatpush.bf16.msra.mxu0 %v1205
    %1914 = vmatpush.bf16.msra.mxu0 %v1173
    %1915 = vmatpush.bf16.msra.mxu0 %v1141
    %1916 = vmatpush.bf16.msra.mxu0 %v1109
    %1917 = vmatmul.bf16.gmra.mxu0 %v60
    %v1918 = vpop.f32.mrf.mxu0
    %v1919 = vadd.f32 0.0, %v1918
    %v1920 = vpop.f32.mrf.mxu0
    %1921 = vdwg.mxu0
    %1922 = vmatpush.bf16.msra.mxu0 %v1334
    %1923 = vmatpush.bf16.msra.mxu0 %v1302
    %1924 = vmatpush.bf16.msra.mxu0 %v1270
    %1925 = vmatpush.bf16.msra.mxu0 %v1238
    %1926 = vmatpush.bf16.msra.mxu0 %v1206
    %1927 = vmatpush.bf16.msra.mxu0 %v1174
    %1928 = vmatpush.bf16.msra.mxu0 %v1142
    %1929 = vmatpush.bf16.msra.mxu0 %v1110
    %1930 = vmatmul.bf16.gmra.mxu0 %v60
    %v1931 = vpop.f32.mrf.mxu0
    %v1932 = vadd.f32 0.0, %v1931
    %v1933 = vpop.f32.mrf.mxu0
    %1934 = vdwg.mxu0
    %1935 = vmatpush.bf16.msra.mxu0 %v1335
    %1936 = vmatpush.bf16.msra.mxu0 %v1303
    %1937 = vmatpush.bf16.msra.mxu0 %v1271
    %1938 = vmatpush.bf16.msra.mxu0 %v1239
    %1939 = vmatpush.bf16.msra.mxu0 %v1207
    %1940 = vmatpush.bf16.msra.mxu0 %v1175
    %1941 = vmatpush.bf16.msra.mxu0 %v1143
    %1942 = vmatpush.bf16.msra.mxu0 %v1111
    %1943 = vmatmul.bf16.gmra.mxu0 %v60
    %v1944 = vpop.f32.mrf.mxu0
    %v1945 = vadd.f32 0.0, %v1944
    %v1946 = vpop.f32.mrf.mxu0
    %1947 = vdwg.mxu0
    %1948 = vmatpush.bf16.msra.mxu0 %v1336
    %1949 = vmatpush.bf16.msra.mxu0 %v1304
    %1950 = vmatpush.bf16.msra.mxu0 %v1272
    %1951 = vmatpush.bf16.msra.mxu0 %v1240
    %1952 = vmatpush.bf16.msra.mxu0 %v1208
    %1953 = vmatpush.bf16.msra.mxu0 %v1176
    %1954 = vmatpush.bf16.msra.mxu0 %v1144
    %1955 = vmatpush.bf16.msra.mxu0 %v1112
    %1956 = vmatmul.bf16.gmra.mxu0 %v60
    %v1957 = vpop.f32.mrf.mxu0
    %v1958 = vadd.f32 0.0, %v1957
    %v1959 = vpop.f32.mrf.mxu0
    %1960 = vdwg.mxu0
    %1961 = vmatpush.bf16.msra.mxu0 %v1337
    %1962 = vmatpush.bf16.msra.mxu0 %v1305
    %1963 = vmatpush.bf16.msra.mxu0 %v1273
    %1964 = vmatpush.bf16.msra.mxu0 %v1241
    %1965 = vmatpush.bf16.msra.mxu0 %v1209
    %1966 = vmatpush.bf16.msra.mxu0 %v1177
    %1967 = vmatpush.bf16.msra.mxu0 %v1145
    %1968 = vmatpush.bf16.msra.mxu0 %v1113
    %1969 = vmatmul.bf16.gmra.mxu0 %v60
    %v1970 = vpop.f32.mrf.mxu0
    %v1971 = vadd.f32 0.0, %v1970
    %v1972 = vpop.f32.mrf.mxu0
    %1973 = vdwg.mxu0
    %1974 = vmatpush.bf16.msra.mxu0 %v1338
    %1975 = vmatpush.bf16.msra.mxu0 %v1306
    %1976 = vmatpush.bf16.msra.mxu0 %v1274
    %1977 = vmatpush.bf16.msra.mxu0 %v1242
    %1978 = vmatpush.bf16.msra.mxu0 %v1210
    %1979 = vmatpush.bf16.msra.mxu0 %v1178
    %1980 = vmatpush.bf16.msra.mxu0 %v1146
    %1981 = vmatpush.bf16.msra.mxu0 %v1114
    %1982 = vmatmul.bf16.gmra.mxu0 %v60
    %v1983 = vpop.f32.mrf.mxu0
    %v1984 = vadd.f32 0.0, %v1983
    %v1985 = vpop.f32.mrf.mxu0
    %1986 = vdwg.mxu0
    %1987 = vmatpush.bf16.msra.mxu0 %v1339
    %1988 = vmatpush.bf16.msra.mxu0 %v1307
    %1989 = vmatpush.bf16.msra.mxu0 %v1275
    %1990 = vmatpush.bf16.msra.mxu0 %v1243
    %1991 = vmatpush.bf16.msra.mxu0 %v1211
    %1992 = vmatpush.bf16.msra.mxu0 %v1179
    %1993 = vmatpush.bf16.msra.mxu0 %v1147
    %1994 = vmatpush.bf16.msra.mxu0 %v1115
    %1995 = vmatmul.bf16.gmra.mxu0 %v60
    %v1996 = vpop.f32.mrf.mxu0
    %v1997 = vadd.f32 0.0, %v1996
    %v1998 = vpop.f32.mrf.mxu0
    %1999 = vdwg.mxu0
    %2000 = vmatpush.bf16.msra.mxu0 %v1340
    %2001 = vmatpush.bf16.msra.mxu0 %v1308
    %2002 = vmatpush.bf16.msra.mxu0 %v1276
    %2003 = vmatpush.bf16.msra.mxu0 %v1244
    %2004 = vmatpush.bf16.msra.mxu0 %v1212
    %2005 = vmatpush.bf16.msra.mxu0 %v1180
    %2006 = vmatpush.bf16.msra.mxu0 %v1148
    %2007 = vmatpush.bf16.msra.mxu0 %v1116
    %2008 = vmatmul.bf16.gmra.mxu0 %v60
    %v2009 = vpop.f32.mrf.mxu0
    %v2010 = vadd.f32 0.0, %v2009
    %v2011 = vpop.f32.mrf.mxu0
    %2012 = vdwg.mxu0
    %vm2013 = vcmask 1041408
    %v2014 = vsel %vm2013, %v1607, 0.0
    %v2015 = vrot.slane %v2014, 4
    %v2016 = vadd.f32 %v2014, %v2015
    %v2017 = vrot.slane %v2016, 2
    %v2018 = vadd.f32 %v2016, %v2017
    %v2019 = vrot.slane %v2018, 1
    %v2020 = vadd.f32 %v2018, %v2019
    %v2021 = vsel %vm2013, %v1620, 0.0
    %v2022 = vrot.slane %v2021, 4
    %v2023 = vadd.f32 %v2021, %v2022
    %v2024 = vrot.slane %v2023, 2
    %v2025 = vadd.f32 %v2023, %v2024
    %v2026 = vrot.slane %v2025, 1
    %v2027 = vadd.f32 %v2025, %v2026
    %v2028 = vsel %vm2013, %v1633, 0.0
    %v2029 = vrot.slane %v2028, 4
    %v2030 = vadd.f32 %v2028, %v2029
    %v2031 = vrot.slane %v2030, 2
    %v2032 = vadd.f32 %v2030, %v2031
    %v2033 = vrot.slane %v2032, 1
    %v2034 = vadd.f32 %v2032, %v2033
    %v2035 = vsel %vm2013, %v1646, 0.0
    %v2036 = vrot.slane %v2035, 4
    %v2037 = vadd.f32 %v2035, %v2036
    %v2038 = vrot.slane %v2037, 2
    %v2039 = vadd.f32 %v2037, %v2038
    %v2040 = vrot.slane %v2039, 1
    %v2041 = vadd.f32 %v2039, %v2040
    %v2042 = vsel %vm2013, %v1659, 0.0
    %v2043 = vrot.slane %v2042, 4
    %v2044 = vadd.f32 %v2042, %v2043
    %v2045 = vrot.slane %v2044, 2
    %v2046 = vadd.f32 %v2044, %v2045
    %v2047 = vrot.slane %v2046, 1
    %v2048 = vadd.f32 %v2046, %v2047
    %v2049 = vsel %vm2013, %v1672, 0.0
    %v2050 = vrot.slane %v2049, 4
    %v2051 = vadd.f32 %v2049, %v2050
    %v2052 = vrot.slane %v2051, 2
    %v2053 = vadd.f32 %v2051, %v2052
    %v2054 = vrot.slane %v2053, 1
    %v2055 = vadd.f32 %v2053, %v2054
    %v2056 = vsel %vm2013, %v1685, 0.0
    %v2057 = vrot.slane %v2056, 4
    %v2058 = vadd.f32 %v2056, %v2057
    %v2059 = vrot.slane %v2058, 2
    %v2060 = vadd.f32 %v2058, %v2059
    %v2061 = vrot.slane %v2060, 1
    %v2062 = vadd.f32 %v2060, %v2061
    %v2063 = vsel %vm2013, %v1698, 0.0
    %v2064 = vrot.slane %v2063, 4
    %v2065 = vadd.f32 %v2063, %v2064
    %v2066 = vrot.slane %v2065, 2
    %v2067 = vadd.f32 %v2065, %v2066
    %v2068 = vrot.slane %v2067, 1
    %v2069 = vadd.f32 %v2067, %v2068
    %v2070 = vsel %vm2013, %v1711, 0.0
    %v2071 = vrot.slane %v2070, 4
    %v2072 = vadd.f32 %v2070, %v2071
    %v2073 = vrot.slane %v2072, 2
    %v2074 = vadd.f32 %v2072, %v2073
    %v2075 = vrot.slane %v2074, 1
    %v2076 = vadd.f32 %v2074, %v2075
    %v2077 = vsel %vm2013, %v1724, 0.0
    %v2078 = vrot.slane %v2077, 4
    %v2079 = vadd.f32 %v2077, %v2078
    %v2080 = vrot.slane %v2079, 2
    %v2081 = vadd.f32 %v2079, %v2080
    %v2082 = vrot.slane %v2081, 1
    %v2083 = vadd.f32 %v2081, %v2082
    %v2084 = vsel %vm2013, %v1737, 0.0
    %v2085 = vrot.slane %v2084, 4
    %v2086 = vadd.f32 %v2084, %v2085
    %v2087 = vrot.slane %v2086, 2
    %v2088 = vadd.f32 %v2086, %v2087
    %v2089 = vrot.slane %v2088, 1
    %v2090 = vadd.f32 %v2088, %v2089
    %v2091 = vsel %vm2013, %v1750, 0.0
    %v2092 = vrot.slane %v2091, 4
    %v2093 = vadd.f32 %v2091, %v2092
    %v2094 = vrot.slane %v2093, 2
    %v2095 = vadd.f32 %v2093, %v2094
    %v2096 = vrot.slane %v2095, 1
    %v2097 = vadd.f32 %v2095, %v2096
    %v2098 = vsel %vm2013, %v1763, 0.0
    %v2099 = vrot.slane %v2098, 4
    %v2100 = vadd.f32 %v2098, %v2099
    %v2101 = vrot.slane %v2100, 2
    %v2102 = vadd.f32 %v2100, %v2101
    %v2103 = vrot.slane %v2102, 1
    %v2104 = vadd.f32 %v2102, %v2103
    %v2105 = vsel %vm2013, %v1776, 0.0
    %v2106 = vrot.slane %v2105, 4
    %v2107 = vadd.f32 %v2105, %v2106
    %v2108 = vrot.slane %v2107, 2
    %v2109 = vadd.f32 %v2107, %v2108
    %v2110 = vrot.slane %v2109, 1
    %v2111 = vadd.f32 %v2109, %v2110
    %v2112 = vsel %vm2013, %v1789, 0.0
    %v2113 = vrot.slane %v2112, 4
    %v2114 = vadd.f32 %v2112, %v2113
    %v2115 = vrot.slane %v2114, 2
    %v2116 = vadd.f32 %v2114, %v2115
    %v2117 = vrot.slane %v2116, 1
    %v2118 = vadd.f32 %v2116, %v2117
    %v2119 = vsel %vm2013, %v1802, 0.0
    %v2120 = vrot.slane %v2119, 4
    %v2121 = vadd.f32 %v2119, %v2120
    %v2122 = vrot.slane %v2121, 2
    %v2123 = vadd.f32 %v2121, %v2122
    %v2124 = vrot.slane %v2123, 1
    %v2125 = vadd.f32 %v2123, %v2124
    %v2126 = vsel %vm2013, %v1815, 0.0
    %v2127 = vrot.slane %v2126, 4
    %v2128 = vadd.f32 %v2126, %v2127
    %v2129 = vrot.slane %v2128, 2
    %v2130 = vadd.f32 %v2128, %v2129
    %v2131 = vrot.slane %v2130, 1
    %v2132 = vadd.f32 %v2130, %v2131
    %v2133 = vsel %vm2013, %v1828, 0.0
    %v2134 = vrot.slane %v2133, 4
    %v2135 = vadd.f32 %v2133, %v2134
    %v2136 = vrot.slane %v2135, 2
    %v2137 = vadd.f32 %v2135, %v2136
    %v2138 = vrot.slane %v2137, 1
    %v2139 = vadd.f32 %v2137, %v2138
    %v2140 = vsel %vm2013, %v1841, 0.0
    %v2141 = vrot.slane %v2140, 4
    %v2142 = vadd.f32 %v2140, %v2141
    %v2143 = vrot.slane %v2142, 2
    %v2144 = vadd.f32 %v2142, %v2143
    %v2145 = vrot.slane %v2144, 1
    %v2146 = vadd.f32 %v2144, %v2145
    %v2147 = vsel %vm2013, %v1854, 0.0
    %v2148 = vrot.slane %v2147, 4
    %v2149 = vadd.f32 %v2147, %v2148
    %v2150 = vrot.slane %v2149, 2
    %v2151 = vadd.f32 %v2149, %v2150
    %v2152 = vrot.slane %v2151, 1
    %v2153 = vadd.f32 %v2151, %v2152
    %v2154 = vsel %vm2013, %v1867, 0.0
    %v2155 = vrot.slane %v2154, 4
    %v2156 = vadd.f32 %v2154, %v2155
    %v2157 = vrot.slane %v2156, 2
    %v2158 = vadd.f32 %v2156, %v2157
    %v2159 = vrot.slane %v2158, 1
    %v2160 = vadd.f32 %v2158, %v2159
    %v2161 = vsel %vm2013, %v1880, 0.0
    %v2162 = vrot.slane %v2161, 4
    %v2163 = vadd.f32 %v2161, %v2162
    %v2164 = vrot.slane %v2163, 2
    %v2165 = vadd.f32 %v2163, %v2164
    %v2166 = vrot.slane %v2165, 1
    %v2167 = vadd.f32 %v2165, %v2166
    %v2168 = vsel %vm2013, %v1893, 0.0
    %v2169 = vrot.slane %v2168, 4
    %v2170 = vadd.f32 %v2168, %v2169
    %v2171 = vrot.slane %v2170, 2
    %v2172 = vadd.f32 %v2170, %v2171
    %v2173 = vrot.slane %v2172, 1
    %v2174 = vadd.f32 %v2172, %v2173
    %v2175 = vsel %vm2013, %v1906, 0.0
    %v2176 = vrot.slane %v2175, 4
    %v2177 = vadd.f32 %v2175, %v2176
    %v2178 = vrot.slane %v2177, 2
    %v2179 = vadd.f32 %v2177, %v2178
    %v2180 = vrot.slane %v2179, 1
    %v2181 = vadd.f32 %v2179, %v2180
    %v2182 = vsel %vm2013, %v1919, 0.0
    %v2183 = vrot.slane %v2182, 4
    %v2184 = vadd.f32 %v2182, %v2183
    %v2185 = vrot.slane %v2184, 2
    %v2186 = vadd.f32 %v2184, %v2185
    %v2187 = vrot.slane %v2186, 1
    %v2188 = vadd.f32 %v2186, %v2187
    %v2189 = vsel %vm2013, %v1932, 0.0
    %v2190 = vrot.slane %v2189, 4
    %v2191 = vadd.f32 %v2189, %v2190
    %v2192 = vrot.slane %v2191, 2
    %v2193 = vadd.f32 %v2191, %v2192
    %v2194 = vrot.slane %v2193, 1
    %v2195 = vadd.f32 %v2193, %v2194
    %v2196 = vsel %vm2013, %v1945, 0.0
    %v2197 = vrot.slane %v2196, 4
    %v2198 = vadd.f32 %v2196, %v2197
    %v2199 = vrot.slane %v2198, 2
    %v2200 = vadd.f32 %v2198, %v2199
    %v2201 = vrot.slane %v2200, 1
    %v2202 = vadd.f32 %v2200, %v2201
    %v2203 = vsel %vm2013, %v1958, 0.0
    %v2204 = vrot.slane %v2203, 4
    %v2205 = vadd.f32 %v2203, %v2204
    %v2206 = vrot.slane %v2205, 2
    %v2207 = vadd.f32 %v2205, %v2206
    %v2208 = vrot.slane %v2207, 1
    %v2209 = vadd.f32 %v2207, %v2208
    %v2210 = vsel %vm2013, %v1971, 0.0
    %v2211 = vrot.slane %v2210, 4
    %v2212 = vadd.f32 %v2210, %v2211
    %v2213 = vrot.slane %v2212, 2
    %v2214 = vadd.f32 %v2212, %v2213
    %v2215 = vrot.slane %v2214, 1
    %v2216 = vadd.f32 %v2214, %v2215
    %v2217 = vsel %vm2013, %v1984, 0.0
    %v2218 = vrot.slane %v2217, 4
    %v2219 = vadd.f32 %v2217, %v2218
    %v2220 = vrot.slane %v2219, 2
    %v2221 = vadd.f32 %v2219, %v2220
    %v2222 = vrot.slane %v2221, 1
    %v2223 = vadd.f32 %v2221, %v2222
    %v2224 = vsel %vm2013, %v1997, 0.0
    %v2225 = vrot.slane %v2224, 4
    %v2226 = vadd.f32 %v2224, %v2225
    %v2227 = vrot.slane %v2226, 2
    %v2228 = vadd.f32 %v2226, %v2227
    %v2229 = vrot.slane %v2228, 1
    %v2230 = vadd.f32 %v2228, %v2229
    %v2231 = vsel %vm2013, %v2010, 0.0
    %v2232 = vrot.slane %v2231, 4
    %v2233 = vadd.f32 %v2231, %v2232
    %v2234 = vrot.slane %v2233, 2
    %v2235 = vadd.f32 %v2233, %v2234
    %v2236 = vrot.slane %v2235, 1
    %v2237 = vadd.f32 %v2235, %v2236
    %v2238 = vmul.f32 %v1607, %v1607
    %v2239 = vmul.f32 %v1620, %v1620
    %v2240 = vmul.f32 %v1633, %v1633
    %v2241 = vmul.f32 %v1646, %v1646
    %v2242 = vmul.f32 %v1659, %v1659
    %v2243 = vmul.f32 %v1672, %v1672
    %v2244 = vmul.f32 %v1685, %v1685
    %v2245 = vmul.f32 %v1698, %v1698
    %v2246 = vmul.f32 %v1711, %v1711
    %v2247 = vmul.f32 %v1724, %v1724
    %v2248 = vmul.f32 %v1737, %v1737
    %v2249 = vmul.f32 %v1750, %v1750
    %v2250 = vmul.f32 %v1763, %v1763
    %v2251 = vmul.f32 %v1776, %v1776
    %v2252 = vmul.f32 %v1789, %v1789
    %v2253 = vmul.f32 %v1802, %v1802
    %v2254 = vmul.f32 %v1815, %v1815
    %v2255 = vmul.f32 %v1828, %v1828
    %v2256 = vmul.f32 %v1841, %v1841
    %v2257 = vmul.f32 %v1854, %v1854
    %v2258 = vmul.f32 %v1867, %v1867
    %v2259 = vmul.f32 %v1880, %v1880
    %v2260 = vmul.f32 %v1893, %v1893
    %v2261 = vmul.f32 %v1906, %v1906
    %v2262 = vmul.f32 %v1919, %v1919
    %v2263 = vmul.f32 %v1932, %v1932
    %v2264 = vmul.f32 %v1945, %v1945
    %v2265 = vmul.f32 %v1958, %v1958
    %v2266 = vmul.f32 %v1971, %v1971
    %v2267 = vmul.f32 %v1984, %v1984
    %v2268 = vmul.f32 %v1997, %v1997
    %v2269 = vmul.f32 %v2010, %v2010
    %v2270 = vsel %vm2013, %v2238, 0.0
    %v2271 = vrot.slane %v2270, 4
    %v2272 = vadd.f32 %v2270, %v2271
    %v2273 = vrot.slane %v2272, 2
    %v2274 = vadd.f32 %v2272, %v2273
    %v2275 = vrot.slane %v2274, 1
    %v2276 = vadd.f32 %v2274, %v2275
    %v2277 = vsel %vm2013, %v2239, 0.0
    %v2278 = vrot.slane %v2277, 4
    %v2279 = vadd.f32 %v2277, %v2278
    %v2280 = vrot.slane %v2279, 2
    %v2281 = vadd.f32 %v2279, %v2280
    %v2282 = vrot.slane %v2281, 1
    %v2283 = vadd.f32 %v2281, %v2282
    %v2284 = vsel %vm2013, %v2240, 0.0
    %v2285 = vrot.slane %v2284, 4
    %v2286 = vadd.f32 %v2284, %v2285
    %v2287 = vrot.slane %v2286, 2
    %v2288 = vadd.f32 %v2286, %v2287
    %v2289 = vrot.slane %v2288, 1
    %v2290 = vadd.f32 %v2288, %v2289
    %v2291 = vsel %vm2013, %v2241, 0.0
    %v2292 = vrot.slane %v2291, 4
    %v2293 = vadd.f32 %v2291, %v2292
    %v2294 = vrot.slane %v2293, 2
    %v2295 = vadd.f32 %v2293, %v2294
    %v2296 = vrot.slane %v2295, 1
    %v2297 = vadd.f32 %v2295, %v2296
    %v2298 = vsel %vm2013, %v2242, 0.0
    %v2299 = vrot.slane %v2298, 4
    %v2300 = vadd.f32 %v2298, %v2299
    %v2301 = vrot.slane %v2300, 2
    %v2302 = vadd.f32 %v2300, %v2301
    %v2303 = vrot.slane %v2302, 1
    %v2304 = vadd.f32 %v2302, %v2303
    %v2305 = vsel %vm2013, %v2243, 0.0
    %v2306 = vrot.slane %v2305, 4
    %v2307 = vadd.f32 %v2305, %v2306
    %v2308 = vrot.slane %v2307, 2
    %v2309 = vadd.f32 %v2307, %v2308
    %v2310 = vrot.slane %v2309, 1
    %v2311 = vadd.f32 %v2309, %v2310
    %v2312 = vsel %vm2013, %v2244, 0.0
    %v2313 = vrot.slane %v2312, 4
    %v2314 = vadd.f32 %v2312, %v2313
    %v2315 = vrot.slane %v2314, 2
    %v2316 = vadd.f32 %v2314, %v2315
    %v2317 = vrot.slane %v2316, 1
    %v2318 = vadd.f32 %v2316, %v2317
    %v2319 = vsel %vm2013, %v2245, 0.0
    %v2320 = vrot.slane %v2319, 4
    %v2321 = vadd.f32 %v2319, %v2320
    %v2322 = vrot.slane %v2321, 2
    %v2323 = vadd.f32 %v2321, %v2322
    %v2324 = vrot.slane %v2323, 1
    %v2325 = vadd.f32 %v2323, %v2324
    %v2326 = vsel %vm2013, %v2246, 0.0
    %v2327 = vrot.slane %v2326, 4
    %v2328 = vadd.f32 %v2326, %v2327
    %v2329 = vrot.slane %v2328, 2
    %v2330 = vadd.f32 %v2328, %v2329
    %v2331 = vrot.slane %v2330, 1
    %v2332 = vadd.f32 %v2330, %v2331
    %v2333 = vsel %vm2013, %v2247, 0.0
    %v2334 = vrot.slane %v2333, 4
    %v2335 = vadd.f32 %v2333, %v2334
    %v2336 = vrot.slane %v2335, 2
    %v2337 = vadd.f32 %v2335, %v2336
    %v2338 = vrot.slane %v2337, 1
    %v2339 = vadd.f32 %v2337, %v2338
    %v2340 = vsel %vm2013, %v2248, 0.0
    %v2341 = vrot.slane %v2340, 4
    %v2342 = vadd.f32 %v2340, %v2341
    %v2343 = vrot.slane %v2342, 2
    %v2344 = vadd.f32 %v2342, %v2343
    %v2345 = vrot.slane %v2344, 1
    %v2346 = vadd.f32 %v2344, %v2345
    %v2347 = vsel %vm2013, %v2249, 0.0
    %v2348 = vrot.slane %v2347, 4
    %v2349 = vadd.f32 %v2347, %v2348
    %v2350 = vrot.slane %v2349, 2
    %v2351 = vadd.f32 %v2349, %v2350
    %v2352 = vrot.slane %v2351, 1
    %v2353 = vadd.f32 %v2351, %v2352
    %v2354 = vsel %vm2013, %v2250, 0.0
    %v2355 = vrot.slane %v2354, 4
    %v2356 = vadd.f32 %v2354, %v2355
    %v2357 = vrot.slane %v2356, 2
    %v2358 = vadd.f32 %v2356, %v2357
    %v2359 = vrot.slane %v2358, 1
    %v2360 = vadd.f32 %v2358, %v2359
    %v2361 = vsel %vm2013, %v2251, 0.0
    %v2362 = vrot.slane %v2361, 4
    %v2363 = vadd.f32 %v2361, %v2362
    %v2364 = vrot.slane %v2363, 2
    %v2365 = vadd.f32 %v2363, %v2364
    %v2366 = vrot.slane %v2365, 1
    %v2367 = vadd.f32 %v2365, %v2366
    %v2368 = vsel %vm2013, %v2252, 0.0
    %v2369 = vrot.slane %v2368, 4
    %v2370 = vadd.f32 %v2368, %v2369
    %v2371 = vrot.slane %v2370, 2
    %v2372 = vadd.f32 %v2370, %v2371
    %v2373 = vrot.slane %v2372, 1
    %v2374 = vadd.f32 %v2372, %v2373
    %v2375 = vsel %vm2013, %v2253, 0.0
    %v2376 = vrot.slane %v2375, 4
    %v2377 = vadd.f32 %v2375, %v2376
    %v2378 = vrot.slane %v2377, 2
    %v2379 = vadd.f32 %v2377, %v2378
    %v2380 = vrot.slane %v2379, 1
    %v2381 = vadd.f32 %v2379, %v2380
    %v2382 = vsel %vm2013, %v2254, 0.0
    %v2383 = vrot.slane %v2382, 4
    %v2384 = vadd.f32 %v2382, %v2383
    %v2385 = vrot.slane %v2384, 2
    %v2386 = vadd.f32 %v2384, %v2385
    %v2387 = vrot.slane %v2386, 1
    %v2388 = vadd.f32 %v2386, %v2387
    %v2389 = vsel %vm2013, %v2255, 0.0
    %v2390 = vrot.slane %v2389, 4
    %v2391 = vadd.f32 %v2389, %v2390
    %v2392 = vrot.slane %v2391, 2
    %v2393 = vadd.f32 %v2391, %v2392
    %v2394 = vrot.slane %v2393, 1
    %v2395 = vadd.f32 %v2393, %v2394
    %v2396 = vsel %vm2013, %v2256, 0.0
    %v2397 = vrot.slane %v2396, 4
    %v2398 = vadd.f32 %v2396, %v2397
    %v2399 = vrot.slane %v2398, 2
    %v2400 = vadd.f32 %v2398, %v2399
    %v2401 = vrot.slane %v2400, 1
    %v2402 = vadd.f32 %v2400, %v2401
    %v2403 = vsel %vm2013, %v2257, 0.0
    %v2404 = vrot.slane %v2403, 4
    %v2405 = vadd.f32 %v2403, %v2404
    %v2406 = vrot.slane %v2405, 2
    %v2407 = vadd.f32 %v2405, %v2406
    %v2408 = vrot.slane %v2407, 1
    %v2409 = vadd.f32 %v2407, %v2408
    %v2410 = vsel %vm2013, %v2258, 0.0
    %v2411 = vrot.slane %v2410, 4
    %v2412 = vadd.f32 %v2410, %v2411
    %v2413 = vrot.slane %v2412, 2
    %v2414 = vadd.f32 %v2412, %v2413
    %v2415 = vrot.slane %v2414, 1
    %v2416 = vadd.f32 %v2414, %v2415
    %v2417 = vsel %vm2013, %v2259, 0.0
    %v2418 = vrot.slane %v2417, 4
    %v2419 = vadd.f32 %v2417, %v2418
    %v2420 = vrot.slane %v2419, 2
    %v2421 = vadd.f32 %v2419, %v2420
    %v2422 = vrot.slane %v2421, 1
    %v2423 = vadd.f32 %v2421, %v2422
    %v2424 = vsel %vm2013, %v2260, 0.0
    %v2425 = vrot.slane %v2424, 4
    %v2426 = vadd.f32 %v2424, %v2425
    %v2427 = vrot.slane %v2426, 2
    %v2428 = vadd.f32 %v2426, %v2427
    %v2429 = vrot.slane %v2428, 1
    %v2430 = vadd.f32 %v2428, %v2429
    %v2431 = vsel %vm2013, %v2261, 0.0
    %v2432 = vrot.slane %v2431, 4
    %v2433 = vadd.f32 %v2431, %v2432
    %v2434 = vrot.slane %v2433, 2
    %v2435 = vadd.f32 %v2433, %v2434
    %v2436 = vrot.slane %v2435, 1
    %v2437 = vadd.f32 %v2435, %v2436
    %v2438 = vsel %vm2013, %v2262, 0.0
    %v2439 = vrot.slane %v2438, 4
    %v2440 = vadd.f32 %v2438, %v2439
    %v2441 = vrot.slane %v2440, 2
    %v2442 = vadd.f32 %v2440, %v2441
    %v2443 = vrot.slane %v2442, 1
    %v2444 = vadd.f32 %v2442, %v2443
    %v2445 = vsel %vm2013, %v2263, 0.0
    %v2446 = vrot.slane %v2445, 4
    %v2447 = vadd.f32 %v2445, %v2446
    %v2448 = vrot.slane %v2447, 2
    %v2449 = vadd.f32 %v2447, %v2448
    %v2450 = vrot.slane %v2449, 1
    %v2451 = vadd.f32 %v2449, %v2450
    %v2452 = vsel %vm2013, %v2264, 0.0
    %v2453 = vrot.slane %v2452, 4
    %v2454 = vadd.f32 %v2452, %v2453
    %v2455 = vrot.slane %v2454, 2
    %v2456 = vadd.f32 %v2454, %v2455
    %v2457 = vrot.slane %v2456, 1
    %v2458 = vadd.f32 %v2456, %v2457
    %v2459 = vsel %vm2013, %v2265, 0.0
    %v2460 = vrot.slane %v2459, 4
    %v2461 = vadd.f32 %v2459, %v2460
    %v2462 = vrot.slane %v2461, 2
    %v2463 = vadd.f32 %v2461, %v2462
    %v2464 = vrot.slane %v2463, 1
    %v2465 = vadd.f32 %v2463, %v2464
    %v2466 = vsel %vm2013, %v2266, 0.0
    %v2467 = vrot.slane %v2466, 4
    %v2468 = vadd.f32 %v2466, %v2467
    %v2469 = vrot.slane %v2468, 2
    %v2470 = vadd.f32 %v2468, %v2469
    %v2471 = vrot.slane %v2470, 1
    %v2472 = vadd.f32 %v2470, %v2471
    %v2473 = vsel %vm2013, %v2267, 0.0
    %v2474 = vrot.slane %v2473, 4
    %v2475 = vadd.f32 %v2473, %v2474
    %v2476 = vrot.slane %v2475, 2
    %v2477 = vadd.f32 %v2475, %v2476
    %v2478 = vrot.slane %v2477, 1
    %v2479 = vadd.f32 %v2477, %v2478
    %v2480 = vsel %vm2013, %v2268, 0.0
    %v2481 = vrot.slane %v2480, 4
    %v2482 = vadd.f32 %v2480, %v2481
    %v2483 = vrot.slane %v2482, 2
    %v2484 = vadd.f32 %v2482, %v2483
    %v2485 = vrot.slane %v2484, 1
    %v2486 = vadd.f32 %v2484, %v2485
    %v2487 = vsel %vm2013, %v2269, 0.0
    %v2488 = vrot.slane %v2487, 4
    %v2489 = vadd.f32 %v2487, %v2488
    %v2490 = vrot.slane %v2489, 2
    %v2491 = vadd.f32 %v2489, %v2490
    %v2492 = vrot.slane %v2491, 1
    %v2493 = vadd.f32 %v2491, %v2492
    %v2494 = vadd.f32 %v2020, %v2034
    %v2495 = vadd.f32 %v2027, %v2041
    %v2496 = vadd.f32 %v2276, %v2290
    %v2497 = vadd.f32 %v2283, %v2297
    %v2498 = vadd.f32 %v2494, %v2048
    %v2499 = vadd.f32 %v2495, %v2055
    %v2500 = vadd.f32 %v2496, %v2304
    %v2501 = vadd.f32 %v2497, %v2311
    %v2502 = vadd.f32 %v2498, %v2062
    %v2503 = vadd.f32 %v2499, %v2069
    %v2504 = vadd.f32 %v2500, %v2318
    %v2505 = vadd.f32 %v2501, %v2325
    %v2506 = vadd.f32 %v2502, %v2076
    %v2507 = vadd.f32 %v2503, %v2083
    %v2508 = vadd.f32 %v2504, %v2332
    %v2509 = vadd.f32 %v2505, %v2339
    %v2510 = vadd.f32 %v2506, %v2090
    %v2511 = vadd.f32 %v2507, %v2097
    %v2512 = vadd.f32 %v2508, %v2346
    %v2513 = vadd.f32 %v2509, %v2353
    %v2514 = vadd.f32 %v2510, %v2104
    %v2515 = vadd.f32 %v2511, %v2111
    %v2516 = vadd.f32 %v2512, %v2360
    %v2517 = vadd.f32 %v2513, %v2367
    %v2518 = vadd.f32 %v2514, %v2118
    %v2519 = vadd.f32 %v2515, %v2125
    %v2520 = vadd.f32 %v2516, %v2374
    %v2521 = vadd.f32 %v2517, %v2381
    %v2522 = vadd.f32 %v2518, %v2132
    %v2523 = vadd.f32 %v2519, %v2139
    %v2524 = vadd.f32 %v2520, %v2388
    %v2525 = vadd.f32 %v2521, %v2395
    %v2526 = vadd.f32 %v2522, %v2146
    %v2527 = vadd.f32 %v2523, %v2153
    %v2528 = vadd.f32 %v2524, %v2402
    %v2529 = vadd.f32 %v2525, %v2409
    %v2530 = vadd.f32 %v2526, %v2160
    %v2531 = vadd.f32 %v2527, %v2167
    %v2532 = vadd.f32 %v2528, %v2416
    %v2533 = vadd.f32 %v2529, %v2423
    %v2534 = vadd.f32 %v2530, %v2174
    %v2535 = vadd.f32 %v2531, %v2181
    %v2536 = vadd.f32 %v2532, %v2430
    %v2537 = vadd.f32 %v2533, %v2437
    %v2538 = vadd.f32 %v2534, %v2188
    %v2539 = vadd.f32 %v2535, %v2195
    %v2540 = vadd.f32 %v2536, %v2444
    %v2541 = vadd.f32 %v2537, %v2451
    %v2542 = vadd.f32 %v2538, %v2202
    %v2543 = vadd.f32 %v2539, %v2209
    %v2544 = vadd.f32 %v2540, %v2458
    %v2545 = vadd.f32 %v2541, %v2465
    %v2546 = vadd.f32 %v2542, %v2216
    %v2547 = vadd.f32 %v2543, %v2223
    %v2548 = vadd.f32 %v2544, %v2472
    %v2549 = vadd.f32 %v2545, %v2479
    %v2550 = vadd.f32 %v2546, %v2230
    %v2551 = vadd.f32 %v2547, %v2237
    %v2552 = vadd.f32 %v2548, %v2486
    %v2553 = vadd.f32 %v2549, %v2493
    %v2554 = vmul.f32 %v2550, 0.03125
    %v2555 = vmul.f32 %v2551, 0.03125
    %v2556 = vmul.f32 %v2552, 0.03125
    %v2557 = vmul.f32 %v2553, 0.03125
    %v2558 = vmul.f32 %v2554, %v2554
    %v2559 = vmul.f32 %v2555, %v2555
    %v2560 = vsub.f32 %v2556, %v2558
    %v2561 = vsub.f32 %v2557, %v2559
    %v2562 = vmax.f32 %v2560, 0.0
    %v2563 = vmax.f32 %v2561, 0.0
    %v2564 = vadd.f32 %v2562, 1e-05
    %v2565 = vadd.f32 %v2563, 1e-05
    %v2566 = vrsqrt.pop %v2564
    %v2567 = vmul.f32 %v2566, %v2564
    %v2568 = vmul.f32 %v2567, %v2566
    %v2569 = vmul.f32 0.5, %v2568
    %v2570 = vsub.f32 1.5, %v2569
    %v2571 = vmul.f32 %v2566, %v2570
    %vm2572 = vweird.f32 %v2564
    %vm2573 = vweird.f32 %v2566
    %vm2574 = vmor %vm2572, %vm2573
    %v2575 = vsel %vm2574, %v2566, %v2571
    %v2576 = vrsqrt.pop %v2565
    %v2577 = vmul.f32 %v2576, %v2565
    %v2578 = vmul.f32 %v2577, %v2576
    %v2579 = vmul.f32 0.5, %v2578
    %v2580 = vsub.f32 1.5, %v2579
    %v2581 = vmul.f32 %v2576, %v2580
    %vm2582 = vweird.f32 %v2565
    %vm2583 = vweird.f32 %v2576
    %vm2584 = vmor %vm2582, %vm2583
    %v2585 = vsel %vm2584, %v2576, %v2581
    %v2586 = vld [vmem:[#allocation4] sm:$0x3]
    %v2588 = vperm.slane %v2586, 0
    %v2589 = vperm.slane %v2586, 1
    %v2592 = vmul.f32 %v2575, %v2588
    %v2593 = vmul.f32 %v2585, %v2589
    %v2594 = vld [vmem:[#allocation6] sm:$0x3]
    %v2595 = vmul.f32 %v2554, %v2592
    %v2596 = vmul.f32 %v2555, %v2593
    %v2599 = vrot.slane %v2596, 7
    %vm2600 = vcmask 1040384
    %v2601 = vsel %vm2600, %v2595, %v2599
    %v2603 = vsub.f32 %v2594, %v2601
    %v2605 = vperm.slane %v2603, 0
    %v2606 = vperm.slane %v2603, 1
    %v2609 = vperm.slane %v2592, 0
    %v2610 = vperm.slane %v2593, 0
    %v2611 = vmul.f32 %v1607, %v2609
    %v2612 = vmul.f32 %v1620, %v2610
    %v2613 = vmul.f32 %v1633, %v2609
    %v2614 = vmul.f32 %v1646, %v2610
    %v2615 = vmul.f32 %v1659, %v2609
    %v2616 = vmul.f32 %v1672, %v2610
    %v2617 = vmul.f32 %v1685, %v2609
    %v2618 = vmul.f32 %v1698, %v2610
    %v2619 = vmul.f32 %v1711, %v2609
    %v2620 = vmul.f32 %v1724, %v2610
    %v2621 = vmul.f32 %v1737, %v2609
    %v2622 = vmul.f32 %v1750, %v2610
    %v2623 = vmul.f32 %v1763, %v2609
    %v2624 = vmul.f32 %v1776, %v2610
    %v2625 = vmul.f32 %v1789, %v2609
    %v2626 = vmul.f32 %v1802, %v2610
    %v2627 = vmul.f32 %v1815, %v2609
    %v2628 = vmul.f32 %v1828, %v2610
    %v2629 = vmul.f32 %v1841, %v2609
    %v2630 = vmul.f32 %v1854, %v2610
    %v2631 = vmul.f32 %v1867, %v2609
    %v2632 = vmul.f32 %v1880, %v2610
    %v2633 = vmul.f32 %v1893, %v2609
    %v2634 = vmul.f32 %v1906, %v2610
    %v2635 = vmul.f32 %v1919, %v2609
    %v2636 = vmul.f32 %v1932, %v2610
    %v2637 = vmul.f32 %v1945, %v2609
    %v2638 = vmul.f32 %v1958, %v2610
    %v2639 = vmul.f32 %v1971, %v2609
    %v2640 = vmul.f32 %v1984, %v2610
    %v2641 = vmul.f32 %v1997, %v2609
    %v2642 = vmul.f32 %v2010, %v2610
    %v2643 = vperm.slane %v2605, 0
    %v2644 = vperm.slane %v2606, 0
    %v2645 = vadd.f32 %v2611, %v2643
    %v2646 = vadd.f32 %v2612, %v2644
    %v2647 = vadd.f32 %v2613, %v2643
    %v2648 = vadd.f32 %v2614, %v2644
    %v2649 = vadd.f32 %v2615, %v2643
    %v2650 = vadd.f32 %v2616, %v2644
    %v2651 = vadd.f32 %v2617, %v2643
    %v2652 = vadd.f32 %v2618, %v2644
    %v2653 = vadd.f32 %v2619, %v2643
    %v2654 = vadd.f32 %v2620, %v2644
    %v2655 = vadd.f32 %v2621, %v2643
    %v2656 = vadd.f32 %v2622, %v2644
    %v2657 = vadd.f32 %v2623, %v2643
    %v2658 = vadd.f32 %v2624, %v2644
    %v2659 = vadd.f32 %v2625, %v2643
    %v2660 = vadd.f32 %v2626, %v2644
    %v2661 = vadd.f32 %v2627, %v2643
    %v2662 = vadd.f32 %v2628, %v2644
    %v2663 = vadd.f32 %v2629, %v2643
    %v2664 = vadd.f32 %v2630, %v2644
    %v2665 = vadd.f32 %v2631, %v2643
    %v2666 = vadd.f32 %v2632, %v2644
    %v2667 = vadd.f32 %v2633, %v2643
    %v2668 = vadd.f32 %v2634, %v2644
    %v2669 = vadd.f32 %v2635, %v2643
    %v2670 = vadd.f32 %v2636, %v2644
    %v2671 = vadd.f32 %v2637, %v2643
    %v2672 = vadd.f32 %v2638, %v2644
    %v2673 = vadd.f32 %v2639, %v2643
    %v2674 = vadd.f32 %v2640, %v2644
    %v2675 = vadd.f32 %v2641, %v2643
    %v2676 = vadd.f32 %v2642, %v2644
    %v2677 = vmax.f32 %v2645, 0.0
    %v2678 = vmax.f32 %v2646, 0.0
    %v2679 = vmax.f32 %v2647, 0.0
    %v2680 = vmax.f32 %v2648, 0.0
    %v2681 = vmax.f32 %v2649, 0.0
    %v2682 = vmax.f32 %v2650, 0.0
    %v2683 = vmax.f32 %v2651, 0.0
    %v2684 = vmax.f32 %v2652, 0.0
    %v2685 = vmax.f32 %v2653, 0.0
    %v2686 = vmax.f32 %v2654, 0.0
    %v2687 = vmax.f32 %v2655, 0.0
    %v2688 = vmax.f32 %v2656, 0.0
    %v2689 = vmax.f32 %v2657, 0.0
    %v2690 = vmax.f32 %v2658, 0.0
    %v2691 = vmax.f32 %v2659, 0.0
    %v2692 = vmax.f32 %v2660, 0.0
    %v2693 = vmax.f32 %v2661, 0.0
    %v2694 = vmax.f32 %v2662, 0.0
    %v2695 = vmax.f32 %v2663, 0.0
    %v2696 = vmax.f32 %v2664, 0.0
    %v2697 = vmax.f32 %v2665, 0.0
    %v2698 = vmax.f32 %v2666, 0.0
    %v2699 = vmax.f32 %v2667, 0.0
    %v2700 = vmax.f32 %v2668, 0.0
    %v2701 = vmax.f32 %v2669, 0.0
    %v2702 = vmax.f32 %v2670, 0.0
    %v2703 = vmax.f32 %v2671, 0.0
    %v2704 = vmax.f32 %v2672, 0.0
    %v2705 = vmax.f32 %v2673, 0.0
    %v2706 = vmax.f32 %v2674, 0.0
    %v2707 = vmax.f32 %v2675, 0.0
    %v2708 = vmax.f32 %v2676, 0.0
    %v2709 = vpack.c.bf16 %v2678, %v2677
    %v2710 = vpack.c.bf16 %v2680, %v2679
    %v2711 = vpack.c.bf16 %v2682, %v2681
    %v2712 = vpack.c.bf16 %v2684, %v2683
    %v2713 = vpack.c.bf16 %v2686, %v2685
    %v2714 = vpack.c.bf16 %v2688, %v2687
    %v2715 = vpack.c.bf16 %v2690, %v2689
    %v2716 = vpack.c.bf16 %v2692, %v2691
    %v2717 = vpack.c.bf16 %v2694, %v2693
    %v2718 = vpack.c.bf16 %v2696, %v2695
    %v2719 = vpack.c.bf16 %v2698, %v2697
    %v2720 = vpack.c.bf16 %v2700, %v2699
    %v2721 = vpack.c.bf16 %v2702, %v2701
    %v2722 = vpack.c.bf16 %v2704, %v2703
    %v2723 = vpack.c.bf16 %v2706, %v2705
    %v2724 = vpack.c.bf16 %v2708, %v2707
    %v2741 = vrot.slane %v2709, 3
    %v2742 = vrot.slane %v2710, 6
    %v2743 = vrot.slane %v2710, 1
    %v2744 = vrot.slane %v2711, 4
    %v2745 = vrot.slane %v2711, 7
    %v2746 = vrot.slane %v2712, 2
    %v2747 = vrot.slane %v2712, 5
    %v2748 = vrot.slane %v2713, 3
    %v2749 = vrot.slane %v2714, 6
    %v2750 = vrot.slane %v2714, 1
    %v2751 = vrot.slane %v2715, 4
    %v2752 = vrot.slane %v2715, 7
    %v2753 = vrot.slane %v2716, 2
    %v2754 = vrot.slane %v2716, 5
    %v2755 = vrot.slane %v2717, 3
    %v2756 = vrot.slane %v2718, 6
    %v2757 = vrot.slane %v2718, 1
    %v2758 = vrot.slane %v2719, 4
    %v2759 = vrot.slane %v2719, 7
    %v2760 = vrot.slane %v2720, 2
    %v2761 = vrot.slane %v2720, 5
    %v2762 = vrot.slane %v2721, 3
    %v2763 = vrot.slane %v2722, 6
    %v2764 = vrot.slane %v2722, 1
    %v2765 = vrot.slane %v2723, 4
    %v2766 = vrot.slane %v2723, 7
    %v2767 = vrot.slane %v2724, 2
    %v2768 = vrot.slane %v2724, 5
    %v2771 = vsel %vm2600, %v2709, %v2741
    %vm2772 = vcmask 1042434
    %v2775 = vsel %vm2772, %v2742, %v2743
    %v2776 = vsel %vm2013, %v2771, %v2775
    %vm2777 = vcmask 1044484
    %v2780 = vsel %vm2777, %v2744, %v2745
    %vm2781 = vcmask 1046534
    %v2784 = vsel %vm2781, %v2746, %v2747
    %vm2785 = vcmask 1045508
    %v2786 = vsel %vm2785, %v2780, %v2784
    %vm2787 = vcmask 1043456
    %v2788 = vsel %vm2787, %v2776, %v2786
    %v2791 = vsel %vm2600, %v2713, %v2748
    %v2794 = vsel %vm2772, %v2749, %v2750
    %v2795 = vsel %vm2013, %v2791, %v2794
    %v2798 = vsel %vm2777, %v2751, %v2752
    %v2801 = vsel %vm2781, %v2753, %v2754
    %v2802 = vsel %vm2785, %v2798, %v2801
    %v2803 = vsel %vm2787, %v2795, %v2802
    %v2806 = vsel %vm2600, %v2717, %v2755
    %v2809 = vsel %vm2772, %v2756, %v2757
    %v2810 = vsel %vm2013, %v2806, %v2809
    %v2813 = vsel %vm2777, %v2758, %v2759
    %v2816 = vsel %vm2781, %v2760, %v2761
    %v2817 = vsel %vm2785, %v2813, %v2816
    %v2818 = vsel %vm2787, %v2810, %v2817
    %v2821 = vsel %vm2600, %v2721, %v2762
    %v2824 = vsel %vm2772, %v2763, %v2764
    %v2825 = vsel %vm2013, %v2821, %v2824
    %v2828 = vsel %vm2777, %v2765, %v2766
    %v2831 = vsel %vm2781, %v2767, %v2768
    %v2832 = vsel %vm2785, %v2828, %v2831
    %v2833 = vsel %vm2787, %v2825, %v2832
    %2838 = vst [vmem:[%s4] sm:$0xff] %v2788
    %2839 = vst [vmem:[%s4 + $0x8] sm:$0xff] %v2803
    %2840 = vst [vmem:[%s4 + $0x10] sm:$0xff] %v2818
    %2841 = vst [vmem:[%s4 + $0x18] sm:$0xff] %v2833
    // Predicated region
    $region30: #{generator_forward.4} parent=1 // pred_check
      _
    $region31: #{generator_forward.4} parent=1 // pred_check_branch
      %2843 = sbr.rel (0) target = $region33
    $region32: #{generator_forward.4} parent=1 // pred_region
      _
    $region33: #{generator_forward.4} parent=1 // pred_fallthru
      _
    // Predicated region
    $region34: #{generator_forward.4} parent=1 // pred_check
      _
    $region35: #{generator_forward.4} parent=1 // pred_check_branch
      %2845 = sbr.rel (0) target = $region37
    $region36: #{generator_forward.4} parent=1 // pred_region
      _
    $region37: #{generator_forward.4} parent=1 // pred_fallthru
      _
    %2846 = vsyncpa [#allocation3], 1
    %2847 = vsyncpa [#allocation5], 1

// kernel: generator_forward.5
$region0: #{generator_forward.5}
  #allocation0 [shape = 'u32[]', space=smem, size = 0x4, offset = 0x4, fixed_abs, tag = 'smem constant byte address 0x4 - core index']
  #allocation1 [shape = 'u32[72,128]{1,0:T(1,128)}', space=vmem, size = 0x9000, scoped, tag = 'internal scratch']
  %s0 = inlined_call_operand.vmem [shape: bf16[32,1024], index: 0, kind: input, shape index: {}]
  %s1 = inlined_call_operand.vmem [shape: bf16[32,1024], index: 1, kind: input, shape index: {}]
  %s2 = inlined_call_operand.vmem [shape: bf16[32,1024], index: 2, kind: input, shape index: {}]
  %s3 = inlined_call_operand.vmem [shape: bf16[32,1024], index: 3, kind: input, shape index: {}]
  %s4 = inlined_call_operand.vmem [shape: bf16[1024,128], index: 4, kind: input, shape index: {}]
  %s5 = inlined_call_operand.vmem [shape: bf16[1024,128], index: 5, kind: input, shape index: {}]
  %s6 = inlined_call_operand.vmem [shape: bf16[1024,128], index: 6, kind: input, shape index: {}]
  %s7 = inlined_call_operand.vmem [shape: bf16[1024,128], index: 7, kind: input, shape index: {}]
  %s8 = inlined_call_operand.vmem [shape: f32[1,128], index: 8, kind: input, shape index: {}]
  %s9 = inlined_call_operand.vmem [shape: f32[1,128], index: 9, kind: input, shape index: {}]
  %s10 = inlined_call_operand.vmem [shape: bf16[32,512], index: 10, kind: output, shape index: {}]
  %s11 = sld [smem:[#allocation0]]
  $region50: #{generator_forward.5} parent=0
    _
  %s13 = ssub.s32 1, %s11
  %s14 = scalar_select 0, %s13, %s11
  // Predicated region
  $region2: #{generator_forward.5} parent=0 // pred_check
    _
  $region3: #{generator_forward.5} parent=0 // pred_check_branch
    %16 = sbr.rel (0) target = $region5
  $region4: #{generator_forward.5} parent=0 // pred_region
    _
  $region5: #{generator_forward.5} parent=0 // pred_fallthru
    _
  // Predicated region
  $region6: #{generator_forward.5} parent=0 // pred_check
    _
  $region7: #{generator_forward.5} parent=0 // pred_check_branch
    %18 = sbr.rel (0) target = $region9
  $region8: #{generator_forward.5} parent=0 // pred_region
    _
  $region9: #{generator_forward.5} parent=0 // pred_fallthru
    _
  // Predicated region
  $region10: #{generator_forward.5} parent=0 // pred_check
    _
  $region11: #{generator_forward.5} parent=0 // pred_check_branch
    %20 = sbr.rel (0) target = $region13
  $region12: #{generator_forward.5} parent=0 // pred_region
    _
  $region13: #{generator_forward.5} parent=0 // pred_fallthru
    _
  // Predicated region
  $region14: #{generator_forward.5} parent=0 // pred_check
    _
  $region15: #{generator_forward.5} parent=0 // pred_check_branch
    %22 = sbr.rel (0) target = $region17
  $region16: #{generator_forward.5} parent=0 // pred_region
    _
  $region17: #{generator_forward.5} parent=0 // pred_fallthru
    _
  // Predicated region
  $region18: #{generator_forward.5} parent=0 // pred_check
    _
  $region19: #{generator_forward.5} parent=0 // pred_check_branch
    %24 = sbr.rel (0) target = $region21
  $region20: #{generator_forward.5} parent=0 // pred_region
    _
  $region21: #{generator_forward.5} parent=0 // pred_fallthru
    _
  // Predicated region
  $region22: #{generator_forward.5} parent=0 // pred_check
    _
  $region23: #{generator_forward.5} parent=0 // pred_check_branch
    %26 = sbr.rel (0) target = $region25
  $region24: #{generator_forward.5} parent=0 // pred_region
    _
  $region25: #{generator_forward.5} parent=0 // pred_fallthru
    _
  // Predicated region
  $region26: #{generator_forward.5} parent=0 // pred_check
    _
  $region27: #{generator_forward.5} parent=0 // pred_check_branch
    %28 = sbr.rel (0) target = $region29
  $region28: #{generator_forward.5} parent=0 // pred_region
    _
  $region29: #{generator_forward.5} parent=0 // pred_fallthru
    _
  // Predicated region
  $region30: #{generator_forward.5} parent=0 // pred_check
    _
  $region31: #{generator_forward.5} parent=0 // pred_check_branch
    %30 = sbr.rel (0) target = $region33
  $region32: #{generator_forward.5} parent=0 // pred_region
    _
  $region33: #{generator_forward.5} parent=0 // pred_fallthru
    _
  // Predicated region
  $region34: #{generator_forward.5} parent=0 // pred_check
    _
  $region35: #{generator_forward.5} parent=0 // pred_check_branch
    %32 = sbr.rel (0) target = $region37
  $region36: #{generator_forward.5} parent=0 // pred_region
    _
  $region37: #{generator_forward.5} parent=0 // pred_fallthru
    _
  // Predicated region
  $region38: #{generator_forward.5} parent=0 // pred_check
    _
  $region39: #{generator_forward.5} parent=0 // pred_check_branch
    %34 = sbr.rel (0) target = $region41
  $region40: #{generator_forward.5} parent=0 // pred_region
    _
  $region41: #{generator_forward.5} parent=0 // pred_fallthru
    _
  %v35 = vld [vmem:[%s0] sm:$0xff]
  %v36 = vld [vmem:[%s0 + $0x8] sm:$0xff]
  %v37 = vld [vmem:[%s0 + $0x10] sm:$0xff]
  %v38 = vld [vmem:[%s0 + $0x18] sm:$0xff]
  %v39 = vld [vmem:[%s0 + $0x20] sm:$0xff]
  %v40 = vld [vmem:[%s0 + $0x28] sm:$0xff]
  %v41 = vld [vmem:[%s0 + $0x30] sm:$0xff]
  %v42 = vld [vmem:[%s0 + $0x38] sm:$0xff]
  %v43 = vld [vmem:[%s0 + $0x40] sm:$0xff]
  %v44 = vld [vmem:[%s0 + $0x48] sm:$0xff]
  %v45 = vld [vmem:[%s0 + $0x50] sm:$0xff]
  %v46 = vld [vmem:[%s0 + $0x58] sm:$0xff]
  %v47 = vld [vmem:[%s0 + $0x60] sm:$0xff]
  %v48 = vld [vmem:[%s0 + $0x68] sm:$0xff]
  %v49 = vld [vmem:[%s0 + $0x70] sm:$0xff]
  %v50 = vld [vmem:[%s0 + $0x78] sm:$0xff]
  %v51 = vld [vmem:[%s4] sm:$0xf]
  %v52 = vld [vmem:[%s4 + $0x4] sm:$0xf]
  %v53 = vld [vmem:[%s4 + $0x8] sm:$0xf]
  %v54 = vld [vmem:[%s4 + $0xc] sm:$0xf]
  %v55 = vld [vmem:[%s4 + $0x10] sm:$0xf]
  %v56 = vld [vmem:[%s4 + $0x14] sm:$0xf]
  %v57 = vld [vmem:[%s4 + $0x18] sm:$0xf]
  %v58 = vld [vmem:[%s4 + $0x1c] sm:$0xf]
  %v59 = vld [vmem:[%s4 + $0x20] sm:$0xf]
  %v60 = vld [vmem:[%s4 + $0x24] sm:$0xf]
  %v61 = vld [vmem:[%s4 + $0x28] sm:$0xf]
  %v62 = vld [vmem:[%s4 + $0x2c] sm:$0xf]
  %v63 = vld [vmem:[%s4 + $0x30] sm:$0xf]
  %v64 = vld [vmem:[%s4 + $0x34] sm:$0xf]
  %v65 = vld [vmem:[%s4 + $0x38] sm:$0xf]
  %v66 = vld [vmem:[%s4 + $0x3c] sm:$0xf]
  %v67 = vld [vmem:[%s4 + $0x40] sm:$0xf]
  %v68 = vld [vmem:[%s4 + $0x44] sm:$0xf]
  %v69 = vld [vmem:[%s4 + $0x48] sm:$0xf]
  %v70 = vld [vmem:[%s4 + $0x4c] sm:$0xf]
  %v71 = vld [vmem:[%s4 + $0x50] sm:$0xf]
  %v72 = vld [vmem:[%s4 + $0x54] sm:$0xf]
  %v73 = vld [vmem:[%s4 + $0x58] sm:$0xf]
  %v74 = vld [vmem:[%s4 + $0x5c] sm:$0xf]
  %v75 = vld [vmem:[%s4 + $0x60] sm:$0xf]
  %v76 = vld [vmem:[%s4 + $0x64] sm:$0xf]
  %v77 = vld [vmem:[%s4 + $0x68] sm:$0xf]
  %v78 = vld [vmem:[%s4 + $0x6c] sm:$0xf]
  %v79 = vld [vmem:[%s4 + $0x70] sm:$0xf]
  %v80 = vld [vmem:[%s4 + $0x74] sm:$0xf]
  %v81 = vld [vmem:[%s4 + $0x78] sm:$0xf]
  %v82 = vld [vmem:[%s4 + $0x7c] sm:$0xf]
  %v83 = vld [vmem:[%s4 + $0x80] sm:$0xf]
  %v84 = vld [vmem:[%s4 + $0x84] sm:$0xf]
  %v85 = vld [vmem:[%s4 + $0x88] sm:$0xf]
  %v86 = vld [vmem:[%s4 + $0x8c] sm:$0xf]
  %v87 = vld [vmem:[%s4 + $0x90] sm:$0xf]
  %v88 = vld [vmem:[%s4 + $0x94] sm:$0xf]
  %v89 = vld [vmem:[%s4 + $0x98] sm:$0xf]
  %v90 = vld [vmem:[%s4 + $0x9c] sm:$0xf]
  %v91 = vld [vmem:[%s4 + $0xa0] sm:$0xf]
  %v92 = vld [vmem:[%s4 + $0xa4] sm:$0xf]
  %v93 = vld [vmem:[%s4 + $0xa8] sm:$0xf]
  %v94 = vld [vmem:[%s4 + $0xac] sm:$0xf]
  %v95 = vld [vmem:[%s4 + $0xb0] sm:$0xf]
  %v96 = vld [vmem:[%s4 + $0xb4] sm:$0xf]
  %v97 = vld [vmem:[%s4 + $0xb8] sm:$0xf]
  %v98 = vld [vmem:[%s4 + $0xbc] sm:$0xf]
  %v99 = vld [vmem:[%s4 + $0xc0] sm:$0xf]
  %v100 = vld [vmem:[%s4 + $0xc4] sm:$0xf]
  %v101 = vld [vmem:[%s4 + $0xc8] sm:$0xf]
  %v102 = vld [vmem:[%s4 + $0xcc] sm:$0xf]
  %v103 = vld [vmem:[%s4 + $0xd0] sm:$0xf]
  %v104 = vld [vmem:[%s4 + $0xd4] sm:$0xf]
  %v105 = vld [vmem:[%s4 + $0xd8] sm:$0xf]
  %v106 = vld [vmem:[%s4 + $0xdc] sm:$0xf]
  %v107 = vld [vmem:[%s4 + $0xe0] sm:$0xf]
  %v108 = vld [vmem:[%s4 + $0xe4] sm:$0xf]
  %v109 = vld [vmem:[%s4 + $0xe8] sm:$0xf]
  %v110 = vld [vmem:[%s4 + $0xec] sm:$0xf]
  %v111 = vld [vmem:[%s4 + $0xf0] sm:$0xf]
  %v112 = vld [vmem:[%s4 + $0xf4] sm:$0xf]
  %v113 = vld [vmem:[%s4 + $0xf8] sm:$0xf]
  %v114 = vld [vmem:[%s4 + $0xfc] sm:$0xf]
  %v115 = vld [vmem:[%s4 + $0x100] sm:$0xf]
  %v116 = vld [vmem:[%s4 + $0x104] sm:$0xf]
  %v117 = vld [vmem:[%s4 + $0x108] sm:$0xf]
  %v118 = vld [vmem:[%s4 + $0x10c] sm:$0xf]
  %v119 = vld [vmem:[%s4 + $0x110] sm:$0xf]
  %v120 = vld [vmem:[%s4 + $0x114] sm:$0xf]
  %v121 = vld [vmem:[%s4 + $0x118] sm:$0xf]
  %v122 = vld [vmem:[%s4 + $0x11c] sm:$0xf]
  %v123 = vld [vmem:[%s4 + $0x120] sm:$0xf]
  %v124 = vld [vmem:[%s4 + $0x124] sm:$0xf]
  %v125 = vld [vmem:[%s4 + $0x128] sm:$0xf]
  %v126 = vld [vmem:[%s4 + $0x12c] sm:$0xf]
  %v127 = vld [vmem:[%s4 + $0x130] sm:$0xf]
  %v128 = vld [vmem:[%s4 + $0x134] sm:$0xf]
  %v129 = vld [vmem:[%s4 + $0x138] sm:$0xf]
  %v130 = vld [vmem:[%s4 + $0x13c] sm:$0xf]
  %v131 = vld [vmem:[%s4 + $0x140] sm:$0xf]
  %v132 = vld [vmem:[%s4 + $0x144] sm:$0xf]
  %v133 = vld [vmem:[%s4 + $0x148] sm:$0xf]
  %v134 = vld [vmem:[%s4 + $0x14c] sm:$0xf]
  %v135 = vld [vmem:[%s4 + $0x150] sm:$0xf]
  %v136 = vld [vmem:[%s4 + $0x154] sm:$0xf]
  %v137 = vld [vmem:[%s4 + $0x158] sm:$0xf]
  %v138 = vld [vmem:[%s4 + $0x15c] sm:$0xf]
  %v139 = vld [vmem:[%s4 + $0x160] sm:$0xf]
  %v140 = vld [vmem:[%s4 + $0x164] sm:$0xf]
  %v141 = vld [vmem:[%s4 + $0x168] sm:$0xf]
  %v142 = vld [vmem:[%s4 + $0x16c] sm:$0xf]
  %v143 = vld [vmem:[%s4 + $0x170] sm:$0xf]
  %v144 = vld [vmem:[%s4 + $0x174] sm:$0xf]
  %v145 = vld [vmem:[%s4 + $0x178] sm:$0xf]
  %v146 = vld [vmem:[%s4 + $0x17c] sm:$0xf]
  %v147 = vld [vmem:[%s4 + $0x180] sm:$0xf]
  %v148 = vld [vmem:[%s4 + $0x184] sm:$0xf]
  %v149 = vld [vmem:[%s4 + $0x188] sm:$0xf]
  %v150 = vld [vmem:[%s4 + $0x18c] sm:$0xf]
  %v151 = vld [vmem:[%s4 + $0x190] sm:$0xf]
  %v152 = vld [vmem:[%s4 + $0x194] sm:$0xf]
  %v153 = vld [vmem:[%s4 + $0x198] sm:$0xf]
  %v154 = vld [vmem:[%s4 + $0x19c] sm:$0xf]
  %v155 = vld [vmem:[%s4 + $0x1a0] sm:$0xf]
  %v156 = vld [vmem:[%s4 + $0x1a4] sm:$0xf]
  %v157 = vld [vmem:[%s4 + $0x1a8] sm:$0xf]
  %v158 = vld [vmem:[%s4 + $0x1ac] sm:$0xf]
  %v159 = vld [vmem:[%s4 + $0x1b0] sm:$0xf]
  %v160 = vld [vmem:[%s4 + $0x1b4] sm:$0xf]
  %v161 = vld [vmem:[%s4 + $0x1b8] sm:$0xf]
  %v162 = vld [vmem:[%s4 + $0x1bc] sm:$0xf]
  %v163 = vld [vmem:[%s4 + $0x1c0] sm:$0xf]
  %v164 = vld [vmem:[%s4 + $0x1c4] sm:$0xf]
  %v165 = vld [vmem:[%s4 + $0x1c8] sm:$0xf]
  %v166 = vld [vmem:[%s4 + $0x1cc] sm:$0xf]
  %v167 = vld [vmem:[%s4 + $0x1d0] sm:$0xf]
  %v168 = vld [vmem:[%s4 + $0x1d4] sm:$0xf]
  %v169 = vld [vmem:[%s4 + $0x1d8] sm:$0xf]
  %v170 = vld [vmem:[%s4 + $0x1dc] sm:$0xf]
  %v171 = vld [vmem:[%s4 + $0x1e0] sm:$0xf]
  %v172 = vld [vmem:[%s4 + $0x1e4] sm:$0xf]
  %v173 = vld [vmem:[%s4 + $0x1e8] sm:$0xf]
  %v174 = vld [vmem:[%s4 + $0x1ec] sm:$0xf]
  %v175 = vld [vmem:[%s4 + $0x1f0] sm:$0xf]
  %v176 = vld [vmem:[%s4 + $0x1f4] sm:$0xf]
  %v177 = vld [vmem:[%s4 + $0x1f8] sm:$0xf]
  %v178 = vld [vmem:[%s4 + $0x1fc] sm:$0xf]
  %v195 = vunpack.c.l.b16 %v35
  %v196 = vunpack.c.h.b16 %v35
  %v197 = vunpack.c.l.b16 %v36
  %v198 = vunpack.c.h.b16 %v36
  %v199 = vunpack.c.l.b16 %v37
  %v200 = vunpack.c.h.b16 %v37
  %v201 = vunpack.c.l.b16 %v38
  %v202 = vunpack.c.h.b16 %v38
  %v203 = vunpack.c.l.b16 %v39
  %v204 = vunpack.c.h.b16 %v39
  %v205 = vunpack.c.l.b16 %v40
  %v206 = vunpack.c.h.b16 %v40
  %v207 = vunpack.c.l.b16 %v41
  %v208 = vunpack.c.h.b16 %v41
  %v209 = vunpack.c.l.b16 %v42
  %v210 = vunpack.c.h.b16 %v42
  %v211 = vunpack.c.l.b16 %v43
  %v212 = vunpack.c.h.b16 %v43
  %v213 = vunpack.c.l.b16 %v44
  %v214 = vunpack.c.h.b16 %v44
  %v215 = vunpack.c.l.b16 %v45
  %v216 = vunpack.c.h.b16 %v45
  %v217 = vunpack.c.l.b16 %v46
  %v218 = vunpack.c.h.b16 %v46
  %v219 = vunpack.c.l.b16 %v47
  %v220 = vunpack.c.h.b16 %v47
  %v221 = vunpack.c.l.b16 %v48
  %v222 = vunpack.c.h.b16 %v48
  %v223 = vunpack.c.l.b16 %v49
  %v224 = vunpack.c.h.b16 %v49
  %v225 = vunpack.c.l.b16 %v50
  %v226 = vunpack.c.h.b16 %v50
  %v227 = vpack.c.b16 %v203, %v195
  %v228 = vpack.c.b16 %v204, %v196
  %v229 = vpack.c.b16 %v205, %v197
  %v230 = vpack.c.b16 %v206, %v198
  %v231 = vpack.c.b16 %v207, %v199
  %v232 = vpack.c.b16 %v208, %v200
  %v233 = vpack.c.b16 %v209, %v201
  %v234 = vpack.c.b16 %v210, %v202
  %v235 = vpack.c.b16 %v219, %v211
  %v236 = vpack.c.b16 %v220, %v212
  %v237 = vpack.c.b16 %v221, %v213
  %v238 = vpack.c.b16 %v222, %v214
  %v239 = vpack.c.b16 %v223, %v215
  %v240 = vpack.c.b16 %v224, %v216
  %v241 = vpack.c.b16 %v225, %v217
  %v242 = vpack.c.b16 %v226, %v218
  %v387 = vunpack.c.l.b16 %v51
  %v388 = vunpack.c.l.b16 %v52
  %v389 = vunpack.c.l.b16 %v53
  %v390 = vunpack.c.l.b16 %v54
  %v391 = vunpack.c.l.b16 %v55
  %v392 = vunpack.c.l.b16 %v56
  %v393 = vunpack.c.l.b16 %v57
  %v394 = vunpack.c.l.b16 %v58
  %v395 = vunpack.c.l.b16 %v59
  %v396 = vunpack.c.l.b16 %v60
  %v397 = vunpack.c.l.b16 %v61
  %v398 = vunpack.c.l.b16 %v62
  %v399 = vunpack.c.l.b16 %v63
  %v400 = vunpack.c.l.b16 %v64
  %v401 = vunpack.c.l.b16 %v65
  %v402 = vunpack.c.l.b16 %v66
  %v403 = vunpack.c.l.b16 %v67
  %v404 = vunpack.c.l.b16 %v68
  %v405 = vunpack.c.l.b16 %v69
  %v406 = vunpack.c.l.b16 %v70
  %v407 = vunpack.c.l.b16 %v71
  %v408 = vunpack.c.l.b16 %v72
  %v409 = vunpack.c.l.b16 %v73
  %v410 = vunpack.c.l.b16 %v74
  %v411 = vunpack.c.l.b16 %v75
  %v412 = vunpack.c.l.b16 %v76
  %v413 = vunpack.c.l.b16 %v77
  %v414 = vunpack.c.l.b16 %v78
  %v415 = vunpack.c.l.b16 %v79
  %v416 = vunpack.c.l.b16 %v80
  %v417 = vunpack.c.l.b16 %v81
  %v418 = vunpack.c.l.b16 %v82
  %v419 = vunpack.c.l.b16 %v83
  %v420 = vunpack.c.l.b16 %v84
  %v421 = vunpack.c.l.b16 %v85
  %v422 = vunpack.c.l.b16 %v86
  %v423 = vunpack.c.l.b16 %v87
  %v424 = vunpack.c.l.b16 %v88
  %v425 = vunpack.c.l.b16 %v89
  %v426 = vunpack.c.l.b16 %v90
  %v427 = vunpack.c.l.b16 %v91
  %v428 = vunpack.c.l.b16 %v92
  %v429 = vunpack.c.l.b16 %v93
  %v430 = vunpack.c.l.b16 %v94
  %v431 = vunpack.c.l.b16 %v95
  %v432 = vunpack.c.l.b16 %v96
  %v433 = vunpack.c.l.b16 %v97
  %v434 = vunpack.c.l.b16 %v98
  %v435 = vunpack.c.l.b16 %v99
  %v436 = vunpack.c.l.b16 %v100
  %v437 = vunpack.c.l.b16 %v101
  %v438 = vunpack.c.l.b16 %v102
  %v439 = vunpack.c.l.b16 %v103
  %v440 = vunpack.c.l.b16 %v104
  %v441 = vunpack.c.l.b16 %v105
  %v442 = vunpack.c.l.b16 %v106
  %v443 = vunpack.c.l.b16 %v107
  %v444 = vunpack.c.l.b16 %v108
  %v445 = vunpack.c.l.b16 %v109
  %v446 = vunpack.c.l.b16 %v110
  %v447 = vunpack.c.l.b16 %v111
  %v448 = vunpack.c.l.b16 %v112
  %v449 = vunpack.c.l.b16 %v113
  %v450 = vunpack.c.l.b16 %v114
  %v451 = vunpack.c.l.b16 %v115
  %v452 = vunpack.c.l.b16 %v116
  %v453 = vunpack.c.l.b16 %v117
  %v454 = vunpack.c.l.b16 %v118
  %v455 = vunpack.c.l.b16 %v119
  %v456 = vunpack.c.l.b16 %v120
  %v457 = vunpack.c.l.b16 %v121
  %v458 = vunpack.c.l.b16 %v122
  %v459 = vunpack.c.l.b16 %v123
  %v460 = vunpack.c.l.b16 %v124
  %v461 = vunpack.c.l.b16 %v125
  %v462 = vunpack.c.l.b16 %v126
  %v463 = vunpack.c.l.b16 %v127
  %v464 = vunpack.c.l.b16 %v128
  %v465 = vunpack.c.l.b16 %v129
  %v466 = vunpack.c.l.b16 %v130
  %v467 = vunpack.c.l.b16 %v131
  %v468 = vunpack.c.l.b16 %v132
  %v469 = vunpack.c.l.b16 %v133
  %v470 = vunpack.c.l.b16 %v134
  %v471 = vunpack.c.l.b16 %v135
  %v472 = vunpack.c.l.b16 %v136
  %v473 = vunpack.c.l.b16 %v137
  %v474 = vunpack.c.l.b16 %v138
  %v475 = vunpack.c.l.b16 %v139
  %v476 = vunpack.c.l.b16 %v140
  %v477 = vunpack.c.l.b16 %v141
  %v478 = vunpack.c.l.b16 %v142
  %v479 = vunpack.c.l.b16 %v143
  %v480 = vunpack.c.l.b16 %v144
  %v481 = vunpack.c.l.b16 %v145
  %v482 = vunpack.c.l.b16 %v146
  %v483 = vunpack.c.l.b16 %v147
  %v484 = vunpack.c.l.b16 %v148
  %v485 = vunpack.c.l.b16 %v149
  %v486 = vunpack.c.l.b16 %v150
  %v487 = vunpack.c.l.b16 %v151
  %v488 = vunpack.c.l.b16 %v152
  %v489 = vunpack.c.l.b16 %v153
  %v490 = vunpack.c.l.b16 %v154
  %v491 = vunpack.c.l.b16 %v155
  %v492 = vunpack.c.l.b16 %v156
  %v493 = vunpack.c.l.b16 %v157
  %v494 = vunpack.c.l.b16 %v158
  %v495 = vunpack.c.l.b16 %v159
  %v496 = vunpack.c.l.b16 %v160
  %v497 = vunpack.c.l.b16 %v161
  %v498 = vunpack.c.l.b16 %v162
  %v499 = vunpack.c.l.b16 %v163
  %v500 = vunpack.c.l.b16 %v164
  %v501 = vunpack.c.l.b16 %v165
  %v502 = vunpack.c.l.b16 %v166
  %v503 = vunpack.c.l.b16 %v167
  %v504 = vunpack.c.l.b16 %v168
  %v505 = vunpack.c.l.b16 %v169
  %v506 = vunpack.c.l.b16 %v170
  %v507 = vunpack.c.l.b16 %v171
  %v508 = vunpack.c.l.b16 %v172
  %v509 = vunpack.c.l.b16 %v173
  %v510 = vunpack.c.l.b16 %v174
  %v511 = vunpack.c.l.b16 %v175
  %v512 = vunpack.c.l.b16 %v176
  %v513 = vunpack.c.l.b16 %v177
  %v514 = vunpack.c.l.b16 %v178
  %v515 = vpack.c.b16 %v388, %v387
  %v516 = vpack.c.b16 %v390, %v389
  %v517 = vpack.c.b16 %v392, %v391
  %v518 = vpack.c.b16 %v394, %v393
  %v519 = vpack.c.b16 %v396, %v395
  %v520 = vpack.c.b16 %v398, %v397
  %v521 = vpack.c.b16 %v400, %v399
  %v522 = vpack.c.b16 %v402, %v401
  %v523 = vpack.c.b16 %v404, %v403
  %v524 = vpack.c.b16 %v406, %v405
  %v525 = vpack.c.b16 %v408, %v407
  %v526 = vpack.c.b16 %v410, %v409
  %v527 = vpack.c.b16 %v412, %v411
  %v528 = vpack.c.b16 %v414, %v413
  %v529 = vpack.c.b16 %v416, %v415
  %v530 = vpack.c.b16 %v418, %v417
  %v531 = vpack.c.b16 %v420, %v419
  %v532 = vpack.c.b16 %v422, %v421
  %v533 = vpack.c.b16 %v424, %v423
  %v534 = vpack.c.b16 %v426, %v425
  %v535 = vpack.c.b16 %v428, %v427
  %v536 = vpack.c.b16 %v430, %v429
  %v537 = vpack.c.b16 %v432, %v431
  %v538 = vpack.c.b16 %v434, %v433
  %v539 = vpack.c.b16 %v436, %v435
  %v540 = vpack.c.b16 %v438, %v437
  %v541 = vpack.c.b16 %v440, %v439
  %v542 = vpack.c.b16 %v442, %v441
  %v543 = vpack.c.b16 %v444, %v443
  %v544 = vpack.c.b16 %v446, %v445
  %v545 = vpack.c.b16 %v448, %v447
  %v546 = vpack.c.b16 %v450, %v449
  %v547 = vpack.c.b16 %v452, %v451
  %v548 = vpack.c.b16 %v454, %v453
  %v549 = vpack.c.b16 %v456, %v455
  %v550 = vpack.c.b16 %v458, %v457
  %v551 = vpack.c.b16 %v460, %v459
  %v552 = vpack.c.b16 %v462, %v461
  %v553 = vpack.c.b16 %v464, %v463
  %v554 = vpack.c.b16 %v466, %v465
  %v555 = vpack.c.b16 %v468, %v467
  %v556 = vpack.c.b16 %v470, %v469
  %v557 = vpack.c.b16 %v472, %v471
  %v558 = vpack.c.b16 %v474, %v473
  %v559 = vpack.c.b16 %v476, %v475
  %v560 = vpack.c.b16 %v478, %v477
  %v561 = vpack.c.b16 %v480, %v479
  %v562 = vpack.c.b16 %v482, %v481
  %v563 = vpack.c.b16 %v484, %v483
  %v564 = vpack.c.b16 %v486, %v485
  %v565 = vpack.c.b16 %v488, %v487
  %v566 = vpack.c.b16 %v490, %v489
  %v567 = vpack.c.b16 %v492, %v491
  %v568 = vpack.c.b16 %v494, %v493
  %v569 = vpack.c.b16 %v496, %v495
  %v570 = vpack.c.b16 %v498, %v497
  %v571 = vpack.c.b16 %v500, %v499
  %v572 = vpack.c.b16 %v502, %v501
  %v573 = vpack.c.b16 %v504, %v503
  %v574 = vpack.c.b16 %v506, %v505
  %v575 = vpack.c.b16 %v508, %v507
  %v576 = vpack.c.b16 %v510, %v509
  %v577 = vpack.c.b16 %v512, %v511
  %v578 = vpack.c.b16 %v514, %v513
  %643 = vmatpush.bf16.msra.mxu0 %v522
  %644 = vmatpush.bf16.msra.mxu0 %v521
  %645 = vmatpush.bf16.msra.mxu0 %v520
  %646 = vmatpush.bf16.msra.mxu0 %v519
  %647 = vmatpush.bf16.msra.mxu0 %v518
  %648 = vmatpush.bf16.msra.mxu0 %v517
  %649 = vmatpush.bf16.msra.mxu0 %v516
  %650 = vmatpush.bf16.msra.mxu0 %v515
  %651 = vmatmul.bf16.gmra.mxu0 %v227
  %v652 = vpop.f32.mrf.mxu0
  %v653 = vadd.f32 0.0, %v652
  %v654 = vpop.f32.mrf.mxu0
  %v655 = vadd.f32 0.0, %v654
  %656 = vmatmul.bf16.gmra.mxu0 %v235
  %v657 = vpop.f32.mrf.mxu0
  %v658 = vadd.f32 0.0, %v657
  %v659 = vpop.f32.mrf.mxu0
  %v660 = vadd.f32 0.0, %v659
  %661 = vdwg.mxu0
  %662 = vmatpush.bf16.msra.mxu0 %v530
  %663 = vmatpush.bf16.msra.mxu0 %v529
  %664 = vmatpush.bf16.msra.mxu0 %v528
  %665 = vmatpush.bf16.msra.mxu0 %v527
  %666 = vmatpush.bf16.msra.mxu0 %v526
  %667 = vmatpush.bf16.msra.mxu0 %v525
  %668 = vmatpush.bf16.msra.mxu0 %v524
  %669 = vmatpush.bf16.msra.mxu0 %v523
  %670 = vmatmul.bf16.gmra.mxu0 %v228
  %v671 = vpop.f32.mrf.mxu0
  %v672 = vadd.f32 %v653, %v671
  %v673 = vpop.f32.mrf.mxu0
  %v674 = vadd.f32 %v655, %v673
  %675 = vmatmul.bf16.gmra.mxu0 %v236
  %v676 = vpop.f32.mrf.mxu0
  %v677 = vadd.f32 %v658, %v676
  %v678 = vpop.f32.mrf.mxu0
  %v679 = vadd.f32 %v660, %v678
  %680 = vdwg.mxu0
  %681 = vmatpush.bf16.msra.mxu0 %v538
  %682 = vmatpush.bf16.msra.mxu0 %v537
  %683 = vmatpush.bf16.msra.mxu0 %v536
  %684 = vmatpush.bf16.msra.mxu0 %v535
  %685 = vmatpush.bf16.msra.mxu0 %v534
  %686 = vmatpush.bf16.msra.mxu0 %v533
  %687 = vmatpush.bf16.msra.mxu0 %v532
  %688 = vmatpush.bf16.msra.mxu0 %v531
  %689 = vmatmul.bf16.gmra.mxu0 %v229
  %v690 = vpop.f32.mrf.mxu0
  %v691 = vadd.f32 %v672, %v690
  %v692 = vpop.f32.mrf.mxu0
  %v693 = vadd.f32 %v674, %v692
  %694 = vmatmul.bf16.gmra.mxu0 %v237
  %v695 = vpop.f32.mrf.mxu0
  %v696 = vadd.f32 %v677, %v695
  %v697 = vpop.f32.mrf.mxu0
  %v698 = vadd.f32 %v679, %v697
  %699 = vdwg.mxu0
  %700 = vmatpush.bf16.msra.mxu0 %v546
  %701 = vmatpush.bf16.msra.mxu0 %v545
  %702 = vmatpush.bf16.msra.mxu0 %v544
  %703 = vmatpush.bf16.msra.mxu0 %v543
  %704 = vmatpush.bf16.msra.mxu0 %v542
  %705 = vmatpush.bf16.msra.mxu0 %v541
  %706 = vmatpush.bf16.msra.mxu0 %v540
  %707 = vmatpush.bf16.msra.mxu0 %v539
  %708 = vmatmul.bf16.gmra.mxu0 %v230
  %v709 = vpop.f32.mrf.mxu0
  %v710 = vadd.f32 %v691, %v709
  %v711 = vpop.f32.mrf.mxu0
  %v712 = vadd.f32 %v693, %v711
  %713 = vmatmul.bf16.gmra.mxu0 %v238
  %v714 = vpop.f32.mrf.mxu0
  %v715 = vadd.f32 %v696, %v714
  %v716 = vpop.f32.mrf.mxu0
  %v717 = vadd.f32 %v698, %v716
  %718 = vdwg.mxu0
  %719 = vmatpush.bf16.msra.mxu0 %v554
  %720 = vmatpush.bf16.msra.mxu0 %v553
  %721 = vmatpush.bf16.msra.mxu0 %v552
  %722 = vmatpush.bf16.msra.mxu0 %v551
  %723 = vmatpush.bf16.msra.mxu0 %v550
  %724 = vmatpush.bf16.msra.mxu0 %v549
  %725 = vmatpush.bf16.msra.mxu0 %v548
  %726 = vmatpush.bf16.msra.mxu0 %v547
  %727 = vmatmul.bf16.gmra.mxu0 %v231
  %v728 = vpop.f32.mrf.mxu0
  %v729 = vadd.f32 %v710, %v728
  %v730 = vpop.f32.mrf.mxu0
  %v731 = vadd.f32 %v712, %v730
  %732 = vmatmul.bf16.gmra.mxu0 %v239
  %v733 = vpop.f32.mrf.mxu0
  %v734 = vadd.f32 %v715, %v733
  %v735 = vpop.f32.mrf.mxu0
  %v736 = vadd.f32 %v717, %v735
  %737 = vdwg.mxu0
  %738 = vmatpush.bf16.msra.mxu0 %v562
  %739 = vmatpush.bf16.msra.mxu0 %v561
  %740 = vmatpush.bf16.msra.mxu0 %v560
  %741 = vmatpush.bf16.msra.mxu0 %v559
  %742 = vmatpush.bf16.msra.mxu0 %v558
  %743 = vmatpush.bf16.msra.mxu0 %v557
  %744 = vmatpush.bf16.msra.mxu0 %v556
  %745 = vmatpush.bf16.msra.mxu0 %v555
  %746 = vmatmul.bf16.gmra.mxu0 %v232
  %v747 = vpop.f32.mrf.mxu0
  %v748 = vadd.f32 %v729, %v747
  %v749 = vpop.f32.mrf.mxu0
  %v750 = vadd.f32 %v731, %v749
  %751 = vmatmul.bf16.gmra.mxu0 %v240
  %v752 = vpop.f32.mrf.mxu0
  %v753 = vadd.f32 %v734, %v752
  %v754 = vpop.f32.mrf.mxu0
  %v755 = vadd.f32 %v736, %v754
  %756 = vdwg.mxu0
  %757 = vmatpush.bf16.msra.mxu0 %v570
  %758 = vmatpush.bf16.msra.mxu0 %v569
  %759 = vmatpush.bf16.msra.mxu0 %v568
  %760 = vmatpush.bf16.msra.mxu0 %v567
  %761 = vmatpush.bf16.msra.mxu0 %v566
  %762 = vmatpush.bf16.msra.mxu0 %v565
  %763 = vmatpush.bf16.msra.mxu0 %v564
  %764 = vmatpush.bf16.msra.mxu0 %v563
  %765 = vmatmul.bf16.gmra.mxu0 %v233
  %v766 = vpop.f32.mrf.mxu0
  %v767 = vadd.f32 %v748, %v766
  %v768 = vpop.f32.mrf.mxu0
  %v769 = vadd.f32 %v750, %v768
  %770 = vmatmul.bf16.gmra.mxu0 %v241
  %v771 = vpop.f32.mrf.mxu0
  %v772 = vadd.f32 %v753, %v771
  %v773 = vpop.f32.mrf.mxu0
  %v774 = vadd.f32 %v755, %v773
  %775 = vdwg.mxu0
  %776 = vmatpush.bf16.msra.mxu0 %v578
  %777 = vmatpush.bf16.msra.mxu0 %v577
  %778 = vmatpush.bf16.msra.mxu0 %v576
  %779 = vmatpush.bf16.msra.mxu0 %v575
  %780 = vmatpush.bf16.msra.mxu0 %v574
  %781 = vmatpush.bf16.msra.mxu0 %v573
  %782 = vmatpush.bf16.msra.mxu0 %v572
  %783 = vmatpush.bf16.msra.mxu0 %v571
  %784 = vmatmul.bf16.gmra.mxu0 %v234
  %v785 = vpop.f32.mrf.mxu0
  %v786 = vadd.f32 %v767, %v785
  %v787 = vpop.f32.mrf.mxu0
  %v788 = vadd.f32 %v769, %v787
  %789 = vmatmul.bf16.gmra.mxu0 %v242
  %v790 = vpop.f32.mrf.mxu0
  %v791 = vadd.f32 %v772, %v790
  %v792 = vpop.f32.mrf.mxu0
  %v793 = vadd.f32 %v774, %v792
  %794 = vdwg.mxu0
  %v795 = vld [vmem:[%s1] sm:$0xff]
  %v796 = vld [vmem:[%s1 + $0x8] sm:$0xff]
  %v797 = vld [vmem:[%s1 + $0x10] sm:$0xff]
  %v798 = vld [vmem:[%s1 + $0x18] sm:$0xff]
  %v799 = vld [vmem:[%s1 + $0x20] sm:$0xff]
  %v800 = vld [vmem:[%s1 + $0x28] sm:$0xff]
  %v801 = vld [vmem:[%s1 + $0x30] sm:$0xff]
  %v802 = vld [vmem:[%s1 + $0x38] sm:$0xff]
  %v803 = vld [vmem:[%s1 + $0x40] sm:$0xff]
  %v804 = vld [vmem:[%s1 + $0x48] sm:$0xff]
  %v805 = vld [vmem:[%s1 + $0x50] sm:$0xff]
  %v806 = vld [vmem:[%s1 + $0x58] sm:$0xff]
  %v807 = vld [vmem:[%s1 + $0x60] sm:$0xff]
  %v808 = vld [vmem:[%s1 + $0x68] sm:$0xff]
  %v809 = vld [vmem:[%s1 + $0x70] sm:$0xff]
  %v810 = vld [vmem:[%s1 + $0x78] sm:$0xff]
  %v811 = vld [vmem:[%s5] sm:$0xf]
  %v812 = vld [vmem:[%s5 + $0x4] sm:$0xf]
  %v813 = vld [vmem:[%s5 + $0x8] sm:$0xf]
  %v814 = vld [vmem:[%s5 + $0xc] sm:$0xf]
  %v815 = vld [vmem:[%s5 + $0x10] sm:$0xf]
  %v816 = vld [vmem:[%s5 + $0x14] sm:$0xf]
  %v817 = vld [vmem:[%s5 + $0x18] sm:$0xf]
  %v818 = vld [vmem:[%s5 + $0x1c] sm:$0xf]
  %v819 = vld [vmem:[%s5 + $0x20] sm:$0xf]
  %v820 = vld [vmem:[%s5 + $0x24] sm:$0xf]
  %v821 = vld [vmem:[%s5 + $0x28] sm:$0xf]
  %v822 = vld [vmem:[%s5 + $0x2c] sm:$0xf]
  %v823 = vld [vmem:[%s5 + $0x30] sm:$0xf]
  %v824 = vld [vmem:[%s5 + $0x34] sm:$0xf]
  %v825 = vld [vmem:[%s5 + $0x38] sm:$0xf]
  %v826 = vld [vmem:[%s5 + $0x3c] sm:$0xf]
  %v827 = vld [vmem:[%s5 + $0x40] sm:$0xf]
  %v828 = vld [vmem:[%s5 + $0x44] sm:$0xf]
  %v829 = vld [vmem:[%s5 + $0x48] sm:$0xf]
  %v830 = vld [vmem:[%s5 + $0x4c] sm:$0xf]
  %v831 = vld [vmem:[%s5 + $0x50] sm:$0xf]
  %v832 = vld [vmem:[%s5 + $0x54] sm:$0xf]
  %v833 = vld [vmem:[%s5 + $0x58] sm:$0xf]
  %v834 = vld [vmem:[%s5 + $0x5c] sm:$0xf]
  %v835 = vld [vmem:[%s5 + $0x60] sm:$0xf]
  %v836 = vld [vmem:[%s5 + $0x64] sm:$0xf]
  %v837 = vld [vmem:[%s5 + $0x68] sm:$0xf]
  %v838 = vld [vmem:[%s5 + $0x6c] sm:$0xf]
  %v839 = vld [vmem:[%s5 + $0x70] sm:$0xf]
  %v840 = vld [vmem:[%s5 + $0x74] sm:$0xf]
  %v841 = vld [vmem:[%s5 + $0x78] sm:$0xf]
  %v842 = vld [vmem:[%s5 + $0x7c] sm:$0xf]
  %v843 = vld [vmem:[%s5 + $0x80] sm:$0xf]
  %v844 = vld [vmem:[%s5 + $0x84] sm:$0xf]
  %v845 = vld [vmem:[%s5 + $0x88] sm:$0xf]
  %v846 = vld [vmem:[%s5 + $0x8c] sm:$0xf]
  %v847 = vld [vmem:[%s5 + $0x90] sm:$0xf]
  %v848 = vld [vmem:[%s5 + $0x94] sm:$0xf]
  %v849 = vld [vmem:[%s5 + $0x98] sm:$0xf]
  %v850 = vld [vmem:[%s5 + $0x9c] sm:$0xf]
  %v851 = vld [vmem:[%s5 + $0xa0] sm:$0xf]
  %v852 = vld [vmem:[%s5 + $0xa4] sm:$0xf]
  %v853 = vld [vmem:[%s5 + $0xa8] sm:$0xf]
  %v854 = vld [vmem:[%s5 + $0xac] sm:$0xf]
  %v855 = vld [vmem:[%s5 + $0xb0] sm:$0xf]
  %v856 = vld [vmem:[%s5 + $0xb4] sm:$0xf]
  %v857 = vld [vmem:[%s5 + $0xb8] sm:$0xf]
  %v858 = vld [vmem:[%s5 + $0xbc] sm:$0xf]
  %v859 = vld [vmem:[%s5 + $0xc0] sm:$0xf]
  %v860 = vld [vmem:[%s5 + $0xc4] sm:$0xf]
  %v861 = vld [vmem:[%s5 + $0xc8] sm:$0xf]
  %v862 = vld [vmem:[%s5 + $0xcc] sm:$0xf]
  %v863 = vld [vmem:[%s5 + $0xd0] sm:$0xf]
  %v864 = vld [vmem:[%s5 + $0xd4] sm:$0xf]
  %v865 = vld [vmem:[%s5 + $0xd8] sm:$0xf]
  %v866 = vld [vmem:[%s5 + $0xdc] sm:$0xf]
  %v867 = vld [vmem:[%s5 + $0xe0] sm:$0xf]
  %v868 = vld [vmem:[%s5 + $0xe4] sm:$0xf]
  %v869 = vld [vmem:[%s5 + $0xe8] sm:$0xf]
  %v870 = vld [vmem:[%s5 + $0xec] sm:$0xf]
  %v871 = vld [vmem:[%s5 + $0xf0] sm:$0xf]
  %v872 = vld [vmem:[%s5 + $0xf4] sm:$0xf]
  %v873 = vld [vmem:[%s5 + $0xf8] sm:$0xf]
  %v874 = vld [vmem:[%s5 + $0xfc] sm:$0xf]
  %v875 = vld [vmem:[%s5 + $0x100] sm:$0xf]
  %v876 = vld [vmem:[%s5 + $0x104] sm:$0xf]
  %v877 = vld [vmem:[%s5 + $0x108] sm:$0xf]
  %v878 = vld [vmem:[%s5 + $0x10c] sm:$0xf]
  %v879 = vld [vmem:[%s5 + $0x110] sm:$0xf]
  %v880 = vld [vmem:[%s5 + $0x114] sm:$0xf]
  %v881 = vld [vmem:[%s5 + $0x118] sm:$0xf]
  %v882 = vld [vmem:[%s5 + $0x11c] sm:$0xf]
  %v883 = vld [vmem:[%s5 + $0x120] sm:$0xf]
  %v884 = vld [vmem:[%s5 + $0x124] sm:$0xf]
  %v885 = vld [vmem:[%s5 + $0x128] sm:$0xf]
  %v886 = vld [vmem:[%s5 + $0x12c] sm:$0xf]
  %v887 = vld [vmem:[%s5 + $0x130] sm:$0xf]
  %v888 = vld [vmem:[%s5 + $0x134] sm:$0xf]
  %v889 = vld [vmem:[%s5 + $0x138] sm:$0xf]
  %v890 = vld [vmem:[%s5 + $0x13c] sm:$0xf]
  %v891 = vld [vmem:[%s5 + $0x140] sm:$0xf]
  %v892 = vld [vmem:[%s5 + $0x144] sm:$0xf]
  %v893 = vld [vmem:[%s5 + $0x148] sm:$0xf]
  %v894 = vld [vmem:[%s5 + $0x14c] sm:$0xf]
  %v895 = vld [vmem:[%s5 + $0x150] sm:$0xf]
  %v896 = vld [vmem:[%s5 + $0x154] sm:$0xf]
  %v897 = vld [vmem:[%s5 + $0x158] sm:$0xf]
  %v898 = vld [vmem:[%s5 + $0x15c] sm:$0xf]
  %v899 = vld [vmem:[%s5 + $0x160] sm:$0xf]
  %v900 = vld [vmem:[%s5 + $0x164] sm:$0xf]
  %v901 = vld [vmem:[%s5 + $0x168] sm:$0xf]
  %v902 = vld [vmem:[%s5 + $0x16c] sm:$0xf]
  %v903 = vld [vmem:[%s5 + $0x170] sm:$0xf]
  %v904 = vld [vmem:[%s5 + $0x174] sm:$0xf]
  %v905 = vld [vmem:[%s5 + $0x178] sm:$0xf]
  %v906 = vld [vmem:[%s5 + $0x17c] sm:$0xf]
  %v907 = vld [vmem:[%s5 + $0x180] sm:$0xf]
  %v908 = vld [vmem:[%s5 + $0x184] sm:$0xf]
  %v909 = vld [vmem:[%s5 + $0x188] sm:$0xf]
  %v910 = vld [vmem:[%s5 + $0x18c] sm:$0xf]
  %v911 = vld [vmem:[%s5 + $0x190] sm:$0xf]
  %v912 = vld [vmem:[%s5 + $0x194] sm:$0xf]
  %v913 = vld [vmem:[%s5 + $0x198] sm:$0xf]
  %v914 = vld [vmem:[%s5 + $0x19c] sm:$0xf]
  %v915 = vld [vmem:[%s5 + $0x1a0] sm:$0xf]
  %v916 = vld [vmem:[%s5 + $0x1a4] sm:$0xf]
  %v917 = vld [vmem:[%s5 + $0x1a8] sm:$0xf]
  %v918 = vld [vmem:[%s5 + $0x1ac] sm:$0xf]
  %v919 = vld [vmem:[%s5 + $0x1b0] sm:$0xf]
  %v920 = vld [vmem:[%s5 + $0x1b4] sm:$0xf]
  %v921 = vld [vmem:[%s5 + $0x1b8] sm:$0xf]
  %v922 = vld [vmem:[%s5 + $0x1bc] sm:$0xf]
  %v923 = vld [vmem:[%s5 + $0x1c0] sm:$0xf]
  %v924 = vld [vmem:[%s5 + $0x1c4] sm:$0xf]
  %v925 = vld [vmem:[%s5 + $0x1c8] sm:$0xf]
  %v926 = vld [vmem:[%s5 + $0x1cc] sm:$0xf]
  %v927 = vld [vmem:[%s5 + $0x1d0] sm:$0xf]
  %v928 = vld [vmem:[%s5 + $0x1d4] sm:$0xf]
  %v929 = vld [vmem:[%s5 + $0x1d8] sm:$0xf]
  %v930 = vld [vmem:[%s5 + $0x1dc] sm:$0xf]
  %v931 = vld [vmem:[%s5 + $0x1e0] sm:$0xf]
  %v932 = vld [vmem:[%s5 + $0x1e4] sm:$0xf]
  %v933 = vld [vmem:[%s5 + $0x1e8] sm:$0xf]
  %v934 = vld [vmem:[%s5 + $0x1ec] sm:$0xf]
  %v935 = vld [vmem:[%s5 + $0x1f0] sm:$0xf]
  %v936 = vld [vmem:[%s5 + $0x1f4] sm:$0xf]
  %v937 = vld [vmem:[%s5 + $0x1f8] sm:$0xf]
  %v938 = vld [vmem:[%s5 + $0x1fc] sm:$0xf]
  %v955 = vunpack.c.l.b16 %v795
  %v956 = vunpack.c.h.b16 %v795
  %v957 = vunpack.c.l.b16 %v796
  %v958 = vunpack.c.h.b16 %v796
  %v959 = vunpack.c.l.b16 %v797
  %v960 = vunpack.c.h.b16 %v797
  %v961 = vunpack.c.l.b16 %v798
  %v962 = vunpack.c.h.b16 %v798
  %v963 = vunpack.c.l.b16 %v799
  %v964 = vunpack.c.h.b16 %v799
  %v965 = vunpack.c.l.b16 %v800
  %v966 = vunpack.c.h.b16 %v800
  %v967 = vunpack.c.l.b16 %v801
  %v968 = vunpack.c.h.b16 %v801
  %v969 = vunpack.c.l.b16 %v802
  %v970 = vunpack.c.h.b16 %v802
  %v971 = vunpack.c.l.b16 %v803
  %v972 = vunpack.c.h.b16 %v803
  %v973 = vunpack.c.l.b16 %v804
  %v974 = vunpack.c.h.b16 %v804
  %v975 = vunpack.c.l.b16 %v805
  %v976 = vunpack.c.h.b16 %v805
  %v977 = vunpack.c.l.b16 %v806
  %v978 = vunpack.c.h.b16 %v806
  %v979 = vunpack.c.l.b16 %v807
  %v980 = vunpack.c.h.b16 %v807
  %v981 = vunpack.c.l.b16 %v808
  %v982 = vunpack.c.h.b16 %v808
  %v983 = vunpack.c.l.b16 %v809
  %v984 = vunpack.c.h.b16 %v809
  %v985 = vunpack.c.l.b16 %v810
  %v986 = vunpack.c.h.b16 %v810
  %v987 = vpack.c.b16 %v963, %v955
  %v988 = vpack.c.b16 %v964, %v956
  %v989 = vpack.c.b16 %v965, %v957
  %v990 = vpack.c.b16 %v966, %v958
  %v991 = vpack.c.b16 %v967, %v959
  %v992 = vpack.c.b16 %v968, %v960
  %v993 = vpack.c.b16 %v969, %v961
  %v994 = vpack.c.b16 %v970, %v962
  %v995 = vpack.c.b16 %v979, %v971
  %v996 = vpack.c.b16 %v980, %v972
  %v997 = vpack.c.b16 %v981, %v973
  %v998 = vpack.c.b16 %v982, %v974
  %v999 = vpack.c.b16 %v983, %v975
  %v1000 = vpack.c.b16 %v984, %v976
  %v1001 = vpack.c.b16 %v985, %v977
  %v1002 = vpack.c.b16 %v986, %v978
  %v1147 = vunpack.c.l.b16 %v811
  %v1148 = vunpack.c.l.b16 %v812
  %v1149 = vunpack.c.l.b16 %v813
  %v1150 = vunpack.c.l.b16 %v814
  %v1151 = vunpack.c.l.b16 %v815
  %v1152 = vunpack.c.l.b16 %v816
  %v1153 = vunpack.c.l.b16 %v817
  %v1154 = vunpack.c.l.b16 %v818
  %v1155 = vunpack.c.l.b16 %v819
  %v1156 = vunpack.c.l.b16 %v820
  %v1157 = vunpack.c.l.b16 %v821
  %v1158 = vunpack.c.l.b16 %v822
  %v1159 = vunpack.c.l.b16 %v823
  %v1160 = vunpack.c.l.b16 %v824
  %v1161 = vunpack.c.l.b16 %v825
  %v1162 = vunpack.c.l.b16 %v826
  %v1163 = vunpack.c.l.b16 %v827
  %v1164 = vunpack.c.l.b16 %v828
  %v1165 = vunpack.c.l.b16 %v829
  %v1166 = vunpack.c.l.b16 %v830
  %v1167 = vunpack.c.l.b16 %v831
  %v1168 = vunpack.c.l.b16 %v832
  %v1169 = vunpack.c.l.b16 %v833
  %v1170 = vunpack.c.l.b16 %v834
  %v1171 = vunpack.c.l.b16 %v835
  %v1172 = vunpack.c.l.b16 %v836
  %v1173 = vunpack.c.l.b16 %v837
  %v1174 = vunpack.c.l.b16 %v838
  %v1175 = vunpack.c.l.b16 %v839
  %v1176 = vunpack.c.l.b16 %v840
  %v1177 = vunpack.c.l.b16 %v841
  %v1178 = vunpack.c.l.b16 %v842
  %v1179 = vunpack.c.l.b16 %v843
  %v1180 = vunpack.c.l.b16 %v844
  %v1181 = vunpack.c.l.b16 %v845
  %v1182 = vunpack.c.l.b16 %v846
  %v1183 = vunpack.c.l.b16 %v847
  %v1184 = vunpack.c.l.b16 %v848
  %v1185 = vunpack.c.l.b16 %v849
  %v1186 = vunpack.c.l.b16 %v850
  %v1187 = vunpack.c.l.b16 %v851
  %v1188 = vunpack.c.l.b16 %v852
  %v1189 = vunpack.c.l.b16 %v853
  %v1190 = vunpack.c.l.b16 %v854
  %v1191 = vunpack.c.l.b16 %v855
  %v1192 = vunpack.c.l.b16 %v856
  %v1193 = vunpack.c.l.b16 %v857
  %v1194 = vunpack.c.l.b16 %v858
  %v1195 = vunpack.c.l.b16 %v859
  %v1196 = vunpack.c.l.b16 %v860
  %v1197 = vunpack.c.l.b16 %v861
  %v1198 = vunpack.c.l.b16 %v862
  %v1199 = vunpack.c.l.b16 %v863
  %v1200 = vunpack.c.l.b16 %v864
  %v1201 = vunpack.c.l.b16 %v865
  %v1202 = vunpack.c.l.b16 %v866
  %v1203 = vunpack.c.l.b16 %v867
  %v1204 = vunpack.c.l.b16 %v868
  %v1205 = vunpack.c.l.b16 %v869
  %v1206 = vunpack.c.l.b16 %v870
  %v1207 = vunpack.c.l.b16 %v871
  %v1208 = vunpack.c.l.b16 %v872
  %v1209 = vunpack.c.l.b16 %v873
  %v1210 = vunpack.c.l.b16 %v874
  %v1211 = vunpack.c.l.b16 %v875
  %v1212 = vunpack.c.l.b16 %v876
  %v1213 = vunpack.c.l.b16 %v877
  %v1214 = vunpack.c.l.b16 %v878
  %v1215 = vunpack.c.l.b16 %v879
  %v1216 = vunpack.c.l.b16 %v880
  %v1217 = vunpack.c.l.b16 %v881
  %v1218 = vunpack.c.l.b16 %v882
  %v1219 = vunpack.c.l.b16 %v883
  %v1220 = vunpack.c.l.b16 %v884
  %v1221 = vunpack.c.l.b16 %v885
  %v1222 = vunpack.c.l.b16 %v886
  %v1223 = vunpack.c.l.b16 %v887
  %v1224 = vunpack.c.l.b16 %v888
  %v1225 = vunpack.c.l.b16 %v889
  %v1226 = vunpack.c.l.b16 %v890
  %v1227 = vunpack.c.l.b16 %v891
  %v1228 = vunpack.c.l.b16 %v892
  %v1229 = vunpack.c.l.b16 %v893
  %v1230 = vunpack.c.l.b16 %v894
  %v1231 = vunpack.c.l.b16 %v895
  %v1232 = vunpack.c.l.b16 %v896
  %v1233 = vunpack.c.l.b16 %v897
  %v1234 = vunpack.c.l.b16 %v898
  %v1235 = vunpack.c.l.b16 %v899
  %v1236 = vunpack.c.l.b16 %v900
  %v1237 = vunpack.c.l.b16 %v901
  %v1238 = vunpack.c.l.b16 %v902
  %v1239 = vunpack.c.l.b16 %v903
  %v1240 = vunpack.c.l.b16 %v904
  %v1241 = vunpack.c.l.b16 %v905
  %v1242 = vunpack.c.l.b16 %v906
  %v1243 = vunpack.c.l.b16 %v907
  %v1244 = vunpack.c.l.b16 %v908
  %v1245 = vunpack.c.l.b16 %v909
  %v1246 = vunpack.c.l.b16 %v910
  %v1247 = vunpack.c.l.b16 %v911
  %v1248 = vunpack.c.l.b16 %v912
  %v1249 = vunpack.c.l.b16 %v913
  %v1250 = vunpack.c.l.b16 %v914
  %v1251 = vunpack.c.l.b16 %v915
  %v1252 = vunpack.c.l.b16 %v916
  %v1253 = vunpack.c.l.b16 %v917
  %v1254 = vunpack.c.l.b16 %v918
  %v1255 = vunpack.c.l.b16 %v919
  %v1256 = vunpack.c.l.b16 %v920
  %v1257 = vunpack.c.l.b16 %v921
  %v1258 = vunpack.c.l.b16 %v922
  %v1259 = vunpack.c.l.b16 %v923
  %v1260 = vunpack.c.l.b16 %v924
  %v1261 = vunpack.c.l.b16 %v925
  %v1262 = vunpack.c.l.b16 %v926
  %v1263 = vunpack.c.l.b16 %v927
  %v1264 = vunpack.c.l.b16 %v928
  %v1265 = vunpack.c.l.b16 %v929
  %v1266 = vunpack.c.l.b16 %v930
  %v1267 = vunpack.c.l.b16 %v931
  %v1268 = vunpack.c.l.b16 %v932
  %v1269 = vunpack.c.l.b16 %v933
  %v1270 = vunpack.c.l.b16 %v934
  %v1271 = vunpack.c.l.b16 %v935
  %v1272 = vunpack.c.l.b16 %v936
  %v1273 = vunpack.c.l.b16 %v937
  %v1274 = vunpack.c.l.b16 %v938
  %v1275 = vpack.c.b16 %v1148, %v1147
  %v1276 = vpack.c.b16 %v1150, %v1149
  %v1277 = vpack.c.b16 %v1152, %v1151
  %v1278 = vpack.c.b16 %v1154, %v1153
  %v1279 = vpack.c.b16 %v1156, %v1155
  %v1280 = vpack.c.b16 %v1158, %v1157
  %v1281 = vpack.c.b16 %v1160, %v1159
  %v1282 = vpack.c.b16 %v1162, %v1161
  %v1283 = vpack.c.b16 %v1164, %v1163
  %v1284 = vpack.c.b16 %v1166, %v1165
  %v1285 = vpack.c.b16 %v1168, %v1167
  %v1286 = vpack.c.b16 %v1170, %v1169
  %v1287 = vpack.c.b16 %v1172, %v1171
  %v1288 = vpack.c.b16 %v1174, %v1173
  %v1289 = vpack.c.b16 %v1176, %v1175
  %v1290 = vpack.c.b16 %v1178, %v1177
  %v1291 = vpack.c.b16 %v1180, %v1179
  %v1292 = vpack.c.b16 %v1182, %v1181
  %v1293 = vpack.c.b16 %v1184, %v1183
  %v1294 = vpack.c.b16 %v1186, %v1185
  %v1295 = vpack.c.b16 %v1188, %v1187
  %v1296 = vpack.c.b16 %v1190, %v1189
  %v1297 = vpack.c.b16 %v1192, %v1191
  %v1298 = vpack.c.b16 %v1194, %v1193
  %v1299 = vpack.c.b16 %v1196, %v1195
  %v1300 = vpack.c.b16 %v1198, %v1197
  %v1301 = vpack.c.b16 %v1200, %v1199
  %v1302 = vpack.c.b16 %v1202, %v1201
  %v1303 = vpack.c.b16 %v1204, %v1203
  %v1304 = vpack.c.b16 %v1206, %v1205
  %v1305 = vpack.c.b16 %v1208, %v1207
  %v1306 = vpack.c.b16 %v1210, %v1209
  %v1307 = vpack.c.b16 %v1212, %v1211
  %v1308 = vpack.c.b16 %v1214, %v1213
  %v1309 = vpack.c.b16 %v1216, %v1215
  %v1310 = vpack.c.b16 %v1218, %v1217
  %v1311 = vpack.c.b16 %v1220, %v1219
  %v1312 = vpack.c.b16 %v1222, %v1221
  %v1313 = vpack.c.b16 %v1224, %v1223
  %v1314 = vpack.c.b16 %v1226, %v1225
  %v1315 = vpack.c.b16 %v1228, %v1227
  %v1316 = vpack.c.b16 %v1230, %v1229
  %v1317 = vpack.c.b16 %v1232, %v1231
  %v1318 = vpack.c.b16 %v1234, %v1233
  %v1319 = vpack.c.b16 %v1236, %v1235
  %v1320 = vpack.c.b16 %v1238, %v1237
  %v1321 = vpack.c.b16 %v1240, %v1239
  %v1322 = vpack.c.b16 %v1242, %v1241
  %v1323 = vpack.c.b16 %v1244, %v1243
  %v1324 = vpack.c.b16 %v1246, %v1245
  %v1325 = vpack.c.b16 %v1248, %v1247
  %v1326 = vpack.c.b16 %v1250, %v1249
  %v1327 = vpack.c.b16 %v1252, %v1251
  %v1328 = vpack.c.b16 %v1254, %v1253
  %v1329 = vpack.c.b16 %v1256, %v1255
  %v1330 = vpack.c.b16 %v1258, %v1257
  %v1331 = vpack.c.b16 %v1260, %v1259
  %v1332 = vpack.c.b16 %v1262, %v1261
  %v1333 = vpack.c.b16 %v1264, %v1263
  %v1334 = vpack.c.b16 %v1266, %v1265
  %v1335 = vpack.c.b16 %v1268, %v1267
  %v1336 = vpack.c.b16 %v1270, %v1269
  %v1337 = vpack.c.b16 %v1272, %v1271
  %v1338 = vpack.c.b16 %v1274, %v1273
  %1403 = vmatpush.bf16.msra.mxu0 %v1282
  %1404 = vmatpush.bf16.msra.mxu0 %v1281
  %1405 = vmatpush.bf16.msra.mxu0 %v1280
  %1406 = vmatpush.bf16.msra.mxu0 %v1279
  %1407 = vmatpush.bf16.msra.mxu0 %v1278
  %1408 = vmatpush.bf16.msra.mxu0 %v1277
  %1409 = vmatpush.bf16.msra.mxu0 %v1276
  %1410 = vmatpush.bf16.msra.mxu0 %v1275
  %1411 = vmatmul.bf16.gmra.mxu0 %v987
  %v1412 = vpop.f32.mrf.mxu0
  %v1413 = vadd.f32 0.0, %v1412
  %v1414 = vpop.f32.mrf.mxu0
  %v1415 = vadd.f32 0.0, %v1414
  %1416 = vmatmul.bf16.gmra.mxu0 %v995
  %v1417 = vpop.f32.mrf.mxu0
  %v1418 = vadd.f32 0.0, %v1417
  %v1419 = vpop.f32.mrf.mxu0
  %v1420 = vadd.f32 0.0, %v1419
  %1421 = vdwg.mxu0
  %1422 = vmatpush.bf16.msra.mxu0 %v1290
  %1423 = vmatpush.bf16.msra.mxu0 %v1289
  %1424 = vmatpush.bf16.msra.mxu0 %v1288
  %1425 = vmatpush.bf16.msra.mxu0 %v1287
  %1426 = vmatpush.bf16.msra.mxu0 %v1286
  %1427 = vmatpush.bf16.msra.mxu0 %v1285
  %1428 = vmatpush.bf16.msra.mxu0 %v1284
  %1429 = vmatpush.bf16.msra.mxu0 %v1283
  %1430 = vmatmul.bf16.gmra.mxu0 %v988
  %v1431 = vpop.f32.mrf.mxu0
  %v1432 = vadd.f32 %v1413, %v1431
  %v1433 = vpop.f32.mrf.mxu0
  %v1434 = vadd.f32 %v1415, %v1433
  %1435 = vmatmul.bf16.gmra.mxu0 %v996
  %v1436 = vpop.f32.mrf.mxu0
  %v1437 = vadd.f32 %v1418, %v1436
  %v1438 = vpop.f32.mrf.mxu0
  %v1439 = vadd.f32 %v1420, %v1438
  %1440 = vdwg.mxu0
  %1441 = vmatpush.bf16.msra.mxu0 %v1298
  %1442 = vmatpush.bf16.msra.mxu0 %v1297
  %1443 = vmatpush.bf16.msra.mxu0 %v1296
  %1444 = vmatpush.bf16.msra.mxu0 %v1295
  %1445 = vmatpush.bf16.msra.mxu0 %v1294
  %1446 = vmatpush.bf16.msra.mxu0 %v1293
  %1447 = vmatpush.bf16.msra.mxu0 %v1292
  %1448 = vmatpush.bf16.msra.mxu0 %v1291
  %1449 = vmatmul.bf16.gmra.mxu0 %v989
  %v1450 = vpop.f32.mrf.mxu0
  %v1451 = vadd.f32 %v1432, %v1450
  %v1452 = vpop.f32.mrf.mxu0
  %v1453 = vadd.f32 %v1434, %v1452
  %1454 = vmatmul.bf16.gmra.mxu0 %v997
  %v1455 = vpop.f32.mrf.mxu0
  %v1456 = vadd.f32 %v1437, %v1455
  %v1457 = vpop.f32.mrf.mxu0
  %v1458 = vadd.f32 %v1439, %v1457
  %1459 = vdwg.mxu0
  %1460 = vmatpush.bf16.msra.mxu0 %v1306
  %1461 = vmatpush.bf16.msra.mxu0 %v1305
  %1462 = vmatpush.bf16.msra.mxu0 %v1304
  %1463 = vmatpush.bf16.msra.mxu0 %v1303
  %1464 = vmatpush.bf16.msra.mxu0 %v1302
  %1465 = vmatpush.bf16.msra.mxu0 %v1301
  %1466 = vmatpush.bf16.msra.mxu0 %v1300
  %1467 = vmatpush.bf16.msra.mxu0 %v1299
  %1468 = vmatmul.bf16.gmra.mxu0 %v990
  %v1469 = vpop.f32.mrf.mxu0
  %v1470 = vadd.f32 %v1451, %v1469
  %v1471 = vpop.f32.mrf.mxu0
  %v1472 = vadd.f32 %v1453, %v1471
  %1473 = vmatmul.bf16.gmra.mxu0 %v998
  %v1474 = vpop.f32.mrf.mxu0
  %v1475 = vadd.f32 %v1456, %v1474
  %v1476 = vpop.f32.mrf.mxu0
  %v1477 = vadd.f32 %v1458, %v1476
  %1478 = vdwg.mxu0
  %1479 = vmatpush.bf16.msra.mxu0 %v1314
  %1480 = vmatpush.bf16.msra.mxu0 %v1313
  %1481 = vmatpush.bf16.msra.mxu0 %v1312
  %1482 = vmatpush.bf16.msra.mxu0 %v1311
  %1483 = vmatpush.bf16.msra.mxu0 %v1310
  %1484 = vmatpush.bf16.msra.mxu0 %v1309
  %1485 = vmatpush.bf16.msra.mxu0 %v1308
  %1486 = vmatpush.bf16.msra.mxu0 %v1307
  %1487 = vmatmul.bf16.gmra.mxu0 %v991
  %v1488 = vpop.f32.mrf.mxu0
  %v1489 = vadd.f32 %v1470, %v1488
  %v1490 = vpop.f32.mrf.mxu0
  %v1491 = vadd.f32 %v1472, %v1490
  %1492 = vmatmul.bf16.gmra.mxu0 %v999
  %v1493 = vpop.f32.mrf.mxu0
  %v1494 = vadd.f32 %v1475, %v1493
  %v1495 = vpop.f32.mrf.mxu0
  %v1496 = vadd.f32 %v1477, %v1495
  %1497 = vdwg.mxu0
  %1498 = vmatpush.bf16.msra.mxu0 %v1322
  %1499 = vmatpush.bf16.msra.mxu0 %v1321
  %1500 = vmatpush.bf16.msra.mxu0 %v1320
  %1501 = vmatpush.bf16.msra.mxu0 %v1319
  %1502 = vmatpush.bf16.msra.mxu0 %v1318
  %1503 = vmatpush.bf16.msra.mxu0 %v1317
  %1504 = vmatpush.bf16.msra.mxu0 %v1316
  %1505 = vmatpush.bf16.msra.mxu0 %v1315
  %1506 = vmatmul.bf16.gmra.mxu0 %v992
  %v1507 = vpop.f32.mrf.mxu0
  %v1508 = vadd.f32 %v1489, %v1507
  %v1509 = vpop.f32.mrf.mxu0
  %v1510 = vadd.f32 %v1491, %v1509
  %1511 = vmatmul.bf16.gmra.mxu0 %v1000
  %v1512 = vpop.f32.mrf.mxu0
  %v1513 = vadd.f32 %v1494, %v1512
  %v1514 = vpop.f32.mrf.mxu0
  %v1515 = vadd.f32 %v1496, %v1514
  %1516 = vdwg.mxu0
  %1517 = vmatpush.bf16.msra.mxu0 %v1330
  %1518 = vmatpush.bf16.msra.mxu0 %v1329
  %1519 = vmatpush.bf16.msra.mxu0 %v1328
  %1520 = vmatpush.bf16.msra.mxu0 %v1327
  %1521 = vmatpush.bf16.msra.mxu0 %v1326
  %1522 = vmatpush.bf16.msra.mxu0 %v1325
  %1523 = vmatpush.bf16.msra.mxu0 %v1324
  %1524 = vmatpush.bf16.msra.mxu0 %v1323
  %1525 = vmatmul.bf16.gmra.mxu0 %v993
  %v1526 = vpop.f32.mrf.mxu0
  %v1527 = vadd.f32 %v1508, %v1526
  %v1528 = vpop.f32.mrf.mxu0
  %v1529 = vadd.f32 %v1510, %v1528
  %1530 = vmatmul.bf16.gmra.mxu0 %v1001
  %v1531 = vpop.f32.mrf.mxu0
  %v1532 = vadd.f32 %v1513, %v1531
  %v1533 = vpop.f32.mrf.mxu0
  %v1534 = vadd.f32 %v1515, %v1533
  %1535 = vdwg.mxu0
  %1536 = vmatpush.bf16.msra.mxu0 %v1338
  %1537 = vmatpush.bf16.msra.mxu0 %v1337
  %1538 = vmatpush.bf16.msra.mxu0 %v1336
  %1539 = vmatpush.bf16.msra.mxu0 %v1335
  %1540 = vmatpush.bf16.msra.mxu0 %v1334
  %1541 = vmatpush.bf16.msra.mxu0 %v1333
  %1542 = vmatpush.bf16.msra.mxu0 %v1332
  %1543 = vmatpush.bf16.msra.mxu0 %v1331
  %1544 = vmatmul.bf16.gmra.mxu0 %v994
  %v1545 = vpop.f32.mrf.mxu0
  %v1546 = vadd.f32 %v1527, %v1545
  %v1547 = vpop.f32.mrf.mxu0
  %v1548 = vadd.f32 %v1529, %v1547
  %1549 = vmatmul.bf16.gmra.mxu0 %v1002
  %v1550 = vpop.f32.mrf.mxu0
  %v1551 = vadd.f32 %v1532, %v1550
  %v1552 = vpop.f32.mrf.mxu0
  %v1553 = vadd.f32 %v1534, %v1552
  %1554 = vdwg.mxu0
  %v1555 = vld [vmem:[%s2] sm:$0xff]
  %v1556 = vld [vmem:[%s2 + $0x8] sm:$0xff]
  %v1557 = vld [vmem:[%s2 + $0x10] sm:$0xff]
  %v1558 = vld [vmem:[%s2 + $0x18] sm:$0xff]
  %v1559 = vld [vmem:[%s2 + $0x20] sm:$0xff]
  %v1560 = vld [vmem:[%s2 + $0x28] sm:$0xff]
  %v1561 = vld [vmem:[%s2 + $0x30] sm:$0xff]
  %v1562 = vld [vmem:[%s2 + $0x38] sm:$0xff]
  %v1563 = vld [vmem:[%s2 + $0x40] sm:$0xff]
  %v1564 = vld [vmem:[%s2 + $0x48] sm:$0xff]
  %v1565 = vld [vmem:[%s2 + $0x50] sm:$0xff]
  %v1566 = vld [vmem:[%s2 + $0x58] sm:$0xff]
  %v1567 = vld [vmem:[%s2 + $0x60] sm:$0xff]
  %v1568 = vld [vmem:[%s2 + $0x68] sm:$0xff]
  %v1569 = vld [vmem:[%s2 + $0x70] sm:$0xff]
  %v1570 = vld [vmem:[%s2 + $0x78] sm:$0xff]
  %v1571 = vld [vmem:[%s6] sm:$0xf]
  %v1572 = vld [vmem:[%s6 + $0x4] sm:$0xf]
  %v1573 = vld [vmem:[%s6 + $0x8] sm:$0xf]
  %v1574 = vld [vmem:[%s6 + $0xc] sm:$0xf]
  %v1575 = vld [vmem:[%s6 + $0x10] sm:$0xf]
  %v1576 = vld [vmem:[%s6 + $0x14] sm:$0xf]
  %v1577 = vld [vmem:[%s6 + $0x18] sm:$0xf]
  %v1578 = vld [vmem:[%s6 + $0x1c] sm:$0xf]
  %v1579 = vld [vmem:[%s6 + $0x20] sm:$0xf]
  %v1580 = vld [vmem:[%s6 + $0x24] sm:$0xf]
  %v1581 = vld [vmem:[%s6 + $0x28] sm:$0xf]
  %v1582 = vld [vmem:[%s6 + $0x2c] sm:$0xf]
  %v1583 = vld [vmem:[%s6 + $0x30] sm:$0xf]
  %v1584 = vld [vmem:[%s6 + $0x34] sm:$0xf]
  %v1585 = vld [vmem:[%s6 + $0x38] sm:$0xf]
  %v1586 = vld [vmem:[%s6 + $0x3c] sm:$0xf]
  %v1587 = vld [vmem:[%s6 + $0x40] sm:$0xf]
  %v1588 = vld [vmem:[%s6 + $0x44] sm:$0xf]
  %v1589 = vld [vmem:[%s6 + $0x48] sm:$0xf]
  %v1590 = vld [vmem:[%s6 + $0x4c] sm:$0xf]
  %v1591 = vld [vmem:[%s6 + $0x50] sm:$0xf]
  %v1592 = vld [vmem:[%s6 + $0x54] sm:$0xf]
  %v1593 = vld [vmem:[%s6 + $0x58] sm:$0xf]
  %v1594 = vld [vmem:[%s6 + $0x5c] sm:$0xf]
  %v1595 = vld [vmem:[%s6 + $0x60] sm:$0xf]
  %v1596 = vld [vmem:[%s6 + $0x64] sm:$0xf]
  %v1597 = vld [vmem:[%s6 + $0x68] sm:$0xf]
  %v1598 = vld [vmem:[%s6 + $0x6c] sm:$0xf]
  %v1599 = vld [vmem:[%s6 + $0x70] sm:$0xf]
  %v1600 = vld [vmem:[%s6 + $0x74] sm:$0xf]
  %v1601 = vld [vmem:[%s6 + $0x78] sm:$0xf]
  %v1602 = vld [vmem:[%s6 + $0x7c] sm:$0xf]
  %v1603 = vld [vmem:[%s6 + $0x80] sm:$0xf]
  %v1604 = vld [vmem:[%s6 + $0x84] sm:$0xf]
  %v1605 = vld [vmem:[%s6 + $0x88] sm:$0xf]
  %v1606 = vld [vmem:[%s6 + $0x8c] sm:$0xf]
  %v1607 = vld [vmem:[%s6 + $0x90] sm:$0xf]
  %v1608 = vld [vmem:[%s6 + $0x94] sm:$0xf]
  %v1609 = vld [vmem:[%s6 + $0x98] sm:$0xf]
  %v1610 = vld [vmem:[%s6 + $0x9c] sm:$0xf]
  %v1611 = vld [vmem:[%s6 + $0xa0] sm:$0xf]
  %v1612 = vld [vmem:[%s6 + $0xa4] sm:$0xf]
  %v1613 = vld [vmem:[%s6 + $0xa8] sm:$0xf]
  %v1614 = vld [vmem:[%s6 + $0xac] sm:$0xf]
  %v1615 = vld [vmem:[%s6 + $0xb0] sm:$0xf]
  %v1616 = vld [vmem:[%s6 + $0xb4] sm:$0xf]
  %v1617 = vld [vmem:[%s6 + $0xb8] sm:$0xf]
  %v1618 = vld [vmem:[%s6 + $0xbc] sm:$0xf]
  %v1619 = vld [vmem:[%s6 + $0xc0] sm:$0xf]
  %v1620 = vld [vmem:[%s6 + $0xc4] sm:$0xf]
  %v1621 = vld [vmem:[%s6 + $0xc8] sm:$0xf]
  %v1622 = vld [vmem:[%s6 + $0xcc] sm:$0xf]
  %v1623 = vld [vmem:[%s6 + $0xd0] sm:$0xf]
  %v1624 = vld [vmem:[%s6 + $0xd4] sm:$0xf]
  %v1625 = vld [vmem:[%s6 + $0xd8] sm:$0xf]
  %v1626 = vld [vmem:[%s6 + $0xdc] sm:$0xf]
  %v1627 = vld [vmem:[%s6 + $0xe0] sm:$0xf]
  %v1628 = vld [vmem:[%s6 + $0xe4] sm:$0xf]
  %v1629 = vld [vmem:[%s6 + $0xe8] sm:$0xf]
  %v1630 = vld [vmem:[%s6 + $0xec] sm:$0xf]
  %v1631 = vld [vmem:[%s6 + $0xf0] sm:$0xf]
  %v1632 = vld [vmem:[%s6 + $0xf4] sm:$0xf]
  %v1633 = vld [vmem:[%s6 + $0xf8] sm:$0xf]
  %v1634 = vld [vmem:[%s6 + $0xfc] sm:$0xf]
  %v1635 = vld [vmem:[%s6 + $0x100] sm:$0xf]
  %v1636 = vld [vmem:[%s6 + $0x104] sm:$0xf]
  %v1637 = vld [vmem:[%s6 + $0x108] sm:$0xf]
  %v1638 = vld [vmem:[%s6 + $0x10c] sm:$0xf]
  %v1639 = vld [vmem:[%s6 + $0x110] sm:$0xf]
  %v1640 = vld [vmem:[%s6 + $0x114] sm:$0xf]
  %v1641 = vld [vmem:[%s6 + $0x118] sm:$0xf]
  %v1642 = vld [vmem:[%s6 + $0x11c] sm:$0xf]
  %v1643 = vld [vmem:[%s6 + $0x120] sm:$0xf]
  %v1644 = vld [vmem:[%s6 + $0x124] sm:$0xf]
  %v1645 = vld [vmem:[%s6 + $0x128] sm:$0xf]
  %v1646 = vld [vmem:[%s6 + $0x12c] sm:$0xf]
  %v1647 = vld [vmem:[%s6 + $0x130] sm:$0xf]
  %v1648 = vld [vmem:[%s6 + $0x134] sm:$0xf]
  %v1649 = vld [vmem:[%s6 + $0x138] sm:$0xf]
  %v1650 = vld [vmem:[%s6 + $0x13c] sm:$0xf]
  %v1651 = vld [vmem:[%s6 + $0x140] sm:$0xf]
  %v1652 = vld [vmem:[%s6 + $0x144] sm:$0xf]
  %v1653 = vld [vmem:[%s6 + $0x148] sm:$0xf]
  %v1654 = vld [vmem:[%s6 + $0x14c] sm:$0xf]
  %v1655 = vld [vmem:[%s6 + $0x150] sm:$0xf]
  %v1656 = vld [vmem:[%s6 + $0x154] sm:$0xf]
  %v1657 = vld [vmem:[%s6 + $0x158] sm:$0xf]
  %v1658 = vld [vmem:[%s6 + $0x15c] sm:$0xf]
  %v1659 = vld [vmem:[%s6 + $0x160] sm:$0xf]
  %v1660 = vld [vmem:[%s6 + $0x164] sm:$0xf]
  %v1661 = vld [vmem:[%s6 + $0x168] sm:$0xf]
  %v1662 = vld [vmem:[%s6 + $0x16c] sm:$0xf]
  %v1663 = vld [vmem:[%s6 + $0x170] sm:$0xf]
  %v1664 = vld [vmem:[%s6 + $0x174] sm:$0xf]
  %v1665 = vld [vmem:[%s6 + $0x178] sm:$0xf]
  %v1666 = vld [vmem:[%s6 + $0x17c] sm:$0xf]
  %v1667 = vld [vmem:[%s6 + $0x180] sm:$0xf]
  %v1668 = vld [vmem:[%s6 + $0x184] sm:$0xf]
  %v1669 = vld [vmem:[%s6 + $0x188] sm:$0xf]
  %v1670 = vld [vmem:[%s6 + $0x18c] sm:$0xf]
  %v1671 = vld [vmem:[%s6 + $0x190] sm:$0xf]
  %v1672 = vld [vmem:[%s6 + $0x194] sm:$0xf]
  %v1673 = vld [vmem:[%s6 + $0x198] sm:$0xf]
  %v1674 = vld [vmem:[%s6 + $0x19c] sm:$0xf]
  %v1675 = vld [vmem:[%s6 + $0x1a0] sm:$0xf]
  %v1676 = vld [vmem:[%s6 + $0x1a4] sm:$0xf]
  %v1677 = vld [vmem:[%s6 + $0x1a8] sm:$0xf]
  %v1678 = vld [vmem:[%s6 + $0x1ac] sm:$0xf]
  %v1679 = vld [vmem:[%s6 + $0x1b0] sm:$0xf]
  %v1680 = vld [vmem:[%s6 + $0x1b4] sm:$0xf]
  %v1681 = vld [vmem:[%s6 + $0x1b8] sm:$0xf]
  %v1682 = vld [vmem:[%s6 + $0x1bc] sm:$0xf]
  %v1683 = vld [vmem:[%s6 + $0x1c0] sm:$0xf]
  %v1684 = vld [vmem:[%s6 + $0x1c4] sm:$0xf]
  %v1685 = vld [vmem:[%s6 + $0x1c8] sm:$0xf]
  %v1686 = vld [vmem:[%s6 + $0x1cc] sm:$0xf]
  %v1687 = vld [vmem:[%s6 + $0x1d0] sm:$0xf]
  %v1688 = vld [vmem:[%s6 + $0x1d4] sm:$0xf]
  %v1689 = vld [vmem:[%s6 + $0x1d8] sm:$0xf]
  %v1690 = vld [vmem:[%s6 + $0x1dc] sm:$0xf]
  %v1691 = vld [vmem:[%s6 + $0x1e0] sm:$0xf]
  %v1692 = vld [vmem:[%s6 + $0x1e4] sm:$0xf]
  %v1693 = vld [vmem:[%s6 + $0x1e8] sm:$0xf]
  %v1694 = vld [vmem:[%s6 + $0x1ec] sm:$0xf]
  %v1695 = vld [vmem:[%s6 + $0x1f0] sm:$0xf]
  %v1696 = vld [vmem:[%s6 + $0x1f4] sm:$0xf]
  %v1697 = vld [vmem:[%s6 + $0x1f8] sm:$0xf]
  %v1698 = vld [vmem:[%s6 + $0x1fc] sm:$0xf]
  %v1715 = vunpack.c.l.b16 %v1555
  %v1716 = vunpack.c.h.b16 %v1555
  %v1717 = vunpack.c.l.b16 %v1556
  %v1718 = vunpack.c.h.b16 %v1556
  %v1719 = vunpack.c.l.b16 %v1557
  %v1720 = vunpack.c.h.b16 %v1557
  %v1721 = vunpack.c.l.b16 %v1558
  %v1722 = vunpack.c.h.b16 %v1558
  %v1723 = vunpack.c.l.b16 %v1559
  %v1724 = vunpack.c.h.b16 %v1559
  %v1725 = vunpack.c.l.b16 %v1560
  %v1726 = vunpack.c.h.b16 %v1560
  %v1727 = vunpack.c.l.b16 %v1561
  %v1728 = vunpack.c.h.b16 %v1561
  %v1729 = vunpack.c.l.b16 %v1562
  %v1730 = vunpack.c.h.b16 %v1562
  %v1731 = vunpack.c.l.b16 %v1563
  %v1732 = vunpack.c.h.b16 %v1563
  %v1733 = vunpack.c.l.b16 %v1564
  %v1734 = vunpack.c.h.b16 %v1564
  %v1735 = vunpack.c.l.b16 %v1565
  %v1736 = vunpack.c.h.b16 %v1565
  %v1737 = vunpack.c.l.b16 %v1566
  %v1738 = vunpack.c.h.b16 %v1566
  %v1739 = vunpack.c.l.b16 %v1567
  %v1740 = vunpack.c.h.b16 %v1567
  %v1741 = vunpack.c.l.b16 %v1568
  %v1742 = vunpack.c.h.b16 %v1568
  %v1743 = vunpack.c.l.b16 %v1569
  %v1744 = vunpack.c.h.b16 %v1569
  %v1745 = vunpack.c.l.b16 %v1570
  %v1746 = vunpack.c.h.b16 %v1570
  %v1747 = vpack.c.b16 %v1723, %v1715
  %v1748 = vpack.c.b16 %v1724, %v1716
  %v1749 = vpack.c.b16 %v1725, %v1717
  %v1750 = vpack.c.b16 %v1726, %v1718
  %v1751 = vpack.c.b16 %v1727, %v1719
  %v1752 = vpack.c.b16 %v1728, %v1720
  %v1753 = vpack.c.b16 %v1729, %v1721
  %v1754 = vpack.c.b16 %v1730, %v1722
  %v1755 = vpack.c.b16 %v1739, %v1731
  %v1756 = vpack.c.b16 %v1740, %v1732
  %v1757 = vpack.c.b16 %v1741, %v1733
  %v1758 = vpack.c.b16 %v1742, %v1734
  %v1759 = vpack.c.b16 %v1743, %v1735
  %v1760 = vpack.c.b16 %v1744, %v1736
  %v1761 = vpack.c.b16 %v1745, %v1737
  %v1762 = vpack.c.b16 %v1746, %v1738
  %v1907 = vunpack.c.l.b16 %v1571
  %v1908 = vunpack.c.l.b16 %v1572
  %v1909 = vunpack.c.l.b16 %v1573
  %v1910 = vunpack.c.l.b16 %v1574
  %v1911 = vunpack.c.l.b16 %v1575
  %v1912 = vunpack.c.l.b16 %v1576
  %v1913 = vunpack.c.l.b16 %v1577
  %v1914 = vunpack.c.l.b16 %v1578
  %v1915 = vunpack.c.l.b16 %v1579
  %v1916 = vunpack.c.l.b16 %v1580
  %v1917 = vunpack.c.l.b16 %v1581
  %v1918 = vunpack.c.l.b16 %v1582
  %v1919 = vunpack.c.l.b16 %v1583
  %v1920 = vunpack.c.l.b16 %v1584
  %v1921 = vunpack.c.l.b16 %v1585
  %v1922 = vunpack.c.l.b16 %v1586
  %v1923 = vunpack.c.l.b16 %v1587
  %v1924 = vunpack.c.l.b16 %v1588
  %v1925 = vunpack.c.l.b16 %v1589
  %v1926 = vunpack.c.l.b16 %v1590
  %v1927 = vunpack.c.l.b16 %v1591
  %v1928 = vunpack.c.l.b16 %v1592
  %v1929 = vunpack.c.l.b16 %v1593
  %v1930 = vunpack.c.l.b16 %v1594
  %v1931 = vunpack.c.l.b16 %v1595
  %v1932 = vunpack.c.l.b16 %v1596
  %v1933 = vunpack.c.l.b16 %v1597
  %v1934 = vunpack.c.l.b16 %v1598
  %v1935 = vunpack.c.l.b16 %v1599
  %v1936 = vunpack.c.l.b16 %v1600
  %v1937 = vunpack.c.l.b16 %v1601
  %v1938 = vunpack.c.l.b16 %v1602
  %v1939 = vunpack.c.l.b16 %v1603
  %v1940 = vunpack.c.l.b16 %v1604
  %v1941 = vunpack.c.l.b16 %v1605
  %v1942 = vunpack.c.l.b16 %v1606
  %v1943 = vunpack.c.l.b16 %v1607
  %v1944 = vunpack.c.l.b16 %v1608
  %v1945 = vunpack.c.l.b16 %v1609
  %v1946 = vunpack.c.l.b16 %v1610
  %v1947 = vunpack.c.l.b16 %v1611
  %v1948 = vunpack.c.l.b16 %v1612
  %v1949 = vunpack.c.l.b16 %v1613
  %v1950 = vunpack.c.l.b16 %v1614
  %v1951 = vunpack.c.l.b16 %v1615
  %v1952 = vunpack.c.l.b16 %v1616
  %v1953 = vunpack.c.l.b16 %v1617
  %v1954 = vunpack.c.l.b16 %v1618
  %v1955 = vunpack.c.l.b16 %v1619
  %v1956 = vunpack.c.l.b16 %v1620
  %v1957 = vunpack.c.l.b16 %v1621
  %v1958 = vunpack.c.l.b16 %v1622
  %v1959 = vunpack.c.l.b16 %v1623
  %v1960 = vunpack.c.l.b16 %v1624
  %v1961 = vunpack.c.l.b16 %v1625
  %v1962 = vunpack.c.l.b16 %v1626
  %v1963 = vunpack.c.l.b16 %v1627
  %v1964 = vunpack.c.l.b16 %v1628
  %v1965 = vunpack.c.l.b16 %v1629
  %v1966 = vunpack.c.l.b16 %v1630
  %v1967 = vunpack.c.l.b16 %v1631
  %v1968 = vunpack.c.l.b16 %v1632
  %v1969 = vunpack.c.l.b16 %v1633
  %v1970 = vunpack.c.l.b16 %v1634
  %v1971 = vunpack.c.l.b16 %v1635
  %v1972 = vunpack.c.l.b16 %v1636
  %v1973 = vunpack.c.l.b16 %v1637
  %v1974 = vunpack.c.l.b16 %v1638
  %v1975 = vunpack.c.l.b16 %v1639
  %v1976 = vunpack.c.l.b16 %v1640
  %v1977 = vunpack.c.l.b16 %v1641
  %v1978 = vunpack.c.l.b16 %v1642
  %v1979 = vunpack.c.l.b16 %v1643
  %v1980 = vunpack.c.l.b16 %v1644
  %v1981 = vunpack.c.l.b16 %v1645
  %v1982 = vunpack.c.l.b16 %v1646
  %v1983 = vunpack.c.l.b16 %v1647
  %v1984 = vunpack.c.l.b16 %v1648
  %v1985 = vunpack.c.l.b16 %v1649
  %v1986 = vunpack.c.l.b16 %v1650
  %v1987 = vunpack.c.l.b16 %v1651
  %v1988 = vunpack.c.l.b16 %v1652
  %v1989 = vunpack.c.l.b16 %v1653
  %v1990 = vunpack.c.l.b16 %v1654
  %v1991 = vunpack.c.l.b16 %v1655
  %v1992 = vunpack.c.l.b16 %v1656
  %v1993 = vunpack.c.l.b16 %v1657
  %v1994 = vunpack.c.l.b16 %v1658
  %v1995 = vunpack.c.l.b16 %v1659
  %v1996 = vunpack.c.l.b16 %v1660
  %v1997 = vunpack.c.l.b16 %v1661
  %v1998 = vunpack.c.l.b16 %v1662
  %v1999 = vunpack.c.l.b16 %v1663
  %v2000 = vunpack.c.l.b16 %v1664
  %v2001 = vunpack.c.l.b16 %v1665
  %v2002 = vunpack.c.l.b16 %v1666
  %v2003 = vunpack.c.l.b16 %v1667
  %v2004 = vunpack.c.l.b16 %v1668
  %v2005 = vunpack.c.l.b16 %v1669
  %v2006 = vunpack.c.l.b16 %v1670
  %v2007 = vunpack.c.l.b16 %v1671
  %v2008 = vunpack.c.l.b16 %v1672
  %v2009 = vunpack.c.l.b16 %v1673
  %v2010 = vunpack.c.l.b16 %v1674
  %v2011 = vunpack.c.l.b16 %v1675
  %v2012 = vunpack.c.l.b16 %v1676
  %v2013 = vunpack.c.l.b16 %v1677
  %v2014 = vunpack.c.l.b16 %v1678
  %v2015 = vunpack.c.l.b16 %v1679
  %v2016 = vunpack.c.l.b16 %v1680
  %v2017 = vunpack.c.l.b16 %v1681
  %v2018 = vunpack.c.l.b16 %v1682
  %v2019 = vunpack.c.l.b16 %v1683
  %v2020 = vunpack.c.l.b16 %v1684
  %v2021 = vunpack.c.l.b16 %v1685
  %v2022 = vunpack.c.l.b16 %v1686
  %v2023 = vunpack.c.l.b16 %v1687
  %v2024 = vunpack.c.l.b16 %v1688
  %v2025 = vunpack.c.l.b16 %v1689
  %v2026 = vunpack.c.l.b16 %v1690
  %v2027 = vunpack.c.l.b16 %v1691
  %v2028 = vunpack.c.l.b16 %v1692
  %v2029 = vunpack.c.l.b16 %v1693
  %v2030 = vunpack.c.l.b16 %v1694
  %v2031 = vunpack.c.l.b16 %v1695
  %v2032 = vunpack.c.l.b16 %v1696
  %v2033 = vunpack.c.l.b16 %v1697
  %v2034 = vunpack.c.l.b16 %v1698
  %v2035 = vpack.c.b16 %v1908, %v1907
  %v2036 = vpack.c.b16 %v1910, %v1909
  %v2037 = vpack.c.b16 %v1912, %v1911
  %v2038 = vpack.c.b16 %v1914, %v1913
  %v2039 = vpack.c.b16 %v1916, %v1915
  %v2040 = vpack.c.b16 %v1918, %v1917
  %v2041 = vpack.c.b16 %v1920, %v1919
  %v2042 = vpack.c.b16 %v1922, %v1921
  %v2043 = vpack.c.b16 %v1924, %v1923
  %v2044 = vpack.c.b16 %v1926, %v1925
  %v2045 = vpack.c.b16 %v1928, %v1927
  %v2046 = vpack.c.b16 %v1930, %v1929
  %v2047 = vpack.c.b16 %v1932, %v1931
  %v2048 = vpack.c.b16 %v1934, %v1933
  %v2049 = vpack.c.b16 %v1936, %v1935
  %v2050 = vpack.c.b16 %v1938, %v1937
  %v2051 = vpack.c.b16 %v1940, %v1939
  %v2052 = vpack.c.b16 %v1942, %v1941
  %v2053 = vpack.c.b16 %v1944, %v1943
  %v2054 = vpack.c.b16 %v1946, %v1945
  %v2055 = vpack.c.b16 %v1948, %v1947
  %v2056 = vpack.c.b16 %v1950, %v1949
  %v2057 = vpack.c.b16 %v1952, %v1951
  %v2058 = vpack.c.b16 %v1954, %v1953
  %v2059 = vpack.c.b16 %v1956, %v1955
  %v2060 = vpack.c.b16 %v1958, %v1957
  %v2061 = vpack.c.b16 %v1960, %v1959
  %v2062 = vpack.c.b16 %v1962, %v1961
  %v2063 = vpack.c.b16 %v1964, %v1963
  %v2064 = vpack.c.b16 %v1966, %v1965
  %v2065 = vpack.c.b16 %v1968, %v1967
  %v2066 = vpack.c.b16 %v1970, %v1969
  %v2067 = vpack.c.b16 %v1972, %v1971
  %v2068 = vpack.c.b16 %v1974, %v1973
  %v2069 = vpack.c.b16 %v1976, %v1975
  %v2070 = vpack.c.b16 %v1978, %v1977
  %v2071 = vpack.c.b16 %v1980, %v1979
  %v2072 = vpack.c.b16 %v1982, %v1981
  %v2073 = vpack.c.b16 %v1984, %v1983
  %v2074 = vpack.c.b16 %v1986, %v1985
  %v2075 = vpack.c.b16 %v1988, %v1987
  %v2076 = vpack.c.b16 %v1990, %v1989
  %v2077 = vpack.c.b16 %v1992, %v1991
  %v2078 = vpack.c.b16 %v1994, %v1993
  %v2079 = vpack.c.b16 %v1996, %v1995
  %v2080 = vpack.c.b16 %v1998, %v1997
  %v2081 = vpack.c.b16 %v2000, %v1999
  %v2082 = vpack.c.b16 %v2002, %v2001
  %v2083 = vpack.c.b16 %v2004, %v2003
  %v2084 = vpack.c.b16 %v2006, %v2005
  %v2085 = vpack.c.b16 %v2008, %v2007
  %v2086 = vpack.c.b16 %v2010, %v2009
  %v2087 = vpack.c.b16 %v2012, %v2011
  %v2088 = vpack.c.b16 %v2014, %v2013
  %v2089 = vpack.c.b16 %v2016, %v2015
  %v2090 = vpack.c.b16 %v2018, %v2017
  %v2091 = vpack.c.b16 %v2020, %v2019
  %v2092 = vpack.c.b16 %v2022, %v2021
  %v2093 = vpack.c.b16 %v2024, %v2023
  %v2094 = vpack.c.b16 %v2026, %v2025
  %v2095 = vpack.c.b16 %v2028, %v2027
  %v2096 = vpack.c.b16 %v2030, %v2029
  %v2097 = vpack.c.b16 %v2032, %v2031
  %v2098 = vpack.c.b16 %v2034, %v2033
  %2163 = vmatpush.bf16.msra.mxu0 %v2042
  %2164 = vmatpush.bf16.msra.mxu0 %v2041
  %2165 = vmatpush.bf16.msra.mxu0 %v2040
  %2166 = vmatpush.bf16.msra.mxu0 %v2039
  %2167 = vmatpush.bf16.msra.mxu0 %v2038
  %2168 = vmatpush.bf16.msra.mxu0 %v2037
  %2169 = vmatpush.bf16.msra.mxu0 %v2036
  %2170 = vmatpush.bf16.msra.mxu0 %v2035
  %2171 = vmatmul.bf16.gmra.mxu0 %v1747
  %v2172 = vpop.f32.mrf.mxu0
  %v2173 = vadd.f32 0.0, %v2172
  %v2174 = vpop.f32.mrf.mxu0
  %v2175 = vadd.f32 0.0, %v2174
  %2176 = vmatmul.bf16.gmra.mxu0 %v1755
  %v2177 = vpop.f32.mrf.mxu0
  %v2178 = vadd.f32 0.0, %v2177
  %v2179 = vpop.f32.mrf.mxu0
  %v2180 = vadd.f32 0.0, %v2179
  %2181 = vdwg.mxu0
  %2182 = vmatpush.bf16.msra.mxu0 %v2050
  %2183 = vmatpush.bf16.msra.mxu0 %v2049
  %2184 = vmatpush.bf16.msra.mxu0 %v2048
  %2185 = vmatpush.bf16.msra.mxu0 %v2047
  %2186 = vmatpush.bf16.msra.mxu0 %v2046
  %2187 = vmatpush.bf16.msra.mxu0 %v2045
  %2188 = vmatpush.bf16.msra.mxu0 %v2044
  %2189 = vmatpush.bf16.msra.mxu0 %v2043
  %2190 = vmatmul.bf16.gmra.mxu0 %v1748
  %v2191 = vpop.f32.mrf.mxu0
  %v2192 = vadd.f32 %v2173, %v2191
  %v2193 = vpop.f32.mrf.mxu0
  %v2194 = vadd.f32 %v2175, %v2193
  %2195 = vmatmul.bf16.gmra.mxu0 %v1756
  %v2196 = vpop.f32.mrf.mxu0
  %v2197 = vadd.f32 %v2178, %v2196
  %v2198 = vpop.f32.mrf.mxu0
  %v2199 = vadd.f32 %v2180, %v2198
  %2200 = vdwg.mxu0
  %2201 = vmatpush.bf16.msra.mxu0 %v2058
  %2202 = vmatpush.bf16.msra.mxu0 %v2057
  %2203 = vmatpush.bf16.msra.mxu0 %v2056
  %2204 = vmatpush.bf16.msra.mxu0 %v2055
  %2205 = vmatpush.bf16.msra.mxu0 %v2054
  %2206 = vmatpush.bf16.msra.mxu0 %v2053
  %2207 = vmatpush.bf16.msra.mxu0 %v2052
  %2208 = vmatpush.bf16.msra.mxu0 %v2051
  %2209 = vmatmul.bf16.gmra.mxu0 %v1749
  %v2210 = vpop.f32.mrf.mxu0
  %v2211 = vadd.f32 %v2192, %v2210
  %v2212 = vpop.f32.mrf.mxu0
  %v2213 = vadd.f32 %v2194, %v2212
  %2214 = vmatmul.bf16.gmra.mxu0 %v1757
  %v2215 = vpop.f32.mrf.mxu0
  %v2216 = vadd.f32 %v2197, %v2215
  %v2217 = vpop.f32.mrf.mxu0
  %v2218 = vadd.f32 %v2199, %v2217
  %2219 = vdwg.mxu0
  %2220 = vmatpush.bf16.msra.mxu0 %v2066
  %2221 = vmatpush.bf16.msra.mxu0 %v2065
  %2222 = vmatpush.bf16.msra.mxu0 %v2064
  %2223 = vmatpush.bf16.msra.mxu0 %v2063
  %2224 = vmatpush.bf16.msra.mxu0 %v2062
  %2225 = vmatpush.bf16.msra.mxu0 %v2061
  %2226 = vmatpush.bf16.msra.mxu0 %v2060
  %2227 = vmatpush.bf16.msra.mxu0 %v2059
  %2228 = vmatmul.bf16.gmra.mxu0 %v1750
  %v2229 = vpop.f32.mrf.mxu0
  %v2230 = vadd.f32 %v2211, %v2229
  %v2231 = vpop.f32.mrf.mxu0
  %v2232 = vadd.f32 %v2213, %v2231
  %2233 = vmatmul.bf16.gmra.mxu0 %v1758
  %v2234 = vpop.f32.mrf.mxu0
  %v2235 = vadd.f32 %v2216, %v2234
  %v2236 = vpop.f32.mrf.mxu0
  %v2237 = vadd.f32 %v2218, %v2236
  %2238 = vdwg.mxu0
  %2239 = vmatpush.bf16.msra.mxu0 %v2074
  %2240 = vmatpush.bf16.msra.mxu0 %v2073
  %2241 = vmatpush.bf16.msra.mxu0 %v2072
  %2242 = vmatpush.bf16.msra.mxu0 %v2071
  %2243 = vmatpush.bf16.msra.mxu0 %v2070
  %2244 = vmatpush.bf16.msra.mxu0 %v2069
  %2245 = vmatpush.bf16.msra.mxu0 %v2068
  %2246 = vmatpush.bf16.msra.mxu0 %v2067
  %2247 = vmatmul.bf16.gmra.mxu0 %v1751
  %v2248 = vpop.f32.mrf.mxu0
  %v2249 = vadd.f32 %v2230, %v2248
  %v2250 = vpop.f32.mrf.mxu0
  %v2251 = vadd.f32 %v2232, %v2250
  %2252 = vmatmul.bf16.gmra.mxu0 %v1759
  %v2253 = vpop.f32.mrf.mxu0
  %v2254 = vadd.f32 %v2235, %v2253
  %v2255 = vpop.f32.mrf.mxu0
  %v2256 = vadd.f32 %v2237, %v2255
  %2257 = vdwg.mxu0
  %2258 = vmatpush.bf16.msra.mxu0 %v2082
  %2259 = vmatpush.bf16.msra.mxu0 %v2081
  %2260 = vmatpush.bf16.msra.mxu0 %v2080
  %2261 = vmatpush.bf16.msra.mxu0 %v2079
  %2262 = vmatpush.bf16.msra.mxu0 %v2078
  %2263 = vmatpush.bf16.msra.mxu0 %v2077
  %2264 = vmatpush.bf16.msra.mxu0 %v2076
  %2265 = vmatpush.bf16.msra.mxu0 %v2075
  %2266 = vmatmul.bf16.gmra.mxu0 %v1752
  %v2267 = vpop.f32.mrf.mxu0
  %v2268 = vadd.f32 %v2249, %v2267
  %v2269 = vpop.f32.mrf.mxu0
  %v2270 = vadd.f32 %v2251, %v2269
  %2271 = vmatmul.bf16.gmra.mxu0 %v1760
  %v2272 = vpop.f32.mrf.mxu0
  %v2273 = vadd.f32 %v2254, %v2272
  %v2274 = vpop.f32.mrf.mxu0
  %v2275 = vadd.f32 %v2256, %v2274
  %2276 = vdwg.mxu0
  %2277 = vmatpush.bf16.msra.mxu0 %v2090
  %2278 = vmatpush.bf16.msra.mxu0 %v2089
  %2279 = vmatpush.bf16.msra.mxu0 %v2088
  %2280 = vmatpush.bf16.msra.mxu0 %v2087
  %2281 = vmatpush.bf16.msra.mxu0 %v2086
  %2282 = vmatpush.bf16.msra.mxu0 %v2085
  %2283 = vmatpush.bf16.msra.mxu0 %v2084
  %2284 = vmatpush.bf16.msra.mxu0 %v2083
  %2285 = vmatmul.bf16.gmra.mxu0 %v1753
  %v2286 = vpop.f32.mrf.mxu0
  %v2287 = vadd.f32 %v2268, %v2286
  %v2288 = vpop.f32.mrf.mxu0
  %v2289 = vadd.f32 %v2270, %v2288
  %2290 = vmatmul.bf16.gmra.mxu0 %v1761
  %v2291 = vpop.f32.mrf.mxu0
  %v2292 = vadd.f32 %v2273, %v2291
  %v2293 = vpop.f32.mrf.mxu0
  %v2294 = vadd.f32 %v2275, %v2293
  %2295 = vdwg.mxu0
  %2296 = vmatpush.bf16.msra.mxu0 %v2098
  %2297 = vmatpush.bf16.msra.mxu0 %v2097
  %2298 = vmatpush.bf16.msra.mxu0 %v2096
  %2299 = vmatpush.bf16.msra.mxu0 %v2095
  %2300 = vmatpush.bf16.msra.mxu0 %v2094
  %2301 = vmatpush.bf16.msra.mxu0 %v2093
  %2302 = vmatpush.bf16.msra.mxu0 %v2092
  %2303 = vmatpush.bf16.msra.mxu0 %v2091
  %2304 = vmatmul.bf16.gmra.mxu0 %v1754
  %v2305 = vpop.f32.mrf.mxu0
  %v2306 = vadd.f32 %v2287, %v2305
  %v2307 = vpop.f32.mrf.mxu0
  %v2308 = vadd.f32 %v2289, %v2307
  %2309 = vmatmul.bf16.gmra.mxu0 %v1762
  %v2310 = vpop.f32.mrf.mxu0
  %v2311 = vadd.f32 %v2292, %v2310
  %v2312 = vpop.f32.mrf.mxu0
  %v2313 = vadd.f32 %v2294, %v2312
  %2314 = vdwg.mxu0
  %v2315 = vld [vmem:[%s3] sm:$0xff]
  %v2316 = vld [vmem:[%s3 + $0x8] sm:$0xff]
  %v2317 = vld [vmem:[%s3 + $0x10] sm:$0xff]
  %v2318 = vld [vmem:[%s3 + $0x18] sm:$0xff]
  %v2319 = vld [vmem:[%s3 + $0x20] sm:$0xff]
  %v2320 = vld [vmem:[%s3 + $0x28] sm:$0xff]
  %v2321 = vld [vmem:[%s3 + $0x30] sm:$0xff]
  %v2322 = vld [vmem:[%s3 + $0x38] sm:$0xff]
  %v2323 = vld [vmem:[%s3 + $0x40] sm:$0xff]
  %v2324 = vld [vmem:[%s3 + $0x48] sm:$0xff]
  %v2325 = vld [vmem:[%s3 + $0x50] sm:$0xff]
  %v2326 = vld [vmem:[%s3 + $0x58] sm:$0xff]
  %v2327 = vld [vmem:[%s3 + $0x60] sm:$0xff]
  %v2328 = vld [vmem:[%s3 + $0x68] sm:$0xff]
  %v2329 = vld [vmem:[%s3 + $0x70] sm:$0xff]
  %v2330 = vld [vmem:[%s3 + $0x78] sm:$0xff]
  %v2331 = vld [vmem:[%s7] sm:$0xf]
  %v2332 = vld [vmem:[%s7 + $0x4] sm:$0xf]
  %v2333 = vld [vmem:[%s7 + $0x8] sm:$0xf]
  %v2334 = vld [vmem:[%s7 + $0xc] sm:$0xf]
  %v2335 = vld [vmem:[%s7 + $0x10] sm:$0xf]
  %v2336 = vld [vmem:[%s7 + $0x14] sm:$0xf]
  %v2337 = vld [vmem:[%s7 + $0x18] sm:$0xf]
  %v2338 = vld [vmem:[%s7 + $0x1c] sm:$0xf]
  %v2339 = vld [vmem:[%s7 + $0x20] sm:$0xf]
  %v2340 = vld [vmem:[%s7 + $0x24] sm:$0xf]
  %v2341 = vld [vmem:[%s7 + $0x28] sm:$0xf]
  %v2342 = vld [vmem:[%s7 + $0x2c] sm:$0xf]
  %v2343 = vld [vmem:[%s7 + $0x30] sm:$0xf]
  %v2344 = vld [vmem:[%s7 + $0x34] sm:$0xf]
  %v2345 = vld [vmem:[%s7 + $0x38] sm:$0xf]
  %v2346 = vld [vmem:[%s7 + $0x3c] sm:$0xf]
  %v2347 = vld [vmem:[%s7 + $0x40] sm:$0xf]
  %v2348 = vld [vmem:[%s7 + $0x44] sm:$0xf]
  %v2349 = vld [vmem:[%s7 + $0x48] sm:$0xf]
  %v2350 = vld [vmem:[%s7 + $0x4c] sm:$0xf]
  %v2351 = vld [vmem:[%s7 + $0x50] sm:$0xf]
  %v2352 = vld [vmem:[%s7 + $0x54] sm:$0xf]
  %v2353 = vld [vmem:[%s7 + $0x58] sm:$0xf]
  %v2354 = vld [vmem:[%s7 + $0x5c] sm:$0xf]
  %v2355 = vld [vmem:[%s7 + $0x60] sm:$0xf]
  %v2356 = vld [vmem:[%s7 + $0x64] sm:$0xf]
  %v2357 = vld [vmem:[%s7 + $0x68] sm:$0xf]
  %v2358 = vld [vmem:[%s7 + $0x6c] sm:$0xf]
  %v2359 = vld [vmem:[%s7 + $0x70] sm:$0xf]
  %v2360 = vld [vmem:[%s7 + $0x74] sm:$0xf]
  %v2361 = vld [vmem:[%s7 + $0x78] sm:$0xf]
  %v2362 = vld [vmem:[%s7 + $0x7c] sm:$0xf]
  %v2363 = vld [vmem:[%s7 + $0x80] sm:$0xf]
  %v2364 = vld [vmem:[%s7 + $0x84] sm:$0xf]
  %v2365 = vld [vmem:[%s7 + $0x88] sm:$0xf]
  %v2366 = vld [vmem:[%s7 + $0x8c] sm:$0xf]
  %v2367 = vld [vmem:[%s7 + $0x90] sm:$0xf]
  %v2368 = vld [vmem:[%s7 + $0x94] sm:$0xf]
  %v2369 = vld [vmem:[%s7 + $0x98] sm:$0xf]
  %v2370 = vld [vmem:[%s7 + $0x9c] sm:$0xf]
  %v2371 = vld [vmem:[%s7 + $0xa0] sm:$0xf]
  %v2372 = vld [vmem:[%s7 + $0xa4] sm:$0xf]
  %v2373 = vld [vmem:[%s7 + $0xa8] sm:$0xf]
  %v2374 = vld [vmem:[%s7 + $0xac] sm:$0xf]
  %v2375 = vld [vmem:[%s7 + $0xb0] sm:$0xf]
  %v2376 = vld [vmem:[%s7 + $0xb4] sm:$0xf]
  %v2377 = vld [vmem:[%s7 + $0xb8] sm:$0xf]
  %v2378 = vld [vmem:[%s7 + $0xbc] sm:$0xf]
  %v2379 = vld [vmem:[%s7 + $0xc0] sm:$0xf]
  %v2380 = vld [vmem:[%s7 + $0xc4] sm:$0xf]
  %v2381 = vld [vmem:[%s7 + $0xc8] sm:$0xf]
  %v2382 = vld [vmem:[%s7 + $0xcc] sm:$0xf]
  %v2383 = vld [vmem:[%s7 + $0xd0] sm:$0xf]
  %v2384 = vld [vmem:[%s7 + $0xd4] sm:$0xf]
  %v2385 = vld [vmem:[%s7 + $0xd8] sm:$0xf]
  %v2386 = vld [vmem:[%s7 + $0xdc] sm:$0xf]
  %v2387 = vld [vmem:[%s7 + $0xe0] sm:$0xf]
  %v2388 = vld [vmem:[%s7 + $0xe4] sm:$0xf]
  %v2389 = vld [vmem:[%s7 + $0xe8] sm:$0xf]
  %v2390 = vld [vmem:[%s7 + $0xec] sm:$0xf]
  %v2391 = vld [vmem:[%s7 + $0xf0] sm:$0xf]
  %v2392 = vld [vmem:[%s7 + $0xf4] sm:$0xf]
  %v2393 = vld [vmem:[%s7 + $0xf8] sm:$0xf]
  %v2394 = vld [vmem:[%s7 + $0xfc] sm:$0xf]
  %v2395 = vld [vmem:[%s7 + $0x100] sm:$0xf]
  %v2396 = vld [vmem:[%s7 + $0x104] sm:$0xf]
  %v2397 = vld [vmem:[%s7 + $0x108] sm:$0xf]
  %v2398 = vld [vmem:[%s7 + $0x10c] sm:$0xf]
  %v2399 = vld [vmem:[%s7 + $0x110] sm:$0xf]
  %v2400 = vld [vmem:[%s7 + $0x114] sm:$0xf]
  %v2401 = vld [vmem:[%s7 + $0x118] sm:$0xf]
  %v2402 = vld [vmem:[%s7 + $0x11c] sm:$0xf]
  %v2403 = vld [vmem:[%s7 + $0x120] sm:$0xf]
  %v2404 = vld [vmem:[%s7 + $0x124] sm:$0xf]
  %v2405 = vld [vmem:[%s7 + $0x128] sm:$0xf]
  %v2406 = vld [vmem:[%s7 + $0x12c] sm:$0xf]
  %v2407 = vld [vmem:[%s7 + $0x130] sm:$0xf]
  %v2408 = vld [vmem:[%s7 + $0x134] sm:$0xf]
  %v2409 = vld [vmem:[%s7 + $0x138] sm:$0xf]
  %v2410 = vld [vmem:[%s7 + $0x13c] sm:$0xf]
  %v2411 = vld [vmem:[%s7 + $0x140] sm:$0xf]
  %v2412 = vld [vmem:[%s7 + $0x144] sm:$0xf]
  %v2413 = vld [vmem:[%s7 + $0x148] sm:$0xf]
  %v2414 = vld [vmem:[%s7 + $0x14c] sm:$0xf]
  %v2415 = vld [vmem:[%s7 + $0x150] sm:$0xf]
  %v2416 = vld [vmem:[%s7 + $0x154] sm:$0xf]
  %v2417 = vld [vmem:[%s7 + $0x158] sm:$0xf]
  %v2418 = vld [vmem:[%s7 + $0x15c] sm:$0xf]
  %v2419 = vld [vmem:[%s7 + $0x160] sm:$0xf]
  %v2420 = vld [vmem:[%s7 + $0x164] sm:$0xf]
  %v2421 = vld [vmem:[%s7 + $0x168] sm:$0xf]
  %v2422 = vld [vmem:[%s7 + $0x16c] sm:$0xf]
  %v2423 = vld [vmem:[%s7 + $0x170] sm:$0xf]
  %v2424 = vld [vmem:[%s7 + $0x174] sm:$0xf]
  %v2425 = vld [vmem:[%s7 + $0x178] sm:$0xf]
  %v2426 = vld [vmem:[%s7 + $0x17c] sm:$0xf]
  %v2427 = vld [vmem:[%s7 + $0x180] sm:$0xf]
  %v2428 = vld [vmem:[%s7 + $0x184] sm:$0xf]
  %v2429 = vld [vmem:[%s7 + $0x188] sm:$0xf]
  %v2430 = vld [vmem:[%s7 + $0x18c] sm:$0xf]
  %v2431 = vld [vmem:[%s7 + $0x190] sm:$0xf]
  %v2432 = vld [vmem:[%s7 + $0x194] sm:$0xf]
  %v2433 = vld [vmem:[%s7 + $0x198] sm:$0xf]
  %v2434 = vld [vmem:[%s7 + $0x19c] sm:$0xf]
  %v2435 = vld [vmem:[%s7 + $0x1a0] sm:$0xf]
  %v2436 = vld [vmem:[%s7 + $0x1a4] sm:$0xf]
  %v2437 = vld [vmem:[%s7 + $0x1a8] sm:$0xf]
  %v2438 = vld [vmem:[%s7 + $0x1ac] sm:$0xf]
  %v2439 = vld [vmem:[%s7 + $0x1b0] sm:$0xf]
  %v2440 = vld [vmem:[%s7 + $0x1b4] sm:$0xf]
  %v2441 = vld [vmem:[%s7 + $0x1b8] sm:$0xf]
  %v2442 = vld [vmem:[%s7 + $0x1bc] sm:$0xf]
  %v2443 = vld [vmem:[%s7 + $0x1c0] sm:$0xf]
  %v2444 = vld [vmem:[%s7 + $0x1c4] sm:$0xf]
  %v2445 = vld [vmem:[%s7 + $0x1c8] sm:$0xf]
  %v2446 = vld [vmem:[%s7 + $0x1cc] sm:$0xf]
  %v2447 = vld [vmem:[%s7 + $0x1d0] sm:$0xf]
  %v2448 = vld [vmem:[%s7 + $0x1d4] sm:$0xf]
  %v2449 = vld [vmem:[%s7 + $0x1d8] sm:$0xf]
  %v2450 = vld [vmem:[%s7 + $0x1dc] sm:$0xf]
  %v2451 = vld [vmem:[%s7 + $0x1e0] sm:$0xf]
  %v2452 = vld [vmem:[%s7 + $0x1e4] sm:$0xf]
  %v2453 = vld [vmem:[%s7 + $0x1e8] sm:$0xf]
  %v2454 = vld [vmem:[%s7 + $0x1ec] sm:$0xf]
  %v2455 = vld [vmem:[%s7 + $0x1f0] sm:$0xf]
  %v2456 = vld [vmem:[%s7 + $0x1f4] sm:$0xf]
  %v2457 = vld [vmem:[%s7 + $0x1f8] sm:$0xf]
  %v2458 = vld [vmem:[%s7 + $0x1fc] sm:$0xf]
  %v2475 = vunpack.c.l.b16 %v2315
  %v2476 = vunpack.c.h.b16 %v2315
  %v2477 = vunpack.c.l.b16 %v2316
  %v2478 = vunpack.c.h.b16 %v2316
  %v2479 = vunpack.c.l.b16 %v2317
  %v2480 = vunpack.c.h.b16 %v2317
  %v2481 = vunpack.c.l.b16 %v2318
  %v2482 = vunpack.c.h.b16 %v2318
  %v2483 = vunpack.c.l.b16 %v2319
  %v2484 = vunpack.c.h.b16 %v2319
  %v2485 = vunpack.c.l.b16 %v2320
  %v2486 = vunpack.c.h.b16 %v2320
  %v2487 = vunpack.c.l.b16 %v2321
  %v2488 = vunpack.c.h.b16 %v2321
  %v2489 = vunpack.c.l.b16 %v2322
  %v2490 = vunpack.c.h.b16 %v2322
  %v2491 = vunpack.c.l.b16 %v2323
  %v2492 = vunpack.c.h.b16 %v2323
  %v2493 = vunpack.c.l.b16 %v2324
  %v2494 = vunpack.c.h.b16 %v2324
  %v2495 = vunpack.c.l.b16 %v2325
  %v2496 = vunpack.c.h.b16 %v2325
  %v2497 = vunpack.c.l.b16 %v2326
  %v2498 = vunpack.c.h.b16 %v2326
  %v2499 = vunpack.c.l.b16 %v2327
  %v2500 = vunpack.c.h.b16 %v2327
  %v2501 = vunpack.c.l.b16 %v2328
  %v2502 = vunpack.c.h.b16 %v2328
  %v2503 = vunpack.c.l.b16 %v2329
  %v2504 = vunpack.c.h.b16 %v2329
  %v2505 = vunpack.c.l.b16 %v2330
  %v2506 = vunpack.c.h.b16 %v2330
  %v2507 = vpack.c.b16 %v2483, %v2475
  %v2508 = vpack.c.b16 %v2484, %v2476
  %v2509 = vpack.c.b16 %v2485, %v2477
  %v2510 = vpack.c.b16 %v2486, %v2478
  %v2511 = vpack.c.b16 %v2487, %v2479
  %v2512 = vpack.c.b16 %v2488, %v2480
  %v2513 = vpack.c.b16 %v2489, %v2481
  %v2514 = vpack.c.b16 %v2490, %v2482
  %v2515 = vpack.c.b16 %v2499, %v2491
  %v2516 = vpack.c.b16 %v2500, %v2492
  %v2517 = vpack.c.b16 %v2501, %v2493
  %v2518 = vpack.c.b16 %v2502, %v2494
  %v2519 = vpack.c.b16 %v2503, %v2495
  %v2520 = vpack.c.b16 %v2504, %v2496
  %v2521 = vpack.c.b16 %v2505, %v2497
  %v2522 = vpack.c.b16 %v2506, %v2498
  %v2667 = vunpack.c.l.b16 %v2331
  %v2668 = vunpack.c.l.b16 %v2332
  %v2669 = vunpack.c.l.b16 %v2333
  %v2670 = vunpack.c.l.b16 %v2334
  %v2671 = vunpack.c.l.b16 %v2335
  %v2672 = vunpack.c.l.b16 %v2336
  %v2673 = vunpack.c.l.b16 %v2337
  %v2674 = vunpack.c.l.b16 %v2338
  %v2675 = vunpack.c.l.b16 %v2339
  %v2676 = vunpack.c.l.b16 %v2340
  %v2677 = vunpack.c.l.b16 %v2341
  %v2678 = vunpack.c.l.b16 %v2342
  %v2679 = vunpack.c.l.b16 %v2343
  %v2680 = vunpack.c.l.b16 %v2344
  %v2681 = vunpack.c.l.b16 %v2345
  %v2682 = vunpack.c.l.b16 %v2346
  %v2683 = vunpack.c.l.b16 %v2347
  %v2684 = vunpack.c.l.b16 %v2348
  %v2685 = vunpack.c.l.b16 %v2349
  %v2686 = vunpack.c.l.b16 %v2350
  %v2687 = vunpack.c.l.b16 %v2351
  %v2688 = vunpack.c.l.b16 %v2352
  %v2689 = vunpack.c.l.b16 %v2353
  %v2690 = vunpack.c.l.b16 %v2354
  %v2691 = vunpack.c.l.b16 %v2355
  %v2692 = vunpack.c.l.b16 %v2356
  %v2693 = vunpack.c.l.b16 %v2357
  %v2694 = vunpack.c.l.b16 %v2358
  %v2695 = vunpack.c.l.b16 %v2359
  %v2696 = vunpack.c.l.b16 %v2360
  %v2697 = vunpack.c.l.b16 %v2361
  %v2698 = vunpack.c.l.b16 %v2362
  %v2699 = vunpack.c.l.b16 %v2363
  %v2700 = vunpack.c.l.b16 %v2364
  %v2701 = vunpack.c.l.b16 %v2365
  %v2702 = vunpack.c.l.b16 %v2366
  %v2703 = vunpack.c.l.b16 %v2367
  %v2704 = vunpack.c.l.b16 %v2368
  %v2705 = vunpack.c.l.b16 %v2369
  %v2706 = vunpack.c.l.b16 %v2370
  %v2707 = vunpack.c.l.b16 %v2371
  %v2708 = vunpack.c.l.b16 %v2372
  %v2709 = vunpack.c.l.b16 %v2373
  %v2710 = vunpack.c.l.b16 %v2374
  %v2711 = vunpack.c.l.b16 %v2375
  %v2712 = vunpack.c.l.b16 %v2376
  %v2713 = vunpack.c.l.b16 %v2377
  %v2714 = vunpack.c.l.b16 %v2378
  %v2715 = vunpack.c.l.b16 %v2379
  %v2716 = vunpack.c.l.b16 %v2380
  %v2717 = vunpack.c.l.b16 %v2381
  %v2718 = vunpack.c.l.b16 %v2382
  %v2719 = vunpack.c.l.b16 %v2383
  %v2720 = vunpack.c.l.b16 %v2384
  %v2721 = vunpack.c.l.b16 %v2385
  %v2722 = vunpack.c.l.b16 %v2386
  %v2723 = vunpack.c.l.b16 %v2387
  %v2724 = vunpack.c.l.b16 %v2388
  %v2725 = vunpack.c.l.b16 %v2389
  %v2726 = vunpack.c.l.b16 %v2390
  %v2727 = vunpack.c.l.b16 %v2391
  %v2728 = vunpack.c.l.b16 %v2392
  %v2729 = vunpack.c.l.b16 %v2393
  %v2730 = vunpack.c.l.b16 %v2394
  %v2731 = vunpack.c.l.b16 %v2395
  %v2732 = vunpack.c.l.b16 %v2396
  %v2733 = vunpack.c.l.b16 %v2397
  %v2734 = vunpack.c.l.b16 %v2398
  %v2735 = vunpack.c.l.b16 %v2399
  %v2736 = vunpack.c.l.b16 %v2400
  %v2737 = vunpack.c.l.b16 %v2401
  %v2738 = vunpack.c.l.b16 %v2402
  %v2739 = vunpack.c.l.b16 %v2403
  %v2740 = vunpack.c.l.b16 %v2404
  %v2741 = vunpack.c.l.b16 %v2405
  %v2742 = vunpack.c.l.b16 %v2406
  %v2743 = vunpack.c.l.b16 %v2407
  %v2744 = vunpack.c.l.b16 %v2408
  %v2745 = vunpack.c.l.b16 %v2409
  %v2746 = vunpack.c.l.b16 %v2410
  %v2747 = vunpack.c.l.b16 %v2411
  %v2748 = vunpack.c.l.b16 %v2412
  %v2749 = vunpack.c.l.b16 %v2413
  %v2750 = vunpack.c.l.b16 %v2414
  %v2751 = vunpack.c.l.b16 %v2415
  %v2752 = vunpack.c.l.b16 %v2416
  %v2753 = vunpack.c.l.b16 %v2417
  %v2754 = vunpack.c.l.b16 %v2418
  %v2755 = vunpack.c.l.b16 %v2419
  %v2756 = vunpack.c.l.b16 %v2420
  %v2757 = vunpack.c.l.b16 %v2421
  %v2758 = vunpack.c.l.b16 %v2422
  %v2759 = vunpack.c.l.b16 %v2423
  %v2760 = vunpack.c.l.b16 %v2424
  %v2761 = vunpack.c.l.b16 %v2425
  %v2762 = vunpack.c.l.b16 %v2426
  %v2763 = vunpack.c.l.b16 %v2427
  %v2764 = vunpack.c.l.b16 %v2428
  %v2765 = vunpack.c.l.b16 %v2429
  %v2766 = vunpack.c.l.b16 %v2430
  %v2767 = vunpack.c.l.b16 %v2431
  %v2768 = vunpack.c.l.b16 %v2432
  %v2769 = vunpack.c.l.b16 %v2433
  %v2770 = vunpack.c.l.b16 %v2434
  %v2771 = vunpack.c.l.b16 %v2435
  %v2772 = vunpack.c.l.b16 %v2436
  %v2773 = vunpack.c.l.b16 %v2437
  %v2774 = vunpack.c.l.b16 %v2438
  %v2775 = vunpack.c.l.b16 %v2439
  %v2776 = vunpack.c.l.b16 %v2440
  %v2777 = vunpack.c.l.b16 %v2441
  %v2778 = vunpack.c.l.b16 %v2442
  %v2779 = vunpack.c.l.b16 %v2443
  %v2780 = vunpack.c.l.b16 %v2444
  %v2781 = vunpack.c.l.b16 %v2445
  %v2782 = vunpack.c.l.b16 %v2446
  %v2783 = vunpack.c.l.b16 %v2447
  %v2784 = vunpack.c.l.b16 %v2448
  %v2785 = vunpack.c.l.b16 %v2449
  %v2786 = vunpack.c.l.b16 %v2450
  %v2787 = vunpack.c.l.b16 %v2451
  %v2788 = vunpack.c.l.b16 %v2452
  %v2789 = vunpack.c.l.b16 %v2453
  %v2790 = vunpack.c.l.b16 %v2454
  %v2791 = vunpack.c.l.b16 %v2455
  %v2792 = vunpack.c.l.b16 %v2456
  %v2793 = vunpack.c.l.b16 %v2457
  %v2794 = vunpack.c.l.b16 %v2458
  %v2795 = vpack.c.b16 %v2668, %v2667
  %v2796 = vpack.c.b16 %v2670, %v2669
  %v2797 = vpack.c.b16 %v2672, %v2671
  %v2798 = vpack.c.b16 %v2674, %v2673
  %v2799 = vpack.c.b16 %v2676, %v2675
  %v2800 = vpack.c.b16 %v2678, %v2677
  %v2801 = vpack.c.b16 %v2680, %v2679
  %v2802 = vpack.c.b16 %v2682, %v2681
  %v2803 = vpack.c.b16 %v2684, %v2683
  %v2804 = vpack.c.b16 %v2686, %v2685
  %v2805 = vpack.c.b16 %v2688, %v2687
  %v2806 = vpack.c.b16 %v2690, %v2689
  %v2807 = vpack.c.b16 %v2692, %v2691
  %v2808 = vpack.c.b16 %v2694, %v2693
  %v2809 = vpack.c.b16 %v2696, %v2695
  %v2810 = vpack.c.b16 %v2698, %v2697
  %v2811 = vpack.c.b16 %v2700, %v2699
  %v2812 = vpack.c.b16 %v2702, %v2701
  %v2813 = vpack.c.b16 %v2704, %v2703
  %v2814 = vpack.c.b16 %v2706, %v2705
  %v2815 = vpack.c.b16 %v2708, %v2707
  %v2816 = vpack.c.b16 %v2710, %v2709
  %v2817 = vpack.c.b16 %v2712, %v2711
  %v2818 = vpack.c.b16 %v2714, %v2713
  %v2819 = vpack.c.b16 %v2716, %v2715
  %v2820 = vpack.c.b16 %v2718, %v2717
  %v2821 = vpack.c.b16 %v2720, %v2719
  %v2822 = vpack.c.b16 %v2722, %v2721
  %v2823 = vpack.c.b16 %v2724, %v2723
  %v2824 = vpack.c.b16 %v2726, %v2725
  %v2825 = vpack.c.b16 %v2728, %v2727
  %v2826 = vpack.c.b16 %v2730, %v2729
  %v2827 = vpack.c.b16 %v2732, %v2731
  %v2828 = vpack.c.b16 %v2734, %v2733
  %v2829 = vpack.c.b16 %v2736, %v2735
  %v2830 = vpack.c.b16 %v2738, %v2737
  %v2831 = vpack.c.b16 %v2740, %v2739
  %v2832 = vpack.c.b16 %v2742, %v2741
  %v2833 = vpack.c.b16 %v2744, %v2743
  %v2834 = vpack.c.b16 %v2746, %v2745
  %v2835 = vpack.c.b16 %v2748, %v2747
  %v2836 = vpack.c.b16 %v2750, %v2749
  %v2837 = vpack.c.b16 %v2752, %v2751
  %v2838 = vpack.c.b16 %v2754, %v2753
  %v2839 = vpack.c.b16 %v2756, %v2755
  %v2840 = vpack.c.b16 %v2758, %v2757
  %v2841 = vpack.c.b16 %v2760, %v2759
  %v2842 = vpack.c.b16 %v2762, %v2761
  %v2843 = vpack.c.b16 %v2764, %v2763
  %v2844 = vpack.c.b16 %v2766, %v2765
  %v2845 = vpack.c.b16 %v2768, %v2767
  %v2846 = vpack.c.b16 %v2770, %v2769
  %v2847 = vpack.c.b16 %v2772, %v2771
  %v2848 = vpack.c.b16 %v2774, %v2773
  %v2849 = vpack.c.b16 %v2776, %v2775
  %v2850 = vpack.c.b16 %v2778, %v2777
  %v2851 = vpack.c.b16 %v2780, %v2779
  %v2852 = vpack.c.b16 %v2782, %v2781
  %v2853 = vpack.c.b16 %v2784, %v2783
  %v2854 = vpack.c.b16 %v2786, %v2785
  %v2855 = vpack.c.b16 %v2788, %v2787
  %v2856 = vpack.c.b16 %v2790, %v2789
  %v2857 = vpack.c.b16 %v2792, %v2791
  %v2858 = vpack.c.b16 %v2794, %v2793
  %2923 = vmatpush.bf16.msra.mxu0 %v2802
  %2924 = vmatpush.bf16.msra.mxu0 %v2801
  %2925 = vmatpush.bf16.msra.mxu0 %v2800
  %2926 = vmatpush.bf16.msra.mxu0 %v2799
  %2927 = vmatpush.bf16.msra.mxu0 %v2798
  %2928 = vmatpush.bf16.msra.mxu0 %v2797
  %2929 = vmatpush.bf16.msra.mxu0 %v2796
  %2930 = vmatpush.bf16.msra.mxu0 %v2795
  %2931 = vmatmul.bf16.gmra.mxu0 %v2507
  %v2932 = vpop.f32.mrf.mxu0
  %v2933 = vadd.f32 0.0, %v2932
  %v2934 = vpop.f32.mrf.mxu0
  %v2935 = vadd.f32 0.0, %v2934
  %2936 = vmatmul.bf16.gmra.mxu0 %v2515
  %v2937 = vpop.f32.mrf.mxu0
  %v2938 = vadd.f32 0.0, %v2937
  %v2939 = vpop.f32.mrf.mxu0
  %v2940 = vadd.f32 0.0, %v2939
  %2941 = vdwg.mxu0
  %2942 = vmatpush.bf16.msra.mxu0 %v2810
  %2943 = vmatpush.bf16.msra.mxu0 %v2809
  %2944 = vmatpush.bf16.msra.mxu0 %v2808
  %2945 = vmatpush.bf16.msra.mxu0 %v2807
  %2946 = vmatpush.bf16.msra.mxu0 %v2806
  %2947 = vmatpush.bf16.msra.mxu0 %v2805
  %2948 = vmatpush.bf16.msra.mxu0 %v2804
  %2949 = vmatpush.bf16.msra.mxu0 %v2803
  %2950 = vmatmul.bf16.gmra.mxu0 %v2508
  %v2951 = vpop.f32.mrf.mxu0
  %v2952 = vadd.f32 %v2933, %v2951
  %v2953 = vpop.f32.mrf.mxu0
  %v2954 = vadd.f32 %v2935, %v2953
  %2955 = vmatmul.bf16.gmra.mxu0 %v2516
  %v2956 = vpop.f32.mrf.mxu0
  %v2957 = vadd.f32 %v2938, %v2956
  %v2958 = vpop.f32.mrf.mxu0
  %v2959 = vadd.f32 %v2940, %v2958
  %2960 = vdwg.mxu0
  %2961 = vmatpush.bf16.msra.mxu0 %v2818
  %2962 = vmatpush.bf16.msra.mxu0 %v2817
  %2963 = vmatpush.bf16.msra.mxu0 %v2816
  %2964 = vmatpush.bf16.msra.mxu0 %v2815
  %2965 = vmatpush.bf16.msra.mxu0 %v2814
  %2966 = vmatpush.bf16.msra.mxu0 %v2813
  %2967 = vmatpush.bf16.msra.mxu0 %v2812
  %2968 = vmatpush.bf16.msra.mxu0 %v2811
  %2969 = vmatmul.bf16.gmra.mxu0 %v2509
  %v2970 = vpop.f32.mrf.mxu0
  %v2971 = vadd.f32 %v2952, %v2970
  %v2972 = vpop.f32.mrf.mxu0
  %v2973 = vadd.f32 %v2954, %v2972
  %2974 = vmatmul.bf16.gmra.mxu0 %v2517
  %v2975 = vpop.f32.mrf.mxu0
  %v2976 = vadd.f32 %v2957, %v2975
  %v2977 = vpop.f32.mrf.mxu0
  %v2978 = vadd.f32 %v2959, %v2977
  %2979 = vdwg.mxu0
  %2980 = vmatpush.bf16.msra.mxu0 %v2826
  %2981 = vmatpush.bf16.msra.mxu0 %v2825
  %2982 = vmatpush.bf16.msra.mxu0 %v2824
  %2983 = vmatpush.bf16.msra.mxu0 %v2823
  %2984 = vmatpush.bf16.msra.mxu0 %v2822
  %2985 = vmatpush.bf16.msra.mxu0 %v2821
  %2986 = vmatpush.bf16.msra.mxu0 %v2820
  %2987 = vmatpush.bf16.msra.mxu0 %v2819
  %2988 = vmatmul.bf16.gmra.mxu0 %v2510
  %v2989 = vpop.f32.mrf.mxu0
  %v2990 = vadd.f32 %v2971, %v2989
  %v2991 = vpop.f32.mrf.mxu0
  %v2992 = vadd.f32 %v2973, %v2991
  %2993 = vmatmul.bf16.gmra.mxu0 %v2518
  %v2994 = vpop.f32.mrf.mxu0
  %v2995 = vadd.f32 %v2976, %v2994
  %v2996 = vpop.f32.mrf.mxu0
  %v2997 = vadd.f32 %v2978, %v2996
  %2998 = vdwg.mxu0
  %2999 = vmatpush.bf16.msra.mxu0 %v2834
  %3000 = vmatpush.bf16.msra.mxu0 %v2833
  %3001 = vmatpush.bf16.msra.mxu0 %v2832
  %3002 = vmatpush.bf16.msra.mxu0 %v2831
  %3003 = vmatpush.bf16.msra.mxu0 %v2830
  %3004 = vmatpush.bf16.msra.mxu0 %v2829
  %3005 = vmatpush.bf16.msra.mxu0 %v2828
  %3006 = vmatpush.bf16.msra.mxu0 %v2827
  %3007 = vmatmul.bf16.gmra.mxu0 %v2511
  %v3008 = vpop.f32.mrf.mxu0
  %v3009 = vadd.f32 %v2990, %v3008
  %v3010 = vpop.f32.mrf.mxu0
  %v3011 = vadd.f32 %v2992, %v3010
  %3012 = vmatmul.bf16.gmra.mxu0 %v2519
  %v3013 = vpop.f32.mrf.mxu0
  %v3014 = vadd.f32 %v2995, %v3013
  %v3015 = vpop.f32.mrf.mxu0
  %v3016 = vadd.f32 %v2997, %v3015
  %3017 = vdwg.mxu0
  %3018 = vmatpush.bf16.msra.mxu0 %v2842
  %3019 = vmatpush.bf16.msra.mxu0 %v2841
  %3020 = vmatpush.bf16.msra.mxu0 %v2840
  %3021 = vmatpush.bf16.msra.mxu0 %v2839
  %3022 = vmatpush.bf16.msra.mxu0 %v2838
  %3023 = vmatpush.bf16.msra.mxu0 %v2837
  %3024 = vmatpush.bf16.msra.mxu0 %v2836
  %3025 = vmatpush.bf16.msra.mxu0 %v2835
  %3026 = vmatmul.bf16.gmra.mxu0 %v2512
  %v3027 = vpop.f32.mrf.mxu0
  %v3028 = vadd.f32 %v3009, %v3027
  %v3029 = vpop.f32.mrf.mxu0
  %v3030 = vadd.f32 %v3011, %v3029
  %3031 = vmatmul.bf16.gmra.mxu0 %v2520
  %v3032 = vpop.f32.mrf.mxu0
  %v3033 = vadd.f32 %v3014, %v3032
  %v3034 = vpop.f32.mrf.mxu0
  %v3035 = vadd.f32 %v3016, %v3034
  %3036 = vdwg.mxu0
  %3037 = vmatpush.bf16.msra.mxu0 %v2850
  %3038 = vmatpush.bf16.msra.mxu0 %v2849
  %3039 = vmatpush.bf16.msra.mxu0 %v2848
  %3040 = vmatpush.bf16.msra.mxu0 %v2847
  %3041 = vmatpush.bf16.msra.mxu0 %v2846
  %3042 = vmatpush.bf16.msra.mxu0 %v2845
  %3043 = vmatpush.bf16.msra.mxu0 %v2844
  %3044 = vmatpush.bf16.msra.mxu0 %v2843
  %3045 = vmatmul.bf16.gmra.mxu0 %v2513
  %v3046 = vpop.f32.mrf.mxu0
  %v3047 = vadd.f32 %v3028, %v3046
  %v3048 = vpop.f32.mrf.mxu0
  %v3049 = vadd.f32 %v3030, %v3048
  %3050 = vmatmul.bf16.gmra.mxu0 %v2521
  %v3051 = vpop.f32.mrf.mxu0
  %v3052 = vadd.f32 %v3033, %v3051
  %v3053 = vpop.f32.mrf.mxu0
  %v3054 = vadd.f32 %v3035, %v3053
  %3055 = vdwg.mxu0
  %3056 = vmatpush.bf16.msra.mxu0 %v2858
  %3057 = vmatpush.bf16.msra.mxu0 %v2857
  %3058 = vmatpush.bf16.msra.mxu0 %v2856
  %3059 = vmatpush.bf16.msra.mxu0 %v2855
  %3060 = vmatpush.bf16.msra.mxu0 %v2854
  %3061 = vmatpush.bf16.msra.mxu0 %v2853
  %3062 = vmatpush.bf16.msra.mxu0 %v2852
  %3063 = vmatpush.bf16.msra.mxu0 %v2851
  %3064 = vmatmul.bf16.gmra.mxu0 %v2514
  %v3065 = vpop.f32.mrf.mxu0
  %v3066 = vadd.f32 %v3047, %v3065
  %v3067 = vpop.f32.mrf.mxu0
  %v3068 = vadd.f32 %v3049, %v3067
  %3069 = vmatmul.bf16.gmra.mxu0 %v2522
  %v3070 = vpop.f32.mrf.mxu0
  %v3071 = vadd.f32 %v3052, %v3070
  %v3072 = vpop.f32.mrf.mxu0
  %v3073 = vadd.f32 %v3054, %v3072
  %3074 = vdwg.mxu0
  %v3075 = vadd.f32 %v786, %v788
  %v3076 = vadd.f32 %v3075, %v791
  %v3077 = vadd.f32 %v3076, %v793
  %v3078 = vrot.slane %v3077, 4
  %v3079 = vadd.f32 %v3077, %v3078
  %v3080 = vrot.slane %v3079, 2
  %v3081 = vadd.f32 %v3079, %v3080
  %v3082 = vrot.slane %v3081, 1
  %v3083 = vadd.f32 %v3081, %v3082
  %v3084 = vadd.f32 %v3083, 0.0
  %v3085 = vmul.f32 %v786, %v786
  %v3086 = vmul.f32 %v788, %v788
  %v3087 = vmul.f32 %v791, %v791
  %v3088 = vmul.f32 %v793, %v793
  %v3089 = vadd.f32 %v3085, %v3086
  %v3090 = vadd.f32 %v3089, %v3087
  %v3091 = vadd.f32 %v3090, %v3088
  %v3092 = vrot.slane %v3091, 4
  %v3093 = vadd.f32 %v3091, %v3092
  %v3094 = vrot.slane %v3093, 2
  %v3095 = vadd.f32 %v3093, %v3094
  %v3096 = vrot.slane %v3095, 1
  %v3097 = vadd.f32 %v3095, %v3096
  %v3098 = vadd.f32 %v3097, 0.0
  %v3099 = vadd.f32 %v1546, %v1548
  %v3100 = vadd.f32 %v3099, %v1551
  %v3101 = vadd.f32 %v3100, %v1553
  %v3102 = vrot.slane %v3101, 4
  %v3103 = vadd.f32 %v3101, %v3102
  %v3104 = vrot.slane %v3103, 2
  %v3105 = vadd.f32 %v3103, %v3104
  %v3106 = vrot.slane %v3105, 1
  %v3107 = vadd.f32 %v3105, %v3106
  %v3108 = vadd.f32 %v3084, %v3107
  %v3109 = vmul.f32 %v1546, %v1546
  %v3110 = vmul.f32 %v1548, %v1548
  %v3111 = vmul.f32 %v1551, %v1551
  %v3112 = vmul.f32 %v1553, %v1553
  %v3113 = vadd.f32 %v3109, %v3110
  %v3114 = vadd.f32 %v3113, %v3111
  %v3115 = vadd.f32 %v3114, %v3112
  %v3116 = vrot.slane %v3115, 4
  %v3117 = vadd.f32 %v3115, %v3116
  %v3118 = vrot.slane %v3117, 2
  %v3119 = vadd.f32 %v3117, %v3118
  %v3120 = vrot.slane %v3119, 1
  %v3121 = vadd.f32 %v3119, %v3120
  %v3122 = vadd.f32 %v3098, %v3121
  %v3123 = vadd.f32 %v2306, %v2308
  %v3124 = vadd.f32 %v3123, %v2311
  %v3125 = vadd.f32 %v3124, %v2313
  %v3126 = vrot.slane %v3125, 4
  %v3127 = vadd.f32 %v3125, %v3126
  %v3128 = vrot.slane %v3127, 2
  %v3129 = vadd.f32 %v3127, %v3128
  %v3130 = vrot.slane %v3129, 1
  %v3131 = vadd.f32 %v3129, %v3130
  %v3132 = vadd.f32 %v3108, %v3131
  %v3133 = vmul.f32 %v2306, %v2306
  %v3134 = vmul.f32 %v2308, %v2308
  %v3135 = vmul.f32 %v2311, %v2311
  %v3136 = vmul.f32 %v2313, %v2313
  %v3137 = vadd.f32 %v3133, %v3134
  %v3138 = vadd.f32 %v3137, %v3135
  %v3139 = vadd.f32 %v3138, %v3136
  %v3140 = vrot.slane %v3139, 4
  %v3141 = vadd.f32 %v3139, %v3140
  %v3142 = vrot.slane %v3141, 2
  %v3143 = vadd.f32 %v3141, %v3142
  %v3144 = vrot.slane %v3143, 1
  %v3145 = vadd.f32 %v3143, %v3144
  %v3146 = vadd.f32 %v3122, %v3145
  %v3147 = vadd.f32 %v3066, %v3068
  %v3148 = vadd.f32 %v3147, %v3071
  %v3149 = vadd.f32 %v3148, %v3073
  %v3150 = vrot.slane %v3149, 4
  %v3151 = vadd.f32 %v3149, %v3150
  %v3152 = vrot.slane %v3151, 2
  %v3153 = vadd.f32 %v3151, %v3152
  %v3154 = vrot.slane %v3153, 1
  %v3155 = vadd.f32 %v3153, %v3154
  %v3156 = vadd.f32 %v3132, %v3155
  %v3157 = vmul.f32 %v3066, %v3066
  %v3158 = vmul.f32 %v3068, %v3068
  %v3159 = vmul.f32 %v3071, %v3071
  %v3160 = vmul.f32 %v3073, %v3073
  %v3161 = vadd.f32 %v3157, %v3158
  %v3162 = vadd.f32 %v3161, %v3159
  %v3163 = vadd.f32 %v3162, %v3160
  %v3164 = vrot.slane %v3163, 4
  %v3165 = vadd.f32 %v3163, %v3164
  %v3166 = vrot.slane %v3165, 2
  %v3167 = vadd.f32 %v3165, %v3166
  %v3168 = vrot.slane %v3167, 1
  %v3169 = vadd.f32 %v3167, %v3168
  %v3170 = vadd.f32 %v3146, %v3169
  %v3171 = vmul.f32 %v3156, 0.0078125
  %v3172 = vmul.f32 %v3170, 0.0078125
  %v3173 = vmul.f32 %v3171, %v3171
  %v3174 = vsub.f32 %v3172, %v3173
  %v3175 = vmax.f32 %v3174, 0.0
  %v3176 = vadd.f32 %v3175, 1e-05
  %v3177 = vrsqrt.pop %v3176
  %v3178 = vmul.f32 %v3177, %v3176
  %v3179 = vmul.f32 %v3178, %v3177
  %v3180 = vmul.f32 0.5, %v3179
  %v3181 = vsub.f32 1.5, %v3180
  %v3182 = vmul.f32 %v3177, %v3181
  %vm3183 = vweird.f32 %v3176
  %vm3184 = vweird.f32 %v3177
  %vm3185 = vmor %vm3183, %vm3184
  %v3186 = vsel %vm3185, %v3177, %v3182
  %v3187 = vld [vmem:[%s8] sm:$0x1]
  %v3188 = vmul.f32 %v3186, %v3187
  %v3189 = vld [vmem:[%s9] sm:$0x1]
  %v3190 = vmul.f32 %v3171, %v3188
  %v3191 = vsub.f32 %v3189, %v3190
  %v3192 = vperm.slane %v3188, 0
  %v3193 = vmul.f32 %v786, %v3192
  %v3194 = vmul.f32 %v788, %v3192
  %v3195 = vmul.f32 %v791, %v3192
  %v3196 = vmul.f32 %v793, %v3192
  %v3198 = vperm.slane %v3191, 0
  %v3200 = vadd.f32 %v3193, %v3198
  %v3201 = vadd.f32 %v3194, %v3198
  %v3202 = vadd.f32 %v3195, %v3198
  %v3203 = vadd.f32 %v3196, %v3198
  %v3204 = vmax.f32 %v3200, 0.0
  %v3205 = vmax.f32 %v3201, 0.0
  %v3206 = vmax.f32 %v3202, 0.0
  %v3207 = vmax.f32 %v3203, 0.0
  %v3208 = vmul.f32 %v1546, %v3192
  %v3209 = vmul.f32 %v1548, %v3192
  %v3210 = vmul.f32 %v1551, %v3192
  %v3211 = vmul.f32 %v1553, %v3192
  %v3212 = vadd.f32 %v3208, %v3198
  %v3213 = vadd.f32 %v3209, %v3198
  %v3214 = vadd.f32 %v3210, %v3198
  %v3215 = vadd.f32 %v3211, %v3198
  %v3216 = vmax.f32 %v3212, 0.0
  %v3217 = vmax.f32 %v3213, 0.0
  %v3218 = vmax.f32 %v3214, 0.0
  %v3219 = vmax.f32 %v3215, 0.0
  %v3220 = vmul.f32 %v2306, %v3192
  %v3221 = vmul.f32 %v2308, %v3192
  %v3222 = vmul.f32 %v2311, %v3192
  %v3223 = vmul.f32 %v2313, %v3192
  %v3224 = vadd.f32 %v3220, %v3198
  %v3225 = vadd.f32 %v3221, %v3198
  %v3226 = vadd.f32 %v3222, %v3198
  %v3227 = vadd.f32 %v3223, %v3198
  %v3228 = vmax.f32 %v3224, 0.0
  %v3229 = vmax.f32 %v3225, 0.0
  %v3230 = vmax.f32 %v3226, 0.0
  %v3231 = vmax.f32 %v3227, 0.0
  %v3232 = vmul.f32 %v3066, %v3192
  %v3233 = vmul.f32 %v3068, %v3192
  %v3234 = vmul.f32 %v3071, %v3192
  %v3235 = vmul.f32 %v3073, %v3192
  %v3236 = vadd.f32 %v3232, %v3198
  %v3237 = vadd.f32 %v3233, %v3198
  %v3238 = vadd.f32 %v3234, %v3198
  %v3239 = vadd.f32 %v3235, %v3198
  %v3240 = vmax.f32 %v3236, 0.0
  %v3241 = vmax.f32 %v3237, 0.0
  %v3242 = vmax.f32 %v3238, 0.0
  %v3243 = vmax.f32 %v3239, 0.0
  %v3244 = vpack.c.bf16 %v3216, %v3204
  %v3245 = vpack.c.bf16 %v3240, %v3228
  %v3246 = vpack.c.bf16 %v3217, %v3205
  %v3247 = vpack.c.bf16 %v3241, %v3229
  %v3248 = vpack.c.bf16 %v3218, %v3206
  %v3249 = vpack.c.bf16 %v3242, %v3230
  %v3250 = vpack.c.bf16 %v3219, %v3207
  %v3251 = vpack.c.bf16 %v3243, %v3231
  %3252 = vst [vmem:[%s10] sm:$0xff] %v3244
  %3253 = vst [vmem:[%s10 + $0x8] sm:$0xff] %v3245
  %3254 = vst [vmem:[%s10 + $0x10] sm:$0xff] %v3246
  %3255 = vst [vmem:[%s10 + $0x18] sm:$0xff] %v3247
  %3256 = vst [vmem:[%s10 + $0x20] sm:$0xff] %v3248
  %3257 = vst [vmem:[%s10 + $0x28] sm:$0xff] %v3249
  %3258 = vst [vmem:[%s10 + $0x30] sm:$0xff] %v3250
  %3259 = vst [vmem:[%s10 + $0x38] sm:$0xff] %v3251
  // Predicated region
  $region42: #{generator_forward.5} parent=0 // pred_check
    _
  $region43: #{generator_forward.5} parent=0 // pred_check_branch
    %3261 = sbr.rel (0) target = $region45
  $region44: #{generator_forward.5} parent=0 // pred_region
    _
  $region45: #{generator_forward.5} parent=0 // pred_fallthru
    _
  // Predicated region
  $region46: #{generator_forward.5} parent=0 // pred_check
    _
  $region47: #{generator_forward.5} parent=0 // pred_check_branch
    %3263 = sbr.rel (0) target = $region49
  $region48: #{generator_forward.5} parent=0 // pred_region
    _
  $region49: #{generator_forward.5} parent=0 // pred_fallthru
    _

// kernel: generator_forward.6
$region0: #{generator_forward.6}
  #allocation0 [shape = 'u32[]', space=smem, size = 0x4, offset = 0x4, fixed_abs, tag = 'smem constant byte address 0x4 - core index']
  #allocation1 [shape = 'u32[72,128]{1,0:T(1,128)}', space=vmem, size = 0x9000, scoped, tag = 'internal scratch']
  %s0 = inlined_call_operand.vmem [shape: bf16[128,512], index: 0, kind: input, shape index: {}]
  %s1 = inlined_call_operand.vmem [shape: bf16[128,512], index: 1, kind: input, shape index: {}]
  %s2 = inlined_call_operand.vmem [shape: bf16[128,512], index: 2, kind: input, shape index: {}]
  %s3 = inlined_call_operand.vmem [shape: bf16[128,512], index: 3, kind: input, shape index: {}]
  %s4 = inlined_call_operand.vmem [shape: bf16[512,64], index: 4, kind: input, shape index: {}]
  %s5 = inlined_call_operand.vmem [shape: bf16[512,64], index: 5, kind: input, shape index: {}]
  %s6 = inlined_call_operand.vmem [shape: bf16[512,64], index: 6, kind: input, shape index: {}]
  %s7 = inlined_call_operand.vmem [shape: bf16[512,64], index: 7, kind: input, shape index: {}]
  %s8 = inlined_call_operand.vmem [shape: f32[1,64], index: 8, kind: input, shape index: {}]
  %s9 = inlined_call_operand.vmem [shape: f32[1,64], index: 9, kind: input, shape index: {}]
  %s10 = inlined_call_operand.vmem [shape: bf16[128,256], index: 10, kind: output, shape index: {}]
  %s11 = sld [smem:[#allocation0]]
  $region50: #{generator_forward.6} parent=0
    _
  %s13 = ssub.s32 1, %s11
  %s14 = scalar_select 0, %s13, %s11
  // Predicated region
  $region2: #{generator_forward.6} parent=0 // pred_check
    _
  $region3: #{generator_forward.6} parent=0 // pred_check_branch
    %16 = sbr.rel (0) target = $region5
  $region4: #{generator_forward.6} parent=0 // pred_region
    _
  $region5: #{generator_forward.6} parent=0 // pred_fallthru
    _
  // Predicated region
  $region6: #{generator_forward.6} parent=0 // pred_check
    _
  $region7: #{generator_forward.6} parent=0 // pred_check_branch
    %18 = sbr.rel (0) target = $region9
  $region8: #{generator_forward.6} parent=0 // pred_region
    _
  $region9: #{generator_forward.6} parent=0 // pred_fallthru
    _
  // Predicated region
  $region10: #{generator_forward.6} parent=0 // pred_check
    _
  $region11: #{generator_forward.6} parent=0 // pred_check_branch
    %20 = sbr.rel (0) target = $region13
  $region12: #{generator_forward.6} parent=0 // pred_region
    _
  $region13: #{generator_forward.6} parent=0 // pred_fallthru
    _
  // Predicated region
  $region14: #{generator_forward.6} parent=0 // pred_check
    _
  $region15: #{generator_forward.6} parent=0 // pred_check_branch
    %22 = sbr.rel (0) target = $region17
  $region16: #{generator_forward.6} parent=0 // pred_region
    _
  $region17: #{generator_forward.6} parent=0 // pred_fallthru
    _
  // Predicated region
  $region18: #{generator_forward.6} parent=0 // pred_check
    _
  $region19: #{generator_forward.6} parent=0 // pred_check_branch
    %24 = sbr.rel (0) target = $region21
  $region20: #{generator_forward.6} parent=0 // pred_region
    _
  $region21: #{generator_forward.6} parent=0 // pred_fallthru
    _
  // Predicated region
  $region22: #{generator_forward.6} parent=0 // pred_check
    _
  $region23: #{generator_forward.6} parent=0 // pred_check_branch
    %26 = sbr.rel (0) target = $region25
  $region24: #{generator_forward.6} parent=0 // pred_region
    _
  $region25: #{generator_forward.6} parent=0 // pred_fallthru
    _
  // Predicated region
  $region26: #{generator_forward.6} parent=0 // pred_check
    _
  $region27: #{generator_forward.6} parent=0 // pred_check_branch
    %28 = sbr.rel (0) target = $region29
  $region28: #{generator_forward.6} parent=0 // pred_region
    _
  $region29: #{generator_forward.6} parent=0 // pred_fallthru
    _
  // Predicated region
  $region30: #{generator_forward.6} parent=0 // pred_check
    _
  $region31: #{generator_forward.6} parent=0 // pred_check_branch
    %30 = sbr.rel (0) target = $region33
  $region32: #{generator_forward.6} parent=0 // pred_region
    _
  $region33: #{generator_forward.6} parent=0 // pred_fallthru
    _
  // Predicated region
  $region34: #{generator_forward.6} parent=0 // pred_check
    _
  $region35: #{generator_forward.6} parent=0 // pred_check_branch
    %32 = sbr.rel (0) target = $region37
  $region36: #{generator_forward.6} parent=0 // pred_region
    _
  $region37: #{generator_forward.6} parent=0 // pred_fallthru
    _
  // Predicated region
  $region38: #{generator_forward.6} parent=0 // pred_check
    _
  $region39: #{generator_forward.6} parent=0 // pred_check_branch
    %34 = sbr.rel (0) target = $region41
  $region40: #{generator_forward.6} parent=0 // pred_region
    _
  $region41: #{generator_forward.6} parent=0 // pred_fallthru
    _
  %v35 = vld [vmem:[%s0] sm:$0xff]
  %v36 = vld [vmem:[%s0 + $0x8] sm:$0xff]
  %v37 = vld [vmem:[%s0 + $0x10] sm:$0xff]
  %v38 = vld [vmem:[%s0 + $0x18] sm:$0xff]
  %v39 = vld [vmem:[%s0 + $0x20] sm:$0xff]
  %v40 = vld [vmem:[%s0 + $0x28] sm:$0xff]
  %v41 = vld [vmem:[%s0 + $0x30] sm:$0xff]
  %v42 = vld [vmem:[%s0 + $0x38] sm:$0xff]
  %v43 = vld [vmem:[%s0 + $0x40] sm:$0xff]
  %v44 = vld [vmem:[%s0 + $0x48] sm:$0xff]
  %v45 = vld [vmem:[%s0 + $0x50] sm:$0xff]
  %v46 = vld [vmem:[%s0 + $0x58] sm:$0xff]
  %v47 = vld [vmem:[%s0 + $0x60] sm:$0xff]
  %v48 = vld [vmem:[%s0 + $0x68] sm:$0xff]
  %v49 = vld [vmem:[%s0 + $0x70] sm:$0xff]
  %v50 = vld [vmem:[%s0 + $0x78] sm:$0xff]
  %v51 = vld [vmem:[%s0 + $0x80] sm:$0xff]
  %v52 = vld [vmem:[%s0 + $0x88] sm:$0xff]
  %v53 = vld [vmem:[%s0 + $0x90] sm:$0xff]
  %v54 = vld [vmem:[%s0 + $0x98] sm:$0xff]
  %v55 = vld [vmem:[%s0 + $0xa0] sm:$0xff]
  %v56 = vld [vmem:[%s0 + $0xa8] sm:$0xff]
  %v57 = vld [vmem:[%s0 + $0xb0] sm:$0xff]
  %v58 = vld [vmem:[%s0 + $0xb8] sm:$0xff]
  %v59 = vld [vmem:[%s0 + $0xc0] sm:$0xff]
  %v60 = vld [vmem:[%s0 + $0xc8] sm:$0xff]
  %v61 = vld [vmem:[%s0 + $0xd0] sm:$0xff]
  %v62 = vld [vmem:[%s0 + $0xd8] sm:$0xff]
  %v63 = vld [vmem:[%s0 + $0xe0] sm:$0xff]
  %v64 = vld [vmem:[%s0 + $0xe8] sm:$0xff]
  %v65 = vld [vmem:[%s0 + $0xf0] sm:$0xff]
  %v66 = vld [vmem:[%s0 + $0xf8] sm:$0xff]
  %v67 = vld [vmem:[%s4] sm:$0xf]
  %v68 = vld [vmem:[%s4 + $0x4] sm:$0xf]
  %v69 = vld [vmem:[%s4 + $0x8] sm:$0xf]
  %v70 = vld [vmem:[%s4 + $0xc] sm:$0xf]
  %v71 = vld [vmem:[%s4 + $0x10] sm:$0xf]
  %v72 = vld [vmem:[%s4 + $0x14] sm:$0xf]
  %v73 = vld [vmem:[%s4 + $0x18] sm:$0xf]
  %v74 = vld [vmem:[%s4 + $0x1c] sm:$0xf]
  %v75 = vld [vmem:[%s4 + $0x20] sm:$0xf]
  %v76 = vld [vmem:[%s4 + $0x24] sm:$0xf]
  %v77 = vld [vmem:[%s4 + $0x28] sm:$0xf]
  %v78 = vld [vmem:[%s4 + $0x2c] sm:$0xf]
  %v79 = vld [vmem:[%s4 + $0x30] sm:$0xf]
  %v80 = vld [vmem:[%s4 + $0x34] sm:$0xf]
  %v81 = vld [vmem:[%s4 + $0x38] sm:$0xf]
  %v82 = vld [vmem:[%s4 + $0x3c] sm:$0xf]
  %v83 = vld [vmem:[%s4 + $0x40] sm:$0xf]
  %v84 = vld [vmem:[%s4 + $0x44] sm:$0xf]
  %v85 = vld [vmem:[%s4 + $0x48] sm:$0xf]
  %v86 = vld [vmem:[%s4 + $0x4c] sm:$0xf]
  %v87 = vld [vmem:[%s4 + $0x50] sm:$0xf]
  %v88 = vld [vmem:[%s4 + $0x54] sm:$0xf]
  %v89 = vld [vmem:[%s4 + $0x58] sm:$0xf]
  %v90 = vld [vmem:[%s4 + $0x5c] sm:$0xf]
  %v91 = vld [vmem:[%s4 + $0x60] sm:$0xf]
  %v92 = vld [vmem:[%s4 + $0x64] sm:$0xf]
  %v93 = vld [vmem:[%s4 + $0x68] sm:$0xf]
  %v94 = vld [vmem:[%s4 + $0x6c] sm:$0xf]
  %v95 = vld [vmem:[%s4 + $0x70] sm:$0xf]
  %v96 = vld [vmem:[%s4 + $0x74] sm:$0xf]
  %v97 = vld [vmem:[%s4 + $0x78] sm:$0xf]
  %v98 = vld [vmem:[%s4 + $0x7c] sm:$0xf]
  %v99 = vld [vmem:[%s4 + $0x80] sm:$0xf]
  %v100 = vld [vmem:[%s4 + $0x84] sm:$0xf]
  %v101 = vld [vmem:[%s4 + $0x88] sm:$0xf]
  %v102 = vld [vmem:[%s4 + $0x8c] sm:$0xf]
  %v103 = vld [vmem:[%s4 + $0x90] sm:$0xf]
  %v104 = vld [vmem:[%s4 + $0x94] sm:$0xf]
  %v105 = vld [vmem:[%s4 + $0x98] sm:$0xf]
  %v106 = vld [vmem:[%s4 + $0x9c] sm:$0xf]
  %v107 = vld [vmem:[%s4 + $0xa0] sm:$0xf]
  %v108 = vld [vmem:[%s4 + $0xa4] sm:$0xf]
  %v109 = vld [vmem:[%s4 + $0xa8] sm:$0xf]
  %v110 = vld [vmem:[%s4 + $0xac] sm:$0xf]
  %v111 = vld [vmem:[%s4 + $0xb0] sm:$0xf]
  %v112 = vld [vmem:[%s4 + $0xb4] sm:$0xf]
  %v113 = vld [vmem:[%s4 + $0xb8] sm:$0xf]
  %v114 = vld [vmem:[%s4 + $0xbc] sm:$0xf]
  %v115 = vld [vmem:[%s4 + $0xc0] sm:$0xf]
  %v116 = vld [vmem:[%s4 + $0xc4] sm:$0xf]
  %v117 = vld [vmem:[%s4 + $0xc8] sm:$0xf]
  %v118 = vld [vmem:[%s4 + $0xcc] sm:$0xf]
  %v119 = vld [vmem:[%s4 + $0xd0] sm:$0xf]
  %v120 = vld [vmem:[%s4 + $0xd4] sm:$0xf]
  %v121 = vld [vmem:[%s4 + $0xd8] sm:$0xf]
  %v122 = vld [vmem:[%s4 + $0xdc] sm:$0xf]
  %v123 = vld [vmem:[%s4 + $0xe0] sm:$0xf]
  %v124 = vld [vmem:[%s4 + $0xe4] sm:$0xf]
  %v125 = vld [vmem:[%s4 + $0xe8] sm:$0xf]
  %v126 = vld [vmem:[%s4 + $0xec] sm:$0xf]
  %v127 = vld [vmem:[%s4 + $0xf0] sm:$0xf]
  %v128 = vld [vmem:[%s4 + $0xf4] sm:$0xf]
  %v129 = vld [vmem:[%s4 + $0xf8] sm:$0xf]
  %v130 = vld [vmem:[%s4 + $0xfc] sm:$0xf]
  %v163 = vunpack.c.l.b16 %v35
  %v164 = vunpack.c.h.b16 %v35
  %v165 = vunpack.c.l.b16 %v36
  %v166 = vunpack.c.h.b16 %v36
  %v167 = vunpack.c.l.b16 %v37
  %v168 = vunpack.c.h.b16 %v37
  %v169 = vunpack.c.l.b16 %v38
  %v170 = vunpack.c.h.b16 %v38
  %v171 = vunpack.c.l.b16 %v39
  %v172 = vunpack.c.h.b16 %v39
  %v173 = vunpack.c.l.b16 %v40
  %v174 = vunpack.c.h.b16 %v40
  %v175 = vunpack.c.l.b16 %v41
  %v176 = vunpack.c.h.b16 %v41
  %v177 = vunpack.c.l.b16 %v42
  %v178 = vunpack.c.h.b16 %v42
  %v179 = vunpack.c.l.b16 %v43
  %v180 = vunpack.c.h.b16 %v43
  %v181 = vunpack.c.l.b16 %v44
  %v182 = vunpack.c.h.b16 %v44
  %v183 = vunpack.c.l.b16 %v45
  %v184 = vunpack.c.h.b16 %v45
  %v185 = vunpack.c.l.b16 %v46
  %v186 = vunpack.c.h.b16 %v46
  %v187 = vunpack.c.l.b16 %v47
  %v188 = vunpack.c.h.b16 %v47
  %v189 = vunpack.c.l.b16 %v48
  %v190 = vunpack.c.h.b16 %v48
  %v191 = vunpack.c.l.b16 %v49
  %v192 = vunpack.c.h.b16 %v49
  %v193 = vunpack.c.l.b16 %v50
  %v194 = vunpack.c.h.b16 %v50
  %v195 = vunpack.c.l.b16 %v51
  %v196 = vunpack.c.h.b16 %v51
  %v197 = vunpack.c.l.b16 %v52
  %v198 = vunpack.c.h.b16 %v52
  %v199 = vunpack.c.l.b16 %v53
  %v200 = vunpack.c.h.b16 %v53
  %v201 = vunpack.c.l.b16 %v54
  %v202 = vunpack.c.h.b16 %v54
  %v203 = vunpack.c.l.b16 %v55
  %v204 = vunpack.c.h.b16 %v55
  %v205 = vunpack.c.l.b16 %v56
  %v206 = vunpack.c.h.b16 %v56
  %v207 = vunpack.c.l.b16 %v57
  %v208 = vunpack.c.h.b16 %v57
  %v209 = vunpack.c.l.b16 %v58
  %v210 = vunpack.c.h.b16 %v58
  %v211 = vunpack.c.l.b16 %v59
  %v212 = vunpack.c.h.b16 %v59
  %v213 = vunpack.c.l.b16 %v60
  %v214 = vunpack.c.h.b16 %v60
  %v215 = vunpack.c.l.b16 %v61
  %v216 = vunpack.c.h.b16 %v61
  %v217 = vunpack.c.l.b16 %v62
  %v218 = vunpack.c.h.b16 %v62
  %v219 = vunpack.c.l.b16 %v63
  %v220 = vunpack.c.h.b16 %v63
  %v221 = vunpack.c.l.b16 %v64
  %v222 = vunpack.c.h.b16 %v64
  %v223 = vunpack.c.l.b16 %v65
  %v224 = vunpack.c.h.b16 %v65
  %v225 = vunpack.c.l.b16 %v66
  %v226 = vunpack.c.h.b16 %v66
  %v227 = vpack.c.b16 %v167, %v163
  %v228 = vpack.c.b16 %v168, %v164
  %v229 = vpack.c.b16 %v169, %v165
  %v230 = vpack.c.b16 %v170, %v166
  %v231 = vpack.c.b16 %v175, %v171
  %v232 = vpack.c.b16 %v176, %v172
  %v233 = vpack.c.b16 %v177, %v173
  %v234 = vpack.c.b16 %v178, %v174
  %v235 = vpack.c.b16 %v183, %v179
  %v236 = vpack.c.b16 %v184, %v180
  %v237 = vpack.c.b16 %v185, %v181
  %v238 = vpack.c.b16 %v186, %v182
  %v239 = vpack.c.b16 %v191, %v187
  %v240 = vpack.c.b16 %v192, %v188
  %v241 = vpack.c.b16 %v193, %v189
  %v242 = vpack.c.b16 %v194, %v190
  %v243 = vpack.c.b16 %v199, %v195
  %v244 = vpack.c.b16 %v200, %v196
  %v245 = vpack.c.b16 %v201, %v197
  %v246 = vpack.c.b16 %v202, %v198
  %v247 = vpack.c.b16 %v207, %v203
  %v248 = vpack.c.b16 %v208, %v204
  %v249 = vpack.c.b16 %v209, %v205
  %v250 = vpack.c.b16 %v210, %v206
  %v251 = vpack.c.b16 %v215, %v211
  %v252 = vpack.c.b16 %v216, %v212
  %v253 = vpack.c.b16 %v217, %v213
  %v254 = vpack.c.b16 %v218, %v214
  %v255 = vpack.c.b16 %v223, %v219
  %v256 = vpack.c.b16 %v224, %v220
  %v257 = vpack.c.b16 %v225, %v221
  %v258 = vpack.c.b16 %v226, %v222
  %v355 = vunpack.c.l.b16 %v67
  %v356 = vunpack.c.l.b16 %v68
  %v357 = vunpack.c.l.b16 %v69
  %v358 = vunpack.c.l.b16 %v70
  %v359 = vunpack.c.l.b16 %v71
  %v360 = vunpack.c.l.b16 %v72
  %v361 = vunpack.c.l.b16 %v73
  %v362 = vunpack.c.l.b16 %v74
  %v363 = vunpack.c.l.b16 %v75
  %v364 = vunpack.c.l.b16 %v76
  %v365 = vunpack.c.l.b16 %v77
  %v366 = vunpack.c.l.b16 %v78
  %v367 = vunpack.c.l.b16 %v79
  %v368 = vunpack.c.l.b16 %v80
  %v369 = vunpack.c.l.b16 %v81
  %v370 = vunpack.c.l.b16 %v82
  %v371 = vunpack.c.l.b16 %v83
  %v372 = vunpack.c.l.b16 %v84
  %v373 = vunpack.c.l.b16 %v85
  %v374 = vunpack.c.l.b16 %v86
  %v375 = vunpack.c.l.b16 %v87
  %v376 = vunpack.c.l.b16 %v88
  %v377 = vunpack.c.l.b16 %v89
  %v378 = vunpack.c.l.b16 %v90
  %v379 = vunpack.c.l.b16 %v91
  %v380 = vunpack.c.l.b16 %v92
  %v381 = vunpack.c.l.b16 %v93
  %v382 = vunpack.c.l.b16 %v94
  %v383 = vunpack.c.l.b16 %v95
  %v384 = vunpack.c.l.b16 %v96
  %v385 = vunpack.c.l.b16 %v97
  %v386 = vunpack.c.l.b16 %v98
  %v387 = vunpack.c.l.b16 %v99
  %v388 = vunpack.c.l.b16 %v100
  %v389 = vunpack.c.l.b16 %v101
  %v390 = vunpack.c.l.b16 %v102
  %v391 = vunpack.c.l.b16 %v103
  %v392 = vunpack.c.l.b16 %v104
  %v393 = vunpack.c.l.b16 %v105
  %v394 = vunpack.c.l.b16 %v106
  %v395 = vunpack.c.l.b16 %v107
  %v396 = vunpack.c.l.b16 %v108
  %v397 = vunpack.c.l.b16 %v109
  %v398 = vunpack.c.l.b16 %v110
  %v399 = vunpack.c.l.b16 %v111
  %v400 = vunpack.c.l.b16 %v112
  %v401 = vunpack.c.l.b16 %v113
  %v402 = vunpack.c.l.b16 %v114
  %v403 = vunpack.c.l.b16 %v115
  %v404 = vunpack.c.l.b16 %v116
  %v405 = vunpack.c.l.b16 %v117
  %v406 = vunpack.c.l.b16 %v118
  %v407 = vunpack.c.l.b16 %v119
  %v408 = vunpack.c.l.b16 %v120
  %v409 = vunpack.c.l.b16 %v121
  %v410 = vunpack.c.l.b16 %v122
  %v411 = vunpack.c.l.b16 %v123
  %v412 = vunpack.c.l.b16 %v124
  %v413 = vunpack.c.l.b16 %v125
  %v414 = vunpack.c.l.b16 %v126
  %v415 = vunpack.c.l.b16 %v127
  %v416 = vunpack.c.l.b16 %v128
  %v417 = vunpack.c.l.b16 %v129
  %v418 = vunpack.c.l.b16 %v130
  %v419 = vpack.c.b16 %v356, %v355
  %v420 = vpack.c.b16 %v358, %v357
  %v421 = vpack.c.b16 %v360, %v359
  %v422 = vpack.c.b16 %v362, %v361
  %v423 = vpack.c.b16 %v364, %v363
  %v424 = vpack.c.b16 %v366, %v365
  %v425 = vpack.c.b16 %v368, %v367
  %v426 = vpack.c.b16 %v370, %v369
  %v427 = vpack.c.b16 %v372, %v371
  %v428 = vpack.c.b16 %v374, %v373
  %v429 = vpack.c.b16 %v376, %v375
  %v430 = vpack.c.b16 %v378, %v377
  %v431 = vpack.c.b16 %v380, %v379
  %v432 = vpack.c.b16 %v382, %v381
  %v433 = vpack.c.b16 %v384, %v383
  %v434 = vpack.c.b16 %v386, %v385
  %v435 = vpack.c.b16 %v388, %v387
  %v436 = vpack.c.b16 %v390, %v389
  %v437 = vpack.c.b16 %v392, %v391
  %v438 = vpack.c.b16 %v394, %v393
  %v439 = vpack.c.b16 %v396, %v395
  %v440 = vpack.c.b16 %v398, %v397
  %v441 = vpack.c.b16 %v400, %v399
  %v442 = vpack.c.b16 %v402, %v401
  %v443 = vpack.c.b16 %v404, %v403
  %v444 = vpack.c.b16 %v406, %v405
  %v445 = vpack.c.b16 %v408, %v407
  %v446 = vpack.c.b16 %v410, %v409
  %v447 = vpack.c.b16 %v412, %v411
  %v448 = vpack.c.b16 %v414, %v413
  %v449 = vpack.c.b16 %v416, %v415
  %v450 = vpack.c.b16 %v418, %v417
  %483 = vmatpush.bf16.msra.mxu0 %v426
  %484 = vmatpush.bf16.msra.mxu0 %v425
  %485 = vmatpush.bf16.msra.mxu0 %v424
  %486 = vmatpush.bf16.msra.mxu0 %v423
  %487 = vmatpush.bf16.msra.mxu0 %v422
  %488 = vmatpush.bf16.msra.mxu0 %v421
  %489 = vmatpush.bf16.msra.mxu0 %v420
  %490 = vmatpush.bf16.msra.mxu0 %v419
  %491 = vmatmul.bf16.gmra.mxu0 %v227
  %v492 = vpop.f32.mrf.mxu0
  %v493 = vadd.f32 0.0, %v492
  %v494 = vpop.f32.mrf.mxu0
  %v495 = vadd.f32 0.0, %v494
  %496 = vmatmul.bf16.gmra.mxu0 %v231
  %v497 = vpop.f32.mrf.mxu0
  %v498 = vadd.f32 0.0, %v497
  %v499 = vpop.f32.mrf.mxu0
  %v500 = vadd.f32 0.0, %v499
  %501 = vmatmul.bf16.gmra.mxu0 %v235
  %v502 = vpop.f32.mrf.mxu0
  %v503 = vadd.f32 0.0, %v502
  %v504 = vpop.f32.mrf.mxu0
  %v505 = vadd.f32 0.0, %v504
  %506 = vmatmul.bf16.gmra.mxu0 %v239
  %v507 = vpop.f32.mrf.mxu0
  %v508 = vadd.f32 0.0, %v507
  %v509 = vpop.f32.mrf.mxu0
  %v510 = vadd.f32 0.0, %v509
  %511 = vmatmul.bf16.gmra.mxu0 %v243
  %v512 = vpop.f32.mrf.mxu0
  %v513 = vadd.f32 0.0, %v512
  %v514 = vpop.f32.mrf.mxu0
  %v515 = vadd.f32 0.0, %v514
  %516 = vmatmul.bf16.gmra.mxu0 %v247
  %v517 = vpop.f32.mrf.mxu0
  %v518 = vadd.f32 0.0, %v517
  %v519 = vpop.f32.mrf.mxu0
  %v520 = vadd.f32 0.0, %v519
  %521 = vmatmul.bf16.gmra.mxu0 %v251
  %v522 = vpop.f32.mrf.mxu0
  %v523 = vadd.f32 0.0, %v522
  %v524 = vpop.f32.mrf.mxu0
  %v525 = vadd.f32 0.0, %v524
  %526 = vmatmul.bf16.gmra.mxu0 %v255
  %v527 = vpop.f32.mrf.mxu0
  %v528 = vadd.f32 0.0, %v527
  %v529 = vpop.f32.mrf.mxu0
  %v530 = vadd.f32 0.0, %v529
  %531 = vdwg.mxu0
  %532 = vmatpush.bf16.msra.mxu0 %v434
  %533 = vmatpush.bf16.msra.mxu0 %v433
  %534 = vmatpush.bf16.msra.mxu0 %v432
  %535 = vmatpush.bf16.msra.mxu0 %v431
  %536 = vmatpush.bf16.msra.mxu0 %v430
  %537 = vmatpush.bf16.msra.mxu0 %v429
  %538 = vmatpush.bf16.msra.mxu0 %v428
  %539 = vmatpush.bf16.msra.mxu0 %v427
  %540 = vmatmul.bf16.gmra.mxu0 %v228
  %v541 = vpop.f32.mrf.mxu0
  %v542 = vadd.f32 %v493, %v541
  %v543 = vpop.f32.mrf.mxu0
  %v544 = vadd.f32 %v495, %v543
  %545 = vmatmul.bf16.gmra.mxu0 %v232
  %v546 = vpop.f32.mrf.mxu0
  %v547 = vadd.f32 %v498, %v546
  %v548 = vpop.f32.mrf.mxu0
  %v549 = vadd.f32 %v500, %v548
  %550 = vmatmul.bf16.gmra.mxu0 %v236
  %v551 = vpop.f32.mrf.mxu0
  %v552 = vadd.f32 %v503, %v551
  %v553 = vpop.f32.mrf.mxu0
  %v554 = vadd.f32 %v505, %v553
  %555 = vmatmul.bf16.gmra.mxu0 %v240
  %v556 = vpop.f32.mrf.mxu0
  %v557 = vadd.f32 %v508, %v556
  %v558 = vpop.f32.mrf.mxu0
  %v559 = vadd.f32 %v510, %v558
  %560 = vmatmul.bf16.gmra.mxu0 %v244
  %v561 = vpop.f32.mrf.mxu0
  %v562 = vadd.f32 %v513, %v561
  %v563 = vpop.f32.mrf.mxu0
  %v564 = vadd.f32 %v515, %v563
  %565 = vmatmul.bf16.gmra.mxu0 %v248
  %v566 = vpop.f32.mrf.mxu0
  %v567 = vadd.f32 %v518, %v566
  %v568 = vpop.f32.mrf.mxu0
  %v569 = vadd.f32 %v520, %v568
  %570 = vmatmul.bf16.gmra.mxu0 %v252
  %v571 = vpop.f32.mrf.mxu0
  %v572 = vadd.f32 %v523, %v571
  %v573 = vpop.f32.mrf.mxu0
  %v574 = vadd.f32 %v525, %v573
  %575 = vmatmul.bf16.gmra.mxu0 %v256
  %v576 = vpop.f32.mrf.mxu0
  %v577 = vadd.f32 %v528, %v576
  %v578 = vpop.f32.mrf.mxu0
  %v579 = vadd.f32 %v530, %v578
  %580 = vdwg.mxu0
  %581 = vmatpush.bf16.msra.mxu0 %v442
  %582 = vmatpush.bf16.msra.mxu0 %v441
  %583 = vmatpush.bf16.msra.mxu0 %v440
  %584 = vmatpush.bf16.msra.mxu0 %v439
  %585 = vmatpush.bf16.msra.mxu0 %v438
  %586 = vmatpush.bf16.msra.mxu0 %v437
  %587 = vmatpush.bf16.msra.mxu0 %v436
  %588 = vmatpush.bf16.msra.mxu0 %v435
  %589 = vmatmul.bf16.gmra.mxu0 %v229
  %v590 = vpop.f32.mrf.mxu0
  %v591 = vadd.f32 %v542, %v590
  %v592 = vpop.f32.mrf.mxu0
  %v593 = vadd.f32 %v544, %v592
  %594 = vmatmul.bf16.gmra.mxu0 %v233
  %v595 = vpop.f32.mrf.mxu0
  %v596 = vadd.f32 %v547, %v595
  %v597 = vpop.f32.mrf.mxu0
  %v598 = vadd.f32 %v549, %v597
  %599 = vmatmul.bf16.gmra.mxu0 %v237
  %v600 = vpop.f32.mrf.mxu0
  %v601 = vadd.f32 %v552, %v600
  %v602 = vpop.f32.mrf.mxu0
  %v603 = vadd.f32 %v554, %v602
  %604 = vmatmul.bf16.gmra.mxu0 %v241
  %v605 = vpop.f32.mrf.mxu0
  %v606 = vadd.f32 %v557, %v605
  %v607 = vpop.f32.mrf.mxu0
  %v608 = vadd.f32 %v559, %v607
  %609 = vmatmul.bf16.gmra.mxu0 %v245
  %v610 = vpop.f32.mrf.mxu0
  %v611 = vadd.f32 %v562, %v610
  %v612 = vpop.f32.mrf.mxu0
  %v613 = vadd.f32 %v564, %v612
  %614 = vmatmul.bf16.gmra.mxu0 %v249
  %v615 = vpop.f32.mrf.mxu0
  %v616 = vadd.f32 %v567, %v615
  %v617 = vpop.f32.mrf.mxu0
  %v618 = vadd.f32 %v569, %v617
  %619 = vmatmul.bf16.gmra.mxu0 %v253
  %v620 = vpop.f32.mrf.mxu0
  %v621 = vadd.f32 %v572, %v620
  %v622 = vpop.f32.mrf.mxu0
  %v623 = vadd.f32 %v574, %v622
  %624 = vmatmul.bf16.gmra.mxu0 %v257
  %v625 = vpop.f32.mrf.mxu0
  %v626 = vadd.f32 %v577, %v625
  %v627 = vpop.f32.mrf.mxu0
  %v628 = vadd.f32 %v579, %v627
  %629 = vdwg.mxu0
  %630 = vmatpush.bf16.msra.mxu0 %v450
  %631 = vmatpush.bf16.msra.mxu0 %v449
  %632 = vmatpush.bf16.msra.mxu0 %v448
  %633 = vmatpush.bf16.msra.mxu0 %v447
  %634 = vmatpush.bf16.msra.mxu0 %v446
  %635 = vmatpush.bf16.msra.mxu0 %v445
  %636 = vmatpush.bf16.msra.mxu0 %v444
  %637 = vmatpush.bf16.msra.mxu0 %v443
  %638 = vmatmul.bf16.gmra.mxu0 %v230
  %v639 = vpop.f32.mrf.mxu0
  %v640 = vadd.f32 %v591, %v639
  %v641 = vpop.f32.mrf.mxu0
  %v642 = vadd.f32 %v593, %v641
  %643 = vmatmul.bf16.gmra.mxu0 %v234
  %v644 = vpop.f32.mrf.mxu0
  %v645 = vadd.f32 %v596, %v644
  %v646 = vpop.f32.mrf.mxu0
  %v647 = vadd.f32 %v598, %v646
  %648 = vmatmul.bf16.gmra.mxu0 %v238
  %v649 = vpop.f32.mrf.mxu0
  %v650 = vadd.f32 %v601, %v649
  %v651 = vpop.f32.mrf.mxu0
  %v652 = vadd.f32 %v603, %v651
  %653 = vmatmul.bf16.gmra.mxu0 %v242
  %v654 = vpop.f32.mrf.mxu0
  %v655 = vadd.f32 %v606, %v654
  %v656 = vpop.f32.mrf.mxu0
  %v657 = vadd.f32 %v608, %v656
  %658 = vmatmul.bf16.gmra.mxu0 %v246
  %v659 = vpop.f32.mrf.mxu0
  %v660 = vadd.f32 %v611, %v659
  %v661 = vpop.f32.mrf.mxu0
  %v662 = vadd.f32 %v613, %v661
  %663 = vmatmul.bf16.gmra.mxu0 %v250
  %v664 = vpop.f32.mrf.mxu0
  %v665 = vadd.f32 %v616, %v664
  %v666 = vpop.f32.mrf.mxu0
  %v667 = vadd.f32 %v618, %v666
  %668 = vmatmul.bf16.gmra.mxu0 %v254
  %v669 = vpop.f32.mrf.mxu0
  %v670 = vadd.f32 %v621, %v669
  %v671 = vpop.f32.mrf.mxu0
  %v672 = vadd.f32 %v623, %v671
  %673 = vmatmul.bf16.gmra.mxu0 %v258
  %v674 = vpop.f32.mrf.mxu0
  %v675 = vadd.f32 %v626, %v674
  %v676 = vpop.f32.mrf.mxu0
  %v677 = vadd.f32 %v628, %v676
  %678 = vdwg.mxu0
  %v679 = vld [vmem:[%s1] sm:$0xff]
  %v680 = vld [vmem:[%s1 + $0x8] sm:$0xff]
  %v681 = vld [vmem:[%s1 + $0x10] sm:$0xff]
  %v682 = vld [vmem:[%s1 + $0x18] sm:$0xff]
  %v683 = vld [vmem:[%s1 + $0x20] sm:$0xff]
  %v684 = vld [vmem:[%s1 + $0x28] sm:$0xff]
  %v685 = vld [vmem:[%s1 + $0x30] sm:$0xff]
  %v686 = vld [vmem:[%s1 + $0x38] sm:$0xff]
  %v687 = vld [vmem:[%s1 + $0x40] sm:$0xff]
  %v688 = vld [vmem:[%s1 + $0x48] sm:$0xff]
  %v689 = vld [vmem:[%s1 + $0x50] sm:$0xff]
  %v690 = vld [vmem:[%s1 + $0x58] sm:$0xff]
  %v691 = vld [vmem:[%s1 + $0x60] sm:$0xff]
  %v692 = vld [vmem:[%s1 + $0x68] sm:$0xff]
  %v693 = vld [vmem:[%s1 + $0x70] sm:$0xff]
  %v694 = vld [vmem:[%s1 + $0x78] sm:$0xff]
  %v695 = vld [vmem:[%s1 + $0x80] sm:$0xff]
  %v696 = vld [vmem:[%s1 + $0x88] sm:$0xff]
  %v697 = vld [vmem:[%s1 + $0x90] sm:$0xff]
  %v698 = vld [vmem:[%s1 + $0x98] sm:$0xff]
  %v699 = vld [vmem:[%s1 + $0xa0] sm:$0xff]
  %v700 = vld [vmem:[%s1 + $0xa8] sm:$0xff]
  %v701 = vld [vmem:[%s1 + $0xb0] sm:$0xff]
  %v702 = vld [vmem:[%s1 + $0xb8] sm:$0xff]
  %v703 = vld [vmem:[%s1 + $0xc0] sm:$0xff]
  %v704 = vld [vmem:[%s1 + $0xc8] sm:$0xff]
  %v705 = vld [vmem:[%s1 + $0xd0] sm:$0xff]
  %v706 = vld [vmem:[%s1 + $0xd8] sm:$0xff]
  %v707 = vld [vmem:[%s1 + $0xe0] sm:$0xff]
  %v708 = vld [vmem:[%s1 + $0xe8] sm:$0xff]
  %v709 = vld [vmem:[%s1 + $0xf0] sm:$0xff]
  %v710 = vld [vmem:[%s1 + $0xf8] sm:$0xff]
  %v711 = vld [vmem:[%s5] sm:$0xf]
  %v712 = vld [vmem:[%s5 + $0x4] sm:$0xf]
  %v713 = vld [vmem:[%s5 + $0x8] sm:$0xf]
  %v714 = vld [vmem:[%s5 + $0xc] sm:$0xf]
  %v715 = vld [vmem:[%s5 + $0x10] sm:$0xf]
  %v716 = vld [vmem:[%s5 + $0x14] sm:$0xf]
  %v717 = vld [vmem:[%s5 + $0x18] sm:$0xf]
  %v718 = vld [vmem:[%s5 + $0x1c] sm:$0xf]
  %v719 = vld [vmem:[%s5 + $0x20] sm:$0xf]
  %v720 = vld [vmem:[%s5 + $0x24] sm:$0xf]
  %v721 = vld [vmem:[%s5 + $0x28] sm:$0xf]
  %v722 = vld [vmem:[%s5 + $0x2c] sm:$0xf]
  %v723 = vld [vmem:[%s5 + $0x30] sm:$0xf]
  %v724 = vld [vmem:[%s5 + $0x34] sm:$0xf]
  %v725 = vld [vmem:[%s5 + $0x38] sm:$0xf]
  %v726 = vld [vmem:[%s5 + $0x3c] sm:$0xf]
  %v727 = vld [vmem:[%s5 + $0x40] sm:$0xf]
  %v728 = vld [vmem:[%s5 + $0x44] sm:$0xf]
  %v729 = vld [vmem:[%s5 + $0x48] sm:$0xf]
  %v730 = vld [vmem:[%s5 + $0x4c] sm:$0xf]
  %v731 = vld [vmem:[%s5 + $0x50] sm:$0xf]
  %v732 = vld [vmem:[%s5 + $0x54] sm:$0xf]
  %v733 = vld [vmem:[%s5 + $0x58] sm:$0xf]
  %v734 = vld [vmem:[%s5 + $0x5c] sm:$0xf]
  %v735 = vld [vmem:[%s5 + $0x60] sm:$0xf]
  %v736 = vld [vmem:[%s5 + $0x64] sm:$0xf]
  %v737 = vld [vmem:[%s5 + $0x68] sm:$0xf]
  %v738 = vld [vmem:[%s5 + $0x6c] sm:$0xf]
  %v739 = vld [vmem:[%s5 + $0x70] sm:$0xf]
  %v740 = vld [vmem:[%s5 + $0x74] sm:$0xf]
  %v741 = vld [vmem:[%s5 + $0x78] sm:$0xf]
  %v742 = vld [vmem:[%s5 + $0x7c] sm:$0xf]
  %v743 = vld [vmem:[%s5 + $0x80] sm:$0xf]
  %v744 = vld [vmem:[%s5 + $0x84] sm:$0xf]
  %v745 = vld [vmem:[%s5 + $0x88] sm:$0xf]
  %v746 = vld [vmem:[%s5 + $0x8c] sm:$0xf]
  %v747 = vld [vmem:[%s5 + $0x90] sm:$0xf]
  %v748 = vld [vmem:[%s5 + $0x94] sm:$0xf]
  %v749 = vld [vmem:[%s5 + $0x98] sm:$0xf]
  %v750 = vld [vmem:[%s5 + $0x9c] sm:$0xf]
  %v751 = vld [vmem:[%s5 + $0xa0] sm:$0xf]
  %v752 = vld [vmem:[%s5 + $0xa4] sm:$0xf]
  %v753 = vld [vmem:[%s5 + $0xa8] sm:$0xf]
  %v754 = vld [vmem:[%s5 + $0xac] sm:$0xf]
  %v755 = vld [vmem:[%s5 + $0xb0] sm:$0xf]
  %v756 = vld [vmem:[%s5 + $0xb4] sm:$0xf]
  %v757 = vld [vmem:[%s5 + $0xb8] sm:$0xf]
  %v758 = vld [vmem:[%s5 + $0xbc] sm:$0xf]
  %v759 = vld [vmem:[%s5 + $0xc0] sm:$0xf]
  %v760 = vld [vmem:[%s5 + $0xc4] sm:$0xf]
  %v761 = vld [vmem:[%s5 + $0xc8] sm:$0xf]
  %v762 = vld [vmem:[%s5 + $0xcc] sm:$0xf]
  %v763 = vld [vmem:[%s5 + $0xd0] sm:$0xf]
  %v764 = vld [vmem:[%s5 + $0xd4] sm:$0xf]
  %v765 = vld [vmem:[%s5 + $0xd8] sm:$0xf]
  %v766 = vld [vmem:[%s5 + $0xdc] sm:$0xf]
  %v767 = vld [vmem:[%s5 + $0xe0] sm:$0xf]
  %v768 = vld [vmem:[%s5 + $0xe4] sm:$0xf]
  %v769 = vld [vmem:[%s5 + $0xe8] sm:$0xf]
  %v770 = vld [vmem:[%s5 + $0xec] sm:$0xf]
  %v771 = vld [vmem:[%s5 + $0xf0] sm:$0xf]
  %v772 = vld [vmem:[%s5 + $0xf4] sm:$0xf]
  %v773 = vld [vmem:[%s5 + $0xf8] sm:$0xf]
  %v774 = vld [vmem:[%s5 + $0xfc] sm:$0xf]
  %v807 = vunpack.c.l.b16 %v679
  %v808 = vunpack.c.h.b16 %v679
  %v809 = vunpack.c.l.b16 %v680
  %v810 = vunpack.c.h.b16 %v680
  %v811 = vunpack.c.l.b16 %v681
  %v812 = vunpack.c.h.b16 %v681
  %v813 = vunpack.c.l.b16 %v682
  %v814 = vunpack.c.h.b16 %v682
  %v815 = vunpack.c.l.b16 %v683
  %v816 = vunpack.c.h.b16 %v683
  %v817 = vunpack.c.l.b16 %v684
  %v818 = vunpack.c.h.b16 %v684
  %v819 = vunpack.c.l.b16 %v685
  %v820 = vunpack.c.h.b16 %v685
  %v821 = vunpack.c.l.b16 %v686
  %v822 = vunpack.c.h.b16 %v686
  %v823 = vunpack.c.l.b16 %v687
  %v824 = vunpack.c.h.b16 %v687
  %v825 = vunpack.c.l.b16 %v688
  %v826 = vunpack.c.h.b16 %v688
  %v827 = vunpack.c.l.b16 %v689
  %v828 = vunpack.c.h.b16 %v689
  %v829 = vunpack.c.l.b16 %v690
  %v830 = vunpack.c.h.b16 %v690
  %v831 = vunpack.c.l.b16 %v691
  %v832 = vunpack.c.h.b16 %v691
  %v833 = vunpack.c.l.b16 %v692
  %v834 = vunpack.c.h.b16 %v692
  %v835 = vunpack.c.l.b16 %v693
  %v836 = vunpack.c.h.b16 %v693
  %v837 = vunpack.c.l.b16 %v694
  %v838 = vunpack.c.h.b16 %v694
  %v839 = vunpack.c.l.b16 %v695
  %v840 = vunpack.c.h.b16 %v695
  %v841 = vunpack.c.l.b16 %v696
  %v842 = vunpack.c.h.b16 %v696
  %v843 = vunpack.c.l.b16 %v697
  %v844 = vunpack.c.h.b16 %v697
  %v845 = vunpack.c.l.b16 %v698
  %v846 = vunpack.c.h.b16 %v698
  %v847 = vunpack.c.l.b16 %v699
  %v848 = vunpack.c.h.b16 %v699
  %v849 = vunpack.c.l.b16 %v700
  %v850 = vunpack.c.h.b16 %v700
  %v851 = vunpack.c.l.b16 %v701
  %v852 = vunpack.c.h.b16 %v701
  %v853 = vunpack.c.l.b16 %v702
  %v854 = vunpack.c.h.b16 %v702
  %v855 = vunpack.c.l.b16 %v703
  %v856 = vunpack.c.h.b16 %v703
  %v857 = vunpack.c.l.b16 %v704
  %v858 = vunpack.c.h.b16 %v704
  %v859 = vunpack.c.l.b16 %v705
  %v860 = vunpack.c.h.b16 %v705
  %v861 = vunpack.c.l.b16 %v706
  %v862 = vunpack.c.h.b16 %v706
  %v863 = vunpack.c.l.b16 %v707
  %v864 = vunpack.c.h.b16 %v707
  %v865 = vunpack.c.l.b16 %v708
  %v866 = vunpack.c.h.b16 %v708
  %v867 = vunpack.c.l.b16 %v709
  %v868 = vunpack.c.h.b16 %v709
  %v869 = vunpack.c.l.b16 %v710
  %v870 = vunpack.c.h.b16 %v710
  %v871 = vpack.c.b16 %v811, %v807
  %v872 = vpack.c.b16 %v812, %v808
  %v873 = vpack.c.b16 %v813, %v809
  %v874 = vpack.c.b16 %v814, %v810
  %v875 = vpack.c.b16 %v819, %v815
  %v876 = vpack.c.b16 %v820, %v816
  %v877 = vpack.c.b16 %v821, %v817
  %v878 = vpack.c.b16 %v822, %v818
  %v879 = vpack.c.b16 %v827, %v823
  %v880 = vpack.c.b16 %v828, %v824
  %v881 = vpack.c.b16 %v829, %v825
  %v882 = vpack.c.b16 %v830, %v826
  %v883 = vpack.c.b16 %v835, %v831
  %v884 = vpack.c.b16 %v836, %v832
  %v885 = vpack.c.b16 %v837, %v833
  %v886 = vpack.c.b16 %v838, %v834
  %v887 = vpack.c.b16 %v843, %v839
  %v888 = vpack.c.b16 %v844, %v840
  %v889 = vpack.c.b16 %v845, %v841
  %v890 = vpack.c.b16 %v846, %v842
  %v891 = vpack.c.b16 %v851, %v847
  %v892 = vpack.c.b16 %v852, %v848
  %v893 = vpack.c.b16 %v853, %v849
  %v894 = vpack.c.b16 %v854, %v850
  %v895 = vpack.c.b16 %v859, %v855
  %v896 = vpack.c.b16 %v860, %v856
  %v897 = vpack.c.b16 %v861, %v857
  %v898 = vpack.c.b16 %v862, %v858
  %v899 = vpack.c.b16 %v867, %v863
  %v900 = vpack.c.b16 %v868, %v864
  %v901 = vpack.c.b16 %v869, %v865
  %v902 = vpack.c.b16 %v870, %v866
  %v999 = vunpack.c.l.b16 %v711
  %v1000 = vunpack.c.l.b16 %v712
  %v1001 = vunpack.c.l.b16 %v713
  %v1002 = vunpack.c.l.b16 %v714
  %v1003 = vunpack.c.l.b16 %v715
  %v1004 = vunpack.c.l.b16 %v716
  %v1005 = vunpack.c.l.b16 %v717
  %v1006 = vunpack.c.l.b16 %v718
  %v1007 = vunpack.c.l.b16 %v719
  %v1008 = vunpack.c.l.b16 %v720
  %v1009 = vunpack.c.l.b16 %v721
  %v1010 = vunpack.c.l.b16 %v722
  %v1011 = vunpack.c.l.b16 %v723
  %v1012 = vunpack.c.l.b16 %v724
  %v1013 = vunpack.c.l.b16 %v725
  %v1014 = vunpack.c.l.b16 %v726
  %v1015 = vunpack.c.l.b16 %v727
  %v1016 = vunpack.c.l.b16 %v728
  %v1017 = vunpack.c.l.b16 %v729
  %v1018 = vunpack.c.l.b16 %v730
  %v1019 = vunpack.c.l.b16 %v731
  %v1020 = vunpack.c.l.b16 %v732
  %v1021 = vunpack.c.l.b16 %v733
  %v1022 = vunpack.c.l.b16 %v734
  %v1023 = vunpack.c.l.b16 %v735
  %v1024 = vunpack.c.l.b16 %v736
  %v1025 = vunpack.c.l.b16 %v737
  %v1026 = vunpack.c.l.b16 %v738
  %v1027 = vunpack.c.l.b16 %v739
  %v1028 = vunpack.c.l.b16 %v740
  %v1029 = vunpack.c.l.b16 %v741
  %v1030 = vunpack.c.l.b16 %v742
  %v1031 = vunpack.c.l.b16 %v743
  %v1032 = vunpack.c.l.b16 %v744
  %v1033 = vunpack.c.l.b16 %v745
  %v1034 = vunpack.c.l.b16 %v746
  %v1035 = vunpack.c.l.b16 %v747
  %v1036 = vunpack.c.l.b16 %v748
  %v1037 = vunpack.c.l.b16 %v749
  %v1038 = vunpack.c.l.b16 %v750
  %v1039 = vunpack.c.l.b16 %v751
  %v1040 = vunpack.c.l.b16 %v752
  %v1041 = vunpack.c.l.b16 %v753
  %v1042 = vunpack.c.l.b16 %v754
  %v1043 = vunpack.c.l.b16 %v755
  %v1044 = vunpack.c.l.b16 %v756
  %v1045 = vunpack.c.l.b16 %v757
  %v1046 = vunpack.c.l.b16 %v758
  %v1047 = vunpack.c.l.b16 %v759
  %v1048 = vunpack.c.l.b16 %v760
  %v1049 = vunpack.c.l.b16 %v761
  %v1050 = vunpack.c.l.b16 %v762
  %v1051 = vunpack.c.l.b16 %v763
  %v1052 = vunpack.c.l.b16 %v764
  %v1053 = vunpack.c.l.b16 %v765
  %v1054 = vunpack.c.l.b16 %v766
  %v1055 = vunpack.c.l.b16 %v767
  %v1056 = vunpack.c.l.b16 %v768
  %v1057 = vunpack.c.l.b16 %v769
  %v1058 = vunpack.c.l.b16 %v770
  %v1059 = vunpack.c.l.b16 %v771
  %v1060 = vunpack.c.l.b16 %v772
  %v1061 = vunpack.c.l.b16 %v773
  %v1062 = vunpack.c.l.b16 %v774
  %v1063 = vpack.c.b16 %v1000, %v999
  %v1064 = vpack.c.b16 %v1002, %v1001
  %v1065 = vpack.c.b16 %v1004, %v1003
  %v1066 = vpack.c.b16 %v1006, %v1005
  %v1067 = vpack.c.b16 %v1008, %v1007
  %v1068 = vpack.c.b16 %v1010, %v1009
  %v1069 = vpack.c.b16 %v1012, %v1011
  %v1070 = vpack.c.b16 %v1014, %v1013
  %v1071 = vpack.c.b16 %v1016, %v1015
  %v1072 = vpack.c.b16 %v1018, %v1017
  %v1073 = vpack.c.b16 %v1020, %v1019
  %v1074 = vpack.c.b16 %v1022, %v1021
  %v1075 = vpack.c.b16 %v1024, %v1023
  %v1076 = vpack.c.b16 %v1026, %v1025
  %v1077 = vpack.c.b16 %v1028, %v1027
  %v1078 = vpack.c.b16 %v1030, %v1029
  %v1079 = vpack.c.b16 %v1032, %v1031
  %v1080 = vpack.c.b16 %v1034, %v1033
  %v1081 = vpack.c.b16 %v1036, %v1035
  %v1082 = vpack.c.b16 %v1038, %v1037
  %v1083 = vpack.c.b16 %v1040, %v1039
  %v1084 = vpack.c.b16 %v1042, %v1041
  %v1085 = vpack.c.b16 %v1044, %v1043
  %v1086 = vpack.c.b16 %v1046, %v1045
  %v1087 = vpack.c.b16 %v1048, %v1047
  %v1088 = vpack.c.b16 %v1050, %v1049
  %v1089 = vpack.c.b16 %v1052, %v1051
  %v1090 = vpack.c.b16 %v1054, %v1053
  %v1091 = vpack.c.b16 %v1056, %v1055
  %v1092 = vpack.c.b16 %v1058, %v1057
  %v1093 = vpack.c.b16 %v1060, %v1059
  %v1094 = vpack.c.b16 %v1062, %v1061
  %1127 = vmatpush.bf16.msra.mxu0 %v1070
  %1128 = vmatpush.bf16.msra.mxu0 %v1069
  %1129 = vmatpush.bf16.msra.mxu0 %v1068
  %1130 = vmatpush.bf16.msra.mxu0 %v1067
  %1131 = vmatpush.bf16.msra.mxu0 %v1066
  %1132 = vmatpush.bf16.msra.mxu0 %v1065
  %1133 = vmatpush.bf16.msra.mxu0 %v1064
  %1134 = vmatpush.bf16.msra.mxu0 %v1063
  %1135 = vmatmul.bf16.gmra.mxu0 %v871
  %v1136 = vpop.f32.mrf.mxu0
  %v1137 = vadd.f32 0.0, %v1136
  %v1138 = vpop.f32.mrf.mxu0
  %v1139 = vadd.f32 0.0, %v1138
  %1140 = vmatmul.bf16.gmra.mxu0 %v875
  %v1141 = vpop.f32.mrf.mxu0
  %v1142 = vadd.f32 0.0, %v1141
  %v1143 = vpop.f32.mrf.mxu0
  %v1144 = vadd.f32 0.0, %v1143
  %1145 = vmatmul.bf16.gmra.mxu0 %v879
  %v1146 = vpop.f32.mrf.mxu0
  %v1147 = vadd.f32 0.0, %v1146
  %v1148 = vpop.f32.mrf.mxu0
  %v1149 = vadd.f32 0.0, %v1148
  %1150 = vmatmul.bf16.gmra.mxu0 %v883
  %v1151 = vpop.f32.mrf.mxu0
  %v1152 = vadd.f32 0.0, %v1151
  %v1153 = vpop.f32.mrf.mxu0
  %v1154 = vadd.f32 0.0, %v1153
  %1155 = vmatmul.bf16.gmra.mxu0 %v887
  %v1156 = vpop.f32.mrf.mxu0
  %v1157 = vadd.f32 0.0, %v1156
  %v1158 = vpop.f32.mrf.mxu0
  %v1159 = vadd.f32 0.0, %v1158
  %1160 = vmatmul.bf16.gmra.mxu0 %v891
  %v1161 = vpop.f32.mrf.mxu0
  %v1162 = vadd.f32 0.0, %v1161
  %v1163 = vpop.f32.mrf.mxu0
  %v1164 = vadd.f32 0.0, %v1163
  %1165 = vmatmul.bf16.gmra.mxu0 %v895
  %v1166 = vpop.f32.mrf.mxu0
  %v1167 = vadd.f32 0.0, %v1166
  %v1168 = vpop.f32.mrf.mxu0
  %v1169 = vadd.f32 0.0, %v1168
  %1170 = vmatmul.bf16.gmra.mxu0 %v899
  %v1171 = vpop.f32.mrf.mxu0
  %v1172 = vadd.f32 0.0, %v1171
  %v1173 = vpop.f32.mrf.mxu0
  %v1174 = vadd.f32 0.0, %v1173
  %1175 = vdwg.mxu0
  %1176 = vmatpush.bf16.msra.mxu0 %v1078
  %1177 = vmatpush.bf16.msra.mxu0 %v1077
  %1178 = vmatpush.bf16.msra.mxu0 %v1076
  %1179 = vmatpush.bf16.msra.mxu0 %v1075
  %1180 = vmatpush.bf16.msra.mxu0 %v1074
  %1181 = vmatpush.bf16.msra.mxu0 %v1073
  %1182 = vmatpush.bf16.msra.mxu0 %v1072
  %1183 = vmatpush.bf16.msra.mxu0 %v1071
  %1184 = vmatmul.bf16.gmra.mxu0 %v872
  %v1185 = vpop.f32.mrf.mxu0
  %v1186 = vadd.f32 %v1137, %v1185
  %v1187 = vpop.f32.mrf.mxu0
  %v1188 = vadd.f32 %v1139, %v1187
  %1189 = vmatmul.bf16.gmra.mxu0 %v876
  %v1190 = vpop.f32.mrf.mxu0
  %v1191 = vadd.f32 %v1142, %v1190
  %v1192 = vpop.f32.mrf.mxu0
  %v1193 = vadd.f32 %v1144, %v1192
  %1194 = vmatmul.bf16.gmra.mxu0 %v880
  %v1195 = vpop.f32.mrf.mxu0
  %v1196 = vadd.f32 %v1147, %v1195
  %v1197 = vpop.f32.mrf.mxu0
  %v1198 = vadd.f32 %v1149, %v1197
  %1199 = vmatmul.bf16.gmra.mxu0 %v884
  %v1200 = vpop.f32.mrf.mxu0
  %v1201 = vadd.f32 %v1152, %v1200
  %v1202 = vpop.f32.mrf.mxu0
  %v1203 = vadd.f32 %v1154, %v1202
  %1204 = vmatmul.bf16.gmra.mxu0 %v888
  %v1205 = vpop.f32.mrf.mxu0
  %v1206 = vadd.f32 %v1157, %v1205
  %v1207 = vpop.f32.mrf.mxu0
  %v1208 = vadd.f32 %v1159, %v1207
  %1209 = vmatmul.bf16.gmra.mxu0 %v892
  %v1210 = vpop.f32.mrf.mxu0
  %v1211 = vadd.f32 %v1162, %v1210
  %v1212 = vpop.f32.mrf.mxu0
  %v1213 = vadd.f32 %v1164, %v1212
  %1214 = vmatmul.bf16.gmra.mxu0 %v896
  %v1215 = vpop.f32.mrf.mxu0
  %v1216 = vadd.f32 %v1167, %v1215
  %v1217 = vpop.f32.mrf.mxu0
  %v1218 = vadd.f32 %v1169, %v1217
  %1219 = vmatmul.bf16.gmra.mxu0 %v900
  %v1220 = vpop.f32.mrf.mxu0
  %v1221 = vadd.f32 %v1172, %v1220
  %v1222 = vpop.f32.mrf.mxu0
  %v1223 = vadd.f32 %v1174, %v1222
  %1224 = vdwg.mxu0
  %1225 = vmatpush.bf16.msra.mxu0 %v1086
  %1226 = vmatpush.bf16.msra.mxu0 %v1085
  %1227 = vmatpush.bf16.msra.mxu0 %v1084
  %1228 = vmatpush.bf16.msra.mxu0 %v1083
  %1229 = vmatpush.bf16.msra.mxu0 %v1082
  %1230 = vmatpush.bf16.msra.mxu0 %v1081
  %1231 = vmatpush.bf16.msra.mxu0 %v1080
  %1232 = vmatpush.bf16.msra.mxu0 %v1079
  %1233 = vmatmul.bf16.gmra.mxu0 %v873
  %v1234 = vpop.f32.mrf.mxu0
  %v1235 = vadd.f32 %v1186, %v1234
  %v1236 = vpop.f32.mrf.mxu0
  %v1237 = vadd.f32 %v1188, %v1236
  %1238 = vmatmul.bf16.gmra.mxu0 %v877
  %v1239 = vpop.f32.mrf.mxu0
  %v1240 = vadd.f32 %v1191, %v1239
  %v1241 = vpop.f32.mrf.mxu0
  %v1242 = vadd.f32 %v1193, %v1241
  %1243 = vmatmul.bf16.gmra.mxu0 %v881
  %v1244 = vpop.f32.mrf.mxu0
  %v1245 = vadd.f32 %v1196, %v1244
  %v1246 = vpop.f32.mrf.mxu0
  %v1247 = vadd.f32 %v1198, %v1246
  %1248 = vmatmul.bf16.gmra.mxu0 %v885
  %v1249 = vpop.f32.mrf.mxu0
  %v1250 = vadd.f32 %v1201, %v1249
  %v1251 = vpop.f32.mrf.mxu0
  %v1252 = vadd.f32 %v1203, %v1251
  %1253 = vmatmul.bf16.gmra.mxu0 %v889
  %v1254 = vpop.f32.mrf.mxu0
  %v1255 = vadd.f32 %v1206, %v1254
  %v1256 = vpop.f32.mrf.mxu0
  %v1257 = vadd.f32 %v1208, %v1256
  %1258 = vmatmul.bf16.gmra.mxu0 %v893
  %v1259 = vpop.f32.mrf.mxu0
  %v1260 = vadd.f32 %v1211, %v1259
  %v1261 = vpop.f32.mrf.mxu0
  %v1262 = vadd.f32 %v1213, %v1261
  %1263 = vmatmul.bf16.gmra.mxu0 %v897
  %v1264 = vpop.f32.mrf.mxu0
  %v1265 = vadd.f32 %v1216, %v1264
  %v1266 = vpop.f32.mrf.mxu0
  %v1267 = vadd.f32 %v1218, %v1266
  %1268 = vmatmul.bf16.gmra.mxu0 %v901
  %v1269 = vpop.f32.mrf.mxu0
  %v1270 = vadd.f32 %v1221, %v1269
  %v1271 = vpop.f32.mrf.mxu0
  %v1272 = vadd.f32 %v1223, %v1271
  %1273 = vdwg.mxu0
  %1274 = vmatpush.bf16.msra.mxu0 %v1094
  %1275 = vmatpush.bf16.msra.mxu0 %v1093
  %1276 = vmatpush.bf16.msra.mxu0 %v1092
  %1277 = vmatpush.bf16.msra.mxu0 %v1091
  %1278 = vmatpush.bf16.msra.mxu0 %v1090
  %1279 = vmatpush.bf16.msra.mxu0 %v1089
  %1280 = vmatpush.bf16.msra.mxu0 %v1088
  %1281 = vmatpush.bf16.msra.mxu0 %v1087
  %1282 = vmatmul.bf16.gmra.mxu0 %v874
  %v1283 = vpop.f32.mrf.mxu0
  %v1284 = vadd.f32 %v1235, %v1283
  %v1285 = vpop.f32.mrf.mxu0
  %v1286 = vadd.f32 %v1237, %v1285
  %1287 = vmatmul.bf16.gmra.mxu0 %v878
  %v1288 = vpop.f32.mrf.mxu0
  %v1289 = vadd.f32 %v1240, %v1288
  %v1290 = vpop.f32.mrf.mxu0
  %v1291 = vadd.f32 %v1242, %v1290
  %1292 = vmatmul.bf16.gmra.mxu0 %v882
  %v1293 = vpop.f32.mrf.mxu0
  %v1294 = vadd.f32 %v1245, %v1293
  %v1295 = vpop.f32.mrf.mxu0
  %v1296 = vadd.f32 %v1247, %v1295
  %1297 = vmatmul.bf16.gmra.mxu0 %v886
  %v1298 = vpop.f32.mrf.mxu0
  %v1299 = vadd.f32 %v1250, %v1298
  %v1300 = vpop.f32.mrf.mxu0
  %v1301 = vadd.f32 %v1252, %v1300
  %1302 = vmatmul.bf16.gmra.mxu0 %v890
  %v1303 = vpop.f32.mrf.mxu0
  %v1304 = vadd.f32 %v1255, %v1303
  %v1305 = vpop.f32.mrf.mxu0
  %v1306 = vadd.f32 %v1257, %v1305
  %1307 = vmatmul.bf16.gmra.mxu0 %v894
  %v1308 = vpop.f32.mrf.mxu0
  %v1309 = vadd.f32 %v1260, %v1308
  %v1310 = vpop.f32.mrf.mxu0
  %v1311 = vadd.f32 %v1262, %v1310
  %1312 = vmatmul.bf16.gmra.mxu0 %v898
  %v1313 = vpop.f32.mrf.mxu0
  %v1314 = vadd.f32 %v1265, %v1313
  %v1315 = vpop.f32.mrf.mxu0
  %v1316 = vadd.f32 %v1267, %v1315
  %1317 = vmatmul.bf16.gmra.mxu0 %v902
  %v1318 = vpop.f32.mrf.mxu0
  %v1319 = vadd.f32 %v1270, %v1318
  %v1320 = vpop.f32.mrf.mxu0
  %v1321 = vadd.f32 %v1272, %v1320
  %1322 = vdwg.mxu0
  %v1323 = vld [vmem:[%s2] sm:$0xff]
  %v1324 = vld [vmem:[%s2 + $0x8] sm:$0xff]
  %v1325 = vld [vmem:[%s2 + $0x10] sm:$0xff]
  %v1326 = vld [vmem:[%s2 + $0x18] sm:$0xff]
  %v1327 = vld [vmem:[%s2 + $0x20] sm:$0xff]
  %v1328 = vld [vmem:[%s2 + $0x28] sm:$0xff]
  %v1329 = vld [vmem:[%s2 + $0x30] sm:$0xff]
  %v1330 = vld [vmem:[%s2 + $0x38] sm:$0xff]
  %v1331 = vld [vmem:[%s2 + $0x40] sm:$0xff]
  %v1332 = vld [vmem:[%s2 + $0x48] sm:$0xff]
  %v1333 = vld [vmem:[%s2 + $0x50] sm:$0xff]
  %v1334 = vld [vmem:[%s2 + $0x58] sm:$0xff]
  %v1335 = vld [vmem:[%s2 + $0x60] sm:$0xff]
  %v1336 = vld [vmem:[%s2 + $0x68] sm:$0xff]
  %v1337 = vld [vmem:[%s2 + $0x70] sm:$0xff]
  %v1338 = vld [vmem:[%s2 + $0x78] sm:$0xff]
  %v1339 = vld [vmem:[%s2 + $0x80] sm:$0xff]
  %v1340 = vld [vmem:[%s2 + $0x88] sm:$0xff]
  %v1341 = vld [vmem:[%s2 + $0x90] sm:$0xff]
  %v1342 = vld [vmem:[%s2 + $0x98] sm:$0xff]
  %v1343 = vld [vmem:[%s2 + $0xa0] sm:$0xff]
  %v1344 = vld [vmem:[%s2 + $0xa8] sm:$0xff]
  %v1345 = vld [vmem:[%s2 + $0xb0] sm:$0xff]
  %v1346 = vld [vmem:[%s2 + $0xb8] sm:$0xff]
  %v1347 = vld [vmem:[%s2 + $0xc0] sm:$0xff]
  %v1348 = vld [vmem:[%s2 + $0xc8] sm:$0xff]
  %v1349 = vld [vmem:[%s2 + $0xd0] sm:$0xff]
  %v1350 = vld [vmem:[%s2 + $0xd8] sm:$0xff]
  %v1351 = vld [vmem:[%s2 + $0xe0] sm:$0xff]
  %v1352 = vld [vmem:[%s2 + $0xe8] sm:$0xff]
  %v1353 = vld [vmem:[%s2 + $0xf0] sm:$0xff]
  %v1354 = vld [vmem:[%s2 + $0xf8] sm:$0xff]
  %v1355 = vld [vmem:[%s6] sm:$0xf]
  %v1356 = vld [vmem:[%s6 + $0x4] sm:$0xf]
  %v1357 = vld [vmem:[%s6 + $0x8] sm:$0xf]
  %v1358 = vld [vmem:[%s6 + $0xc] sm:$0xf]
  %v1359 = vld [vmem:[%s6 + $0x10] sm:$0xf]
  %v1360 = vld [vmem:[%s6 + $0x14] sm:$0xf]
  %v1361 = vld [vmem:[%s6 + $0x18] sm:$0xf]
  %v1362 = vld [vmem:[%s6 + $0x1c] sm:$0xf]
  %v1363 = vld [vmem:[%s6 + $0x20] sm:$0xf]
  %v1364 = vld [vmem:[%s6 + $0x24] sm:$0xf]
  %v1365 = vld [vmem:[%s6 + $0x28] sm:$0xf]
  %v1366 = vld [vmem:[%s6 + $0x2c] sm:$0xf]
  %v1367 = vld [vmem:[%s6 + $0x30] sm:$0xf]
  %v1368 = vld [vmem:[%s6 + $0x34] sm:$0xf]
  %v1369 = vld [vmem:[%s6 + $0x38] sm:$0xf]
  %v1370 = vld [vmem:[%s6 + $0x3c] sm:$0xf]
  %v1371 = vld [vmem:[%s6 + $0x40] sm:$0xf]
  %v1372 = vld [vmem:[%s6 + $0x44] sm:$0xf]
  %v1373 = vld [vmem:[%s6 + $0x48] sm:$0xf]
  %v1374 = vld [vmem:[%s6 + $0x4c] sm:$0xf]
  %v1375 = vld [vmem:[%s6 + $0x50] sm:$0xf]
  %v1376 = vld [vmem:[%s6 + $0x54] sm:$0xf]
  %v1377 = vld [vmem:[%s6 + $0x58] sm:$0xf]
  %v1378 = vld [vmem:[%s6 + $0x5c] sm:$0xf]
  %v1379 = vld [vmem:[%s6 + $0x60] sm:$0xf]
  %v1380 = vld [vmem:[%s6 + $0x64] sm:$0xf]
  %v1381 = vld [vmem:[%s6 + $0x68] sm:$0xf]
  %v1382 = vld [vmem:[%s6 + $0x6c] sm:$0xf]
  %v1383 = vld [vmem:[%s6 + $0x70] sm:$0xf]
  %v1384 = vld [vmem:[%s6 + $0x74] sm:$0xf]
  %v1385 = vld [vmem:[%s6 + $0x78] sm:$0xf]
  %v1386 = vld [vmem:[%s6 + $0x7c] sm:$0xf]
  %v1387 = vld [vmem:[%s6 + $0x80] sm:$0xf]
  %v1388 = vld [vmem:[%s6 + $0x84] sm:$0xf]
  %v1389 = vld [vmem:[%s6 + $0x88] sm:$0xf]
  %v1390 = vld [vmem:[%s6 + $0x8c] sm:$0xf]
  %v1391 = vld [vmem:[%s6 + $0x90] sm:$0xf]
  %v1392 = vld [vmem:[%s6 + $0x94] sm:$0xf]
  %v1393 = vld [vmem:[%s6 + $0x98] sm:$0xf]
  %v1394 = vld [vmem:[%s6 + $0x9c] sm:$0xf]
  %v1395 = vld [vmem:[%s6 + $0xa0] sm:$0xf]
  %v1396 = vld [vmem:[%s6 + $0xa4] sm:$0xf]
  %v1397 = vld [vmem:[%s6 + $0xa8] sm:$0xf]
  %v1398 = vld [vmem:[%s6 + $0xac] sm:$0xf]
  %v1399 = vld [vmem:[%s6 + $0xb0] sm:$0xf]
  %v1400 = vld [vmem:[%s6 + $0xb4] sm:$0xf]
  %v1401 = vld [vmem:[%s6 + $0xb8] sm:$0xf]
  %v1402 = vld [vmem:[%s6 + $0xbc] sm:$0xf]
  %v1403 = vld [vmem:[%s6 + $0xc0] sm:$0xf]
  %v1404 = vld [vmem:[%s6 + $0xc4] sm:$0xf]
  %v1405 = vld [vmem:[%s6 + $0xc8] sm:$0xf]
  %v1406 = vld [vmem:[%s6 + $0xcc] sm:$0xf]
  %v1407 = vld [vmem:[%s6 + $0xd0] sm:$0xf]
  %v1408 = vld [vmem:[%s6 + $0xd4] sm:$0xf]
  %v1409 = vld [vmem:[%s6 + $0xd8] sm:$0xf]
  %v1410 = vld [vmem:[%s6 + $0xdc] sm:$0xf]
  %v1411 = vld [vmem:[%s6 + $0xe0] sm:$0xf]
  %v1412 = vld [vmem:[%s6 + $0xe4] sm:$0xf]
  %v1413 = vld [vmem:[%s6 + $0xe8] sm:$0xf]
  %v1414 = vld [vmem:[%s6 + $0xec] sm:$0xf]
  %v1415 = vld [vmem:[%s6 + $0xf0] sm:$0xf]
  %v1416 = vld [vmem:[%s6 + $0xf4] sm:$0xf]
  %v1417 = vld [vmem:[%s6 + $0xf8] sm:$0xf]
  %v1418 = vld [vmem:[%s6 + $0xfc] sm:$0xf]
  %v1451 = vunpack.c.l.b16 %v1323
  %v1452 = vunpack.c.h.b16 %v1323
  %v1453 = vunpack.c.l.b16 %v1324
  %v1454 = vunpack.c.h.b16 %v1324
  %v1455 = vunpack.c.l.b16 %v1325
  %v1456 = vunpack.c.h.b16 %v1325
  %v1457 = vunpack.c.l.b16 %v1326
  %v1458 = vunpack.c.h.b16 %v1326
  %v1459 = vunpack.c.l.b16 %v1327
  %v1460 = vunpack.c.h.b16 %v1327
  %v1461 = vunpack.c.l.b16 %v1328
  %v1462 = vunpack.c.h.b16 %v1328
  %v1463 = vunpack.c.l.b16 %v1329
  %v1464 = vunpack.c.h.b16 %v1329
  %v1465 = vunpack.c.l.b16 %v1330
  %v1466 = vunpack.c.h.b16 %v1330
  %v1467 = vunpack.c.l.b16 %v1331
  %v1468 = vunpack.c.h.b16 %v1331
  %v1469 = vunpack.c.l.b16 %v1332
  %v1470 = vunpack.c.h.b16 %v1332
  %v1471 = vunpack.c.l.b16 %v1333
  %v1472 = vunpack.c.h.b16 %v1333
  %v1473 = vunpack.c.l.b16 %v1334
  %v1474 = vunpack.c.h.b16 %v1334
  %v1475 = vunpack.c.l.b16 %v1335
  %v1476 = vunpack.c.h.b16 %v1335
  %v1477 = vunpack.c.l.b16 %v1336
  %v1478 = vunpack.c.h.b16 %v1336
  %v1479 = vunpack.c.l.b16 %v1337
  %v1480 = vunpack.c.h.b16 %v1337
  %v1481 = vunpack.c.l.b16 %v1338
  %v1482 = vunpack.c.h.b16 %v1338
  %v1483 = vunpack.c.l.b16 %v1339
  %v1484 = vunpack.c.h.b16 %v1339
  %v1485 = vunpack.c.l.b16 %v1340
  %v1486 = vunpack.c.h.b16 %v1340
  %v1487 = vunpack.c.l.b16 %v1341
  %v1488 = vunpack.c.h.b16 %v1341
  %v1489 = vunpack.c.l.b16 %v1342
  %v1490 = vunpack.c.h.b16 %v1342
  %v1491 = vunpack.c.l.b16 %v1343
  %v1492 = vunpack.c.h.b16 %v1343
  %v1493 = vunpack.c.l.b16 %v1344
  %v1494 = vunpack.c.h.b16 %v1344
  %v1495 = vunpack.c.l.b16 %v1345
  %v1496 = vunpack.c.h.b16 %v1345
  %v1497 = vunpack.c.l.b16 %v1346
  %v1498 = vunpack.c.h.b16 %v1346
  %v1499 = vunpack.c.l.b16 %v1347
  %v1500 = vunpack.c.h.b16 %v1347
  %v1501 = vunpack.c.l.b16 %v1348
  %v1502 = vunpack.c.h.b16 %v1348
  %v1503 = vunpack.c.l.b16 %v1349
  %v1504 = vunpack.c.h.b16 %v1349
  %v1505 = vunpack.c.l.b16 %v1350
  %v1506 = vunpack.c.h.b16 %v1350
  %v1507 = vunpack.c.l.b16 %v1351
  %v1508 = vunpack.c.h.b16 %v1351
  %v1509 = vunpack.c.l.b16 %v1352
  %v1510 = vunpack.c.h.b16 %v1352
  %v1511 = vunpack.c.l.b16 %v1353
  %v1512 = vunpack.c.h.b16 %v1353
  %v1513 = vunpack.c.l.b16 %v1354
  %v1514 = vunpack.c.h.b16 %v1354
  %v1515 = vpack.c.b16 %v1455, %v1451
  %v1516 = vpack.c.b16 %v1456, %v1452
  %v1517 = vpack.c.b16 %v1457, %v1453
  %v1518 = vpack.c.b16 %v1458, %v1454
  %v1519 = vpack.c.b16 %v1463, %v1459
  %v1520 = vpack.c.b16 %v1464, %v1460
  %v1521 = vpack.c.b16 %v1465, %v1461
  %v1522 = vpack.c.b16 %v1466, %v1462
  %v1523 = vpack.c.b16 %v1471, %v1467
  %v1524 = vpack.c.b16 %v1472, %v1468
  %v1525 = vpack.c.b16 %v1473, %v1469
  %v1526 = vpack.c.b16 %v1474, %v1470
  %v1527 = vpack.c.b16 %v1479, %v1475
  %v1528 = vpack.c.b16 %v1480, %v1476
  %v1529 = vpack.c.b16 %v1481, %v1477
  %v1530 = vpack.c.b16 %v1482, %v1478
  %v1531 = vpack.c.b16 %v1487, %v1483
  %v1532 = vpack.c.b16 %v1488, %v1484
  %v1533 = vpack.c.b16 %v1489, %v1485
  %v1534 = vpack.c.b16 %v1490, %v1486
  %v1535 = vpack.c.b16 %v1495, %v1491
  %v1536 = vpack.c.b16 %v1496, %v1492
  %v1537 = vpack.c.b16 %v1497, %v1493
  %v1538 = vpack.c.b16 %v1498, %v1494
  %v1539 = vpack.c.b16 %v1503, %v1499
  %v1540 = vpack.c.b16 %v1504, %v1500
  %v1541 = vpack.c.b16 %v1505, %v1501
  %v1542 = vpack.c.b16 %v1506, %v1502
  %v1543 = vpack.c.b16 %v1511, %v1507
  %v1544 = vpack.c.b16 %v1512, %v1508
  %v1545 = vpack.c.b16 %v1513, %v1509
  %v1546 = vpack.c.b16 %v1514, %v1510
  %v1643 = vunpack.c.l.b16 %v1355
  %v1644 = vunpack.c.l.b16 %v1356
  %v1645 = vunpack.c.l.b16 %v1357
  %v1646 = vunpack.c.l.b16 %v1358
  %v1647 = vunpack.c.l.b16 %v1359
  %v1648 = vunpack.c.l.b16 %v1360
  %v1649 = vunpack.c.l.b16 %v1361
  %v1650 = vunpack.c.l.b16 %v1362
  %v1651 = vunpack.c.l.b16 %v1363
  %v1652 = vunpack.c.l.b16 %v1364
  %v1653 = vunpack.c.l.b16 %v1365
  %v1654 = vunpack.c.l.b16 %v1366
  %v1655 = vunpack.c.l.b16 %v1367
  %v1656 = vunpack.c.l.b16 %v1368
  %v1657 = vunpack.c.l.b16 %v1369
  %v1658 = vunpack.c.l.b16 %v1370
  %v1659 = vunpack.c.l.b16 %v1371
  %v1660 = vunpack.c.l.b16 %v1372
  %v1661 = vunpack.c.l.b16 %v1373
  %v1662 = vunpack.c.l.b16 %v1374
  %v1663 = vunpack.c.l.b16 %v1375
  %v1664 = vunpack.c.l.b16 %v1376
  %v1665 = vunpack.c.l.b16 %v1377
  %v1666 = vunpack.c.l.b16 %v1378
  %v1667 = vunpack.c.l.b16 %v1379
  %v1668 = vunpack.c.l.b16 %v1380
  %v1669 = vunpack.c.l.b16 %v1381
  %v1670 = vunpack.c.l.b16 %v1382
  %v1671 = vunpack.c.l.b16 %v1383
  %v1672 = vunpack.c.l.b16 %v1384
  %v1673 = vunpack.c.l.b16 %v1385
  %v1674 = vunpack.c.l.b16 %v1386
  %v1675 = vunpack.c.l.b16 %v1387
  %v1676 = vunpack.c.l.b16 %v1388
  %v1677 = vunpack.c.l.b16 %v1389
  %v1678 = vunpack.c.l.b16 %v1390
  %v1679 = vunpack.c.l.b16 %v1391
  %v1680 = vunpack.c.l.b16 %v1392
  %v1681 = vunpack.c.l.b16 %v1393
  %v1682 = vunpack.c.l.b16 %v1394
  %v1683 = vunpack.c.l.b16 %v1395
  %v1684 = vunpack.c.l.b16 %v1396
  %v1685 = vunpack.c.l.b16 %v1397
  %v1686 = vunpack.c.l.b16 %v1398
  %v1687 = vunpack.c.l.b16 %v1399
  %v1688 = vunpack.c.l.b16 %v1400
  %v1689 = vunpack.c.l.b16 %v1401
  %v1690 = vunpack.c.l.b16 %v1402
  %v1691 = vunpack.c.l.b16 %v1403
  %v1692 = vunpack.c.l.b16 %v1404
  %v1693 = vunpack.c.l.b16 %v1405
  %v1694 = vunpack.c.l.b16 %v1406
  %v1695 = vunpack.c.l.b16 %v1407
  %v1696 = vunpack.c.l.b16 %v1408
  %v1697 = vunpack.c.l.b16 %v1409
  %v1698 = vunpack.c.l.b16 %v1410
  %v1699 = vunpack.c.l.b16 %v1411
  %v1700 = vunpack.c.l.b16 %v1412
  %v1701 = vunpack.c.l.b16 %v1413
  %v1702 = vunpack.c.l.b16 %v1414
  %v1703 = vunpack.c.l.b16 %v1415
  %v1704 = vunpack.c.l.b16 %v1416
  %v1705 = vunpack.c.l.b16 %v1417
  %v1706 = vunpack.c.l.b16 %v1418
  %v1707 = vpack.c.b16 %v1644, %v1643
  %v1708 = vpack.c.b16 %v1646, %v1645
  %v1709 = vpack.c.b16 %v1648, %v1647
  %v1710 = vpack.c.b16 %v1650, %v1649
  %v1711 = vpack.c.b16 %v1652, %v1651
  %v1712 = vpack.c.b16 %v1654, %v1653
  %v1713 = vpack.c.b16 %v1656, %v1655
  %v1714 = vpack.c.b16 %v1658, %v1657
  %v1715 = vpack.c.b16 %v1660, %v1659
  %v1716 = vpack.c.b16 %v1662, %v1661
  %v1717 = vpack.c.b16 %v1664, %v1663
  %v1718 = vpack.c.b16 %v1666, %v1665
  %v1719 = vpack.c.b16 %v1668, %v1667
  %v1720 = vpack.c.b16 %v1670, %v1669
  %v1721 = vpack.c.b16 %v1672, %v1671
  %v1722 = vpack.c.b16 %v1674, %v1673
  %v1723 = vpack.c.b16 %v1676, %v1675
  %v1724 = vpack.c.b16 %v1678, %v1677
  %v1725 = vpack.c.b16 %v1680, %v1679
  %v1726 = vpack.c.b16 %v1682, %v1681
  %v1727 = vpack.c.b16 %v1684, %v1683
  %v1728 = vpack.c.b16 %v1686, %v1685
  %v1729 = vpack.c.b16 %v1688, %v1687
  %v1730 = vpack.c.b16 %v1690, %v1689
  %v1731 = vpack.c.b16 %v1692, %v1691
  %v1732 = vpack.c.b16 %v1694, %v1693
  %v1733 = vpack.c.b16 %v1696, %v1695
  %v1734 = vpack.c.b16 %v1698, %v1697
  %v1735 = vpack.c.b16 %v1700, %v1699
  %v1736 = vpack.c.b16 %v1702, %v1701
  %v1737 = vpack.c.b16 %v1704, %v1703
  %v1738 = vpack.c.b16 %v1706, %v1705
  %1771 = vmatpush.bf16.msra.mxu0 %v1714
  %1772 = vmatpush.bf16.msra.mxu0 %v1713
  %1773 = vmatpush.bf16.msra.mxu0 %v1712
  %1774 = vmatpush.bf16.msra.mxu0 %v1711
  %1775 = vmatpush.bf16.msra.mxu0 %v1710
  %1776 = vmatpush.bf16.msra.mxu0 %v1709
  %1777 = vmatpush.bf16.msra.mxu0 %v1708
  %1778 = vmatpush.bf16.msra.mxu0 %v1707
  %1779 = vmatmul.bf16.gmra.mxu0 %v1515
  %v1780 = vpop.f32.mrf.mxu0
  %v1781 = vadd.f32 0.0, %v1780
  %v1782 = vpop.f32.mrf.mxu0
  %v1783 = vadd.f32 0.0, %v1782
  %1784 = vmatmul.bf16.gmra.mxu0 %v1519
  %v1785 = vpop.f32.mrf.mxu0
  %v1786 = vadd.f32 0.0, %v1785
  %v1787 = vpop.f32.mrf.mxu0
  %v1788 = vadd.f32 0.0, %v1787
  %1789 = vmatmul.bf16.gmra.mxu0 %v1523
  %v1790 = vpop.f32.mrf.mxu0
  %v1791 = vadd.f32 0.0, %v1790
  %v1792 = vpop.f32.mrf.mxu0
  %v1793 = vadd.f32 0.0, %v1792
  %1794 = vmatmul.bf16.gmra.mxu0 %v1527
  %v1795 = vpop.f32.mrf.mxu0
  %v1796 = vadd.f32 0.0, %v1795
  %v1797 = vpop.f32.mrf.mxu0
  %v1798 = vadd.f32 0.0, %v1797
  %1799 = vmatmul.bf16.gmra.mxu0 %v1531
  %v1800 = vpop.f32.mrf.mxu0
  %v1801 = vadd.f32 0.0, %v1800
  %v1802 = vpop.f32.mrf.mxu0
  %v1803 = vadd.f32 0.0, %v1802
  %1804 = vmatmul.bf16.gmra.mxu0 %v1535
  %v1805 = vpop.f32.mrf.mxu0
  %v1806 = vadd.f32 0.0, %v1805
  %v1807 = vpop.f32.mrf.mxu0
  %v1808 = vadd.f32 0.0, %v1807
  %1809 = vmatmul.bf16.gmra.mxu0 %v1539
  %v1810 = vpop.f32.mrf.mxu0
  %v1811 = vadd.f32 0.0, %v1810
  %v1812 = vpop.f32.mrf.mxu0
  %v1813 = vadd.f32 0.0, %v1812
  %1814 = vmatmul.bf16.gmra.mxu0 %v1543
  %v1815 = vpop.f32.mrf.mxu0
  %v1816 = vadd.f32 0.0, %v1815
  %v1817 = vpop.f32.mrf.mxu0
  %v1818 = vadd.f32 0.0, %v1817
  %1819 = vdwg.mxu0
  %1820 = vmatpush.bf16.msra.mxu0 %v1722
  %1821 = vmatpush.bf16.msra.mxu0 %v1721
  %1822 = vmatpush.bf16.msra.mxu0 %v1720
  %1823 = vmatpush.bf16.msra.mxu0 %v1719
  %1824 = vmatpush.bf16.msra.mxu0 %v1718
  %1825 = vmatpush.bf16.msra.mxu0 %v1717
  %1826 = vmatpush.bf16.msra.mxu0 %v1716
  %1827 = vmatpush.bf16.msra.mxu0 %v1715
  %1828 = vmatmul.bf16.gmra.mxu0 %v1516
  %v1829 = vpop.f32.mrf.mxu0
  %v1830 = vadd.f32 %v1781, %v1829
  %v1831 = vpop.f32.mrf.mxu0
  %v1832 = vadd.f32 %v1783, %v1831
  %1833 = vmatmul.bf16.gmra.mxu0 %v1520
  %v1834 = vpop.f32.mrf.mxu0
  %v1835 = vadd.f32 %v1786, %v1834
  %v1836 = vpop.f32.mrf.mxu0
  %v1837 = vadd.f32 %v1788, %v1836
  %1838 = vmatmul.bf16.gmra.mxu0 %v1524
  %v1839 = vpop.f32.mrf.mxu0
  %v1840 = vadd.f32 %v1791, %v1839
  %v1841 = vpop.f32.mrf.mxu0
  %v1842 = vadd.f32 %v1793, %v1841
  %1843 = vmatmul.bf16.gmra.mxu0 %v1528
  %v1844 = vpop.f32.mrf.mxu0
  %v1845 = vadd.f32 %v1796, %v1844
  %v1846 = vpop.f32.mrf.mxu0
  %v1847 = vadd.f32 %v1798, %v1846
  %1848 = vmatmul.bf16.gmra.mxu0 %v1532
  %v1849 = vpop.f32.mrf.mxu0
  %v1850 = vadd.f32 %v1801, %v1849
  %v1851 = vpop.f32.mrf.mxu0
  %v1852 = vadd.f32 %v1803, %v1851
  %1853 = vmatmul.bf16.gmra.mxu0 %v1536
  %v1854 = vpop.f32.mrf.mxu0
  %v1855 = vadd.f32 %v1806, %v1854
  %v1856 = vpop.f32.mrf.mxu0
  %v1857 = vadd.f32 %v1808, %v1856
  %1858 = vmatmul.bf16.gmra.mxu0 %v1540
  %v1859 = vpop.f32.mrf.mxu0
  %v1860 = vadd.f32 %v1811, %v1859
  %v1861 = vpop.f32.mrf.mxu0
  %v1862 = vadd.f32 %v1813, %v1861
  %1863 = vmatmul.bf16.gmra.mxu0 %v1544
  %v1864 = vpop.f32.mrf.mxu0
  %v1865 = vadd.f32 %v1816, %v1864
  %v1866 = vpop.f32.mrf.mxu0
  %v1867 = vadd.f32 %v1818, %v1866
  %1868 = vdwg.mxu0
  %1869 = vmatpush.bf16.msra.mxu0 %v1730
  %1870 = vmatpush.bf16.msra.mxu0 %v1729
  %1871 = vmatpush.bf16.msra.mxu0 %v1728
  %1872 = vmatpush.bf16.msra.mxu0 %v1727
  %1873 = vmatpush.bf16.msra.mxu0 %v1726
  %1874 = vmatpush.bf16.msra.mxu0 %v1725
  %1875 = vmatpush.bf16.msra.mxu0 %v1724
  %1876 = vmatpush.bf16.msra.mxu0 %v1723
  %1877 = vmatmul.bf16.gmra.mxu0 %v1517
  %v1878 = vpop.f32.mrf.mxu0
  %v1879 = vadd.f32 %v1830, %v1878
  %v1880 = vpop.f32.mrf.mxu0
  %v1881 = vadd.f32 %v1832, %v1880
  %1882 = vmatmul.bf16.gmra.mxu0 %v1521
  %v1883 = vpop.f32.mrf.mxu0
  %v1884 = vadd.f32 %v1835, %v1883
  %v1885 = vpop.f32.mrf.mxu0
  %v1886 = vadd.f32 %v1837, %v1885
  %1887 = vmatmul.bf16.gmra.mxu0 %v1525
  %v1888 = vpop.f32.mrf.mxu0
  %v1889 = vadd.f32 %v1840, %v1888
  %v1890 = vpop.f32.mrf.mxu0
  %v1891 = vadd.f32 %v1842, %v1890
  %1892 = vmatmul.bf16.gmra.mxu0 %v1529
  %v1893 = vpop.f32.mrf.mxu0
  %v1894 = vadd.f32 %v1845, %v1893
  %v1895 = vpop.f32.mrf.mxu0
  %v1896 = vadd.f32 %v1847, %v1895
  %1897 = vmatmul.bf16.gmra.mxu0 %v1533
  %v1898 = vpop.f32.mrf.mxu0
  %v1899 = vadd.f32 %v1850, %v1898
  %v1900 = vpop.f32.mrf.mxu0
  %v1901 = vadd.f32 %v1852, %v1900
  %1902 = vmatmul.bf16.gmra.mxu0 %v1537
  %v1903 = vpop.f32.mrf.mxu0
  %v1904 = vadd.f32 %v1855, %v1903
  %v1905 = vpop.f32.mrf.mxu0
  %v1906 = vadd.f32 %v1857, %v1905
  %1907 = vmatmul.bf16.gmra.mxu0 %v1541
  %v1908 = vpop.f32.mrf.mxu0
  %v1909 = vadd.f32 %v1860, %v1908
  %v1910 = vpop.f32.mrf.mxu0
  %v1911 = vadd.f32 %v1862, %v1910
  %1912 = vmatmul.bf16.gmra.mxu0 %v1545
  %v1913 = vpop.f32.mrf.mxu0
  %v1914 = vadd.f32 %v1865, %v1913
  %v1915 = vpop.f32.mrf.mxu0
  %v1916 = vadd.f32 %v1867, %v1915
  %1917 = vdwg.mxu0
  %1918 = vmatpush.bf16.msra.mxu0 %v1738
  %1919 = vmatpush.bf16.msra.mxu0 %v1737
  %1920 = vmatpush.bf16.msra.mxu0 %v1736
  %1921 = vmatpush.bf16.msra.mxu0 %v1735
  %1922 = vmatpush.bf16.msra.mxu0 %v1734
  %1923 = vmatpush.bf16.msra.mxu0 %v1733
  %1924 = vmatpush.bf16.msra.mxu0 %v1732
  %1925 = vmatpush.bf16.msra.mxu0 %v1731
  %1926 = vmatmul.bf16.gmra.mxu0 %v1518
  %v1927 = vpop.f32.mrf.mxu0
  %v1928 = vadd.f32 %v1879, %v1927
  %v1929 = vpop.f32.mrf.mxu0
  %v1930 = vadd.f32 %v1881, %v1929
  %1931 = vmatmul.bf16.gmra.mxu0 %v1522
  %v1932 = vpop.f32.mrf.mxu0
  %v1933 = vadd.f32 %v1884, %v1932
  %v1934 = vpop.f32.mrf.mxu0
  %v1935 = vadd.f32 %v1886, %v1934
  %1936 = vmatmul.bf16.gmra.mxu0 %v1526
  %v1937 = vpop.f32.mrf.mxu0
  %v1938 = vadd.f32 %v1889, %v1937
  %v1939 = vpop.f32.mrf.mxu0
  %v1940 = vadd.f32 %v1891, %v1939
  %1941 = vmatmul.bf16.gmra.mxu0 %v1530
  %v1942 = vpop.f32.mrf.mxu0
  %v1943 = vadd.f32 %v1894, %v1942
  %v1944 = vpop.f32.mrf.mxu0
  %v1945 = vadd.f32 %v1896, %v1944
  %1946 = vmatmul.bf16.gmra.mxu0 %v1534
  %v1947 = vpop.f32.mrf.mxu0
  %v1948 = vadd.f32 %v1899, %v1947
  %v1949 = vpop.f32.mrf.mxu0
  %v1950 = vadd.f32 %v1901, %v1949
  %1951 = vmatmul.bf16.gmra.mxu0 %v1538
  %v1952 = vpop.f32.mrf.mxu0
  %v1953 = vadd.f32 %v1904, %v1952
  %v1954 = vpop.f32.mrf.mxu0
  %v1955 = vadd.f32 %v1906, %v1954
  %1956 = vmatmul.bf16.gmra.mxu0 %v1542
  %v1957 = vpop.f32.mrf.mxu0
  %v1958 = vadd.f32 %v1909, %v1957
  %v1959 = vpop.f32.mrf.mxu0
  %v1960 = vadd.f32 %v1911, %v1959
  %1961 = vmatmul.bf16.gmra.mxu0 %v1546
  %v1962 = vpop.f32.mrf.mxu0
  %v1963 = vadd.f32 %v1914, %v1962
  %v1964 = vpop.f32.mrf.mxu0
  %v1965 = vadd.f32 %v1916, %v1964
  %1966 = vdwg.mxu0
  %v1967 = vld [vmem:[%s3] sm:$0xff]
  %v1968 = vld [vmem:[%s3 + $0x8] sm:$0xff]
  %v1969 = vld [vmem:[%s3 + $0x10] sm:$0xff]
  %v1970 = vld [vmem:[%s3 + $0x18] sm:$0xff]
  %v1971 = vld [vmem:[%s3 + $0x20] sm:$0xff]
  %v1972 = vld [vmem:[%s3 + $0x28] sm:$0xff]
  %v1973 = vld [vmem:[%s3 + $0x30] sm:$0xff]
  %v1974 = vld [vmem:[%s3 + $0x38] sm:$0xff]
  %v1975 = vld [vmem:[%s3 + $0x40] sm:$0xff]
  %v1976 = vld [vmem:[%s3 + $0x48] sm:$0xff]
  %v1977 = vld [vmem:[%s3 + $0x50] sm:$0xff]
  %v1978 = vld [vmem:[%s3 + $0x58] sm:$0xff]
  %v1979 = vld [vmem:[%s3 + $0x60] sm:$0xff]
  %v1980 = vld [vmem:[%s3 + $0x68] sm:$0xff]
  %v1981 = vld [vmem:[%s3 + $0x70] sm:$0xff]
  %v1982 = vld [vmem:[%s3 + $0x78] sm:$0xff]
  %v1983 = vld [vmem:[%s3 + $0x80] sm:$0xff]
  %v1984 = vld [vmem:[%s3 + $0x88] sm:$0xff]
  %v1985 = vld [vmem:[%s3 + $0x90] sm:$0xff]
  %v1986 = vld [vmem:[%s3 + $0x98] sm:$0xff]
  %v1987 = vld [vmem:[%s3 + $0xa0] sm:$0xff]
  %v1988 = vld [vmem:[%s3 + $0xa8] sm:$0xff]
  %v1989 = vld [vmem:[%s3 + $0xb0] sm:$0xff]
  %v1990 = vld [vmem:[%s3 + $0xb8] sm:$0xff]
  %v1991 = vld [vmem:[%s3 + $0xc0] sm:$0xff]
  %v1992 = vld [vmem:[%s3 + $0xc8] sm:$0xff]
  %v1993 = vld [vmem:[%s3 + $0xd0] sm:$0xff]
  %v1994 = vld [vmem:[%s3 + $0xd8] sm:$0xff]
  %v1995 = vld [vmem:[%s3 + $0xe0] sm:$0xff]
  %v1996 = vld [vmem:[%s3 + $0xe8] sm:$0xff]
  %v1997 = vld [vmem:[%s3 + $0xf0] sm:$0xff]
  %v1998 = vld [vmem:[%s3 + $0xf8] sm:$0xff]
  %v1999 = vld [vmem:[%s7] sm:$0xf]
  %v2000 = vld [vmem:[%s7 + $0x4] sm:$0xf]
  %v2001 = vld [vmem:[%s7 + $0x8] sm:$0xf]
  %v2002 = vld [vmem:[%s7 + $0xc] sm:$0xf]
  %v2003 = vld [vmem:[%s7 + $0x10] sm:$0xf]
  %v2004 = vld [vmem:[%s7 + $0x14] sm:$0xf]
  %v2005 = vld [vmem:[%s7 + $0x18] sm:$0xf]
  %v2006 = vld [vmem:[%s7 + $0x1c] sm:$0xf]
  %v2007 = vld [vmem:[%s7 + $0x20] sm:$0xf]
  %v2008 = vld [vmem:[%s7 + $0x24] sm:$0xf]
  %v2009 = vld [vmem:[%s7 + $0x28] sm:$0xf]
  %v2010 = vld [vmem:[%s7 + $0x2c] sm:$0xf]
  %v2011 = vld [vmem:[%s7 + $0x30] sm:$0xf]
  %v2012 = vld [vmem:[%s7 + $0x34] sm:$0xf]
  %v2013 = vld [vmem:[%s7 + $0x38] sm:$0xf]
  %v2014 = vld [vmem:[%s7 + $0x3c] sm:$0xf]
  %v2015 = vld [vmem:[%s7 + $0x40] sm:$0xf]
  %v2016 = vld [vmem:[%s7 + $0x44] sm:$0xf]
  %v2017 = vld [vmem:[%s7 + $0x48] sm:$0xf]
  %v2018 = vld [vmem:[%s7 + $0x4c] sm:$0xf]
  %v2019 = vld [vmem:[%s7 + $0x50] sm:$0xf]
  %v2020 = vld [vmem:[%s7 + $0x54] sm:$0xf]
  %v2021 = vld [vmem:[%s7 + $0x58] sm:$0xf]
  %v2022 = vld [vmem:[%s7 + $0x5c] sm:$0xf]
  %v2023 = vld [vmem:[%s7 + $0x60] sm:$0xf]
  %v2024 = vld [vmem:[%s7 + $0x64] sm:$0xf]
  %v2025 = vld [vmem:[%s7 + $0x68] sm:$0xf]
  %v2026 = vld [vmem:[%s7 + $0x6c] sm:$0xf]
  %v2027 = vld [vmem:[%s7 + $0x70] sm:$0xf]
  %v2028 = vld [vmem:[%s7 + $0x74] sm:$0xf]
  %v2029 = vld [vmem:[%s7 + $0x78] sm:$0xf]
  %v2030 = vld [vmem:[%s7 + $0x7c] sm:$0xf]
  %v2031 = vld [vmem:[%s7 + $0x80] sm:$0xf]
  %v2032 = vld [vmem:[%s7 + $0x84] sm:$0xf]
  %v2033 = vld [vmem:[%s7 + $0x88] sm:$0xf]
  %v2034 = vld [vmem:[%s7 + $0x8c] sm:$0xf]
  %v2035 = vld [vmem:[%s7 + $0x90] sm:$0xf]
  %v2036 = vld [vmem:[%s7 + $0x94] sm:$0xf]
  %v2037 = vld [vmem:[%s7 + $0x98] sm:$0xf]
  %v2038 = vld [vmem:[%s7 + $0x9c] sm:$0xf]
  %v2039 = vld [vmem:[%s7 + $0xa0] sm:$0xf]
  %v2040 = vld [vmem:[%s7 + $0xa4] sm:$0xf]
  %v2041 = vld [vmem:[%s7 + $0xa8] sm:$0xf]
  %v2042 = vld [vmem:[%s7 + $0xac] sm:$0xf]
  %v2043 = vld [vmem:[%s7 + $0xb0] sm:$0xf]
  %v2044 = vld [vmem:[%s7 + $0xb4] sm:$0xf]
  %v2045 = vld [vmem:[%s7 + $0xb8] sm:$0xf]
  %v2046 = vld [vmem:[%s7 + $0xbc] sm:$0xf]
  %v2047 = vld [vmem:[%s7 + $0xc0] sm:$0xf]
  %v2048 = vld [vmem:[%s7 + $0xc4] sm:$0xf]
  %v2049 = vld [vmem:[%s7 + $0xc8] sm:$0xf]
  %v2050 = vld [vmem:[%s7 + $0xcc] sm:$0xf]
  %v2051 = vld [vmem:[%s7 + $0xd0] sm:$0xf]
  %v2052 = vld [vmem:[%s7 + $0xd4] sm:$0xf]
  %v2053 = vld [vmem:[%s7 + $0xd8] sm:$0xf]
  %v2054 = vld [vmem:[%s7 + $0xdc] sm:$0xf]
  %v2055 = vld [vmem:[%s7 + $0xe0] sm:$0xf]
  %v2056 = vld [vmem:[%s7 + $0xe4] sm:$0xf]
  %v2057 = vld [vmem:[%s7 + $0xe8] sm:$0xf]
  %v2058 = vld [vmem:[%s7 + $0xec] sm:$0xf]
  %v2059 = vld [vmem:[%s7 + $0xf0] sm:$0xf]
  %v2060 = vld [vmem:[%s7 + $0xf4] sm:$0xf]
  %v2061 = vld [vmem:[%s7 + $0xf8] sm:$0xf]
  %v2062 = vld [vmem:[%s7 + $0xfc] sm:$0xf]
  %v2095 = vunpack.c.l.b16 %v1967
  %v2096 = vunpack.c.h.b16 %v1967
  %v2097 = vunpack.c.l.b16 %v1968
  %v2098 = vunpack.c.h.b16 %v1968
  %v2099 = vunpack.c.l.b16 %v1969
  %v2100 = vunpack.c.h.b16 %v1969
  %v2101 = vunpack.c.l.b16 %v1970
  %v2102 = vunpack.c.h.b16 %v1970
  %v2103 = vunpack.c.l.b16 %v1971
  %v2104 = vunpack.c.h.b16 %v1971
  %v2105 = vunpack.c.l.b16 %v1972
  %v2106 = vunpack.c.h.b16 %v1972
  %v2107 = vunpack.c.l.b16 %v1973
  %v2108 = vunpack.c.h.b16 %v1973
  %v2109 = vunpack.c.l.b16 %v1974
  %v2110 = vunpack.c.h.b16 %v1974
  %v2111 = vunpack.c.l.b16 %v1975
  %v2112 = vunpack.c.h.b16 %v1975
  %v2113 = vunpack.c.l.b16 %v1976
  %v2114 = vunpack.c.h.b16 %v1976
  %v2115 = vunpack.c.l.b16 %v1977
  %v2116 = vunpack.c.h.b16 %v1977
  %v2117 = vunpack.c.l.b16 %v1978
  %v2118 = vunpack.c.h.b16 %v1978
  %v2119 = vunpack.c.l.b16 %v1979
  %v2120 = vunpack.c.h.b16 %v1979
  %v2121 = vunpack.c.l.b16 %v1980
  %v2122 = vunpack.c.h.b16 %v1980
  %v2123 = vunpack.c.l.b16 %v1981
  %v2124 = vunpack.c.h.b16 %v1981
  %v2125 = vunpack.c.l.b16 %v1982
  %v2126 = vunpack.c.h.b16 %v1982
  %v2127 = vunpack.c.l.b16 %v1983
  %v2128 = vunpack.c.h.b16 %v1983
  %v2129 = vunpack.c.l.b16 %v1984
  %v2130 = vunpack.c.h.b16 %v1984
  %v2131 = vunpack.c.l.b16 %v1985
  %v2132 = vunpack.c.h.b16 %v1985
  %v2133 = vunpack.c.l.b16 %v1986
  %v2134 = vunpack.c.h.b16 %v1986
  %v2135 = vunpack.c.l.b16 %v1987
  %v2136 = vunpack.c.h.b16 %v1987
  %v2137 = vunpack.c.l.b16 %v1988
  %v2138 = vunpack.c.h.b16 %v1988
  %v2139 = vunpack.c.l.b16 %v1989
  %v2140 = vunpack.c.h.b16 %v1989
  %v2141 = vunpack.c.l.b16 %v1990
  %v2142 = vunpack.c.h.b16 %v1990
  %v2143 = vunpack.c.l.b16 %v1991
  %v2144 = vunpack.c.h.b16 %v1991
  %v2145 = vunpack.c.l.b16 %v1992
  %v2146 = vunpack.c.h.b16 %v1992
  %v2147 = vunpack.c.l.b16 %v1993
  %v2148 = vunpack.c.h.b16 %v1993
  %v2149 = vunpack.c.l.b16 %v1994
  %v2150 = vunpack.c.h.b16 %v1994
  %v2151 = vunpack.c.l.b16 %v1995
  %v2152 = vunpack.c.h.b16 %v1995
  %v2153 = vunpack.c.l.b16 %v1996
  %v2154 = vunpack.c.h.b16 %v1996
  %v2155 = vunpack.c.l.b16 %v1997
  %v2156 = vunpack.c.h.b16 %v1997
  %v2157 = vunpack.c.l.b16 %v1998
  %v2158 = vunpack.c.h.b16 %v1998
  %v2159 = vpack.c.b16 %v2099, %v2095
  %v2160 = vpack.c.b16 %v2100, %v2096
  %v2161 = vpack.c.b16 %v2101, %v2097
  %v2162 = vpack.c.b16 %v2102, %v2098
  %v2163 = vpack.c.b16 %v2107, %v2103
  %v2164 = vpack.c.b16 %v2108, %v2104
  %v2165 = vpack.c.b16 %v2109, %v2105
  %v2166 = vpack.c.b16 %v2110, %v2106
  %v2167 = vpack.c.b16 %v2115, %v2111
  %v2168 = vpack.c.b16 %v2116, %v2112
  %v2169 = vpack.c.b16 %v2117, %v2113
  %v2170 = vpack.c.b16 %v2118, %v2114
  %v2171 = vpack.c.b16 %v2123, %v2119
  %v2172 = vpack.c.b16 %v2124, %v2120
  %v2173 = vpack.c.b16 %v2125, %v2121
  %v2174 = vpack.c.b16 %v2126, %v2122
  %v2175 = vpack.c.b16 %v2131, %v2127
  %v2176 = vpack.c.b16 %v2132, %v2128
  %v2177 = vpack.c.b16 %v2133, %v2129
  %v2178 = vpack.c.b16 %v2134, %v2130
  %v2179 = vpack.c.b16 %v2139, %v2135
  %v2180 = vpack.c.b16 %v2140, %v2136
  %v2181 = vpack.c.b16 %v2141, %v2137
  %v2182 = vpack.c.b16 %v2142, %v2138
  %v2183 = vpack.c.b16 %v2147, %v2143
  %v2184 = vpack.c.b16 %v2148, %v2144
  %v2185 = vpack.c.b16 %v2149, %v2145
  %v2186 = vpack.c.b16 %v2150, %v2146
  %v2187 = vpack.c.b16 %v2155, %v2151
  %v2188 = vpack.c.b16 %v2156, %v2152
  %v2189 = vpack.c.b16 %v2157, %v2153
  %v2190 = vpack.c.b16 %v2158, %v2154
  %v2287 = vunpack.c.l.b16 %v1999
  %v2288 = vunpack.c.l.b16 %v2000
  %v2289 = vunpack.c.l.b16 %v2001
  %v2290 = vunpack.c.l.b16 %v2002
  %v2291 = vunpack.c.l.b16 %v2003
  %v2292 = vunpack.c.l.b16 %v2004
  %v2293 = vunpack.c.l.b16 %v2005
  %v2294 = vunpack.c.l.b16 %v2006
  %v2295 = vunpack.c.l.b16 %v2007
  %v2296 = vunpack.c.l.b16 %v2008
  %v2297 = vunpack.c.l.b16 %v2009
  %v2298 = vunpack.c.l.b16 %v2010
  %v2299 = vunpack.c.l.b16 %v2011
  %v2300 = vunpack.c.l.b16 %v2012
  %v2301 = vunpack.c.l.b16 %v2013
  %v2302 = vunpack.c.l.b16 %v2014
  %v2303 = vunpack.c.l.b16 %v2015
  %v2304 = vunpack.c.l.b16 %v2016
  %v2305 = vunpack.c.l.b16 %v2017
  %v2306 = vunpack.c.l.b16 %v2018
  %v2307 = vunpack.c.l.b16 %v2019
  %v2308 = vunpack.c.l.b16 %v2020
  %v2309 = vunpack.c.l.b16 %v2021
  %v2310 = vunpack.c.l.b16 %v2022
  %v2311 = vunpack.c.l.b16 %v2023
  %v2312 = vunpack.c.l.b16 %v2024
  %v2313 = vunpack.c.l.b16 %v2025
  %v2314 = vunpack.c.l.b16 %v2026
  %v2315 = vunpack.c.l.b16 %v2027
  %v2316 = vunpack.c.l.b16 %v2028
  %v2317 = vunpack.c.l.b16 %v2029
  %v2318 = vunpack.c.l.b16 %v2030
  %v2319 = vunpack.c.l.b16 %v2031
  %v2320 = vunpack.c.l.b16 %v2032
  %v2321 = vunpack.c.l.b16 %v2033
  %v2322 = vunpack.c.l.b16 %v2034
  %v2323 = vunpack.c.l.b16 %v2035
  %v2324 = vunpack.c.l.b16 %v2036
  %v2325 = vunpack.c.l.b16 %v2037
  %v2326 = vunpack.c.l.b16 %v2038
  %v2327 = vunpack.c.l.b16 %v2039
  %v2328 = vunpack.c.l.b16 %v2040
  %v2329 = vunpack.c.l.b16 %v2041
  %v2330 = vunpack.c.l.b16 %v2042
  %v2331 = vunpack.c.l.b16 %v2043
  %v2332 = vunpack.c.l.b16 %v2044
  %v2333 = vunpack.c.l.b16 %v2045
  %v2334 = vunpack.c.l.b16 %v2046
  %v2335 = vunpack.c.l.b16 %v2047
  %v2336 = vunpack.c.l.b16 %v2048
  %v2337 = vunpack.c.l.b16 %v2049
  %v2338 = vunpack.c.l.b16 %v2050
  %v2339 = vunpack.c.l.b16 %v2051
  %v2340 = vunpack.c.l.b16 %v2052
  %v2341 = vunpack.c.l.b16 %v2053
  %v2342 = vunpack.c.l.b16 %v2054
  %v2343 = vunpack.c.l.b16 %v2055
  %v2344 = vunpack.c.l.b16 %v2056
  %v2345 = vunpack.c.l.b16 %v2057
  %v2346 = vunpack.c.l.b16 %v2058
  %v2347 = vunpack.c.l.b16 %v2059
  %v2348 = vunpack.c.l.b16 %v2060
  %v2349 = vunpack.c.l.b16 %v2061
  %v2350 = vunpack.c.l.b16 %v2062
  %v2351 = vpack.c.b16 %v2288, %v2287
  %v2352 = vpack.c.b16 %v2290, %v2289
  %v2353 = vpack.c.b16 %v2292, %v2291
  %v2354 = vpack.c.b16 %v2294, %v2293
  %v2355 = vpack.c.b16 %v2296, %v2295
  %v2356 = vpack.c.b16 %v2298, %v2297
  %v2357 = vpack.c.b16 %v2300, %v2299
  %v2358 = vpack.c.b16 %v2302, %v2301
  %v2359 = vpack.c.b16 %v2304, %v2303
  %v2360 = vpack.c.b16 %v2306, %v2305
  %v2361 = vpack.c.b16 %v2308, %v2307
  %v2362 = vpack.c.b16 %v2310, %v2309
  %v2363 = vpack.c.b16 %v2312, %v2311
  %v2364 = vpack.c.b16 %v2314, %v2313
  %v2365 = vpack.c.b16 %v2316, %v2315
  %v2366 = vpack.c.b16 %v2318, %v2317
  %v2367 = vpack.c.b16 %v2320, %v2319
  %v2368 = vpack.c.b16 %v2322, %v2321
  %v2369 = vpack.c.b16 %v2324, %v2323
  %v2370 = vpack.c.b16 %v2326, %v2325
  %v2371 = vpack.c.b16 %v2328, %v2327
  %v2372 = vpack.c.b16 %v2330, %v2329
  %v2373 = vpack.c.b16 %v2332, %v2331
  %v2374 = vpack.c.b16 %v2334, %v2333
  %v2375 = vpack.c.b16 %v2336, %v2335
  %v2376 = vpack.c.b16 %v2338, %v2337
  %v2377 = vpack.c.b16 %v2340, %v2339
  %v2378 = vpack.c.b16 %v2342, %v2341
  %v2379 = vpack.c.b16 %v2344, %v2343
  %v2380 = vpack.c.b16 %v2346, %v2345
  %v2381 = vpack.c.b16 %v2348, %v2347
  %v2382 = vpack.c.b16 %v2350, %v2349
  %2415 = vmatpush.bf16.msra.mxu0 %v2358
  %2416 = vmatpush.bf16.msra.mxu0 %v2357
  %2417 = vmatpush.bf16.msra.mxu0 %v2356
  %2418 = vmatpush.bf16.msra.mxu0 %v2355
  %2419 = vmatpush.bf16.msra.mxu0 %v2354
  %2420 = vmatpush.bf16.msra.mxu0 %v2353
  %2421 = vmatpush.bf16.msra.mxu0 %v2352
  %2422 = vmatpush.bf16.msra.mxu0 %v2351
  %2423 = vmatmul.bf16.gmra.mxu0 %v2159
  %v2424 = vpop.f32.mrf.mxu0
  %v2425 = vadd.f32 0.0, %v2424
  %v2426 = vpop.f32.mrf.mxu0
  %v2427 = vadd.f32 0.0, %v2426
  %2428 = vmatmul.bf16.gmra.mxu0 %v2163
  %v2429 = vpop.f32.mrf.mxu0
  %v2430 = vadd.f32 0.0, %v2429
  %v2431 = vpop.f32.mrf.mxu0
  %v2432 = vadd.f32 0.0, %v2431
  %2433 = vmatmul.bf16.gmra.mxu0 %v2167
  %v2434 = vpop.f32.mrf.mxu0
  %v2435 = vadd.f32 0.0, %v2434
  %v2436 = vpop.f32.mrf.mxu0
  %v2437 = vadd.f32 0.0, %v2436
  %2438 = vmatmul.bf16.gmra.mxu0 %v2171
  %v2439 = vpop.f32.mrf.mxu0
  %v2440 = vadd.f32 0.0, %v2439
  %v2441 = vpop.f32.mrf.mxu0
  %v2442 = vadd.f32 0.0, %v2441
  %2443 = vmatmul.bf16.gmra.mxu0 %v2175
  %v2444 = vpop.f32.mrf.mxu0
  %v2445 = vadd.f32 0.0, %v2444
  %v2446 = vpop.f32.mrf.mxu0
  %v2447 = vadd.f32 0.0, %v2446
  %2448 = vmatmul.bf16.gmra.mxu0 %v2179
  %v2449 = vpop.f32.mrf.mxu0
  %v2450 = vadd.f32 0.0, %v2449
  %v2451 = vpop.f32.mrf.mxu0
  %v2452 = vadd.f32 0.0, %v2451
  %2453 = vmatmul.bf16.gmra.mxu0 %v2183
  %v2454 = vpop.f32.mrf.mxu0
  %v2455 = vadd.f32 0.0, %v2454
  %v2456 = vpop.f32.mrf.mxu0
  %v2457 = vadd.f32 0.0, %v2456
  %2458 = vmatmul.bf16.gmra.mxu0 %v2187
  %v2459 = vpop.f32.mrf.mxu0
  %v2460 = vadd.f32 0.0, %v2459
  %v2461 = vpop.f32.mrf.mxu0
  %v2462 = vadd.f32 0.0, %v2461
  %2463 = vdwg.mxu0
  %2464 = vmatpush.bf16.msra.mxu0 %v2366
  %2465 = vmatpush.bf16.msra.mxu0 %v2365
  %2466 = vmatpush.bf16.msra.mxu0 %v2364
  %2467 = vmatpush.bf16.msra.mxu0 %v2363
  %2468 = vmatpush.bf16.msra.mxu0 %v2362
  %2469 = vmatpush.bf16.msra.mxu0 %v2361
  %2470 = vmatpush.bf16.msra.mxu0 %v2360
  %2471 = vmatpush.bf16.msra.mxu0 %v2359
  %2472 = vmatmul.bf16.gmra.mxu0 %v2160
  %v2473 = vpop.f32.mrf.mxu0
  %v2474 = vadd.f32 %v2425, %v2473
  %v2475 = vpop.f32.mrf.mxu0
  %v2476 = vadd.f32 %v2427, %v2475
  %2477 = vmatmul.bf16.gmra.mxu0 %v2164
  %v2478 = vpop.f32.mrf.mxu0
  %v2479 = vadd.f32 %v2430, %v2478
  %v2480 = vpop.f32.mrf.mxu0
  %v2481 = vadd.f32 %v2432, %v2480
  %2482 = vmatmul.bf16.gmra.mxu0 %v2168
  %v2483 = vpop.f32.mrf.mxu0
  %v2484 = vadd.f32 %v2435, %v2483
  %v2485 = vpop.f32.mrf.mxu0
  %v2486 = vadd.f32 %v2437, %v2485
  %2487 = vmatmul.bf16.gmra.mxu0 %v2172
  %v2488 = vpop.f32.mrf.mxu0
  %v2489 = vadd.f32 %v2440, %v2488
  %v2490 = vpop.f32.mrf.mxu0
  %v2491 = vadd.f32 %v2442, %v2490
  %2492 = vmatmul.bf16.gmra.mxu0 %v2176
  %v2493 = vpop.f32.mrf.mxu0
  %v2494 = vadd.f32 %v2445, %v2493
  %v2495 = vpop.f32.mrf.mxu0
  %v2496 = vadd.f32 %v2447, %v2495
  %2497 = vmatmul.bf16.gmra.mxu0 %v2180
  %v2498 = vpop.f32.mrf.mxu0
  %v2499 = vadd.f32 %v2450, %v2498
  %v2500 = vpop.f32.mrf.mxu0
  %v2501 = vadd.f32 %v2452, %v2500
  %2502 = vmatmul.bf16.gmra.mxu0 %v2184
  %v2503 = vpop.f32.mrf.mxu0
  %v2504 = vadd.f32 %v2455, %v2503
  %v2505 = vpop.f32.mrf.mxu0
  %v2506 = vadd.f32 %v2457, %v2505
  %2507 = vmatmul.bf16.gmra.mxu0 %v2188
  %v2508 = vpop.f32.mrf.mxu0
  %v2509 = vadd.f32 %v2460, %v2508
  %v2510 = vpop.f32.mrf.mxu0
  %v2511 = vadd.f32 %v2462, %v2510
  %2512 = vdwg.mxu0
  %2513 = vmatpush.bf16.msra.mxu0 %v2374
  %2514 = vmatpush.bf16.msra.mxu0 %v2373
  %2515 = vmatpush.bf16.msra.mxu0 %v2372
  %2516 = vmatpush.bf16.msra.mxu0 %v2371
  %2517 = vmatpush.bf16.msra.mxu0 %v2370
  %2518 = vmatpush.bf16.msra.mxu0 %v2369
  %2519 = vmatpush.bf16.msra.mxu0 %v2368
  %2520 = vmatpush.bf16.msra.mxu0 %v2367
  %2521 = vmatmul.bf16.gmra.mxu0 %v2161
  %v2522 = vpop.f32.mrf.mxu0
  %v2523 = vadd.f32 %v2474, %v2522
  %v2524 = vpop.f32.mrf.mxu0
  %v2525 = vadd.f32 %v2476, %v2524
  %2526 = vmatmul.bf16.gmra.mxu0 %v2165
  %v2527 = vpop.f32.mrf.mxu0
  %v2528 = vadd.f32 %v2479, %v2527
  %v2529 = vpop.f32.mrf.mxu0
  %v2530 = vadd.f32 %v2481, %v2529
  %2531 = vmatmul.bf16.gmra.mxu0 %v2169
  %v2532 = vpop.f32.mrf.mxu0
  %v2533 = vadd.f32 %v2484, %v2532
  %v2534 = vpop.f32.mrf.mxu0
  %v2535 = vadd.f32 %v2486, %v2534
  %2536 = vmatmul.bf16.gmra.mxu0 %v2173
  %v2537 = vpop.f32.mrf.mxu0
  %v2538 = vadd.f32 %v2489, %v2537
  %v2539 = vpop.f32.mrf.mxu0
  %v2540 = vadd.f32 %v2491, %v2539
  %2541 = vmatmul.bf16.gmra.mxu0 %v2177
  %v2542 = vpop.f32.mrf.mxu0
  %v2543 = vadd.f32 %v2494, %v2542
  %v2544 = vpop.f32.mrf.mxu0
  %v2545 = vadd.f32 %v2496, %v2544
  %2546 = vmatmul.bf16.gmra.mxu0 %v2181
  %v2547 = vpop.f32.mrf.mxu0
  %v2548 = vadd.f32 %v2499, %v2547
  %v2549 = vpop.f32.mrf.mxu0
  %v2550 = vadd.f32 %v2501, %v2549
  %2551 = vmatmul.bf16.gmra.mxu0 %v2185
  %v2552 = vpop.f32.mrf.mxu0
  %v2553 = vadd.f32 %v2504, %v2552
  %v2554 = vpop.f32.mrf.mxu0
  %v2555 = vadd.f32 %v2506, %v2554
  %2556 = vmatmul.bf16.gmra.mxu0 %v2189
  %v2557 = vpop.f32.mrf.mxu0
  %v2558 = vadd.f32 %v2509, %v2557
  %v2559 = vpop.f32.mrf.mxu0
  %v2560 = vadd.f32 %v2511, %v2559
  %2561 = vdwg.mxu0
  %2562 = vmatpush.bf16.msra.mxu0 %v2382
  %2563 = vmatpush.bf16.msra.mxu0 %v2381
  %2564 = vmatpush.bf16.msra.mxu0 %v2380
  %2565 = vmatpush.bf16.msra.mxu0 %v2379
  %2566 = vmatpush.bf16.msra.mxu0 %v2378
  %2567 = vmatpush.bf16.msra.mxu0 %v2377
  %2568 = vmatpush.bf16.msra.mxu0 %v2376
  %2569 = vmatpush.bf16.msra.mxu0 %v2375
  %2570 = vmatmul.bf16.gmra.mxu0 %v2162
  %v2571 = vpop.f32.mrf.mxu0
  %v2572 = vadd.f32 %v2523, %v2571
  %v2573 = vpop.f32.mrf.mxu0
  %v2574 = vadd.f32 %v2525, %v2573
  %2575 = vmatmul.bf16.gmra.mxu0 %v2166
  %v2576 = vpop.f32.mrf.mxu0
  %v2577 = vadd.f32 %v2528, %v2576
  %v2578 = vpop.f32.mrf.mxu0
  %v2579 = vadd.f32 %v2530, %v2578
  %2580 = vmatmul.bf16.gmra.mxu0 %v2170
  %v2581 = vpop.f32.mrf.mxu0
  %v2582 = vadd.f32 %v2533, %v2581
  %v2583 = vpop.f32.mrf.mxu0
  %v2584 = vadd.f32 %v2535, %v2583
  %2585 = vmatmul.bf16.gmra.mxu0 %v2174
  %v2586 = vpop.f32.mrf.mxu0
  %v2587 = vadd.f32 %v2538, %v2586
  %v2588 = vpop.f32.mrf.mxu0
  %v2589 = vadd.f32 %v2540, %v2588
  %2590 = vmatmul.bf16.gmra.mxu0 %v2178
  %v2591 = vpop.f32.mrf.mxu0
  %v2592 = vadd.f32 %v2543, %v2591
  %v2593 = vpop.f32.mrf.mxu0
  %v2594 = vadd.f32 %v2545, %v2593
  %2595 = vmatmul.bf16.gmra.mxu0 %v2182
  %v2596 = vpop.f32.mrf.mxu0
  %v2597 = vadd.f32 %v2548, %v2596
  %v2598 = vpop.f32.mrf.mxu0
  %v2599 = vadd.f32 %v2550, %v2598
  %2600 = vmatmul.bf16.gmra.mxu0 %v2186
  %v2601 = vpop.f32.mrf.mxu0
  %v2602 = vadd.f32 %v2553, %v2601
  %v2603 = vpop.f32.mrf.mxu0
  %v2604 = vadd.f32 %v2555, %v2603
  %2605 = vmatmul.bf16.gmra.mxu0 %v2190
  %v2606 = vpop.f32.mrf.mxu0
  %v2607 = vadd.f32 %v2558, %v2606
  %v2608 = vpop.f32.mrf.mxu0
  %v2609 = vadd.f32 %v2560, %v2608
  %2610 = vdwg.mxu0
  %vm2611 = vcmask 523264
  %v2612 = vsel %vm2611, %v640, 0.0
  %v2613 = vsel %vm2611, %v642, 0.0
  %v2614 = vadd.f32 %v2612, %v2613
  %v2615 = vsel %vm2611, %v645, 0.0
  %v2616 = vadd.f32 %v2614, %v2615
  %v2617 = vsel %vm2611, %v647, 0.0
  %v2618 = vadd.f32 %v2616, %v2617
  %v2619 = vsel %vm2611, %v650, 0.0
  %v2620 = vadd.f32 %v2618, %v2619
  %v2621 = vsel %vm2611, %v652, 0.0
  %v2622 = vadd.f32 %v2620, %v2621
  %v2623 = vsel %vm2611, %v655, 0.0
  %v2624 = vadd.f32 %v2622, %v2623
  %v2625 = vsel %vm2611, %v657, 0.0
  %v2626 = vadd.f32 %v2624, %v2625
  %v2627 = vsel %vm2611, %v660, 0.0
  %v2628 = vadd.f32 %v2626, %v2627
  %v2629 = vsel %vm2611, %v662, 0.0
  %v2630 = vadd.f32 %v2628, %v2629
  %v2631 = vsel %vm2611, %v665, 0.0
  %v2632 = vadd.f32 %v2630, %v2631
  %v2633 = vsel %vm2611, %v667, 0.0
  %v2634 = vadd.f32 %v2632, %v2633
  %v2635 = vsel %vm2611, %v670, 0.0
  %v2636 = vadd.f32 %v2634, %v2635
  %v2637 = vsel %vm2611, %v672, 0.0
  %v2638 = vadd.f32 %v2636, %v2637
  %v2639 = vsel %vm2611, %v675, 0.0
  %v2640 = vadd.f32 %v2638, %v2639
  %v2641 = vsel %vm2611, %v677, 0.0
  %v2642 = vadd.f32 %v2640, %v2641
  %v2643 = vrot.slane %v2642, 4
  %v2644 = vadd.f32 %v2642, %v2643
  %v2645 = vrot.slane %v2644, 2
  %v2646 = vadd.f32 %v2644, %v2645
  %v2647 = vrot.slane %v2646, 1
  %v2648 = vadd.f32 %v2646, %v2647
  %v2649 = vadd.f32 %v2648, 0.0
  %v2650 = vmul.f32 %v640, %v640
  %v2651 = vmul.f32 %v642, %v642
  %v2652 = vmul.f32 %v645, %v645
  %v2653 = vmul.f32 %v647, %v647
  %v2654 = vmul.f32 %v650, %v650
  %v2655 = vmul.f32 %v652, %v652
  %v2656 = vmul.f32 %v655, %v655
  %v2657 = vmul.f32 %v657, %v657
  %v2658 = vmul.f32 %v660, %v660
  %v2659 = vmul.f32 %v662, %v662
  %v2660 = vmul.f32 %v665, %v665
  %v2661 = vmul.f32 %v667, %v667
  %v2662 = vmul.f32 %v670, %v670
  %v2663 = vmul.f32 %v672, %v672
  %v2664 = vmul.f32 %v675, %v675
  %v2665 = vmul.f32 %v677, %v677
  %v2666 = vsel %vm2611, %v2650, 0.0
  %v2667 = vsel %vm2611, %v2651, 0.0
  %v2668 = vadd.f32 %v2666, %v2667
  %v2669 = vsel %vm2611, %v2652, 0.0
  %v2670 = vadd.f32 %v2668, %v2669
  %v2671 = vsel %vm2611, %v2653, 0.0
  %v2672 = vadd.f32 %v2670, %v2671
  %v2673 = vsel %vm2611, %v2654, 0.0
  %v2674 = vadd.f32 %v2672, %v2673
  %v2675 = vsel %vm2611, %v2655, 0.0
  %v2676 = vadd.f32 %v2674, %v2675
  %v2677 = vsel %vm2611, %v2656, 0.0
  %v2678 = vadd.f32 %v2676, %v2677
  %v2679 = vsel %vm2611, %v2657, 0.0
  %v2680 = vadd.f32 %v2678, %v2679
  %v2681 = vsel %vm2611, %v2658, 0.0
  %v2682 = vadd.f32 %v2680, %v2681
  %v2683 = vsel %vm2611, %v2659, 0.0
  %v2684 = vadd.f32 %v2682, %v2683
  %v2685 = vsel %vm2611, %v2660, 0.0
  %v2686 = vadd.f32 %v2684, %v2685
  %v2687 = vsel %vm2611, %v2661, 0.0
  %v2688 = vadd.f32 %v2686, %v2687
  %v2689 = vsel %vm2611, %v2662, 0.0
  %v2690 = vadd.f32 %v2688, %v2689
  %v2691 = vsel %vm2611, %v2663, 0.0
  %v2692 = vadd.f32 %v2690, %v2691
  %v2693 = vsel %vm2611, %v2664, 0.0
  %v2694 = vadd.f32 %v2692, %v2693
  %v2695 = vsel %vm2611, %v2665, 0.0
  %v2696 = vadd.f32 %v2694, %v2695
  %v2697 = vrot.slane %v2696, 4
  %v2698 = vadd.f32 %v2696, %v2697
  %v2699 = vrot.slane %v2698, 2
  %v2700 = vadd.f32 %v2698, %v2699
  %v2701 = vrot.slane %v2700, 1
  %v2702 = vadd.f32 %v2700, %v2701
  %v2703 = vadd.f32 %v2702, 0.0
  %v2704 = vsel %vm2611, %v1284, 0.0
  %v2705 = vsel %vm2611, %v1286, 0.0
  %v2706 = vadd.f32 %v2704, %v2705
  %v2707 = vsel %vm2611, %v1289, 0.0
  %v2708 = vadd.f32 %v2706, %v2707
  %v2709 = vsel %vm2611, %v1291, 0.0
  %v2710 = vadd.f32 %v2708, %v2709
  %v2711 = vsel %vm2611, %v1294, 0.0
  %v2712 = vadd.f32 %v2710, %v2711
  %v2713 = vsel %vm2611, %v1296, 0.0
  %v2714 = vadd.f32 %v2712, %v2713
  %v2715 = vsel %vm2611, %v1299, 0.0
  %v2716 = vadd.f32 %v2714, %v2715
  %v2717 = vsel %vm2611, %v1301, 0.0
  %v2718 = vadd.f32 %v2716, %v2717
  %v2719 = vsel %vm2611, %v1304, 0.0
  %v2720 = vadd.f32 %v2718, %v2719
  %v2721 = vsel %vm2611, %v1306, 0.0
  %v2722 = vadd.f32 %v2720, %v2721
  %v2723 = vsel %vm2611, %v1309, 0.0
  %v2724 = vadd.f32 %v2722, %v2723
  %v2725 = vsel %vm2611, %v1311, 0.0
  %v2726 = vadd.f32 %v2724, %v2725
  %v2727 = vsel %vm2611, %v1314, 0.0
  %v2728 = vadd.f32 %v2726, %v2727
  %v2729 = vsel %vm2611, %v1316, 0.0
  %v2730 = vadd.f32 %v2728, %v2729
  %v2731 = vsel %vm2611, %v1319, 0.0
  %v2732 = vadd.f32 %v2730, %v2731
  %v2733 = vsel %vm2611, %v1321, 0.0
  %v2734 = vadd.f32 %v2732, %v2733
  %v2735 = vrot.slane %v2734, 4
  %v2736 = vadd.f32 %v2734, %v2735
  %v2737 = vrot.slane %v2736, 2
  %v2738 = vadd.f32 %v2736, %v2737
  %v2739 = vrot.slane %v2738, 1
  %v2740 = vadd.f32 %v2738, %v2739
  %v2741 = vadd.f32 %v2649, %v2740
  %v2742 = vmul.f32 %v1284, %v1284
  %v2743 = vmul.f32 %v1286, %v1286
  %v2744 = vmul.f32 %v1289, %v1289
  %v2745 = vmul.f32 %v1291, %v1291
  %v2746 = vmul.f32 %v1294, %v1294
  %v2747 = vmul.f32 %v1296, %v1296
  %v2748 = vmul.f32 %v1299, %v1299
  %v2749 = vmul.f32 %v1301, %v1301
  %v2750 = vmul.f32 %v1304, %v1304
  %v2751 = vmul.f32 %v1306, %v1306
  %v2752 = vmul.f32 %v1309, %v1309
  %v2753 = vmul.f32 %v1311, %v1311
  %v2754 = vmul.f32 %v1314, %v1314
  %v2755 = vmul.f32 %v1316, %v1316
  %v2756 = vmul.f32 %v1319, %v1319
  %v2757 = vmul.f32 %v1321, %v1321
  %v2758 = vsel %vm2611, %v2742, 0.0
  %v2759 = vsel %vm2611, %v2743, 0.0
  %v2760 = vadd.f32 %v2758, %v2759
  %v2761 = vsel %vm2611, %v2744, 0.0
  %v2762 = vadd.f32 %v2760, %v2761
  %v2763 = vsel %vm2611, %v2745, 0.0
  %v2764 = vadd.f32 %v2762, %v2763
  %v2765 = vsel %vm2611, %v2746, 0.0
  %v2766 = vadd.f32 %v2764, %v2765
  %v2767 = vsel %vm2611, %v2747, 0.0
  %v2768 = vadd.f32 %v2766, %v2767
  %v2769 = vsel %vm2611, %v2748, 0.0
  %v2770 = vadd.f32 %v2768, %v2769
  %v2771 = vsel %vm2611, %v2749, 0.0
  %v2772 = vadd.f32 %v2770, %v2771
  %v2773 = vsel %vm2611, %v2750, 0.0
  %v2774 = vadd.f32 %v2772, %v2773
  %v2775 = vsel %vm2611, %v2751, 0.0
  %v2776 = vadd.f32 %v2774, %v2775
  %v2777 = vsel %vm2611, %v2752, 0.0
  %v2778 = vadd.f32 %v2776, %v2777
  %v2779 = vsel %vm2611, %v2753, 0.0
  %v2780 = vadd.f32 %v2778, %v2779
  %v2781 = vsel %vm2611, %v2754, 0.0
  %v2782 = vadd.f32 %v2780, %v2781
  %v2783 = vsel %vm2611, %v2755, 0.0
  %v2784 = vadd.f32 %v2782, %v2783
  %v2785 = vsel %vm2611, %v2756, 0.0
  %v2786 = vadd.f32 %v2784, %v2785
  %v2787 = vsel %vm2611, %v2757, 0.0
  %v2788 = vadd.f32 %v2786, %v2787
  %v2789 = vrot.slane %v2788, 4
  %v2790 = vadd.f32 %v2788, %v2789
  %v2791 = vrot.slane %v2790, 2
  %v2792 = vadd.f32 %v2790, %v2791
  %v2793 = vrot.slane %v2792, 1
  %v2794 = vadd.f32 %v2792, %v2793
  %v2795 = vadd.f32 %v2703, %v2794
  %v2796 = vsel %vm2611, %v1928, 0.0
  %v2797 = vsel %vm2611, %v1930, 0.0
  %v2798 = vadd.f32 %v2796, %v2797
  %v2799 = vsel %vm2611, %v1933, 0.0
  %v2800 = vadd.f32 %v2798, %v2799
  %v2801 = vsel %vm2611, %v1935, 0.0
  %v2802 = vadd.f32 %v2800, %v2801
  %v2803 = vsel %vm2611, %v1938, 0.0
  %v2804 = vadd.f32 %v2802, %v2803
  %v2805 = vsel %vm2611, %v1940, 0.0
  %v2806 = vadd.f32 %v2804, %v2805
  %v2807 = vsel %vm2611, %v1943, 0.0
  %v2808 = vadd.f32 %v2806, %v2807
  %v2809 = vsel %vm2611, %v1945, 0.0
  %v2810 = vadd.f32 %v2808, %v2809
  %v2811 = vsel %vm2611, %v1948, 0.0
  %v2812 = vadd.f32 %v2810, %v2811
  %v2813 = vsel %vm2611, %v1950, 0.0
  %v2814 = vadd.f32 %v2812, %v2813
  %v2815 = vsel %vm2611, %v1953, 0.0
  %v2816 = vadd.f32 %v2814, %v2815
  %v2817 = vsel %vm2611, %v1955, 0.0
  %v2818 = vadd.f32 %v2816, %v2817
  %v2819 = vsel %vm2611, %v1958, 0.0
  %v2820 = vadd.f32 %v2818, %v2819
  %v2821 = vsel %vm2611, %v1960, 0.0
  %v2822 = vadd.f32 %v2820, %v2821
  %v2823 = vsel %vm2611, %v1963, 0.0
  %v2824 = vadd.f32 %v2822, %v2823
  %v2825 = vsel %vm2611, %v1965, 0.0
  %v2826 = vadd.f32 %v2824, %v2825
  %v2827 = vrot.slane %v2826, 4
  %v2828 = vadd.f32 %v2826, %v2827
  %v2829 = vrot.slane %v2828, 2
  %v2830 = vadd.f32 %v2828, %v2829
  %v2831 = vrot.slane %v2830, 1
  %v2832 = vadd.f32 %v2830, %v2831
  %v2833 = vadd.f32 %v2741, %v2832
  %v2834 = vmul.f32 %v1928, %v1928
  %v2835 = vmul.f32 %v1930, %v1930
  %v2836 = vmul.f32 %v1933, %v1933
  %v2837 = vmul.f32 %v1935, %v1935
  %v2838 = vmul.f32 %v1938, %v1938
  %v2839 = vmul.f32 %v1940, %v1940
  %v2840 = vmul.f32 %v1943, %v1943
  %v2841 = vmul.f32 %v1945, %v1945
  %v2842 = vmul.f32 %v1948, %v1948
  %v2843 = vmul.f32 %v1950, %v1950
  %v2844 = vmul.f32 %v1953, %v1953
  %v2845 = vmul.f32 %v1955, %v1955
  %v2846 = vmul.f32 %v1958, %v1958
  %v2847 = vmul.f32 %v1960, %v1960
  %v2848 = vmul.f32 %v1963, %v1963
  %v2849 = vmul.f32 %v1965, %v1965
  %v2850 = vsel %vm2611, %v2834, 0.0
  %v2851 = vsel %vm2611, %v2835, 0.0
  %v2852 = vadd.f32 %v2850, %v2851
  %v2853 = vsel %vm2611, %v2836, 0.0
  %v2854 = vadd.f32 %v2852, %v2853
  %v2855 = vsel %vm2611, %v2837, 0.0
  %v2856 = vadd.f32 %v2854, %v2855
  %v2857 = vsel %vm2611, %v2838, 0.0
  %v2858 = vadd.f32 %v2856, %v2857
  %v2859 = vsel %vm2611, %v2839, 0.0
  %v2860 = vadd.f32 %v2858, %v2859
  %v2861 = vsel %vm2611, %v2840, 0.0
  %v2862 = vadd.f32 %v2860, %v2861
  %v2863 = vsel %vm2611, %v2841, 0.0
  %v2864 = vadd.f32 %v2862, %v2863
  %v2865 = vsel %vm2611, %v2842, 0.0
  %v2866 = vadd.f32 %v2864, %v2865
  %v2867 = vsel %vm2611, %v2843, 0.0
  %v2868 = vadd.f32 %v2866, %v2867
  %v2869 = vsel %vm2611, %v2844, 0.0
  %v2870 = vadd.f32 %v2868, %v2869
  %v2871 = vsel %vm2611, %v2845, 0.0
  %v2872 = vadd.f32 %v2870, %v2871
  %v2873 = vsel %vm2611, %v2846, 0.0
  %v2874 = vadd.f32 %v2872, %v2873
  %v2875 = vsel %vm2611, %v2847, 0.0
  %v2876 = vadd.f32 %v2874, %v2875
  %v2877 = vsel %vm2611, %v2848, 0.0
  %v2878 = vadd.f32 %v2876, %v2877
  %v2879 = vsel %vm2611, %v2849, 0.0
  %v2880 = vadd.f32 %v2878, %v2879
  %v2881 = vrot.slane %v2880, 4
  %v2882 = vadd.f32 %v2880, %v2881
  %v2883 = vrot.slane %v2882, 2
  %v2884 = vadd.f32 %v2882, %v2883
  %v2885 = vrot.slane %v2884, 1
  %v2886 = vadd.f32 %v2884, %v2885
  %v2887 = vadd.f32 %v2795, %v2886
  %v2888 = vsel %vm2611, %v2572, 0.0
  %v2889 = vsel %vm2611, %v2574, 0.0
  %v2890 = vadd.f32 %v2888, %v2889
  %v2891 = vsel %vm2611, %v2577, 0.0
  %v2892 = vadd.f32 %v2890, %v2891
  %v2893 = vsel %vm2611, %v2579, 0.0
  %v2894 = vadd.f32 %v2892, %v2893
  %v2895 = vsel %vm2611, %v2582, 0.0
  %v2896 = vadd.f32 %v2894, %v2895
  %v2897 = vsel %vm2611, %v2584, 0.0
  %v2898 = vadd.f32 %v2896, %v2897
  %v2899 = vsel %vm2611, %v2587, 0.0
  %v2900 = vadd.f32 %v2898, %v2899
  %v2901 = vsel %vm2611, %v2589, 0.0
  %v2902 = vadd.f32 %v2900, %v2901
  %v2903 = vsel %vm2611, %v2592, 0.0
  %v2904 = vadd.f32 %v2902, %v2903
  %v2905 = vsel %vm2611, %v2594, 0.0
  %v2906 = vadd.f32 %v2904, %v2905
  %v2907 = vsel %vm2611, %v2597, 0.0
  %v2908 = vadd.f32 %v2906, %v2907
  %v2909 = vsel %vm2611, %v2599, 0.0
  %v2910 = vadd.f32 %v2908, %v2909
  %v2911 = vsel %vm2611, %v2602, 0.0
  %v2912 = vadd.f32 %v2910, %v2911
  %v2913 = vsel %vm2611, %v2604, 0.0
  %v2914 = vadd.f32 %v2912, %v2913
  %v2915 = vsel %vm2611, %v2607, 0.0
  %v2916 = vadd.f32 %v2914, %v2915
  %v2917 = vsel %vm2611, %v2609, 0.0
  %v2918 = vadd.f32 %v2916, %v2917
  %v2919 = vrot.slane %v2918, 4
  %v2920 = vadd.f32 %v2918, %v2919
  %v2921 = vrot.slane %v2920, 2
  %v2922 = vadd.f32 %v2920, %v2921
  %v2923 = vrot.slane %v2922, 1
  %v2924 = vadd.f32 %v2922, %v2923
  %v2925 = vadd.f32 %v2833, %v2924
  %v2926 = vmul.f32 %v2572, %v2572
  %v2927 = vmul.f32 %v2574, %v2574
  %v2928 = vmul.f32 %v2577, %v2577
  %v2929 = vmul.f32 %v2579, %v2579
  %v2930 = vmul.f32 %v2582, %v2582
  %v2931 = vmul.f32 %v2584, %v2584
  %v2932 = vmul.f32 %v2587, %v2587
  %v2933 = vmul.f32 %v2589, %v2589
  %v2934 = vmul.f32 %v2592, %v2592
  %v2935 = vmul.f32 %v2594, %v2594
  %v2936 = vmul.f32 %v2597, %v2597
  %v2937 = vmul.f32 %v2599, %v2599
  %v2938 = vmul.f32 %v2602, %v2602
  %v2939 = vmul.f32 %v2604, %v2604
  %v2940 = vmul.f32 %v2607, %v2607
  %v2941 = vmul.f32 %v2609, %v2609
  %v2942 = vsel %vm2611, %v2926, 0.0
  %v2943 = vsel %vm2611, %v2927, 0.0
  %v2944 = vadd.f32 %v2942, %v2943
  %v2945 = vsel %vm2611, %v2928, 0.0
  %v2946 = vadd.f32 %v2944, %v2945
  %v2947 = vsel %vm2611, %v2929, 0.0
  %v2948 = vadd.f32 %v2946, %v2947
  %v2949 = vsel %vm2611, %v2930, 0.0
  %v2950 = vadd.f32 %v2948, %v2949
  %v2951 = vsel %vm2611, %v2931, 0.0
  %v2952 = vadd.f32 %v2950, %v2951
  %v2953 = vsel %vm2611, %v2932, 0.0
  %v2954 = vadd.f32 %v2952, %v2953
  %v2955 = vsel %vm2611, %v2933, 0.0
  %v2956 = vadd.f32 %v2954, %v2955
  %v2957 = vsel %vm2611, %v2934, 0.0
  %v2958 = vadd.f32 %v2956, %v2957
  %v2959 = vsel %vm2611, %v2935, 0.0
  %v2960 = vadd.f32 %v2958, %v2959
  %v2961 = vsel %vm2611, %v2936, 0.0
  %v2962 = vadd.f32 %v2960, %v2961
  %v2963 = vsel %vm2611, %v2937, 0.0
  %v2964 = vadd.f32 %v2962, %v2963
  %v2965 = vsel %vm2611, %v2938, 0.0
  %v2966 = vadd.f32 %v2964, %v2965
  %v2967 = vsel %vm2611, %v2939, 0.0
  %v2968 = vadd.f32 %v2966, %v2967
  %v2969 = vsel %vm2611, %v2940, 0.0
  %v2970 = vadd.f32 %v2968, %v2969
  %v2971 = vsel %vm2611, %v2941, 0.0
  %v2972 = vadd.f32 %v2970, %v2971
  %v2973 = vrot.slane %v2972, 4
  %v2974 = vadd.f32 %v2972, %v2973
  %v2975 = vrot.slane %v2974, 2
  %v2976 = vadd.f32 %v2974, %v2975
  %v2977 = vrot.slane %v2976, 1
  %v2978 = vadd.f32 %v2976, %v2977
  %v2979 = vadd.f32 %v2887, %v2978
  %v2980 = vmul.f32 %v2925, 0.001953125
  %v2981 = vmul.f32 %v2979, 0.001953125
  %v2982 = vmul.f32 %v2980, %v2980
  %v2983 = vsub.f32 %v2981, %v2982
  %v2984 = vmax.f32 %v2983, 0.0
  %v2985 = vadd.f32 %v2984, 1e-05
  %v2986 = vrsqrt.pop %v2985
  %v2987 = vmul.f32 %v2986, %v2985
  %v2988 = vmul.f32 %v2987, %v2986
  %v2989 = vmul.f32 0.5, %v2988
  %v2990 = vsub.f32 1.5, %v2989
  %v2991 = vmul.f32 %v2986, %v2990
  %vm2992 = vweird.f32 %v2985
  %vm2993 = vweird.f32 %v2986
  %vm2994 = vmor %vm2992, %vm2993
  %v2995 = vsel %vm2994, %v2986, %v2991
  %v2996 = vld [vmem:[%s8] sm:$0x1]
  %v2997 = vmul.f32 %v2995, %v2996
  %v2998 = vld [vmem:[%s9] sm:$0x1]
  %v2999 = vmul.f32 %v2980, %v2997
  %v3000 = vsub.f32 %v2998, %v2999
  %v3001 = vperm.slane %v2997, 0
  %v3002 = vmul.f32 %v640, %v3001
  %v3003 = vmul.f32 %v642, %v3001
  %v3004 = vmul.f32 %v645, %v3001
  %v3005 = vmul.f32 %v647, %v3001
  %v3006 = vmul.f32 %v650, %v3001
  %v3007 = vmul.f32 %v652, %v3001
  %v3008 = vmul.f32 %v655, %v3001
  %v3009 = vmul.f32 %v657, %v3001
  %v3010 = vmul.f32 %v660, %v3001
  %v3011 = vmul.f32 %v662, %v3001
  %v3012 = vmul.f32 %v665, %v3001
  %v3013 = vmul.f32 %v667, %v3001
  %v3014 = vmul.f32 %v670, %v3001
  %v3015 = vmul.f32 %v672, %v3001
  %v3016 = vmul.f32 %v675, %v3001
  %v3017 = vmul.f32 %v677, %v3001
  %v3019 = vperm.slane %v3000, 0
  %v3021 = vadd.f32 %v3002, %v3019
  %v3022 = vadd.f32 %v3003, %v3019
  %v3023 = vadd.f32 %v3004, %v3019
  %v3024 = vadd.f32 %v3005, %v3019
  %v3025 = vadd.f32 %v3006, %v3019
  %v3026 = vadd.f32 %v3007, %v3019
  %v3027 = vadd.f32 %v3008, %v3019
  %v3028 = vadd.f32 %v3009, %v3019
  %v3029 = vadd.f32 %v3010, %v3019
  %v3030 = vadd.f32 %v3011, %v3019
  %v3031 = vadd.f32 %v3012, %v3019
  %v3032 = vadd.f32 %v3013, %v3019
  %v3033 = vadd.f32 %v3014, %v3019
  %v3034 = vadd.f32 %v3015, %v3019
  %v3035 = vadd.f32 %v3016, %v3019
  %v3036 = vadd.f32 %v3017, %v3019
  %v3037 = vmax.f32 %v3021, 0.0
  %v3038 = vmax.f32 %v3022, 0.0
  %v3039 = vmax.f32 %v3023, 0.0
  %v3040 = vmax.f32 %v3024, 0.0
  %v3041 = vmax.f32 %v3025, 0.0
  %v3042 = vmax.f32 %v3026, 0.0
  %v3043 = vmax.f32 %v3027, 0.0
  %v3044 = vmax.f32 %v3028, 0.0
  %v3045 = vmax.f32 %v3029, 0.0
  %v3046 = vmax.f32 %v3030, 0.0
  %v3047 = vmax.f32 %v3031, 0.0
  %v3048 = vmax.f32 %v3032, 0.0
  %v3049 = vmax.f32 %v3033, 0.0
  %v3050 = vmax.f32 %v3034, 0.0
  %v3051 = vmax.f32 %v3035, 0.0
  %v3052 = vmax.f32 %v3036, 0.0
  %v3053 = vmul.f32 %v1284, %v3001
  %v3054 = vmul.f32 %v1286, %v3001
  %v3055 = vmul.f32 %v1289, %v3001
  %v3056 = vmul.f32 %v1291, %v3001
  %v3057 = vmul.f32 %v1294, %v3001
  %v3058 = vmul.f32 %v1296, %v3001
  %v3059 = vmul.f32 %v1299, %v3001
  %v3060 = vmul.f32 %v1301, %v3001
  %v3061 = vmul.f32 %v1304, %v3001
  %v3062 = vmul.f32 %v1306, %v3001
  %v3063 = vmul.f32 %v1309, %v3001
  %v3064 = vmul.f32 %v1311, %v3001
  %v3065 = vmul.f32 %v1314, %v3001
  %v3066 = vmul.f32 %v1316, %v3001
  %v3067 = vmul.f32 %v1319, %v3001
  %v3068 = vmul.f32 %v1321, %v3001
  %v3069 = vadd.f32 %v3053, %v3019
  %v3070 = vadd.f32 %v3054, %v3019
  %v3071 = vadd.f32 %v3055, %v3019
  %v3072 = vadd.f32 %v3056, %v3019
  %v3073 = vadd.f32 %v3057, %v3019
  %v3074 = vadd.f32 %v3058, %v3019
  %v3075 = vadd.f32 %v3059, %v3019
  %v3076 = vadd.f32 %v3060, %v3019
  %v3077 = vadd.f32 %v3061, %v3019
  %v3078 = vadd.f32 %v3062, %v3019
  %v3079 = vadd.f32 %v3063, %v3019
  %v3080 = vadd.f32 %v3064, %v3019
  %v3081 = vadd.f32 %v3065, %v3019
  %v3082 = vadd.f32 %v3066, %v3019
  %v3083 = vadd.f32 %v3067, %v3019
  %v3084 = vadd.f32 %v3068, %v3019
  %v3085 = vmax.f32 %v3069, 0.0
  %v3086 = vmax.f32 %v3070, 0.0
  %v3087 = vmax.f32 %v3071, 0.0
  %v3088 = vmax.f32 %v3072, 0.0
  %v3089 = vmax.f32 %v3073, 0.0
  %v3090 = vmax.f32 %v3074, 0.0
  %v3091 = vmax.f32 %v3075, 0.0
  %v3092 = vmax.f32 %v3076, 0.0
  %v3093 = vmax.f32 %v3077, 0.0
  %v3094 = vmax.f32 %v3078, 0.0
  %v3095 = vmax.f32 %v3079, 0.0
  %v3096 = vmax.f32 %v3080, 0.0
  %v3097 = vmax.f32 %v3081, 0.0
  %v3098 = vmax.f32 %v3082, 0.0
  %v3099 = vmax.f32 %v3083, 0.0
  %v3100 = vmax.f32 %v3084, 0.0
  %v3101 = vmul.f32 %v1928, %v3001
  %v3102 = vmul.f32 %v1930, %v3001
  %v3103 = vmul.f32 %v1933, %v3001
  %v3104 = vmul.f32 %v1935, %v3001
  %v3105 = vmul.f32 %v1938, %v3001
  %v3106 = vmul.f32 %v1940, %v3001
  %v3107 = vmul.f32 %v1943, %v3001
  %v3108 = vmul.f32 %v1945, %v3001
  %v3109 = vmul.f32 %v1948, %v3001
  %v3110 = vmul.f32 %v1950, %v3001
  %v3111 = vmul.f32 %v1953, %v3001
  %v3112 = vmul.f32 %v1955, %v3001
  %v3113 = vmul.f32 %v1958, %v3001
  %v3114 = vmul.f32 %v1960, %v3001
  %v3115 = vmul.f32 %v1963, %v3001
  %v3116 = vmul.f32 %v1965, %v3001
  %v3117 = vadd.f32 %v3101, %v3019
  %v3118 = vadd.f32 %v3102, %v3019
  %v3119 = vadd.f32 %v3103, %v3019
  %v3120 = vadd.f32 %v3104, %v3019
  %v3121 = vadd.f32 %v3105, %v3019
  %v3122 = vadd.f32 %v3106, %v3019
  %v3123 = vadd.f32 %v3107, %v3019
  %v3124 = vadd.f32 %v3108, %v3019
  %v3125 = vadd.f32 %v3109, %v3019
  %v3126 = vadd.f32 %v3110, %v3019
  %v3127 = vadd.f32 %v3111, %v3019
  %v3128 = vadd.f32 %v3112, %v3019
  %v3129 = vadd.f32 %v3113, %v3019
  %v3130 = vadd.f32 %v3114, %v3019
  %v3131 = vadd.f32 %v3115, %v3019
  %v3132 = vadd.f32 %v3116, %v3019
  %v3133 = vmax.f32 %v3117, 0.0
  %v3134 = vmax.f32 %v3118, 0.0
  %v3135 = vmax.f32 %v3119, 0.0
  %v3136 = vmax.f32 %v3120, 0.0
  %v3137 = vmax.f32 %v3121, 0.0
  %v3138 = vmax.f32 %v3122, 0.0
  %v3139 = vmax.f32 %v3123, 0.0
  %v3140 = vmax.f32 %v3124, 0.0
  %v3141 = vmax.f32 %v3125, 0.0
  %v3142 = vmax.f32 %v3126, 0.0
  %v3143 = vmax.f32 %v3127, 0.0
  %v3144 = vmax.f32 %v3128, 0.0
  %v3145 = vmax.f32 %v3129, 0.0
  %v3146 = vmax.f32 %v3130, 0.0
  %v3147 = vmax.f32 %v3131, 0.0
  %v3148 = vmax.f32 %v3132, 0.0
  %v3149 = vmul.f32 %v2572, %v3001
  %v3150 = vmul.f32 %v2574, %v3001
  %v3151 = vmul.f32 %v2577, %v3001
  %v3152 = vmul.f32 %v2579, %v3001
  %v3153 = vmul.f32 %v2582, %v3001
  %v3154 = vmul.f32 %v2584, %v3001
  %v3155 = vmul.f32 %v2587, %v3001
  %v3156 = vmul.f32 %v2589, %v3001
  %v3157 = vmul.f32 %v2592, %v3001
  %v3158 = vmul.f32 %v2594, %v3001
  %v3159 = vmul.f32 %v2597, %v3001
  %v3160 = vmul.f32 %v2599, %v3001
  %v3161 = vmul.f32 %v2602, %v3001
  %v3162 = vmul.f32 %v2604, %v3001
  %v3163 = vmul.f32 %v2607, %v3001
  %v3164 = vmul.f32 %v2609, %v3001
  %v3165 = vadd.f32 %v3149, %v3019
  %v3166 = vadd.f32 %v3150, %v3019
  %v3167 = vadd.f32 %v3151, %v3019
  %v3168 = vadd.f32 %v3152, %v3019
  %v3169 = vadd.f32 %v3153, %v3019
  %v3170 = vadd.f32 %v3154, %v3019
  %v3171 = vadd.f32 %v3155, %v3019
  %v3172 = vadd.f32 %v3156, %v3019
  %v3173 = vadd.f32 %v3157, %v3019
  %v3174 = vadd.f32 %v3158, %v3019
  %v3175 = vadd.f32 %v3159, %v3019
  %v3176 = vadd.f32 %v3160, %v3019
  %v3177 = vadd.f32 %v3161, %v3019
  %v3178 = vadd.f32 %v3162, %v3019
  %v3179 = vadd.f32 %v3163, %v3019
  %v3180 = vadd.f32 %v3164, %v3019
  %v3181 = vmax.f32 %v3165, 0.0
  %v3182 = vmax.f32 %v3166, 0.0
  %v3183 = vmax.f32 %v3167, 0.0
  %v3184 = vmax.f32 %v3168, 0.0
  %v3185 = vmax.f32 %v3169, 0.0
  %v3186 = vmax.f32 %v3170, 0.0
  %v3187 = vmax.f32 %v3171, 0.0
  %v3188 = vmax.f32 %v3172, 0.0
  %v3189 = vmax.f32 %v3173, 0.0
  %v3190 = vmax.f32 %v3174, 0.0
  %v3191 = vmax.f32 %v3175, 0.0
  %v3192 = vmax.f32 %v3176, 0.0
  %v3193 = vmax.f32 %v3177, 0.0
  %v3194 = vmax.f32 %v3178, 0.0
  %v3195 = vmax.f32 %v3179, 0.0
  %v3196 = vmax.f32 %v3180, 0.0
  %3213 = vrot.lane.b32.xlu0 %v3085, 64
  %v3214 = vpop.permute.xlu0 %3213
  %3215 = vrot.lane.b32.xlu0 %v3086, 64
  %v3216 = vpop.permute.xlu0 %3215
  %3217 = vrot.lane.b32.xlu0 %v3087, 64
  %v3218 = vpop.permute.xlu0 %3217
  %3219 = vrot.lane.b32.xlu0 %v3088, 64
  %v3220 = vpop.permute.xlu0 %3219
  %3221 = vrot.lane.b32.xlu0 %v3089, 64
  %v3222 = vpop.permute.xlu0 %3221
  %3223 = vrot.lane.b32.xlu0 %v3090, 64
  %v3224 = vpop.permute.xlu0 %3223
  %3225 = vrot.lane.b32.xlu0 %v3091, 64
  %v3226 = vpop.permute.xlu0 %3225
  %3227 = vrot.lane.b32.xlu0 %v3092, 64
  %v3228 = vpop.permute.xlu0 %3227
  %3229 = vrot.lane.b32.xlu0 %v3093, 64
  %v3230 = vpop.permute.xlu0 %3229
  %3231 = vrot.lane.b32.xlu0 %v3094, 64
  %v3232 = vpop.permute.xlu0 %3231
  %3233 = vrot.lane.b32.xlu0 %v3095, 64
  %v3234 = vpop.permute.xlu0 %3233
  %3235 = vrot.lane.b32.xlu0 %v3096, 64
  %v3236 = vpop.permute.xlu0 %3235
  %3237 = vrot.lane.b32.xlu0 %v3097, 64
  %v3238 = vpop.permute.xlu0 %3237
  %3239 = vrot.lane.b32.xlu0 %v3098, 64
  %v3240 = vpop.permute.xlu0 %3239
  %3241 = vrot.lane.b32.xlu0 %v3099, 64
  %v3242 = vpop.permute.xlu0 %3241
  %3243 = vrot.lane.b32.xlu0 %v3100, 64
  %v3244 = vpop.permute.xlu0 %3243
  %3277 = vrot.lane.b32.xlu0 %v3181, 64
  %v3278 = vpop.permute.xlu0 %3277
  %3279 = vrot.lane.b32.xlu0 %v3182, 64
  %v3280 = vpop.permute.xlu0 %3279
  %3281 = vrot.lane.b32.xlu0 %v3183, 64
  %v3282 = vpop.permute.xlu0 %3281
  %3283 = vrot.lane.b32.xlu0 %v3184, 64
  %v3284 = vpop.permute.xlu0 %3283
  %3285 = vrot.lane.b32.xlu0 %v3185, 64
  %v3286 = vpop.permute.xlu0 %3285
  %3287 = vrot.lane.b32.xlu0 %v3186, 64
  %v3288 = vpop.permute.xlu0 %3287
  %3289 = vrot.lane.b32.xlu0 %v3187, 64
  %v3290 = vpop.permute.xlu0 %3289
  %3291 = vrot.lane.b32.xlu0 %v3188, 64
  %v3292 = vpop.permute.xlu0 %3291
  %3293 = vrot.lane.b32.xlu0 %v3189, 64
  %v3294 = vpop.permute.xlu0 %3293
  %3295 = vrot.lane.b32.xlu0 %v3190, 64
  %v3296 = vpop.permute.xlu0 %3295
  %3297 = vrot.lane.b32.xlu0 %v3191, 64
  %v3298 = vpop.permute.xlu0 %3297
  %3299 = vrot.lane.b32.xlu0 %v3192, 64
  %v3300 = vpop.permute.xlu0 %3299
  %3301 = vrot.lane.b32.xlu0 %v3193, 64
  %v3302 = vpop.permute.xlu0 %3301
  %3303 = vrot.lane.b32.xlu0 %v3194, 64
  %v3304 = vpop.permute.xlu0 %3303
  %3305 = vrot.lane.b32.xlu0 %v3195, 64
  %v3306 = vpop.permute.xlu0 %3305
  %3307 = vrot.lane.b32.xlu0 %v3196, 64
  %v3308 = vpop.permute.xlu0 %3307
  %v3325 = vsel %vm2611, %v3037, %v3214
  %v3326 = vsel %vm2611, %v3038, %v3216
  %v3327 = vsel %vm2611, %v3039, %v3218
  %v3328 = vsel %vm2611, %v3040, %v3220
  %v3329 = vsel %vm2611, %v3041, %v3222
  %v3330 = vsel %vm2611, %v3042, %v3224
  %v3331 = vsel %vm2611, %v3043, %v3226
  %v3332 = vsel %vm2611, %v3044, %v3228
  %v3333 = vsel %vm2611, %v3045, %v3230
  %v3334 = vsel %vm2611, %v3046, %v3232
  %v3335 = vsel %vm2611, %v3047, %v3234
  %v3336 = vsel %vm2611, %v3048, %v3236
  %v3337 = vsel %vm2611, %v3049, %v3238
  %v3338 = vsel %vm2611, %v3050, %v3240
  %v3339 = vsel %vm2611, %v3051, %v3242
  %v3340 = vsel %vm2611, %v3052, %v3244
  %v3341 = vsel %vm2611, %v3133, %v3278
  %v3342 = vsel %vm2611, %v3134, %v3280
  %v3343 = vsel %vm2611, %v3135, %v3282
  %v3344 = vsel %vm2611, %v3136, %v3284
  %v3345 = vsel %vm2611, %v3137, %v3286
  %v3346 = vsel %vm2611, %v3138, %v3288
  %v3347 = vsel %vm2611, %v3139, %v3290
  %v3348 = vsel %vm2611, %v3140, %v3292
  %v3349 = vsel %vm2611, %v3141, %v3294
  %v3350 = vsel %vm2611, %v3142, %v3296
  %v3351 = vsel %vm2611, %v3143, %v3298
  %v3352 = vsel %vm2611, %v3144, %v3300
  %v3353 = vsel %vm2611, %v3145, %v3302
  %v3354 = vsel %vm2611, %v3146, %v3304
  %v3355 = vsel %vm2611, %v3147, %v3306
  %v3356 = vsel %vm2611, %v3148, %v3308
  %v3357 = vpack.c.bf16 %v3341, %v3325
  %v3358 = vpack.c.bf16 %v3342, %v3326
  %v3359 = vpack.c.bf16 %v3343, %v3327
  %v3360 = vpack.c.bf16 %v3344, %v3328
  %v3361 = vpack.c.bf16 %v3345, %v3329
  %v3362 = vpack.c.bf16 %v3346, %v3330
  %v3363 = vpack.c.bf16 %v3347, %v3331
  %v3364 = vpack.c.bf16 %v3348, %v3332
  %v3365 = vpack.c.bf16 %v3349, %v3333
  %v3366 = vpack.c.bf16 %v3350, %v3334
  %v3367 = vpack.c.bf16 %v3351, %v3335
  %v3368 = vpack.c.bf16 %v3352, %v3336
  %v3369 = vpack.c.bf16 %v3353, %v3337
  %v3370 = vpack.c.bf16 %v3354, %v3338
  %v3371 = vpack.c.bf16 %v3355, %v3339
  %v3372 = vpack.c.bf16 %v3356, %v3340
  %3373 = vst [vmem:[%s10] sm:$0xff] %v3357
  %3374 = vst [vmem:[%s10 + $0x8] sm:$0xff] %v3358
  %3375 = vst [vmem:[%s10 + $0x10] sm:$0xff] %v3359
  %3376 = vst [vmem:[%s10 + $0x18] sm:$0xff] %v3360
  %3377 = vst [vmem:[%s10 + $0x20] sm:$0xff] %v3361
  %3378 = vst [vmem:[%s10 + $0x28] sm:$0xff] %v3362
  %3379 = vst [vmem:[%s10 + $0x30] sm:$0xff] %v3363
  %3380 = vst [vmem:[%s10 + $0x38] sm:$0xff] %v3364
  %3381 = vst [vmem:[%s10 + $0x40] sm:$0xff] %v3365
  %3382 = vst [vmem:[%s10 + $0x48] sm:$0xff] %v3366
  %3383 = vst [vmem:[%s10 + $0x50] sm:$0xff] %v3367
  %3384 = vst [vmem:[%s10 + $0x58] sm:$0xff] %v3368
  %3385 = vst [vmem:[%s10 + $0x60] sm:$0xff] %v3369
  %3386 = vst [vmem:[%s10 + $0x68] sm:$0xff] %v3370
  %3387 = vst [vmem:[%s10 + $0x70] sm:$0xff] %v3371
  %3388 = vst [vmem:[%s10 + $0x78] sm:$0xff] %v3372
  // Predicated region
  $region42: #{generator_forward.6} parent=0 // pred_check
    _
  $region43: #{generator_forward.6} parent=0 // pred_check_branch
    %3390 = sbr.rel (0) target = $region45
  $region44: #{generator_forward.6} parent=0 // pred_region
    _
  $region45: #{generator_forward.6} parent=0 // pred_fallthru
    _
  // Predicated region
  $region46: #{generator_forward.6} parent=0 // pred_check
    _
  $region47: #{generator_forward.6} parent=0 // pred_check_branch
    %3392 = sbr.rel (0) target = $region49
  $region48: #{generator_forward.6} parent=0 // pred_region
    _
  $region49: #{generator_forward.6} parent=0 // pred_fallthru
    _

// kernel: generator_forward.7
$region0: #{generator_forward.7}
  #allocation0 [shape = 'u32[]', space=smem, size = 0x4, offset = 0x4, fixed_abs, tag = 'smem constant byte address 0x4 - core index']
  #allocation1 [shape = 'u32[72,128]{1,0:T(1,128)}', space=vmem, size = 0x9000, scoped, tag = 'internal scratch']
  %s0 = inlined_call_operand.vmem [shape: bf16[512,576], index: 0, kind: input, shape index: {}]
  %s1 = inlined_call_operand.vmem [shape: bf16[576,128], index: 1, kind: input, shape index: {}]
  %s2 = inlined_call_operand.vmem [shape: f32[512,128], index: 2, kind: output, shape index: {}]
  %s3 = sld [smem:[#allocation0]]
  $region18: #{generator_forward.7} parent=0
    _
  %s5 = ssub.s32 1, %s3
  %s6 = scalar_select 0, %s5, %s3
  // Predicated region
  $region2: #{generator_forward.7} parent=0 // pred_check
    _
  $region3: #{generator_forward.7} parent=0 // pred_check_branch
    %8 = sbr.rel (0) target = $region5
  $region4: #{generator_forward.7} parent=0 // pred_region
    _
  $region5: #{generator_forward.7} parent=0 // pred_fallthru
    _
  // Predicated region
  $region6: #{generator_forward.7} parent=0 // pred_check
    _
  $region7: #{generator_forward.7} parent=0 // pred_check_branch
    %10 = sbr.rel (0) target = $region9
  $region8: #{generator_forward.7} parent=0 // pred_region
    _
  $region9: #{generator_forward.7} parent=0 // pred_fallthru
    _
  %v12 = vld [vmem:[%s0] sm:$0xff]
  %v13 = vld [vmem:[%s0 + $0x8] sm:$0xff]
  %v14 = vld [vmem:[%s0 + $0x10] sm:$0xf]
  %v15 = vld [vmem:[%s0 + $0x14] sm:$0xff]
  %v16 = vld [vmem:[%s0 + $0x1c] sm:$0xff]
  %v17 = vld [vmem:[%s0 + $0x24] sm:$0xf]
  %v18 = vld [vmem:[%s0 + $0x28] sm:$0xff]
  %v19 = vld [vmem:[%s0 + $0x30] sm:$0xff]
  %v20 = vld [vmem:[%s0 + $0x38] sm:$0xf]
  %v21 = vld [vmem:[%s0 + $0x3c] sm:$0xff]
  %v22 = vld [vmem:[%s0 + $0x44] sm:$0xff]
  %v23 = vld [vmem:[%s0 + $0x4c] sm:$0xf]
  %v24 = vld [vmem:[%s0 + $0x50] sm:$0xff]
  %v25 = vld [vmem:[%s0 + $0x58] sm:$0xff]
  %v26 = vld [vmem:[%s0 + $0x60] sm:$0xf]
  %v27 = vld [vmem:[%s0 + $0x64] sm:$0xff]
  %v28 = vld [vmem:[%s0 + $0x6c] sm:$0xff]
  %v29 = vld [vmem:[%s0 + $0x74] sm:$0xf]
  %v30 = vld [vmem:[%s0 + $0x78] sm:$0xff]
  %v31 = vld [vmem:[%s0 + $0x80] sm:$0xff]
  %v32 = vld [vmem:[%s0 + $0x88] sm:$0xf]
  %v33 = vld [vmem:[%s0 + $0x8c] sm:$0xff]
  %v34 = vld [vmem:[%s0 + $0x94] sm:$0xff]
  %v35 = vld [vmem:[%s0 + $0x9c] sm:$0xf]
  %v36 = vld [vmem:[%s0 + $0xa0] sm:$0xff]
  %v37 = vld [vmem:[%s0 + $0xa8] sm:$0xff]
  %v38 = vld [vmem:[%s0 + $0xb0] sm:$0xf]
  %v39 = vld [vmem:[%s0 + $0xb4] sm:$0xff]
  %v40 = vld [vmem:[%s0 + $0xbc] sm:$0xff]
  %v41 = vld [vmem:[%s0 + $0xc4] sm:$0xf]
  %v42 = vld [vmem:[%s0 + $0xc8] sm:$0xff]
  %v43 = vld [vmem:[%s0 + $0xd0] sm:$0xff]
  %v44 = vld [vmem:[%s0 + $0xd8] sm:$0xf]
  %v45 = vld [vmem:[%s0 + $0xdc] sm:$0xff]
  %v46 = vld [vmem:[%s0 + $0xe4] sm:$0xff]
  %v47 = vld [vmem:[%s0 + $0xec] sm:$0xf]
  %v48 = vld [vmem:[%s0 + $0xf0] sm:$0xff]
  %v49 = vld [vmem:[%s0 + $0xf8] sm:$0xff]
  %v50 = vld [vmem:[%s0 + $0x100] sm:$0xf]
  %v51 = vld [vmem:[%s0 + $0x104] sm:$0xff]
  %v52 = vld [vmem:[%s0 + $0x10c] sm:$0xff]
  %v53 = vld [vmem:[%s0 + $0x114] sm:$0xf]
  %v54 = vld [vmem:[%s0 + $0x118] sm:$0xff]
  %v55 = vld [vmem:[%s0 + $0x120] sm:$0xff]
  %v56 = vld [vmem:[%s0 + $0x128] sm:$0xf]
  %v57 = vld [vmem:[%s0 + $0x12c] sm:$0xff]
  %v58 = vld [vmem:[%s0 + $0x134] sm:$0xff]
  %v59 = vld [vmem:[%s0 + $0x13c] sm:$0xf]
  %v60 = vld [vmem:[%s0 + $0x140] sm:$0xff]
  %v61 = vld [vmem:[%s0 + $0x148] sm:$0xff]
  %v62 = vld [vmem:[%s0 + $0x150] sm:$0xf]
  %v63 = vld [vmem:[%s0 + $0x154] sm:$0xff]
  %v64 = vld [vmem:[%s0 + $0x15c] sm:$0xff]
  %v65 = vld [vmem:[%s0 + $0x164] sm:$0xf]
  %v66 = vld [vmem:[%s0 + $0x168] sm:$0xff]
  %v67 = vld [vmem:[%s0 + $0x170] sm:$0xff]
  %v68 = vld [vmem:[%s0 + $0x178] sm:$0xf]
  %v69 = vld [vmem:[%s0 + $0x17c] sm:$0xff]
  %v70 = vld [vmem:[%s0 + $0x184] sm:$0xff]
  %v71 = vld [vmem:[%s0 + $0x18c] sm:$0xf]
  %v72 = vld [vmem:[%s0 + $0x190] sm:$0xff]
  %v73 = vld [vmem:[%s0 + $0x198] sm:$0xff]
  %v74 = vld [vmem:[%s0 + $0x1a0] sm:$0xf]
  %v75 = vld [vmem:[%s0 + $0x1a4] sm:$0xff]
  %v76 = vld [vmem:[%s0 + $0x1ac] sm:$0xff]
  %v77 = vld [vmem:[%s0 + $0x1b4] sm:$0xf]
  %v78 = vld [vmem:[%s0 + $0x1b8] sm:$0xff]
  %v79 = vld [vmem:[%s0 + $0x1c0] sm:$0xff]
  %v80 = vld [vmem:[%s0 + $0x1c8] sm:$0xf]
  %v81 = vld [vmem:[%s0 + $0x1cc] sm:$0xff]
  %v82 = vld [vmem:[%s0 + $0x1d4] sm:$0xff]
  %v83 = vld [vmem:[%s0 + $0x1dc] sm:$0xf]
  %v84 = vld [vmem:[%s0 + $0x1e0] sm:$0xff]
  %v85 = vld [vmem:[%s0 + $0x1e8] sm:$0xff]
  %v86 = vld [vmem:[%s0 + $0x1f0] sm:$0xf]
  %v87 = vld [vmem:[%s0 + $0x1f4] sm:$0xff]
  %v88 = vld [vmem:[%s0 + $0x1fc] sm:$0xff]
  %v89 = vld [vmem:[%s0 + $0x204] sm:$0xf]
  %v90 = vld [vmem:[%s0 + $0x208] sm:$0xff]
  %v91 = vld [vmem:[%s0 + $0x210] sm:$0xff]
  %v92 = vld [vmem:[%s0 + $0x218] sm:$0xf]
  %v93 = vld [vmem:[%s0 + $0x21c] sm:$0xff]
  %v94 = vld [vmem:[%s0 + $0x224] sm:$0xff]
  %v95 = vld [vmem:[%s0 + $0x22c] sm:$0xf]
  %v96 = vld [vmem:[%s0 + $0x230] sm:$0xff]
  %v97 = vld [vmem:[%s0 + $0x238] sm:$0xff]
  %v98 = vld [vmem:[%s0 + $0x240] sm:$0xf]
  %v99 = vld [vmem:[%s0 + $0x244] sm:$0xff]
  %v100 = vld [vmem:[%s0 + $0x24c] sm:$0xff]
  %v101 = vld [vmem:[%s0 + $0x254] sm:$0xf]
  %v102 = vld [vmem:[%s0 + $0x258] sm:$0xff]
  %v103 = vld [vmem:[%s0 + $0x260] sm:$0xff]
  %v104 = vld [vmem:[%s0 + $0x268] sm:$0xf]
  %v105 = vld [vmem:[%s0 + $0x26c] sm:$0xff]
  %v106 = vld [vmem:[%s0 + $0x274] sm:$0xff]
  %v107 = vld [vmem:[%s0 + $0x27c] sm:$0xf]
  %v108 = vld [vmem:[%s0 + $0x280] sm:$0xff]
  %v109 = vld [vmem:[%s0 + $0x288] sm:$0xff]
  %v110 = vld [vmem:[%s0 + $0x290] sm:$0xf]
  %v111 = vld [vmem:[%s0 + $0x294] sm:$0xff]
  %v112 = vld [vmem:[%s0 + $0x29c] sm:$0xff]
  %v113 = vld [vmem:[%s0 + $0x2a4] sm:$0xf]
  %v114 = vld [vmem:[%s0 + $0x2a8] sm:$0xff]
  %v115 = vld [vmem:[%s0 + $0x2b0] sm:$0xff]
  %v116 = vld [vmem:[%s0 + $0x2b8] sm:$0xf]
  %v117 = vld [vmem:[%s0 + $0x2bc] sm:$0xff]
  %v118 = vld [vmem:[%s0 + $0x2c4] sm:$0xff]
  %v119 = vld [vmem:[%s0 + $0x2cc] sm:$0xf]
  %v120 = vld [vmem:[%s0 + $0x2d0] sm:$0xff]
  %v121 = vld [vmem:[%s0 + $0x2d8] sm:$0xff]
  %v122 = vld [vmem:[%s0 + $0x2e0] sm:$0xf]
  %v123 = vld [vmem:[%s0 + $0x2e4] sm:$0xff]
  %v124 = vld [vmem:[%s0 + $0x2ec] sm:$0xff]
  %v125 = vld [vmem:[%s0 + $0x2f4] sm:$0xf]
  %v126 = vld [vmem:[%s0 + $0x2f8] sm:$0xff]
  %v127 = vld [vmem:[%s0 + $0x300] sm:$0xff]
  %v128 = vld [vmem:[%s0 + $0x308] sm:$0xf]
  %v129 = vld [vmem:[%s0 + $0x30c] sm:$0xff]
  %v130 = vld [vmem:[%s0 + $0x314] sm:$0xff]
  %v131 = vld [vmem:[%s0 + $0x31c] sm:$0xf]
  %v132 = vld [vmem:[%s0 + $0x320] sm:$0xff]
  %v133 = vld [vmem:[%s0 + $0x328] sm:$0xff]
  %v134 = vld [vmem:[%s0 + $0x330] sm:$0xf]
  %v135 = vld [vmem:[%s0 + $0x334] sm:$0xff]
  %v136 = vld [vmem:[%s0 + $0x33c] sm:$0xff]
  %v137 = vld [vmem:[%s0 + $0x344] sm:$0xf]
  %v138 = vld [vmem:[%s0 + $0x348] sm:$0xff]
  %v139 = vld [vmem:[%s0 + $0x350] sm:$0xff]
  %v140 = vld [vmem:[%s0 + $0x358] sm:$0xf]
  %v141 = vld [vmem:[%s0 + $0x35c] sm:$0xff]
  %v142 = vld [vmem:[%s0 + $0x364] sm:$0xff]
  %v143 = vld [vmem:[%s0 + $0x36c] sm:$0xf]
  %v144 = vld [vmem:[%s0 + $0x370] sm:$0xff]
  %v145 = vld [vmem:[%s0 + $0x378] sm:$0xff]
  %v146 = vld [vmem:[%s0 + $0x380] sm:$0xf]
  %v147 = vld [vmem:[%s0 + $0x384] sm:$0xff]
  %v148 = vld [vmem:[%s0 + $0x38c] sm:$0xff]
  %v149 = vld [vmem:[%s0 + $0x394] sm:$0xf]
  %v150 = vld [vmem:[%s0 + $0x398] sm:$0xff]
  %v151 = vld [vmem:[%s0 + $0x3a0] sm:$0xff]
  %v152 = vld [vmem:[%s0 + $0x3a8] sm:$0xf]
  %v153 = vld [vmem:[%s0 + $0x3ac] sm:$0xff]
  %v154 = vld [vmem:[%s0 + $0x3b4] sm:$0xff]
  %v155 = vld [vmem:[%s0 + $0x3bc] sm:$0xf]
  %v156 = vld [vmem:[%s0 + $0x3c0] sm:$0xff]
  %v157 = vld [vmem:[%s0 + $0x3c8] sm:$0xff]
  %v158 = vld [vmem:[%s0 + $0x3d0] sm:$0xf]
  %v159 = vld [vmem:[%s0 + $0x3d4] sm:$0xff]
  %v160 = vld [vmem:[%s0 + $0x3dc] sm:$0xff]
  %v161 = vld [vmem:[%s0 + $0x3e4] sm:$0xf]
  %v162 = vld [vmem:[%s0 + $0x3e8] sm:$0xff]
  %v163 = vld [vmem:[%s0 + $0x3f0] sm:$0xff]
  %v164 = vld [vmem:[%s0 + $0x3f8] sm:$0xf]
  %v165 = vld [vmem:[%s0 + $0x3fc] sm:$0xff]
  %v166 = vld [vmem:[%s0 + $0x404] sm:$0xff]
  %v167 = vld [vmem:[%s0 + $0x40c] sm:$0xf]
  %v168 = vld [vmem:[%s0 + $0x410] sm:$0xff]
  %v169 = vld [vmem:[%s0 + $0x418] sm:$0xff]
  %v170 = vld [vmem:[%s0 + $0x420] sm:$0xf]
  %v171 = vld [vmem:[%s0 + $0x424] sm:$0xff]
  %v172 = vld [vmem:[%s0 + $0x42c] sm:$0xff]
  %v173 = vld [vmem:[%s0 + $0x434] sm:$0xf]
  %v174 = vld [vmem:[%s0 + $0x438] sm:$0xff]
  %v175 = vld [vmem:[%s0 + $0x440] sm:$0xff]
  %v176 = vld [vmem:[%s0 + $0x448] sm:$0xf]
  %v177 = vld [vmem:[%s0 + $0x44c] sm:$0xff]
  %v178 = vld [vmem:[%s0 + $0x454] sm:$0xff]
  %v179 = vld [vmem:[%s0 + $0x45c] sm:$0xf]
  %v180 = vld [vmem:[%s0 + $0x460] sm:$0xff]
  %v181 = vld [vmem:[%s0 + $0x468] sm:$0xff]
  %v182 = vld [vmem:[%s0 + $0x470] sm:$0xf]
  %v183 = vld [vmem:[%s0 + $0x474] sm:$0xff]
  %v184 = vld [vmem:[%s0 + $0x47c] sm:$0xff]
  %v185 = vld [vmem:[%s0 + $0x484] sm:$0xf]
  %v186 = vld [vmem:[%s0 + $0x488] sm:$0xff]
  %v187 = vld [vmem:[%s0 + $0x490] sm:$0xff]
  %v188 = vld [vmem:[%s0 + $0x498] sm:$0xf]
  %v189 = vld [vmem:[%s0 + $0x49c] sm:$0xff]
  %v190 = vld [vmem:[%s0 + $0x4a4] sm:$0xff]
  %v191 = vld [vmem:[%s0 + $0x4ac] sm:$0xf]
  %v192 = vld [vmem:[%s0 + $0x4b0] sm:$0xff]
  %v193 = vld [vmem:[%s0 + $0x4b8] sm:$0xff]
  %v194 = vld [vmem:[%s0 + $0x4c0] sm:$0xf]
  %v195 = vld [vmem:[%s0 + $0x4c4] sm:$0xff]
  %v196 = vld [vmem:[%s0 + $0x4cc] sm:$0xff]
  %v197 = vld [vmem:[%s0 + $0x4d4] sm:$0xf]
  %v198 = vld [vmem:[%s0 + $0x4d8] sm:$0xff]
  %v199 = vld [vmem:[%s0 + $0x4e0] sm:$0xff]
  %v200 = vld [vmem:[%s0 + $0x4e8] sm:$0xf]
  %v201 = vld [vmem:[%s0 + $0x4ec] sm:$0xff]
  %v202 = vld [vmem:[%s0 + $0x4f4] sm:$0xff]
  %v203 = vld [vmem:[%s0 + $0x4fc] sm:$0xf]
  %v204 = vld [vmem:[%s1] sm:$0xf]
  %v205 = vld [vmem:[%s1 + $0x4] sm:$0xf]
  %v206 = vld [vmem:[%s1 + $0x8] sm:$0xf]
  %v207 = vld [vmem:[%s1 + $0xc] sm:$0xf]
  %v208 = vld [vmem:[%s1 + $0x10] sm:$0xf]
  %v209 = vld [vmem:[%s1 + $0x14] sm:$0xf]
  %v210 = vld [vmem:[%s1 + $0x18] sm:$0xf]
  %v211 = vld [vmem:[%s1 + $0x1c] sm:$0xf]
  %v212 = vld [vmem:[%s1 + $0x20] sm:$0xf]
  %v213 = vld [vmem:[%s1 + $0x24] sm:$0xf]
  %v214 = vld [vmem:[%s1 + $0x28] sm:$0xf]
  %v215 = vld [vmem:[%s1 + $0x2c] sm:$0xf]
  %v216 = vld [vmem:[%s1 + $0x30] sm:$0xf]
  %v217 = vld [vmem:[%s1 + $0x34] sm:$0xf]
  %v218 = vld [vmem:[%s1 + $0x38] sm:$0xf]
  %v219 = vld [vmem:[%s1 + $0x3c] sm:$0xf]
  %v220 = vld [vmem:[%s1 + $0x40] sm:$0xf]
  %v221 = vld [vmem:[%s1 + $0x44] sm:$0xf]
  %v222 = vld [vmem:[%s1 + $0x48] sm:$0xf]
  %v223 = vld [vmem:[%s1 + $0x4c] sm:$0xf]
  %v224 = vld [vmem:[%s1 + $0x50] sm:$0xf]
  %v225 = vld [vmem:[%s1 + $0x54] sm:$0xf]
  %v226 = vld [vmem:[%s1 + $0x58] sm:$0xf]
  %v227 = vld [vmem:[%s1 + $0x5c] sm:$0xf]
  %v228 = vld [vmem:[%s1 + $0x60] sm:$0xf]
  %v229 = vld [vmem:[%s1 + $0x64] sm:$0xf]
  %v230 = vld [vmem:[%s1 + $0x68] sm:$0xf]
  %v231 = vld [vmem:[%s1 + $0x6c] sm:$0xf]
  %v232 = vld [vmem:[%s1 + $0x70] sm:$0xf]
  %v233 = vld [vmem:[%s1 + $0x74] sm:$0xf]
  %v234 = vld [vmem:[%s1 + $0x78] sm:$0xf]
  %v235 = vld [vmem:[%s1 + $0x7c] sm:$0xf]
  %v236 = vld [vmem:[%s1 + $0x80] sm:$0xf]
  %v237 = vld [vmem:[%s1 + $0x84] sm:$0xf]
  %v238 = vld [vmem:[%s1 + $0x88] sm:$0xf]
  %v239 = vld [vmem:[%s1 + $0x8c] sm:$0xf]
  %v240 = vld [vmem:[%s1 + $0x90] sm:$0xf]
  %v241 = vld [vmem:[%s1 + $0x94] sm:$0xf]
  %v242 = vld [vmem:[%s1 + $0x98] sm:$0xf]
  %v243 = vld [vmem:[%s1 + $0x9c] sm:$0xf]
  %v244 = vld [vmem:[%s1 + $0xa0] sm:$0xf]
  %v245 = vld [vmem:[%s1 + $0xa4] sm:$0xf]
  %v246 = vld [vmem:[%s1 + $0xa8] sm:$0xf]
  %v247 = vld [vmem:[%s1 + $0xac] sm:$0xf]
  %v248 = vld [vmem:[%s1 + $0xb0] sm:$0xf]
  %v249 = vld [vmem:[%s1 + $0xb4] sm:$0xf]
  %v250 = vld [vmem:[%s1 + $0xb8] sm:$0xf]
  %v251 = vld [vmem:[%s1 + $0xbc] sm:$0xf]
  %v252 = vld [vmem:[%s1 + $0xc0] sm:$0xf]
  %v253 = vld [vmem:[%s1 + $0xc4] sm:$0xf]
  %v254 = vld [vmem:[%s1 + $0xc8] sm:$0xf]
  %v255 = vld [vmem:[%s1 + $0xcc] sm:$0xf]
  %v256 = vld [vmem:[%s1 + $0xd0] sm:$0xf]
  %v257 = vld [vmem:[%s1 + $0xd4] sm:$0xf]
  %v258 = vld [vmem:[%s1 + $0xd8] sm:$0xf]
  %v259 = vld [vmem:[%s1 + $0xdc] sm:$0xf]
  %v260 = vld [vmem:[%s1 + $0xe0] sm:$0xf]
  %v261 = vld [vmem:[%s1 + $0xe4] sm:$0xf]
  %v262 = vld [vmem:[%s1 + $0xe8] sm:$0xf]
  %v263 = vld [vmem:[%s1 + $0xec] sm:$0xf]
  %v264 = vld [vmem:[%s1 + $0xf0] sm:$0xf]
  %v265 = vld [vmem:[%s1 + $0xf4] sm:$0xf]
  %v266 = vld [vmem:[%s1 + $0xf8] sm:$0xf]
  %v267 = vld [vmem:[%s1 + $0xfc] sm:$0xf]
  %v268 = vld [vmem:[%s1 + $0x100] sm:$0xf]
  %v269 = vld [vmem:[%s1 + $0x104] sm:$0xf]
  %v270 = vld [vmem:[%s1 + $0x108] sm:$0xf]
  %v271 = vld [vmem:[%s1 + $0x10c] sm:$0xf]
  %v272 = vld [vmem:[%s1 + $0x110] sm:$0xf]
  %v273 = vld [vmem:[%s1 + $0x114] sm:$0xf]
  %v274 = vld [vmem:[%s1 + $0x118] sm:$0xf]
  %v275 = vld [vmem:[%s1 + $0x11c] sm:$0xf]
  %v468 = vunpack.c.l.b16 %v12
  %v469 = vunpack.c.h.b16 %v12
  %v470 = vunpack.c.l.b16 %v13
  %v471 = vunpack.c.h.b16 %v13
  %v472 = vunpack.c.l.b16 %v14
  %v473 = vunpack.c.l.b16 %v15
  %v474 = vunpack.c.h.b16 %v15
  %v475 = vunpack.c.l.b16 %v16
  %v476 = vunpack.c.h.b16 %v16
  %v477 = vunpack.c.l.b16 %v17
  %v478 = vunpack.c.l.b16 %v18
  %v479 = vunpack.c.h.b16 %v18
  %v480 = vunpack.c.l.b16 %v19
  %v481 = vunpack.c.h.b16 %v19
  %v482 = vunpack.c.l.b16 %v20
  %v483 = vunpack.c.l.b16 %v21
  %v484 = vunpack.c.h.b16 %v21
  %v485 = vunpack.c.l.b16 %v22
  %v486 = vunpack.c.h.b16 %v22
  %v487 = vunpack.c.l.b16 %v23
  %v488 = vunpack.c.l.b16 %v24
  %v489 = vunpack.c.h.b16 %v24
  %v490 = vunpack.c.l.b16 %v25
  %v491 = vunpack.c.h.b16 %v25
  %v492 = vunpack.c.l.b16 %v26
  %v493 = vunpack.c.l.b16 %v27
  %v494 = vunpack.c.h.b16 %v27
  %v495 = vunpack.c.l.b16 %v28
  %v496 = vunpack.c.h.b16 %v28
  %v497 = vunpack.c.l.b16 %v29
  %v498 = vunpack.c.l.b16 %v30
  %v499 = vunpack.c.h.b16 %v30
  %v500 = vunpack.c.l.b16 %v31
  %v501 = vunpack.c.h.b16 %v31
  %v502 = vunpack.c.l.b16 %v32
  %v503 = vunpack.c.l.b16 %v33
  %v504 = vunpack.c.h.b16 %v33
  %v505 = vunpack.c.l.b16 %v34
  %v506 = vunpack.c.h.b16 %v34
  %v507 = vunpack.c.l.b16 %v35
  %v508 = vunpack.c.l.b16 %v36
  %v509 = vunpack.c.h.b16 %v36
  %v510 = vunpack.c.l.b16 %v37
  %v511 = vunpack.c.h.b16 %v37
  %v512 = vunpack.c.l.b16 %v38
  %v513 = vunpack.c.l.b16 %v39
  %v514 = vunpack.c.h.b16 %v39
  %v515 = vunpack.c.l.b16 %v40
  %v516 = vunpack.c.h.b16 %v40
  %v517 = vunpack.c.l.b16 %v41
  %v518 = vunpack.c.l.b16 %v42
  %v519 = vunpack.c.h.b16 %v42
  %v520 = vunpack.c.l.b16 %v43
  %v521 = vunpack.c.h.b16 %v43
  %v522 = vunpack.c.l.b16 %v44
  %v523 = vunpack.c.l.b16 %v45
  %v524 = vunpack.c.h.b16 %v45
  %v525 = vunpack.c.l.b16 %v46
  %v526 = vunpack.c.h.b16 %v46
  %v527 = vunpack.c.l.b16 %v47
  %v528 = vunpack.c.l.b16 %v48
  %v529 = vunpack.c.h.b16 %v48
  %v530 = vunpack.c.l.b16 %v49
  %v531 = vunpack.c.h.b16 %v49
  %v532 = vunpack.c.l.b16 %v50
  %v533 = vunpack.c.l.b16 %v51
  %v534 = vunpack.c.h.b16 %v51
  %v535 = vunpack.c.l.b16 %v52
  %v536 = vunpack.c.h.b16 %v52
  %v537 = vunpack.c.l.b16 %v53
  %v538 = vunpack.c.l.b16 %v54
  %v539 = vunpack.c.h.b16 %v54
  %v540 = vunpack.c.l.b16 %v55
  %v541 = vunpack.c.h.b16 %v55
  %v542 = vunpack.c.l.b16 %v56
  %v543 = vunpack.c.l.b16 %v57
  %v544 = vunpack.c.h.b16 %v57
  %v545 = vunpack.c.l.b16 %v58
  %v546 = vunpack.c.h.b16 %v58
  %v547 = vunpack.c.l.b16 %v59
  %v548 = vunpack.c.l.b16 %v60
  %v549 = vunpack.c.h.b16 %v60
  %v550 = vunpack.c.l.b16 %v61
  %v551 = vunpack.c.h.b16 %v61
  %v552 = vunpack.c.l.b16 %v62
  %v553 = vunpack.c.l.b16 %v63
  %v554 = vunpack.c.h.b16 %v63
  %v555 = vunpack.c.l.b16 %v64
  %v556 = vunpack.c.h.b16 %v64
  %v557 = vunpack.c.l.b16 %v65
  %v558 = vunpack.c.l.b16 %v66
  %v559 = vunpack.c.h.b16 %v66
  %v560 = vunpack.c.l.b16 %v67
  %v561 = vunpack.c.h.b16 %v67
  %v562 = vunpack.c.l.b16 %v68
  %v563 = vunpack.c.l.b16 %v69
  %v564 = vunpack.c.h.b16 %v69
  %v565 = vunpack.c.l.b16 %v70
  %v566 = vunpack.c.h.b16 %v70
  %v567 = vunpack.c.l.b16 %v71
  %v568 = vunpack.c.l.b16 %v72
  %v569 = vunpack.c.h.b16 %v72
  %v570 = vunpack.c.l.b16 %v73
  %v571 = vunpack.c.h.b16 %v73
  %v572 = vunpack.c.l.b16 %v74
  %v573 = vunpack.c.l.b16 %v75
  %v574 = vunpack.c.h.b16 %v75
  %v575 = vunpack.c.l.b16 %v76
  %v576 = vunpack.c.h.b16 %v76
  %v577 = vunpack.c.l.b16 %v77
  %v578 = vunpack.c.l.b16 %v78
  %v579 = vunpack.c.h.b16 %v78
  %v580 = vunpack.c.l.b16 %v79
  %v581 = vunpack.c.h.b16 %v79
  %v582 = vunpack.c.l.b16 %v80
  %v583 = vunpack.c.l.b16 %v81
  %v584 = vunpack.c.h.b16 %v81
  %v585 = vunpack.c.l.b16 %v82
  %v586 = vunpack.c.h.b16 %v82
  %v587 = vunpack.c.l.b16 %v83
  %v588 = vunpack.c.l.b16 %v84
  %v589 = vunpack.c.h.b16 %v84
  %v590 = vunpack.c.l.b16 %v85
  %v591 = vunpack.c.h.b16 %v85
  %v592 = vunpack.c.l.b16 %v86
  %v593 = vunpack.c.l.b16 %v87
  %v594 = vunpack.c.h.b16 %v87
  %v595 = vunpack.c.l.b16 %v88
  %v596 = vunpack.c.h.b16 %v88
  %v597 = vunpack.c.l.b16 %v89
  %v598 = vunpack.c.l.b16 %v90
  %v599 = vunpack.c.h.b16 %v90
  %v600 = vunpack.c.l.b16 %v91
  %v601 = vunpack.c.h.b16 %v91
  %v602 = vunpack.c.l.b16 %v92
  %v603 = vunpack.c.l.b16 %v93
  %v604 = vunpack.c.h.b16 %v93
  %v605 = vunpack.c.l.b16 %v94
  %v606 = vunpack.c.h.b16 %v94
  %v607 = vunpack.c.l.b16 %v95
  %v608 = vunpack.c.l.b16 %v96
  %v609 = vunpack.c.h.b16 %v96
  %v610 = vunpack.c.l.b16 %v97
  %v611 = vunpack.c.h.b16 %v97
  %v612 = vunpack.c.l.b16 %v98
  %v613 = vunpack.c.l.b16 %v99
  %v614 = vunpack.c.h.b16 %v99
  %v615 = vunpack.c.l.b16 %v100
  %v616 = vunpack.c.h.b16 %v100
  %v617 = vunpack.c.l.b16 %v101
  %v618 = vunpack.c.l.b16 %v102
  %v619 = vunpack.c.h.b16 %v102
  %v620 = vunpack.c.l.b16 %v103
  %v621 = vunpack.c.h.b16 %v103
  %v622 = vunpack.c.l.b16 %v104
  %v623 = vunpack.c.l.b16 %v105
  %v624 = vunpack.c.h.b16 %v105
  %v625 = vunpack.c.l.b16 %v106
  %v626 = vunpack.c.h.b16 %v106
  %v627 = vunpack.c.l.b16 %v107
  %v628 = vunpack.c.l.b16 %v108
  %v629 = vunpack.c.h.b16 %v108
  %v630 = vunpack.c.l.b16 %v109
  %v631 = vunpack.c.h.b16 %v109
  %v632 = vunpack.c.l.b16 %v110
  %v633 = vunpack.c.l.b16 %v111
  %v634 = vunpack.c.h.b16 %v111
  %v635 = vunpack.c.l.b16 %v112
  %v636 = vunpack.c.h.b16 %v112
  %v637 = vunpack.c.l.b16 %v113
  %v638 = vunpack.c.l.b16 %v114
  %v639 = vunpack.c.h.b16 %v114
  %v640 = vunpack.c.l.b16 %v115
  %v641 = vunpack.c.h.b16 %v115
  %v642 = vunpack.c.l.b16 %v116
  %v643 = vunpack.c.l.b16 %v117
  %v644 = vunpack.c.h.b16 %v117
  %v645 = vunpack.c.l.b16 %v118
  %v646 = vunpack.c.h.b16 %v118
  %v647 = vunpack.c.l.b16 %v119
  %v648 = vunpack.c.l.b16 %v120
  %v649 = vunpack.c.h.b16 %v120
  %v650 = vunpack.c.l.b16 %v121
  %v651 = vunpack.c.h.b16 %v121
  %v652 = vunpack.c.l.b16 %v122
  %v653 = vunpack.c.l.b16 %v123
  %v654 = vunpack.c.h.b16 %v123
  %v655 = vunpack.c.l.b16 %v124
  %v656 = vunpack.c.h.b16 %v124
  %v657 = vunpack.c.l.b16 %v125
  %v658 = vunpack.c.l.b16 %v126
  %v659 = vunpack.c.h.b16 %v126
  %v660 = vunpack.c.l.b16 %v127
  %v661 = vunpack.c.h.b16 %v127
  %v662 = vunpack.c.l.b16 %v128
  %v663 = vunpack.c.l.b16 %v129
  %v664 = vunpack.c.h.b16 %v129
  %v665 = vunpack.c.l.b16 %v130
  %v666 = vunpack.c.h.b16 %v130
  %v667 = vunpack.c.l.b16 %v131
  %v668 = vunpack.c.l.b16 %v132
  %v669 = vunpack.c.h.b16 %v132
  %v670 = vunpack.c.l.b16 %v133
  %v671 = vunpack.c.h.b16 %v133
  %v672 = vunpack.c.l.b16 %v134
  %v673 = vunpack.c.l.b16 %v135
  %v674 = vunpack.c.h.b16 %v135
  %v675 = vunpack.c.l.b16 %v136
  %v676 = vunpack.c.h.b16 %v136
  %v677 = vunpack.c.l.b16 %v137
  %v678 = vunpack.c.l.b16 %v138
  %v679 = vunpack.c.h.b16 %v138
  %v680 = vunpack.c.l.b16 %v139
  %v681 = vunpack.c.h.b16 %v139
  %v682 = vunpack.c.l.b16 %v140
  %v683 = vunpack.c.l.b16 %v141
  %v684 = vunpack.c.h.b16 %v141
  %v685 = vunpack.c.l.b16 %v142
  %v686 = vunpack.c.h.b16 %v142
  %v687 = vunpack.c.l.b16 %v143
  %v688 = vunpack.c.l.b16 %v144
  %v689 = vunpack.c.h.b16 %v144
  %v690 = vunpack.c.l.b16 %v145
  %v691 = vunpack.c.h.b16 %v145
  %v692 = vunpack.c.l.b16 %v146
  %v693 = vunpack.c.l.b16 %v147
  %v694 = vunpack.c.h.b16 %v147
  %v695 = vunpack.c.l.b16 %v148
  %v696 = vunpack.c.h.b16 %v148
  %v697 = vunpack.c.l.b16 %v149
  %v698 = vunpack.c.l.b16 %v150
  %v699 = vunpack.c.h.b16 %v150
  %v700 = vunpack.c.l.b16 %v151
  %v701 = vunpack.c.h.b16 %v151
  %v702 = vunpack.c.l.b16 %v152
  %v703 = vunpack.c.l.b16 %v153
  %v704 = vunpack.c.h.b16 %v153
  %v705 = vunpack.c.l.b16 %v154
  %v706 = vunpack.c.h.b16 %v154
  %v707 = vunpack.c.l.b16 %v155
  %v708 = vunpack.c.l.b16 %v156
  %v709 = vunpack.c.h.b16 %v156
  %v710 = vunpack.c.l.b16 %v157
  %v711 = vunpack.c.h.b16 %v157
  %v712 = vunpack.c.l.b16 %v158
  %v713 = vunpack.c.l.b16 %v159
  %v714 = vunpack.c.h.b16 %v159
  %v715 = vunpack.c.l.b16 %v160
  %v716 = vunpack.c.h.b16 %v160
  %v717 = vunpack.c.l.b16 %v161
  %v718 = vunpack.c.l.b16 %v162
  %v719 = vunpack.c.h.b16 %v162
  %v720 = vunpack.c.l.b16 %v163
  %v721 = vunpack.c.h.b16 %v163
  %v722 = vunpack.c.l.b16 %v164
  %v723 = vunpack.c.l.b16 %v165
  %v724 = vunpack.c.h.b16 %v165
  %v725 = vunpack.c.l.b16 %v166
  %v726 = vunpack.c.h.b16 %v166
  %v727 = vunpack.c.l.b16 %v167
  %v728 = vunpack.c.l.b16 %v168
  %v729 = vunpack.c.h.b16 %v168
  %v730 = vunpack.c.l.b16 %v169
  %v731 = vunpack.c.h.b16 %v169
  %v732 = vunpack.c.l.b16 %v170
  %v733 = vunpack.c.l.b16 %v171
  %v734 = vunpack.c.h.b16 %v171
  %v735 = vunpack.c.l.b16 %v172
  %v736 = vunpack.c.h.b16 %v172
  %v737 = vunpack.c.l.b16 %v173
  %v738 = vunpack.c.l.b16 %v174
  %v739 = vunpack.c.h.b16 %v174
  %v740 = vunpack.c.l.b16 %v175
  %v741 = vunpack.c.h.b16 %v175
  %v742 = vunpack.c.l.b16 %v176
  %v743 = vunpack.c.l.b16 %v177
  %v744 = vunpack.c.h.b16 %v177
  %v745 = vunpack.c.l.b16 %v178
  %v746 = vunpack.c.h.b16 %v178
  %v747 = vunpack.c.l.b16 %v179
  %v748 = vunpack.c.l.b16 %v180
  %v749 = vunpack.c.h.b16 %v180
  %v750 = vunpack.c.l.b16 %v181
  %v751 = vunpack.c.h.b16 %v181
  %v752 = vunpack.c.l.b16 %v182
  %v753 = vunpack.c.l.b16 %v183
  %v754 = vunpack.c.h.b16 %v183
  %v755 = vunpack.c.l.b16 %v184
  %v756 = vunpack.c.h.b16 %v184
  %v757 = vunpack.c.l.b16 %v185
  %v758 = vunpack.c.l.b16 %v186
  %v759 = vunpack.c.h.b16 %v186
  %v760 = vunpack.c.l.b16 %v187
  %v761 = vunpack.c.h.b16 %v187
  %v762 = vunpack.c.l.b16 %v188
  %v763 = vunpack.c.l.b16 %v189
  %v764 = vunpack.c.h.b16 %v189
  %v765 = vunpack.c.l.b16 %v190
  %v766 = vunpack.c.h.b16 %v190
  %v767 = vunpack.c.l.b16 %v191
  %v768 = vunpack.c.l.b16 %v192
  %v769 = vunpack.c.h.b16 %v192
  %v770 = vunpack.c.l.b16 %v193
  %v771 = vunpack.c.h.b16 %v193
  %v772 = vunpack.c.l.b16 %v194
  %v773 = vunpack.c.l.b16 %v195
  %v774 = vunpack.c.h.b16 %v195
  %v775 = vunpack.c.l.b16 %v196
  %v776 = vunpack.c.h.b16 %v196
  %v777 = vunpack.c.l.b16 %v197
  %v778 = vunpack.c.l.b16 %v198
  %v779 = vunpack.c.h.b16 %v198
  %v780 = vunpack.c.l.b16 %v199
  %v781 = vunpack.c.h.b16 %v199
  %v782 = vunpack.c.l.b16 %v200
  %v783 = vunpack.c.l.b16 %v201
  %v784 = vunpack.c.h.b16 %v201
  %v785 = vunpack.c.l.b16 %v202
  %v786 = vunpack.c.h.b16 %v202
  %v787 = vunpack.c.l.b16 %v203
  %v788 = vpack.c.b16 %v473, %v468
  %v789 = vpack.c.b16 %v474, %v469
  %v790 = vpack.c.b16 %v475, %v470
  %v791 = vpack.c.b16 %v476, %v471
  %v792 = vpack.c.b16 %v477, %v472
  %v793 = vpack.c.b16 %v483, %v478
  %v794 = vpack.c.b16 %v484, %v479
  %v795 = vpack.c.b16 %v485, %v480
  %v796 = vpack.c.b16 %v486, %v481
  %v797 = vpack.c.b16 %v487, %v482
  %v798 = vpack.c.b16 %v493, %v488
  %v799 = vpack.c.b16 %v494, %v489
  %v800 = vpack.c.b16 %v495, %v490
  %v801 = vpack.c.b16 %v496, %v491
  %v802 = vpack.c.b16 %v497, %v492
  %v803 = vpack.c.b16 %v503, %v498
  %v804 = vpack.c.b16 %v504, %v499
  %v805 = vpack.c.b16 %v505, %v500
  %v806 = vpack.c.b16 %v506, %v501
  %v807 = vpack.c.b16 %v507, %v502
  %v808 = vpack.c.b16 %v513, %v508
  %v809 = vpack.c.b16 %v514, %v509
  %v810 = vpack.c.b16 %v515, %v510
  %v811 = vpack.c.b16 %v516, %v511
  %v812 = vpack.c.b16 %v517, %v512
  %v813 = vpack.c.b16 %v523, %v518
  %v814 = vpack.c.b16 %v524, %v519
  %v815 = vpack.c.b16 %v525, %v520
  %v816 = vpack.c.b16 %v526, %v521
  %v817 = vpack.c.b16 %v527, %v522
  %v818 = vpack.c.b16 %v533, %v528
  %v819 = vpack.c.b16 %v534, %v529
  %v820 = vpack.c.b16 %v535, %v530
  %v821 = vpack.c.b16 %v536, %v531
  %v822 = vpack.c.b16 %v537, %v532
  %v823 = vpack.c.b16 %v543, %v538
  %v824 = vpack.c.b16 %v544, %v539
  %v825 = vpack.c.b16 %v545, %v540
  %v826 = vpack.c.b16 %v546, %v541
  %v827 = vpack.c.b16 %v547, %v542
  %v828 = vpack.c.b16 %v553, %v548
  %v829 = vpack.c.b16 %v554, %v549
  %v830 = vpack.c.b16 %v555, %v550
  %v831 = vpack.c.b16 %v556, %v551
  %v832 = vpack.c.b16 %v557, %v552
  %v833 = vpack.c.b16 %v563, %v558
  %v834 = vpack.c.b16 %v564, %v559
  %v835 = vpack.c.b16 %v565, %v560
  %v836 = vpack.c.b16 %v566, %v561
  %v837 = vpack.c.b16 %v567, %v562
  %v838 = vpack.c.b16 %v573, %v568
  %v839 = vpack.c.b16 %v574, %v569
  %v840 = vpack.c.b16 %v575, %v570
  %v841 = vpack.c.b16 %v576, %v571
  %v842 = vpack.c.b16 %v577, %v572
  %v843 = vpack.c.b16 %v583, %v578
  %v844 = vpack.c.b16 %v584, %v579
  %v845 = vpack.c.b16 %v585, %v580
  %v846 = vpack.c.b16 %v586, %v581
  %v847 = vpack.c.b16 %v587, %v582
  %v848 = vpack.c.b16 %v593, %v588
  %v849 = vpack.c.b16 %v594, %v589
  %v850 = vpack.c.b16 %v595, %v590
  %v851 = vpack.c.b16 %v596, %v591
  %v852 = vpack.c.b16 %v597, %v592
  %v853 = vpack.c.b16 %v603, %v598
  %v854 = vpack.c.b16 %v604, %v599
  %v855 = vpack.c.b16 %v605, %v600
  %v856 = vpack.c.b16 %v606, %v601
  %v857 = vpack.c.b16 %v607, %v602
  %v858 = vpack.c.b16 %v613, %v608
  %v859 = vpack.c.b16 %v614, %v609
  %v860 = vpack.c.b16 %v615, %v610
  %v861 = vpack.c.b16 %v616, %v611
  %v862 = vpack.c.b16 %v617, %v612
  %v863 = vpack.c.b16 %v623, %v618
  %v864 = vpack.c.b16 %v624, %v619
  %v865 = vpack.c.b16 %v625, %v620
  %v866 = vpack.c.b16 %v626, %v621
  %v867 = vpack.c.b16 %v627, %v622
  %v868 = vpack.c.b16 %v633, %v628
  %v869 = vpack.c.b16 %v634, %v629
  %v870 = vpack.c.b16 %v635, %v630
  %v871 = vpack.c.b16 %v636, %v631
  %v872 = vpack.c.b16 %v637, %v632
  %v873 = vpack.c.b16 %v643, %v638
  %v874 = vpack.c.b16 %v644, %v639
  %v875 = vpack.c.b16 %v645, %v640
  %v876 = vpack.c.b16 %v646, %v641
  %v877 = vpack.c.b16 %v647, %v642
  %v878 = vpack.c.b16 %v653, %v648
  %v879 = vpack.c.b16 %v654, %v649
  %v880 = vpack.c.b16 %v655, %v650
  %v881 = vpack.c.b16 %v656, %v651
  %v882 = vpack.c.b16 %v657, %v652
  %v883 = vpack.c.b16 %v663, %v658
  %v884 = vpack.c.b16 %v664, %v659
  %v885 = vpack.c.b16 %v665, %v660
  %v886 = vpack.c.b16 %v666, %v661
  %v887 = vpack.c.b16 %v667, %v662
  %v888 = vpack.c.b16 %v673, %v668
  %v889 = vpack.c.b16 %v674, %v669
  %v890 = vpack.c.b16 %v675, %v670
  %v891 = vpack.c.b16 %v676, %v671
  %v892 = vpack.c.b16 %v677, %v672
  %v893 = vpack.c.b16 %v683, %v678
  %v894 = vpack.c.b16 %v684, %v679
  %v895 = vpack.c.b16 %v685, %v680
  %v896 = vpack.c.b16 %v686, %v681
  %v897 = vpack.c.b16 %v687, %v682
  %v898 = vpack.c.b16 %v693, %v688
  %v899 = vpack.c.b16 %v694, %v689
  %v900 = vpack.c.b16 %v695, %v690
  %v901 = vpack.c.b16 %v696, %v691
  %v902 = vpack.c.b16 %v697, %v692
  %v903 = vpack.c.b16 %v703, %v698
  %v904 = vpack.c.b16 %v704, %v699
  %v905 = vpack.c.b16 %v705, %v700
  %v906 = vpack.c.b16 %v706, %v701
  %v907 = vpack.c.b16 %v707, %v702
  %v908 = vpack.c.b16 %v713, %v708
  %v909 = vpack.c.b16 %v714, %v709
  %v910 = vpack.c.b16 %v715, %v710
  %v911 = vpack.c.b16 %v716, %v711
  %v912 = vpack.c.b16 %v717, %v712
  %v913 = vpack.c.b16 %v723, %v718
  %v914 = vpack.c.b16 %v724, %v719
  %v915 = vpack.c.b16 %v725, %v720
  %v916 = vpack.c.b16 %v726, %v721
  %v917 = vpack.c.b16 %v727, %v722
  %v918 = vpack.c.b16 %v733, %v728
  %v919 = vpack.c.b16 %v734, %v729
  %v920 = vpack.c.b16 %v735, %v730
  %v921 = vpack.c.b16 %v736, %v731
  %v922 = vpack.c.b16 %v737, %v732
  %v923 = vpack.c.b16 %v743, %v738
  %v924 = vpack.c.b16 %v744, %v739
  %v925 = vpack.c.b16 %v745, %v740
  %v926 = vpack.c.b16 %v746, %v741
  %v927 = vpack.c.b16 %v747, %v742
  %v928 = vpack.c.b16 %v753, %v748
  %v929 = vpack.c.b16 %v754, %v749
  %v930 = vpack.c.b16 %v755, %v750
  %v931 = vpack.c.b16 %v756, %v751
  %v932 = vpack.c.b16 %v757, %v752
  %v933 = vpack.c.b16 %v763, %v758
  %v934 = vpack.c.b16 %v764, %v759
  %v935 = vpack.c.b16 %v765, %v760
  %v936 = vpack.c.b16 %v766, %v761
  %v937 = vpack.c.b16 %v767, %v762
  %v938 = vpack.c.b16 %v773, %v768
  %v939 = vpack.c.b16 %v774, %v769
  %v940 = vpack.c.b16 %v775, %v770
  %v941 = vpack.c.b16 %v776, %v771
  %v942 = vpack.c.b16 %v777, %v772
  %v943 = vpack.c.b16 %v783, %v778
  %v944 = vpack.c.b16 %v784, %v779
  %v945 = vpack.c.b16 %v785, %v780
  %v946 = vpack.c.b16 %v786, %v781
  %v947 = vpack.c.b16 %v787, %v782
  %v1148 = vunpack.c.l.b16 %v204
  %v1149 = vunpack.c.l.b16 %v205
  %v1150 = vunpack.c.l.b16 %v206
  %v1151 = vunpack.c.l.b16 %v207
  %v1152 = vunpack.c.l.b16 %v208
  %v1153 = vunpack.c.l.b16 %v209
  %v1154 = vunpack.c.l.b16 %v210
  %v1155 = vunpack.c.l.b16 %v211
  %v1156 = vunpack.c.l.b16 %v212
  %v1157 = vunpack.c.l.b16 %v213
  %v1158 = vunpack.c.l.b16 %v214
  %v1159 = vunpack.c.l.b16 %v215
  %v1160 = vunpack.c.l.b16 %v216
  %v1161 = vunpack.c.l.b16 %v217
  %v1162 = vunpack.c.l.b16 %v218
  %v1163 = vunpack.c.l.b16 %v219
  %v1164 = vunpack.c.l.b16 %v220
  %v1165 = vunpack.c.l.b16 %v221
  %v1166 = vunpack.c.l.b16 %v222
  %v1167 = vunpack.c.l.b16 %v223
  %v1168 = vunpack.c.l.b16 %v224
  %v1169 = vunpack.c.l.b16 %v225
  %v1170 = vunpack.c.l.b16 %v226
  %v1171 = vunpack.c.l.b16 %v227
  %v1172 = vunpack.c.l.b16 %v228
  %v1173 = vunpack.c.l.b16 %v229
  %v1174 = vunpack.c.l.b16 %v230
  %v1175 = vunpack.c.l.b16 %v231
  %v1176 = vunpack.c.l.b16 %v232
  %v1177 = vunpack.c.l.b16 %v233
  %v1178 = vunpack.c.l.b16 %v234
  %v1179 = vunpack.c.l.b16 %v235
  %v1180 = vunpack.c.l.b16 %v236
  %v1181 = vunpack.c.l.b16 %v237
  %v1182 = vunpack.c.l.b16 %v238
  %v1183 = vunpack.c.l.b16 %v239
  %v1184 = vunpack.c.l.b16 %v240
  %v1185 = vunpack.c.l.b16 %v241
  %v1186 = vunpack.c.l.b16 %v242
  %v1187 = vunpack.c.l.b16 %v243
  %v1188 = vunpack.c.l.b16 %v244
  %v1189 = vunpack.c.l.b16 %v245
  %v1190 = vunpack.c.l.b16 %v246
  %v1191 = vunpack.c.l.b16 %v247
  %v1192 = vunpack.c.l.b16 %v248
  %v1193 = vunpack.c.l.b16 %v249
  %v1194 = vunpack.c.l.b16 %v250
  %v1195 = vunpack.c.l.b16 %v251
  %v1196 = vunpack.c.l.b16 %v252
  %v1197 = vunpack.c.l.b16 %v253
  %v1198 = vunpack.c.l.b16 %v254
  %v1199 = vunpack.c.l.b16 %v255
  %v1200 = vunpack.c.l.b16 %v256
  %v1201 = vunpack.c.l.b16 %v257
  %v1202 = vunpack.c.l.b16 %v258
  %v1203 = vunpack.c.l.b16 %v259
  %v1204 = vunpack.c.l.b16 %v260
  %v1205 = vunpack.c.l.b16 %v261
  %v1206 = vunpack.c.l.b16 %v262
  %v1207 = vunpack.c.l.b16 %v263
  %v1208 = vunpack.c.l.b16 %v264
  %v1209 = vunpack.c.l.b16 %v265
  %v1210 = vunpack.c.l.b16 %v266
  %v1211 = vunpack.c.l.b16 %v267
  %v1212 = vunpack.c.l.b16 %v268
  %v1213 = vunpack.c.l.b16 %v269
  %v1214 = vunpack.c.l.b16 %v270
  %v1215 = vunpack.c.l.b16 %v271
  %v1216 = vunpack.c.l.b16 %v272
  %v1217 = vunpack.c.l.b16 %v273
  %v1218 = vunpack.c.l.b16 %v274
  %v1219 = vunpack.c.l.b16 %v275
  %v1220 = vpack.c.b16 %v1149, %v1148
  %v1221 = vpack.c.b16 %v1151, %v1150
  %v1222 = vpack.c.b16 %v1153, %v1152
  %v1223 = vpack.c.b16 %v1155, %v1154
  %v1224 = vpack.c.b16 %v1157, %v1156
  %v1225 = vpack.c.b16 %v1159, %v1158
  %v1226 = vpack.c.b16 %v1161, %v1160
  %v1227 = vpack.c.b16 %v1163, %v1162
  %v1228 = vpack.c.b16 %v1165, %v1164
  %v1229 = vpack.c.b16 %v1167, %v1166
  %v1230 = vpack.c.b16 %v1169, %v1168
  %v1231 = vpack.c.b16 %v1171, %v1170
  %v1232 = vpack.c.b16 %v1173, %v1172
  %v1233 = vpack.c.b16 %v1175, %v1174
  %v1234 = vpack.c.b16 %v1177, %v1176
  %v1235 = vpack.c.b16 %v1179, %v1178
  %v1236 = vpack.c.b16 %v1181, %v1180
  %v1237 = vpack.c.b16 %v1183, %v1182
  %v1238 = vpack.c.b16 %v1185, %v1184
  %v1239 = vpack.c.b16 %v1187, %v1186
  %v1240 = vpack.c.b16 %v1189, %v1188
  %v1241 = vpack.c.b16 %v1191, %v1190
  %v1242 = vpack.c.b16 %v1193, %v1192
  %v1243 = vpack.c.b16 %v1195, %v1194
  %v1244 = vpack.c.b16 %v1197, %v1196
  %v1245 = vpack.c.b16 %v1199, %v1198
  %v1246 = vpack.c.b16 %v1201, %v1200
  %v1247 = vpack.c.b16 %v1203, %v1202
  %v1248 = vpack.c.b16 %v1205, %v1204
  %v1249 = vpack.c.b16 %v1207, %v1206
  %v1250 = vpack.c.b16 %v1209, %v1208
  %v1251 = vpack.c.b16 %v1211, %v1210
  %v1252 = vpack.c.b16 %v1213, %v1212
  %v1253 = vpack.c.b16 %v1215, %v1214
  %v1254 = vpack.c.b16 %v1217, %v1216
  %v1255 = vpack.c.b16 %v1219, %v1218
  %vm1292 = vcmask 523264
  %v1294 = vsel %vm1292, %v792, 0
  %v1297 = vsel %vm1292, %v797, 0
  %v1300 = vsel %vm1292, %v802, 0
  %v1303 = vsel %vm1292, %v807, 0
  %v1306 = vsel %vm1292, %v812, 0
  %v1309 = vsel %vm1292, %v817, 0
  %v1312 = vsel %vm1292, %v822, 0
  %v1315 = vsel %vm1292, %v827, 0
  %v1318 = vsel %vm1292, %v832, 0
  %v1321 = vsel %vm1292, %v837, 0
  %v1324 = vsel %vm1292, %v842, 0
  %v1327 = vsel %vm1292, %v847, 0
  %v1330 = vsel %vm1292, %v852, 0
  %v1333 = vsel %vm1292, %v857, 0
  %v1336 = vsel %vm1292, %v862, 0
  %v1339 = vsel %vm1292, %v867, 0
  %v1342 = vsel %vm1292, %v872, 0
  %v1345 = vsel %vm1292, %v877, 0
  %v1348 = vsel %vm1292, %v882, 0
  %v1351 = vsel %vm1292, %v887, 0
  %v1354 = vsel %vm1292, %v892, 0
  %v1357 = vsel %vm1292, %v897, 0
  %v1360 = vsel %vm1292, %v902, 0
  %v1363 = vsel %vm1292, %v907, 0
  %v1366 = vsel %vm1292, %v912, 0
  %v1369 = vsel %vm1292, %v917, 0
  %v1372 = vsel %vm1292, %v922, 0
  %v1375 = vsel %vm1292, %v927, 0
  %v1378 = vsel %vm1292, %v932, 0
  %v1381 = vsel %vm1292, %v937, 0
  %v1384 = vsel %vm1292, %v942, 0
  %v1387 = vsel %vm1292, %v947, 0
  %1389 = vmatpush.bf16.msra.mxu0 %v1227
  %1390 = vmatpush.bf16.msra.mxu0 %v1226
  %1391 = vmatpush.bf16.msra.mxu0 %v1225
  %1392 = vmatpush.bf16.msra.mxu0 %v1224
  %1393 = vmatpush.bf16.msra.mxu0 %v1223
  %1394 = vmatpush.bf16.msra.mxu0 %v1222
  %1395 = vmatpush.bf16.msra.mxu0 %v1221
  %1396 = vmatpush.bf16.msra.mxu0 %v1220
  %1397 = vmatmul.bf16.gmra.mxu0 %v788
  %v1398 = vpop.f32.mrf.mxu0
  %v1399 = vadd.f32 0.0, %v1398
  %v1400 = vpop.f32.mrf.mxu0
  %v1401 = vadd.f32 0.0, %v1400
  %1402 = vmatmul.bf16.gmra.mxu0 %v793
  %v1403 = vpop.f32.mrf.mxu0
  %v1404 = vadd.f32 0.0, %v1403
  %v1405 = vpop.f32.mrf.mxu0
  %v1406 = vadd.f32 0.0, %v1405
  %1407 = vmatmul.bf16.gmra.mxu0 %v798
  %v1408 = vpop.f32.mrf.mxu0
  %v1409 = vadd.f32 0.0, %v1408
  %v1410 = vpop.f32.mrf.mxu0
  %v1411 = vadd.f32 0.0, %v1410
  %1412 = vmatmul.bf16.gmra.mxu0 %v803
  %v1413 = vpop.f32.mrf.mxu0
  %v1414 = vadd.f32 0.0, %v1413
  %v1415 = vpop.f32.mrf.mxu0
  %v1416 = vadd.f32 0.0, %v1415
  %1417 = vmatmul.bf16.gmra.mxu0 %v808
  %v1418 = vpop.f32.mrf.mxu0
  %v1419 = vadd.f32 0.0, %v1418
  %v1420 = vpop.f32.mrf.mxu0
  %v1421 = vadd.f32 0.0, %v1420
  %1422 = vmatmul.bf16.gmra.mxu0 %v813
  %v1423 = vpop.f32.mrf.mxu0
  %v1424 = vadd.f32 0.0, %v1423
  %v1425 = vpop.f32.mrf.mxu0
  %v1426 = vadd.f32 0.0, %v1425
  %1427 = vmatmul.bf16.gmra.mxu0 %v818
  %v1428 = vpop.f32.mrf.mxu0
  %v1429 = vadd.f32 0.0, %v1428
  %v1430 = vpop.f32.mrf.mxu0
  %v1431 = vadd.f32 0.0, %v1430
  %1432 = vmatmul.bf16.gmra.mxu0 %v823
  %v1433 = vpop.f32.mrf.mxu0
  %v1434 = vadd.f32 0.0, %v1433
  %v1435 = vpop.f32.mrf.mxu0
  %v1436 = vadd.f32 0.0, %v1435
  %1437 = vmatmul.bf16.gmra.mxu0 %v828
  %v1438 = vpop.f32.mrf.mxu0
  %v1439 = vadd.f32 0.0, %v1438
  %v1440 = vpop.f32.mrf.mxu0
  %v1441 = vadd.f32 0.0, %v1440
  %1442 = vmatmul.bf16.gmra.mxu0 %v833
  %v1443 = vpop.f32.mrf.mxu0
  %v1444 = vadd.f32 0.0, %v1443
  %v1445 = vpop.f32.mrf.mxu0
  %v1446 = vadd.f32 0.0, %v1445
  %1447 = vmatmul.bf16.gmra.mxu0 %v838
  %v1448 = vpop.f32.mrf.mxu0
  %v1449 = vadd.f32 0.0, %v1448
  %v1450 = vpop.f32.mrf.mxu0
  %v1451 = vadd.f32 0.0, %v1450
  %1452 = vmatmul.bf16.gmra.mxu0 %v843
  %v1453 = vpop.f32.mrf.mxu0
  %v1454 = vadd.f32 0.0, %v1453
  %v1455 = vpop.f32.mrf.mxu0
  %v1456 = vadd.f32 0.0, %v1455
  %1457 = vmatmul.bf16.gmra.mxu0 %v848
  %v1458 = vpop.f32.mrf.mxu0
  %v1459 = vadd.f32 0.0, %v1458
  %v1460 = vpop.f32.mrf.mxu0
  %v1461 = vadd.f32 0.0, %v1460
  %1462 = vmatmul.bf16.gmra.mxu0 %v853
  %v1463 = vpop.f32.mrf.mxu0
  %v1464 = vadd.f32 0.0, %v1463
  %v1465 = vpop.f32.mrf.mxu0
  %v1466 = vadd.f32 0.0, %v1465
  %1467 = vmatmul.bf16.gmra.mxu0 %v858
  %v1468 = vpop.f32.mrf.mxu0
  %v1469 = vadd.f32 0.0, %v1468
  %v1470 = vpop.f32.mrf.mxu0
  %v1471 = vadd.f32 0.0, %v1470
  %1472 = vmatmul.bf16.gmra.mxu0 %v863
  %v1473 = vpop.f32.mrf.mxu0
  %v1474 = vadd.f32 0.0, %v1473
  %v1475 = vpop.f32.mrf.mxu0
  %v1476 = vadd.f32 0.0, %v1475
  %1477 = vmatmul.bf16.gmra.mxu0 %v868
  %v1478 = vpop.f32.mrf.mxu0
  %v1479 = vadd.f32 0.0, %v1478
  %v1480 = vpop.f32.mrf.mxu0
  %v1481 = vadd.f32 0.0, %v1480
  %1482 = vmatmul.bf16.gmra.mxu0 %v873
  %v1483 = vpop.f32.mrf.mxu0
  %v1484 = vadd.f32 0.0, %v1483
  %v1485 = vpop.f32.mrf.mxu0
  %v1486 = vadd.f32 0.0, %v1485
  %1487 = vmatmul.bf16.gmra.mxu0 %v878
  %v1488 = vpop.f32.mrf.mxu0
  %v1489 = vadd.f32 0.0, %v1488
  %v1490 = vpop.f32.mrf.mxu0
  %v1491 = vadd.f32 0.0, %v1490
  %1492 = vmatmul.bf16.gmra.mxu0 %v883
  %v1493 = vpop.f32.mrf.mxu0
  %v1494 = vadd.f32 0.0, %v1493
  %v1495 = vpop.f32.mrf.mxu0
  %v1496 = vadd.f32 0.0, %v1495
  %1497 = vmatmul.bf16.gmra.mxu0 %v888
  %v1498 = vpop.f32.mrf.mxu0
  %v1499 = vadd.f32 0.0, %v1498
  %v1500 = vpop.f32.mrf.mxu0
  %v1501 = vadd.f32 0.0, %v1500
  %1502 = vmatmul.bf16.gmra.mxu0 %v893
  %v1503 = vpop.f32.mrf.mxu0
  %v1504 = vadd.f32 0.0, %v1503
  %v1505 = vpop.f32.mrf.mxu0
  %v1506 = vadd.f32 0.0, %v1505
  %1507 = vmatmul.bf16.gmra.mxu0 %v898
  %v1508 = vpop.f32.mrf.mxu0
  %v1509 = vadd.f32 0.0, %v1508
  %v1510 = vpop.f32.mrf.mxu0
  %v1511 = vadd.f32 0.0, %v1510
  %1512 = vmatmul.bf16.gmra.mxu0 %v903
  %v1513 = vpop.f32.mrf.mxu0
  %v1514 = vadd.f32 0.0, %v1513
  %v1515 = vpop.f32.mrf.mxu0
  %v1516 = vadd.f32 0.0, %v1515
  %1517 = vmatmul.bf16.gmra.mxu0 %v908
  %v1518 = vpop.f32.mrf.mxu0
  %v1519 = vadd.f32 0.0, %v1518
  %v1520 = vpop.f32.mrf.mxu0
  %v1521 = vadd.f32 0.0, %v1520
  %1522 = vmatmul.bf16.gmra.mxu0 %v913
  %v1523 = vpop.f32.mrf.mxu0
  %v1524 = vadd.f32 0.0, %v1523
  %v1525 = vpop.f32.mrf.mxu0
  %v1526 = vadd.f32 0.0, %v1525
  %1527 = vmatmul.bf16.gmra.mxu0 %v918
  %v1528 = vpop.f32.mrf.mxu0
  %v1529 = vadd.f32 0.0, %v1528
  %v1530 = vpop.f32.mrf.mxu0
  %v1531 = vadd.f32 0.0, %v1530
  %1532 = vmatmul.bf16.gmra.mxu0 %v923
  %v1533 = vpop.f32.mrf.mxu0
  %v1534 = vadd.f32 0.0, %v1533
  %v1535 = vpop.f32.mrf.mxu0
  %v1536 = vadd.f32 0.0, %v1535
  %1537 = vmatmul.bf16.gmra.mxu0 %v928
  %v1538 = vpop.f32.mrf.mxu0
  %v1539 = vadd.f32 0.0, %v1538
  %v1540 = vpop.f32.mrf.mxu0
  %v1541 = vadd.f32 0.0, %v1540
  %1542 = vmatmul.bf16.gmra.mxu0 %v933
  %v1543 = vpop.f32.mrf.mxu0
  %v1544 = vadd.f32 0.0, %v1543
  %v1545 = vpop.f32.mrf.mxu0
  %v1546 = vadd.f32 0.0, %v1545
  %1547 = vmatmul.bf16.gmra.mxu0 %v938
  %v1548 = vpop.f32.mrf.mxu0
  %v1549 = vadd.f32 0.0, %v1548
  %v1550 = vpop.f32.mrf.mxu0
  %v1551 = vadd.f32 0.0, %v1550
  %1552 = vmatmul.bf16.gmra.mxu0 %v943
  %v1553 = vpop.f32.mrf.mxu0
  %v1554 = vadd.f32 0.0, %v1553
  %v1555 = vpop.f32.mrf.mxu0
  %v1556 = vadd.f32 0.0, %v1555
  %1557 = vdwg.mxu0
  %1558 = vmatpush.bf16.msra.mxu0 %v1235
  %1559 = vmatpush.bf16.msra.mxu0 %v1234
  %1560 = vmatpush.bf16.msra.mxu0 %v1233
  %1561 = vmatpush.bf16.msra.mxu0 %v1232
  %1562 = vmatpush.bf16.msra.mxu0 %v1231
  %1563 = vmatpush.bf16.msra.mxu0 %v1230
  %1564 = vmatpush.bf16.msra.mxu0 %v1229
  %1565 = vmatpush.bf16.msra.mxu0 %v1228
  %1566 = vmatmul.bf16.gmra.mxu0 %v789
  %v1567 = vpop.f32.mrf.mxu0
  %v1568 = vadd.f32 %v1399, %v1567
  %v1569 = vpop.f32.mrf.mxu0
  %v1570 = vadd.f32 %v1401, %v1569
  %1571 = vmatmul.bf16.gmra.mxu0 %v794
  %v1572 = vpop.f32.mrf.mxu0
  %v1573 = vadd.f32 %v1404, %v1572
  %v1574 = vpop.f32.mrf.mxu0
  %v1575 = vadd.f32 %v1406, %v1574
  %1576 = vmatmul.bf16.gmra.mxu0 %v799
  %v1577 = vpop.f32.mrf.mxu0
  %v1578 = vadd.f32 %v1409, %v1577
  %v1579 = vpop.f32.mrf.mxu0
  %v1580 = vadd.f32 %v1411, %v1579
  %1581 = vmatmul.bf16.gmra.mxu0 %v804
  %v1582 = vpop.f32.mrf.mxu0
  %v1583 = vadd.f32 %v1414, %v1582
  %v1584 = vpop.f32.mrf.mxu0
  %v1585 = vadd.f32 %v1416, %v1584
  %1586 = vmatmul.bf16.gmra.mxu0 %v809
  %v1587 = vpop.f32.mrf.mxu0
  %v1588 = vadd.f32 %v1419, %v1587
  %v1589 = vpop.f32.mrf.mxu0
  %v1590 = vadd.f32 %v1421, %v1589
  %1591 = vmatmul.bf16.gmra.mxu0 %v814
  %v1592 = vpop.f32.mrf.mxu0
  %v1593 = vadd.f32 %v1424, %v1592
  %v1594 = vpop.f32.mrf.mxu0
  %v1595 = vadd.f32 %v1426, %v1594
  %1596 = vmatmul.bf16.gmra.mxu0 %v819
  %v1597 = vpop.f32.mrf.mxu0
  %v1598 = vadd.f32 %v1429, %v1597
  %v1599 = vpop.f32.mrf.mxu0
  %v1600 = vadd.f32 %v1431, %v1599
  %1601 = vmatmul.bf16.gmra.mxu0 %v824
  %v1602 = vpop.f32.mrf.mxu0
  %v1603 = vadd.f32 %v1434, %v1602
  %v1604 = vpop.f32.mrf.mxu0
  %v1605 = vadd.f32 %v1436, %v1604
  %1606 = vmatmul.bf16.gmra.mxu0 %v829
  %v1607 = vpop.f32.mrf.mxu0
  %v1608 = vadd.f32 %v1439, %v1607
  %v1609 = vpop.f32.mrf.mxu0
  %v1610 = vadd.f32 %v1441, %v1609
  %1611 = vmatmul.bf16.gmra.mxu0 %v834
  %v1612 = vpop.f32.mrf.mxu0
  %v1613 = vadd.f32 %v1444, %v1612
  %v1614 = vpop.f32.mrf.mxu0
  %v1615 = vadd.f32 %v1446, %v1614
  %1616 = vmatmul.bf16.gmra.mxu0 %v839
  %v1617 = vpop.f32.mrf.mxu0
  %v1618 = vadd.f32 %v1449, %v1617
  %v1619 = vpop.f32.mrf.mxu0
  %v1620 = vadd.f32 %v1451, %v1619
  %1621 = vmatmul.bf16.gmra.mxu0 %v844
  %v1622 = vpop.f32.mrf.mxu0
  %v1623 = vadd.f32 %v1454, %v1622
  %v1624 = vpop.f32.mrf.mxu0
  %v1625 = vadd.f32 %v1456, %v1624
  %1626 = vmatmul.bf16.gmra.mxu0 %v849
  %v1627 = vpop.f32.mrf.mxu0
  %v1628 = vadd.f32 %v1459, %v1627
  %v1629 = vpop.f32.mrf.mxu0
  %v1630 = vadd.f32 %v1461, %v1629
  %1631 = vmatmul.bf16.gmra.mxu0 %v854
  %v1632 = vpop.f32.mrf.mxu0
  %v1633 = vadd.f32 %v1464, %v1632
  %v1634 = vpop.f32.mrf.mxu0
  %v1635 = vadd.f32 %v1466, %v1634
  %1636 = vmatmul.bf16.gmra.mxu0 %v859
  %v1637 = vpop.f32.mrf.mxu0
  %v1638 = vadd.f32 %v1469, %v1637
  %v1639 = vpop.f32.mrf.mxu0
  %v1640 = vadd.f32 %v1471, %v1639
  %1641 = vmatmul.bf16.gmra.mxu0 %v864
  %v1642 = vpop.f32.mrf.mxu0
  %v1643 = vadd.f32 %v1474, %v1642
  %v1644 = vpop.f32.mrf.mxu0
  %v1645 = vadd.f32 %v1476, %v1644
  %1646 = vmatmul.bf16.gmra.mxu0 %v869
  %v1647 = vpop.f32.mrf.mxu0
  %v1648 = vadd.f32 %v1479, %v1647
  %v1649 = vpop.f32.mrf.mxu0
  %v1650 = vadd.f32 %v1481, %v1649
  %1651 = vmatmul.bf16.gmra.mxu0 %v874
  %v1652 = vpop.f32.mrf.mxu0
  %v1653 = vadd.f32 %v1484, %v1652
  %v1654 = vpop.f32.mrf.mxu0
  %v1655 = vadd.f32 %v1486, %v1654
  %1656 = vmatmul.bf16.gmra.mxu0 %v879
  %v1657 = vpop.f32.mrf.mxu0
  %v1658 = vadd.f32 %v1489, %v1657
  %v1659 = vpop.f32.mrf.mxu0
  %v1660 = vadd.f32 %v1491, %v1659
  %1661 = vmatmul.bf16.gmra.mxu0 %v884
  %v1662 = vpop.f32.mrf.mxu0
  %v1663 = vadd.f32 %v1494, %v1662
  %v1664 = vpop.f32.mrf.mxu0
  %v1665 = vadd.f32 %v1496, %v1664
  %1666 = vmatmul.bf16.gmra.mxu0 %v889
  %v1667 = vpop.f32.mrf.mxu0
  %v1668 = vadd.f32 %v1499, %v1667
  %v1669 = vpop.f32.mrf.mxu0
  %v1670 = vadd.f32 %v1501, %v1669
  %1671 = vmatmul.bf16.gmra.mxu0 %v894
  %v1672 = vpop.f32.mrf.mxu0
  %v1673 = vadd.f32 %v1504, %v1672
  %v1674 = vpop.f32.mrf.mxu0
  %v1675 = vadd.f32 %v1506, %v1674
  %1676 = vmatmul.bf16.gmra.mxu0 %v899
  %v1677 = vpop.f32.mrf.mxu0
  %v1678 = vadd.f32 %v1509, %v1677
  %v1679 = vpop.f32.mrf.mxu0
  %v1680 = vadd.f32 %v1511, %v1679
  %1681 = vmatmul.bf16.gmra.mxu0 %v904
  %v1682 = vpop.f32.mrf.mxu0
  %v1683 = vadd.f32 %v1514, %v1682
  %v1684 = vpop.f32.mrf.mxu0
  %v1685 = vadd.f32 %v1516, %v1684
  %1686 = vmatmul.bf16.gmra.mxu0 %v909
  %v1687 = vpop.f32.mrf.mxu0
  %v1688 = vadd.f32 %v1519, %v1687
  %v1689 = vpop.f32.mrf.mxu0
  %v1690 = vadd.f32 %v1521, %v1689
  %1691 = vmatmul.bf16.gmra.mxu0 %v914
  %v1692 = vpop.f32.mrf.mxu0
  %v1693 = vadd.f32 %v1524, %v1692
  %v1694 = vpop.f32.mrf.mxu0
  %v1695 = vadd.f32 %v1526, %v1694
  %1696 = vmatmul.bf16.gmra.mxu0 %v919
  %v1697 = vpop.f32.mrf.mxu0
  %v1698 = vadd.f32 %v1529, %v1697
  %v1699 = vpop.f32.mrf.mxu0
  %v1700 = vadd.f32 %v1531, %v1699
  %1701 = vmatmul.bf16.gmra.mxu0 %v924
  %v1702 = vpop.f32.mrf.mxu0
  %v1703 = vadd.f32 %v1534, %v1702
  %v1704 = vpop.f32.mrf.mxu0
  %v1705 = vadd.f32 %v1536, %v1704
  %1706 = vmatmul.bf16.gmra.mxu0 %v929
  %v1707 = vpop.f32.mrf.mxu0
  %v1708 = vadd.f32 %v1539, %v1707
  %v1709 = vpop.f32.mrf.mxu0
  %v1710 = vadd.f32 %v1541, %v1709
  %1711 = vmatmul.bf16.gmra.mxu0 %v934
  %v1712 = vpop.f32.mrf.mxu0
  %v1713 = vadd.f32 %v1544, %v1712
  %v1714 = vpop.f32.mrf.mxu0
  %v1715 = vadd.f32 %v1546, %v1714
  %1716 = vmatmul.bf16.gmra.mxu0 %v939
  %v1717 = vpop.f32.mrf.mxu0
  %v1718 = vadd.f32 %v1549, %v1717
  %v1719 = vpop.f32.mrf.mxu0
  %v1720 = vadd.f32 %v1551, %v1719
  %1721 = vmatmul.bf16.gmra.mxu0 %v944
  %v1722 = vpop.f32.mrf.mxu0
  %v1723 = vadd.f32 %v1554, %v1722
  %v1724 = vpop.f32.mrf.mxu0
  %v1725 = vadd.f32 %v1556, %v1724
  %1726 = vdwg.mxu0
  %1727 = vmatpush.bf16.msra.mxu0 %v1243
  %1728 = vmatpush.bf16.msra.mxu0 %v1242
  %1729 = vmatpush.bf16.msra.mxu0 %v1241
  %1730 = vmatpush.bf16.msra.mxu0 %v1240
  %1731 = vmatpush.bf16.msra.mxu0 %v1239
  %1732 = vmatpush.bf16.msra.mxu0 %v1238
  %1733 = vmatpush.bf16.msra.mxu0 %v1237
  %1734 = vmatpush.bf16.msra.mxu0 %v1236
  %1735 = vmatmul.bf16.gmra.mxu0 %v790
  %v1736 = vpop.f32.mrf.mxu0
  %v1737 = vadd.f32 %v1568, %v1736
  %v1738 = vpop.f32.mrf.mxu0
  %v1739 = vadd.f32 %v1570, %v1738
  %1740 = vmatmul.bf16.gmra.mxu0 %v795
  %v1741 = vpop.f32.mrf.mxu0
  %v1742 = vadd.f32 %v1573, %v1741
  %v1743 = vpop.f32.mrf.mxu0
  %v1744 = vadd.f32 %v1575, %v1743
  %1745 = vmatmul.bf16.gmra.mxu0 %v800
  %v1746 = vpop.f32.mrf.mxu0
  %v1747 = vadd.f32 %v1578, %v1746
  %v1748 = vpop.f32.mrf.mxu0
  %v1749 = vadd.f32 %v1580, %v1748
  %1750 = vmatmul.bf16.gmra.mxu0 %v805
  %v1751 = vpop.f32.mrf.mxu0
  %v1752 = vadd.f32 %v1583, %v1751
  %v1753 = vpop.f32.mrf.mxu0
  %v1754 = vadd.f32 %v1585, %v1753
  %1755 = vmatmul.bf16.gmra.mxu0 %v810
  %v1756 = vpop.f32.mrf.mxu0
  %v1757 = vadd.f32 %v1588, %v1756
  %v1758 = vpop.f32.mrf.mxu0
  %v1759 = vadd.f32 %v1590, %v1758
  %1760 = vmatmul.bf16.gmra.mxu0 %v815
  %v1761 = vpop.f32.mrf.mxu0
  %v1762 = vadd.f32 %v1593, %v1761
  %v1763 = vpop.f32.mrf.mxu0
  %v1764 = vadd.f32 %v1595, %v1763
  %1765 = vmatmul.bf16.gmra.mxu0 %v820
  %v1766 = vpop.f32.mrf.mxu0
  %v1767 = vadd.f32 %v1598, %v1766
  %v1768 = vpop.f32.mrf.mxu0
  %v1769 = vadd.f32 %v1600, %v1768
  %1770 = vmatmul.bf16.gmra.mxu0 %v825
  %v1771 = vpop.f32.mrf.mxu0
  %v1772 = vadd.f32 %v1603, %v1771
  %v1773 = vpop.f32.mrf.mxu0
  %v1774 = vadd.f32 %v1605, %v1773
  %1775 = vmatmul.bf16.gmra.mxu0 %v830
  %v1776 = vpop.f32.mrf.mxu0
  %v1777 = vadd.f32 %v1608, %v1776
  %v1778 = vpop.f32.mrf.mxu0
  %v1779 = vadd.f32 %v1610, %v1778
  %1780 = vmatmul.bf16.gmra.mxu0 %v835
  %v1781 = vpop.f32.mrf.mxu0
  %v1782 = vadd.f32 %v1613, %v1781
  %v1783 = vpop.f32.mrf.mxu0
  %v1784 = vadd.f32 %v1615, %v1783
  %1785 = vmatmul.bf16.gmra.mxu0 %v840
  %v1786 = vpop.f32.mrf.mxu0
  %v1787 = vadd.f32 %v1618, %v1786
  %v1788 = vpop.f32.mrf.mxu0
  %v1789 = vadd.f32 %v1620, %v1788
  %1790 = vmatmul.bf16.gmra.mxu0 %v845
  %v1791 = vpop.f32.mrf.mxu0
  %v1792 = vadd.f32 %v1623, %v1791
  %v1793 = vpop.f32.mrf.mxu0
  %v1794 = vadd.f32 %v1625, %v1793
  %1795 = vmatmul.bf16.gmra.mxu0 %v850
  %v1796 = vpop.f32.mrf.mxu0
  %v1797 = vadd.f32 %v1628, %v1796
  %v1798 = vpop.f32.mrf.mxu0
  %v1799 = vadd.f32 %v1630, %v1798
  %1800 = vmatmul.bf16.gmra.mxu0 %v855
  %v1801 = vpop.f32.mrf.mxu0
  %v1802 = vadd.f32 %v1633, %v1801
  %v1803 = vpop.f32.mrf.mxu0
  %v1804 = vadd.f32 %v1635, %v1803
  %1805 = vmatmul.bf16.gmra.mxu0 %v860
  %v1806 = vpop.f32.mrf.mxu0
  %v1807 = vadd.f32 %v1638, %v1806
  %v1808 = vpop.f32.mrf.mxu0
  %v1809 = vadd.f32 %v1640, %v1808
  %1810 = vmatmul.bf16.gmra.mxu0 %v865
  %v1811 = vpop.f32.mrf.mxu0
  %v1812 = vadd.f32 %v1643, %v1811
  %v1813 = vpop.f32.mrf.mxu0
  %v1814 = vadd.f32 %v1645, %v1813
  %1815 = vmatmul.bf16.gmra.mxu0 %v870
  %v1816 = vpop.f32.mrf.mxu0
  %v1817 = vadd.f32 %v1648, %v1816
  %v1818 = vpop.f32.mrf.mxu0
  %v1819 = vadd.f32 %v1650, %v1818
  %1820 = vmatmul.bf16.gmra.mxu0 %v875
  %v1821 = vpop.f32.mrf.mxu0
  %v1822 = vadd.f32 %v1653, %v1821
  %v1823 = vpop.f32.mrf.mxu0
  %v1824 = vadd.f32 %v1655, %v1823
  %1825 = vmatmul.bf16.gmra.mxu0 %v880
  %v1826 = vpop.f32.mrf.mxu0
  %v1827 = vadd.f32 %v1658, %v1826
  %v1828 = vpop.f32.mrf.mxu0
  %v1829 = vadd.f32 %v1660, %v1828
  %1830 = vmatmul.bf16.gmra.mxu0 %v885
  %v1831 = vpop.f32.mrf.mxu0
  %v1832 = vadd.f32 %v1663, %v1831
  %v1833 = vpop.f32.mrf.mxu0
  %v1834 = vadd.f32 %v1665, %v1833
  %1835 = vmatmul.bf16.gmra.mxu0 %v890
  %v1836 = vpop.f32.mrf.mxu0
  %v1837 = vadd.f32 %v1668, %v1836
  %v1838 = vpop.f32.mrf.mxu0
  %v1839 = vadd.f32 %v1670, %v1838
  %1840 = vmatmul.bf16.gmra.mxu0 %v895
  %v1841 = vpop.f32.mrf.mxu0
  %v1842 = vadd.f32 %v1673, %v1841
  %v1843 = vpop.f32.mrf.mxu0
  %v1844 = vadd.f32 %v1675, %v1843
  %1845 = vmatmul.bf16.gmra.mxu0 %v900
  %v1846 = vpop.f32.mrf.mxu0
  %v1847 = vadd.f32 %v1678, %v1846
  %v1848 = vpop.f32.mrf.mxu0
  %v1849 = vadd.f32 %v1680, %v1848
  %1850 = vmatmul.bf16.gmra.mxu0 %v905
  %v1851 = vpop.f32.mrf.mxu0
  %v1852 = vadd.f32 %v1683, %v1851
  %v1853 = vpop.f32.mrf.mxu0
  %v1854 = vadd.f32 %v1685, %v1853
  %1855 = vmatmul.bf16.gmra.mxu0 %v910
  %v1856 = vpop.f32.mrf.mxu0
  %v1857 = vadd.f32 %v1688, %v1856
  %v1858 = vpop.f32.mrf.mxu0
  %v1859 = vadd.f32 %v1690, %v1858
  %1860 = vmatmul.bf16.gmra.mxu0 %v915
  %v1861 = vpop.f32.mrf.mxu0
  %v1862 = vadd.f32 %v1693, %v1861
  %v1863 = vpop.f32.mrf.mxu0
  %v1864 = vadd.f32 %v1695, %v1863
  %1865 = vmatmul.bf16.gmra.mxu0 %v920
  %v1866 = vpop.f32.mrf.mxu0
  %v1867 = vadd.f32 %v1698, %v1866
  %v1868 = vpop.f32.mrf.mxu0
  %v1869 = vadd.f32 %v1700, %v1868
  %1870 = vmatmul.bf16.gmra.mxu0 %v925
  %v1871 = vpop.f32.mrf.mxu0
  %v1872 = vadd.f32 %v1703, %v1871
  %v1873 = vpop.f32.mrf.mxu0
  %v1874 = vadd.f32 %v1705, %v1873
  %1875 = vmatmul.bf16.gmra.mxu0 %v930
  %v1876 = vpop.f32.mrf.mxu0
  %v1877 = vadd.f32 %v1708, %v1876
  %v1878 = vpop.f32.mrf.mxu0
  %v1879 = vadd.f32 %v1710, %v1878
  %1880 = vmatmul.bf16.gmra.mxu0 %v935
  %v1881 = vpop.f32.mrf.mxu0
  %v1882 = vadd.f32 %v1713, %v1881
  %v1883 = vpop.f32.mrf.mxu0
  %v1884 = vadd.f32 %v1715, %v1883
  %1885 = vmatmul.bf16.gmra.mxu0 %v940
  %v1886 = vpop.f32.mrf.mxu0
  %v1887 = vadd.f32 %v1718, %v1886
  %v1888 = vpop.f32.mrf.mxu0
  %v1889 = vadd.f32 %v1720, %v1888
  %1890 = vmatmul.bf16.gmra.mxu0 %v945
  %v1891 = vpop.f32.mrf.mxu0
  %v1892 = vadd.f32 %v1723, %v1891
  %v1893 = vpop.f32.mrf.mxu0
  %v1894 = vadd.f32 %v1725, %v1893
  %1895 = vdwg.mxu0
  %1896 = vmatpush.bf16.msra.mxu0 %v1251
  %1897 = vmatpush.bf16.msra.mxu0 %v1250
  %1898 = vmatpush.bf16.msra.mxu0 %v1249
  %1899 = vmatpush.bf16.msra.mxu0 %v1248
  %1900 = vmatpush.bf16.msra.mxu0 %v1247
  %1901 = vmatpush.bf16.msra.mxu0 %v1246
  %1902 = vmatpush.bf16.msra.mxu0 %v1245
  %1903 = vmatpush.bf16.msra.mxu0 %v1244
  %1904 = vmatmul.bf16.gmra.mxu0 %v791
  %v1905 = vpop.f32.mrf.mxu0
  %v1906 = vadd.f32 %v1737, %v1905
  %v1907 = vpop.f32.mrf.mxu0
  %v1908 = vadd.f32 %v1739, %v1907
  %1909 = vmatmul.bf16.gmra.mxu0 %v796
  %v1910 = vpop.f32.mrf.mxu0
  %v1911 = vadd.f32 %v1742, %v1910
  %v1912 = vpop.f32.mrf.mxu0
  %v1913 = vadd.f32 %v1744, %v1912
  %1914 = vmatmul.bf16.gmra.mxu0 %v801
  %v1915 = vpop.f32.mrf.mxu0
  %v1916 = vadd.f32 %v1747, %v1915
  %v1917 = vpop.f32.mrf.mxu0
  %v1918 = vadd.f32 %v1749, %v1917
  %1919 = vmatmul.bf16.gmra.mxu0 %v806
  %v1920 = vpop.f32.mrf.mxu0
  %v1921 = vadd.f32 %v1752, %v1920
  %v1922 = vpop.f32.mrf.mxu0
  %v1923 = vadd.f32 %v1754, %v1922
  %1924 = vmatmul.bf16.gmra.mxu0 %v811
  %v1925 = vpop.f32.mrf.mxu0
  %v1926 = vadd.f32 %v1757, %v1925
  %v1927 = vpop.f32.mrf.mxu0
  %v1928 = vadd.f32 %v1759, %v1927
  %1929 = vmatmul.bf16.gmra.mxu0 %v816
  %v1930 = vpop.f32.mrf.mxu0
  %v1931 = vadd.f32 %v1762, %v1930
  %v1932 = vpop.f32.mrf.mxu0
  %v1933 = vadd.f32 %v1764, %v1932
  %1934 = vmatmul.bf16.gmra.mxu0 %v821
  %v1935 = vpop.f32.mrf.mxu0
  %v1936 = vadd.f32 %v1767, %v1935
  %v1937 = vpop.f32.mrf.mxu0
  %v1938 = vadd.f32 %v1769, %v1937
  %1939 = vmatmul.bf16.gmra.mxu0 %v826
  %v1940 = vpop.f32.mrf.mxu0
  %v1941 = vadd.f32 %v1772, %v1940
  %v1942 = vpop.f32.mrf.mxu0
  %v1943 = vadd.f32 %v1774, %v1942
  %1944 = vmatmul.bf16.gmra.mxu0 %v831
  %v1945 = vpop.f32.mrf.mxu0
  %v1946 = vadd.f32 %v1777, %v1945
  %v1947 = vpop.f32.mrf.mxu0
  %v1948 = vadd.f32 %v1779, %v1947
  %1949 = vmatmul.bf16.gmra.mxu0 %v836
  %v1950 = vpop.f32.mrf.mxu0
  %v1951 = vadd.f32 %v1782, %v1950
  %v1952 = vpop.f32.mrf.mxu0
  %v1953 = vadd.f32 %v1784, %v1952
  %1954 = vmatmul.bf16.gmra.mxu0 %v841
  %v1955 = vpop.f32.mrf.mxu0
  %v1956 = vadd.f32 %v1787, %v1955
  %v1957 = vpop.f32.mrf.mxu0
  %v1958 = vadd.f32 %v1789, %v1957
  %1959 = vmatmul.bf16.gmra.mxu0 %v846
  %v1960 = vpop.f32.mrf.mxu0
  %v1961 = vadd.f32 %v1792, %v1960
  %v1962 = vpop.f32.mrf.mxu0
  %v1963 = vadd.f32 %v1794, %v1962
  %1964 = vmatmul.bf16.gmra.mxu0 %v851
  %v1965 = vpop.f32.mrf.mxu0
  %v1966 = vadd.f32 %v1797, %v1965
  %v1967 = vpop.f32.mrf.mxu0
  %v1968 = vadd.f32 %v1799, %v1967
  %1969 = vmatmul.bf16.gmra.mxu0 %v856
  %v1970 = vpop.f32.mrf.mxu0
  %v1971 = vadd.f32 %v1802, %v1970
  %v1972 = vpop.f32.mrf.mxu0
  %v1973 = vadd.f32 %v1804, %v1972
  %1974 = vmatmul.bf16.gmra.mxu0 %v861
  %v1975 = vpop.f32.mrf.mxu0
  %v1976 = vadd.f32 %v1807, %v1975
  %v1977 = vpop.f32.mrf.mxu0
  %v1978 = vadd.f32 %v1809, %v1977
  %1979 = vmatmul.bf16.gmra.mxu0 %v866
  %v1980 = vpop.f32.mrf.mxu0
  %v1981 = vadd.f32 %v1812, %v1980
  %v1982 = vpop.f32.mrf.mxu0
  %v1983 = vadd.f32 %v1814, %v1982
  %1984 = vmatmul.bf16.gmra.mxu0 %v871
  %v1985 = vpop.f32.mrf.mxu0
  %v1986 = vadd.f32 %v1817, %v1985
  %v1987 = vpop.f32.mrf.mxu0
  %v1988 = vadd.f32 %v1819, %v1987
  %1989 = vmatmul.bf16.gmra.mxu0 %v876
  %v1990 = vpop.f32.mrf.mxu0
  %v1991 = vadd.f32 %v1822, %v1990
  %v1992 = vpop.f32.mrf.mxu0
  %v1993 = vadd.f32 %v1824, %v1992
  %1994 = vmatmul.bf16.gmra.mxu0 %v881
  %v1995 = vpop.f32.mrf.mxu0
  %v1996 = vadd.f32 %v1827, %v1995
  %v1997 = vpop.f32.mrf.mxu0
  %v1998 = vadd.f32 %v1829, %v1997
  %1999 = vmatmul.bf16.gmra.mxu0 %v886
  %v2000 = vpop.f32.mrf.mxu0
  %v2001 = vadd.f32 %v1832, %v2000
  %v2002 = vpop.f32.mrf.mxu0
  %v2003 = vadd.f32 %v1834, %v2002
  %2004 = vmatmul.bf16.gmra.mxu0 %v891
  %v2005 = vpop.f32.mrf.mxu0
  %v2006 = vadd.f32 %v1837, %v2005
  %v2007 = vpop.f32.mrf.mxu0
  %v2008 = vadd.f32 %v1839, %v2007
  %2009 = vmatmul.bf16.gmra.mxu0 %v896
  %v2010 = vpop.f32.mrf.mxu0
  %v2011 = vadd.f32 %v1842, %v2010
  %v2012 = vpop.f32.mrf.mxu0
  %v2013 = vadd.f32 %v1844, %v2012
  %2014 = vmatmul.bf16.gmra.mxu0 %v901
  %v2015 = vpop.f32.mrf.mxu0
  %v2016 = vadd.f32 %v1847, %v2015
  %v2017 = vpop.f32.mrf.mxu0
  %v2018 = vadd.f32 %v1849, %v2017
  %2019 = vmatmul.bf16.gmra.mxu0 %v906
  %v2020 = vpop.f32.mrf.mxu0
  %v2021 = vadd.f32 %v1852, %v2020
  %v2022 = vpop.f32.mrf.mxu0
  %v2023 = vadd.f32 %v1854, %v2022
  %2024 = vmatmul.bf16.gmra.mxu0 %v911
  %v2025 = vpop.f32.mrf.mxu0
  %v2026 = vadd.f32 %v1857, %v2025
  %v2027 = vpop.f32.mrf.mxu0
  %v2028 = vadd.f32 %v1859, %v2027
  %2029 = vmatmul.bf16.gmra.mxu0 %v916
  %v2030 = vpop.f32.mrf.mxu0
  %v2031 = vadd.f32 %v1862, %v2030
  %v2032 = vpop.f32.mrf.mxu0
  %v2033 = vadd.f32 %v1864, %v2032
  %2034 = vmatmul.bf16.gmra.mxu0 %v921
  %v2035 = vpop.f32.mrf.mxu0
  %v2036 = vadd.f32 %v1867, %v2035
  %v2037 = vpop.f32.mrf.mxu0
  %v2038 = vadd.f32 %v1869, %v2037
  %2039 = vmatmul.bf16.gmra.mxu0 %v926
  %v2040 = vpop.f32.mrf.mxu0
  %v2041 = vadd.f32 %v1872, %v2040
  %v2042 = vpop.f32.mrf.mxu0
  %v2043 = vadd.f32 %v1874, %v2042
  %2044 = vmatmul.bf16.gmra.mxu0 %v931
  %v2045 = vpop.f32.mrf.mxu0
  %v2046 = vadd.f32 %v1877, %v2045
  %v2047 = vpop.f32.mrf.mxu0
  %v2048 = vadd.f32 %v1879, %v2047
  %2049 = vmatmul.bf16.gmra.mxu0 %v936
  %v2050 = vpop.f32.mrf.mxu0
  %v2051 = vadd.f32 %v1882, %v2050
  %v2052 = vpop.f32.mrf.mxu0
  %v2053 = vadd.f32 %v1884, %v2052
  %2054 = vmatmul.bf16.gmra.mxu0 %v941
  %v2055 = vpop.f32.mrf.mxu0
  %v2056 = vadd.f32 %v1887, %v2055
  %v2057 = vpop.f32.mrf.mxu0
  %v2058 = vadd.f32 %v1889, %v2057
  %2059 = vmatmul.bf16.gmra.mxu0 %v946
  %v2060 = vpop.f32.mrf.mxu0
  %v2061 = vadd.f32 %v1892, %v2060
  %v2062 = vpop.f32.mrf.mxu0
  %v2063 = vadd.f32 %v1894, %v2062
  %2064 = vdwg.mxu0
  %2065 = vmatpush.bf16.msra.mxu0 0
  %2066 = vmatpush.bf16.msra.mxu0 0
  %2067 = vmatpush.bf16.msra.mxu0 0
  %2068 = vmatpush.bf16.msra.mxu0 0
  %2069 = vmatpush.bf16.msra.mxu0 %v1255
  %2070 = vmatpush.bf16.msra.mxu0 %v1254
  %2071 = vmatpush.bf16.msra.mxu0 %v1253
  %2072 = vmatpush.bf16.msra.mxu0 %v1252
  %2073 = vmatmul.bf16.gmra.mxu0 %v1294
  %v2074 = vpop.f32.mrf.mxu0
  %v2075 = vadd.f32 %v1906, %v2074
  %v2076 = vpop.f32.mrf.mxu0
  %v2077 = vadd.f32 %v1908, %v2076
  %2078 = vmatmul.bf16.gmra.mxu0 %v1297
  %v2079 = vpop.f32.mrf.mxu0
  %v2080 = vadd.f32 %v1911, %v2079
  %v2081 = vpop.f32.mrf.mxu0
  %v2082 = vadd.f32 %v1913, %v2081
  %2083 = vmatmul.bf16.gmra.mxu0 %v1300
  %v2084 = vpop.f32.mrf.mxu0
  %v2085 = vadd.f32 %v1916, %v2084
  %v2086 = vpop.f32.mrf.mxu0
  %v2087 = vadd.f32 %v1918, %v2086
  %2088 = vmatmul.bf16.gmra.mxu0 %v1303
  %v2089 = vpop.f32.mrf.mxu0
  %v2090 = vadd.f32 %v1921, %v2089
  %v2091 = vpop.f32.mrf.mxu0
  %v2092 = vadd.f32 %v1923, %v2091
  %2093 = vmatmul.bf16.gmra.mxu0 %v1306
  %v2094 = vpop.f32.mrf.mxu0
  %v2095 = vadd.f32 %v1926, %v2094
  %v2096 = vpop.f32.mrf.mxu0
  %v2097 = vadd.f32 %v1928, %v2096
  %2098 = vmatmul.bf16.gmra.mxu0 %v1309
  %v2099 = vpop.f32.mrf.mxu0
  %v2100 = vadd.f32 %v1931, %v2099
  %v2101 = vpop.f32.mrf.mxu0
  %v2102 = vadd.f32 %v1933, %v2101
  %2103 = vmatmul.bf16.gmra.mxu0 %v1312
  %v2104 = vpop.f32.mrf.mxu0
  %v2105 = vadd.f32 %v1936, %v2104
  %v2106 = vpop.f32.mrf.mxu0
  %v2107 = vadd.f32 %v1938, %v2106
  %2108 = vmatmul.bf16.gmra.mxu0 %v1315
  %v2109 = vpop.f32.mrf.mxu0
  %v2110 = vadd.f32 %v1941, %v2109
  %v2111 = vpop.f32.mrf.mxu0
  %v2112 = vadd.f32 %v1943, %v2111
  %2113 = vmatmul.bf16.gmra.mxu0 %v1318
  %v2114 = vpop.f32.mrf.mxu0
  %v2115 = vadd.f32 %v1946, %v2114
  %v2116 = vpop.f32.mrf.mxu0
  %v2117 = vadd.f32 %v1948, %v2116
  %2118 = vmatmul.bf16.gmra.mxu0 %v1321
  %v2119 = vpop.f32.mrf.mxu0
  %v2120 = vadd.f32 %v1951, %v2119
  %v2121 = vpop.f32.mrf.mxu0
  %v2122 = vadd.f32 %v1953, %v2121
  %2123 = vmatmul.bf16.gmra.mxu0 %v1324
  %v2124 = vpop.f32.mrf.mxu0
  %v2125 = vadd.f32 %v1956, %v2124
  %v2126 = vpop.f32.mrf.mxu0
  %v2127 = vadd.f32 %v1958, %v2126
  %2128 = vmatmul.bf16.gmra.mxu0 %v1327
  %v2129 = vpop.f32.mrf.mxu0
  %v2130 = vadd.f32 %v1961, %v2129
  %v2131 = vpop.f32.mrf.mxu0
  %v2132 = vadd.f32 %v1963, %v2131
  %2133 = vmatmul.bf16.gmra.mxu0 %v1330
  %v2134 = vpop.f32.mrf.mxu0
  %v2135 = vadd.f32 %v1966, %v2134
  %v2136 = vpop.f32.mrf.mxu0
  %v2137 = vadd.f32 %v1968, %v2136
  %2138 = vmatmul.bf16.gmra.mxu0 %v1333
  %v2139 = vpop.f32.mrf.mxu0
  %v2140 = vadd.f32 %v1971, %v2139
  %v2141 = vpop.f32.mrf.mxu0
  %v2142 = vadd.f32 %v1973, %v2141
  %2143 = vmatmul.bf16.gmra.mxu0 %v1336
  %v2144 = vpop.f32.mrf.mxu0
  %v2145 = vadd.f32 %v1976, %v2144
  %v2146 = vpop.f32.mrf.mxu0
  %v2147 = vadd.f32 %v1978, %v2146
  %2148 = vmatmul.bf16.gmra.mxu0 %v1339
  %v2149 = vpop.f32.mrf.mxu0
  %v2150 = vadd.f32 %v1981, %v2149
  %v2151 = vpop.f32.mrf.mxu0
  %v2152 = vadd.f32 %v1983, %v2151
  %2153 = vmatmul.bf16.gmra.mxu0 %v1342
  %v2154 = vpop.f32.mrf.mxu0
  %v2155 = vadd.f32 %v1986, %v2154
  %v2156 = vpop.f32.mrf.mxu0
  %v2157 = vadd.f32 %v1988, %v2156
  %2158 = vmatmul.bf16.gmra.mxu0 %v1345
  %v2159 = vpop.f32.mrf.mxu0
  %v2160 = vadd.f32 %v1991, %v2159
  %v2161 = vpop.f32.mrf.mxu0
  %v2162 = vadd.f32 %v1993, %v2161
  %2163 = vmatmul.bf16.gmra.mxu0 %v1348
  %v2164 = vpop.f32.mrf.mxu0
  %v2165 = vadd.f32 %v1996, %v2164
  %v2166 = vpop.f32.mrf.mxu0
  %v2167 = vadd.f32 %v1998, %v2166
  %2168 = vmatmul.bf16.gmra.mxu0 %v1351
  %v2169 = vpop.f32.mrf.mxu0
  %v2170 = vadd.f32 %v2001, %v2169
  %v2171 = vpop.f32.mrf.mxu0
  %v2172 = vadd.f32 %v2003, %v2171
  %2173 = vmatmul.bf16.gmra.mxu0 %v1354
  %v2174 = vpop.f32.mrf.mxu0
  %v2175 = vadd.f32 %v2006, %v2174
  %v2176 = vpop.f32.mrf.mxu0
  %v2177 = vadd.f32 %v2008, %v2176
  %2178 = vmatmul.bf16.gmra.mxu0 %v1357
  %v2179 = vpop.f32.mrf.mxu0
  %v2180 = vadd.f32 %v2011, %v2179
  %v2181 = vpop.f32.mrf.mxu0
  %v2182 = vadd.f32 %v2013, %v2181
  %2183 = vmatmul.bf16.gmra.mxu0 %v1360
  %v2184 = vpop.f32.mrf.mxu0
  %v2185 = vadd.f32 %v2016, %v2184
  %v2186 = vpop.f32.mrf.mxu0
  %v2187 = vadd.f32 %v2018, %v2186
  %2188 = vmatmul.bf16.gmra.mxu0 %v1363
  %v2189 = vpop.f32.mrf.mxu0
  %v2190 = vadd.f32 %v2021, %v2189
  %v2191 = vpop.f32.mrf.mxu0
  %v2192 = vadd.f32 %v2023, %v2191
  %2193 = vmatmul.bf16.gmra.mxu0 %v1366
  %v2194 = vpop.f32.mrf.mxu0
  %v2195 = vadd.f32 %v2026, %v2194
  %v2196 = vpop.f32.mrf.mxu0
  %v2197 = vadd.f32 %v2028, %v2196
  %2198 = vmatmul.bf16.gmra.mxu0 %v1369
  %v2199 = vpop.f32.mrf.mxu0
  %v2200 = vadd.f32 %v2031, %v2199
  %v2201 = vpop.f32.mrf.mxu0
  %v2202 = vadd.f32 %v2033, %v2201
  %2203 = vmatmul.bf16.gmra.mxu0 %v1372
  %v2204 = vpop.f32.mrf.mxu0
  %v2205 = vadd.f32 %v2036, %v2204
  %v2206 = vpop.f32.mrf.mxu0
  %v2207 = vadd.f32 %v2038, %v2206
  %2208 = vmatmul.bf16.gmra.mxu0 %v1375
  %v2209 = vpop.f32.mrf.mxu0
  %v2210 = vadd.f32 %v2041, %v2209
  %v2211 = vpop.f32.mrf.mxu0
  %v2212 = vadd.f32 %v2043, %v2211
  %2213 = vmatmul.bf16.gmra.mxu0 %v1378
  %v2214 = vpop.f32.mrf.mxu0
  %v2215 = vadd.f32 %v2046, %v2214
  %v2216 = vpop.f32.mrf.mxu0
  %v2217 = vadd.f32 %v2048, %v2216
  %2218 = vmatmul.bf16.gmra.mxu0 %v1381
  %v2219 = vpop.f32.mrf.mxu0
  %v2220 = vadd.f32 %v2051, %v2219
  %v2221 = vpop.f32.mrf.mxu0
  %v2222 = vadd.f32 %v2053, %v2221
  %2223 = vmatmul.bf16.gmra.mxu0 %v1384
  %v2224 = vpop.f32.mrf.mxu0
  %v2225 = vadd.f32 %v2056, %v2224
  %v2226 = vpop.f32.mrf.mxu0
  %v2227 = vadd.f32 %v2058, %v2226
  %2228 = vmatmul.bf16.gmra.mxu0 %v1387
  %v2229 = vpop.f32.mrf.mxu0
  %v2230 = vadd.f32 %v2061, %v2229
  %v2231 = vpop.f32.mrf.mxu0
  %v2232 = vadd.f32 %v2063, %v2231
  %2233 = vdwg.mxu0
  %v2234 = vtanh.pop %v2075
  %v2235 = vtanh.pop %v2077
  %v2236 = vtanh.pop %v2080
  %v2237 = vtanh.pop %v2082
  %v2238 = vtanh.pop %v2085
  %v2239 = vtanh.pop %v2087
  %v2240 = vtanh.pop %v2090
  %v2241 = vtanh.pop %v2092
  %v2242 = vtanh.pop %v2095
  %v2243 = vtanh.pop %v2097
  %v2244 = vtanh.pop %v2100
  %v2245 = vtanh.pop %v2102
  %v2246 = vtanh.pop %v2105
  %v2247 = vtanh.pop %v2107
  %v2248 = vtanh.pop %v2110
  %v2249 = vtanh.pop %v2112
  %v2250 = vtanh.pop %v2115
  %v2251 = vtanh.pop %v2117
  %v2252 = vtanh.pop %v2120
  %v2253 = vtanh.pop %v2122
  %v2254 = vtanh.pop %v2125
  %v2255 = vtanh.pop %v2127
  %v2256 = vtanh.pop %v2130
  %v2257 = vtanh.pop %v2132
  %v2258 = vtanh.pop %v2135
  %v2259 = vtanh.pop %v2137
  %v2260 = vtanh.pop %v2140
  %v2261 = vtanh.pop %v2142
  %v2262 = vtanh.pop %v2145
  %v2263 = vtanh.pop %v2147
  %v2264 = vtanh.pop %v2150
  %v2265 = vtanh.pop %v2152
  %v2266 = vtanh.pop %v2155
  %v2267 = vtanh.pop %v2157
  %v2268 = vtanh.pop %v2160
  %v2269 = vtanh.pop %v2162
  %v2270 = vtanh.pop %v2165
  %v2271 = vtanh.pop %v2167
  %v2272 = vtanh.pop %v2170
  %v2273 = vtanh.pop %v2172
  %v2274 = vtanh.pop %v2175
  %v2275 = vtanh.pop %v2177
  %v2276 = vtanh.pop %v2180
  %v2277 = vtanh.pop %v2182
  %v2278 = vtanh.pop %v2185
  %v2279 = vtanh.pop %v2187
  %v2280 = vtanh.pop %v2190
  %v2281 = vtanh.pop %v2192
  %v2282 = vtanh.pop %v2195
  %v2283 = vtanh.pop %v2197
  %v2284 = vtanh.pop %v2200
  %v2285 = vtanh.pop %v2202
  %v2286 = vtanh.pop %v2205
  %v2287 = vtanh.pop %v2207
  %v2288 = vtanh.pop %v2210
  %v2289 = vtanh.pop %v2212
  %v2290 = vtanh.pop %v2215
  %v2291 = vtanh.pop %v2217
  %v2292 = vtanh.pop %v2220
  %v2293 = vtanh.pop %v2222
  %v2294 = vtanh.pop %v2225
  %v2295 = vtanh.pop %v2227
  %v2296 = vtanh.pop %v2230
  %v2297 = vtanh.pop %v2232
  %2298 = vst [vmem:[%s2] sm:$0xff] %v2234
  %2299 = vst [vmem:[%s2 + $0x8] sm:$0xff] %v2235
  %2300 = vst [vmem:[%s2 + $0x10] sm:$0xff] %v2236
  %2301 = vst [vmem:[%s2 + $0x18] sm:$0xff] %v2237
  %2302 = vst [vmem:[%s2 + $0x20] sm:$0xff] %v2238
  %2303 = vst [vmem:[%s2 + $0x28] sm:$0xff] %v2239
  %2304 = vst [vmem:[%s2 + $0x30] sm:$0xff] %v2240
  %2305 = vst [vmem:[%s2 + $0x38] sm:$0xff] %v2241
  %2306 = vst [vmem:[%s2 + $0x40] sm:$0xff] %v2242
  %2307 = vst [vmem:[%s2 + $0x48] sm:$0xff] %v2243
  %2308 = vst [vmem:[%s2 + $0x50] sm:$0xff] %v2244
  %2309 = vst [vmem:[%s2 + $0x58] sm:$0xff] %v2245
  %2310 = vst [vmem:[%s2 + $0x60] sm:$0xff] %v2246
  %2311 = vst [vmem:[%s2 + $0x68] sm:$0xff] %v2247
  %2312 = vst [vmem:[%s2 + $0x70] sm:$0xff] %v2248
  %2313 = vst [vmem:[%s2 + $0x78] sm:$0xff] %v2249
  %2314 = vst [vmem:[%s2 + $0x80] sm:$0xff] %v2250
  %2315 = vst [vmem:[%s2 + $0x88] sm:$0xff] %v2251
  %2316 = vst [vmem:[%s2 + $0x90] sm:$0xff] %v2252
  %2317 = vst [vmem:[%s2 + $0x98] sm:$0xff] %v2253
  %2318 = vst [vmem:[%s2 + $0xa0] sm:$0xff] %v2254
  %2319 = vst [vmem:[%s2 + $0xa8] sm:$0xff] %v2255
  %2320 = vst [vmem:[%s2 + $0xb0] sm:$0xff] %v2256
  %2321 = vst [vmem:[%s2 + $0xb8] sm:$0xff] %v2257
  %2322 = vst [vmem:[%s2 + $0xc0] sm:$0xff] %v2258
  %2323 = vst [vmem:[%s2 + $0xc8] sm:$0xff] %v2259
  %2324 = vst [vmem:[%s2 + $0xd0] sm:$0xff] %v2260
  %2325 = vst [vmem:[%s2 + $0xd8] sm:$0xff] %v2261
  %2326 = vst [vmem:[%s2 + $0xe0] sm:$0xff] %v2262
  %2327 = vst [vmem:[%s2 + $0xe8] sm:$0xff] %v2263
  %2328 = vst [vmem:[%s2 + $0xf0] sm:$0xff] %v2264
  %2329 = vst [vmem:[%s2 + $0xf8] sm:$0xff] %v2265
  %2330 = vst [vmem:[%s2 + $0x100] sm:$0xff] %v2266
  %2331 = vst [vmem:[%s2 + $0x108] sm:$0xff] %v2267
  %2332 = vst [vmem:[%s2 + $0x110] sm:$0xff] %v2268
  %2333 = vst [vmem:[%s2 + $0x118] sm:$0xff] %v2269
  %2334 = vst [vmem:[%s2 + $0x120] sm:$0xff] %v2270
  %2335 = vst [vmem:[%s2 + $0x128] sm:$0xff] %v2271
  %2336 = vst [vmem:[%s2 + $0x130] sm:$0xff] %v2272
  %2337 = vst [vmem:[%s2 + $0x138] sm:$0xff] %v2273
  %2338 = vst [vmem:[%s2 + $0x140] sm:$0xff] %v2274
  %2339 = vst [vmem:[%s2 + $0x148] sm:$0xff] %v2275
  %2340 = vst [vmem:[%s2 + $0x150] sm:$0xff] %v2276
  %2341 = vst [vmem:[%s2 + $0x158] sm:$0xff] %v2277
  %2342 = vst [vmem:[%s2 + $0x160] sm:$0xff] %v2278
  %2343 = vst [vmem:[%s2 + $0x168] sm:$0xff] %v2279
  %2344 = vst [vmem:[%s2 + $0x170] sm:$0xff] %v2280
  %2345 = vst [vmem:[%s2 + $0x178] sm:$0xff] %v2281
  %2346 = vst [vmem:[%s2 + $0x180] sm:$0xff] %v2282
  %2347 = vst [vmem:[%s2 + $0x188] sm:$0xff] %v2283
  %2348 = vst [vmem:[%s2 + $0x190] sm:$0xff] %v2284
  %2349 = vst [vmem:[%s2 + $0x198] sm:$0xff] %v2285
  %2350 = vst [vmem:[%s2 + $0x1a0] sm:$0xff] %v2286
  %2351 = vst [vmem:[%s2 + $0x1a8] sm:$0xff] %v2287
  %2352 = vst [vmem:[%s2 + $0x1b0] sm:$0xff] %v2288
  %2353 = vst [vmem:[%s2 + $0x1b8] sm:$0xff] %v2289
  %2354 = vst [vmem:[%s2 + $0x1c0] sm:$0xff] %v2290
  %2355 = vst [vmem:[%s2 + $0x1c8] sm:$0xff] %v2291
  %2356 = vst [vmem:[%s2 + $0x1d0] sm:$0xff] %v2292
  %2357 = vst [vmem:[%s2 + $0x1d8] sm:$0xff] %v2293
  %2358 = vst [vmem:[%s2 + $0x1e0] sm:$0xff] %v2294
  %2359 = vst [vmem:[%s2 + $0x1e8] sm:$0xff] %v2295
  %2360 = vst [vmem:[%s2 + $0x1f0] sm:$0xff] %v2296
  %2361 = vst [vmem:[%s2 + $0x1f8] sm:$0xff] %v2297
  // Predicated region
  $region10: #{generator_forward.7} parent=0 // pred_check
    _
  $region11: #{generator_forward.7} parent=0 // pred_check_branch
    %2363 = sbr.rel (0) target = $region13
  $region12: #{generator_forward.7} parent=0 // pred_region
    _
  $region13: #{generator_forward.7} parent=0 // pred_fallthru
    _
  // Predicated region
  $region14: #{generator_forward.7} parent=0 // pred_check
    _
  $region15: #{generator_forward.7} parent=0 // pred_check_branch
    %2365 = sbr.rel (0) target = $region17
  $region16: #{generator_forward.7} parent=0 // pred_region
    _
  $region17: #{generator_forward.7} parent=0 // pred_fallthru
    _

</llo_original>
